<compile_context>
chip_gen: v7x
topology: tpu7x:2x2x1
jax: 0.10.0
libtpu: 0.0.40
codegen_flags: <defaults>
</compile_context>

<pallas_src>
import math

import jax
import jax.numpy as jnp
from jax.experimental import pallas as pl
from jax.experimental.pallas import tpu as pltpu

# --- globals the original script defines elsewhere; small/stable choices ---
VOCAB_SIZE = 16
MAX_LEN = 16
PAD_IDX = 0            # char2idx[PAD]
D_MODEL = 64
N_HEADS = 2
N_LAYERS = 2
DIM_FF = 2048          # nn.TransformerEncoderLayer default dim_feedforward
LN_EPS = 1e-5
HEAD_DIM = D_MODEL // N_HEADS
NEG_INF = -1e30        # finite additive mask (avoids inf arithmetic)


def _layernorm(x, g, b):
    mu = jnp.mean(x, axis=-1, keepdims=True)
    xc = x - mu
    var = jnp.mean(xc * xc, axis=-1, keepdims=True)
    return xc * jax.lax.rsqrt(var + LN_EPS) * g + b


def _make_kernel(B, L):
    BL = B * L
    H = N_HEADS

    def kernel(ids_ref, emb_ref, posb_ref, mask_ref, fcb_ref,
               wq_ref, bq_ref, wk_ref, bk_ref, wv_ref, bv_ref,
               wo_ref, bo_ref, ln1g_ref, ln1b_ref,
               w1_ref, b1_ref, w2_ref, b2_ref, ln2g_ref, ln2b_ref,
               o_ref, x_ref):
        layer = pl.program_id(0)
        V, D = emb_ref.shape

        # ---- first grid step: token embedding (one-hot matmul) + positions ----
        @pl.when(layer == 0)
        def _():
            ids = ids_ref[...]                                        # (BL, 1) i32
            vocab_iota = jax.lax.broadcasted_iota(jnp.int32, (BL, V), 1)
            onehot = (ids == vocab_iota).astype(jnp.float32)          # (BL, V)
            tok = jnp.dot(onehot, emb_ref[...],
                          preferred_element_type=jnp.float32)         # (BL, D)
            x_ref[...] = tok + posb_ref[...]

        # ---- one post-norm encoder layer (this layer's weights only) ----
        x = x_ref[...]                                                # (BL, D) f32
        xb = x.astype(jnp.bfloat16)
        addmask = mask_ref[...]                                       # (BL, BL) f32

        attn = jnp.zeros((BL, D), jnp.float32)
        for h in range(H):                                            # static, H=2
            # per-head projections (1/sqrt(Dh) already folded into wq/bq)
            qh = jnp.dot(xb, wq_ref[0, h],
                         preferred_element_type=jnp.float32) + bq_ref[0, h]
            kh = jnp.dot(xb, wk_ref[0, h],
                         preferred_element_type=jnp.float32) + bk_ref[0, h]
            vh = jnp.dot(xb, wv_ref[0, h],
                         preferred_element_type=jnp.float32) + bv_ref[0, h]
            # full (BL, BL) scores; block-diag + causal mask handles batching
            s = jax.lax.dot_general(
                qh, kh, dimension_numbers=(((1,), (1,)), ((), ())),
                preferred_element_type=jnp.float32) + addmask
            m = jnp.max(s, axis=-1, keepdims=True)
            p = jnp.exp(s - m)
            p = p * pl.reciprocal(jnp.sum(p, axis=-1, keepdims=True), approx=True)
            ctx = jnp.dot(p, vh, preferred_element_type=jnp.float32)   # (BL, Dh)
            attn = attn + jnp.dot(ctx.astype(jnp.bfloat16), wo_ref[0, h],
                                  preferred_element_type=jnp.float32)
        attn = attn + bo_ref[0]

        # residual + LayerNorm1 (post-norm)
        x = _layernorm(x + attn, ln1g_ref[0], ln1b_ref[0])

        # FFN: relu(x @ W1 + b1) @ W2 + b2
        hmid = jnp.dot(x.astype(jnp.bfloat16), w1_ref[0],
                       preferred_element_type=jnp.float32) + b1_ref[0]
        hmid = jnp.maximum(hmid, 0.0)
        ffn = jnp.dot(hmid.astype(jnp.bfloat16), w2_ref[0],
                      preferred_element_type=jnp.float32) + b2_ref[0]

        # residual + LayerNorm2
        x = _layernorm(x + ffn, ln2g_ref[0], ln2b_ref[0])
        x_ref[...] = x

        # ---- last grid step: last-token select, tied head, log_softmax ----
        @pl.when(layer == pl.num_programs(0) - 1)
        def _():
            b_iota = jax.lax.broadcasted_iota(jnp.int32, (B, BL), 0)
            c_iota = jax.lax.broadcasted_iota(jnp.int32, (B, BL), 1)
            last_sel = (c_iota == b_iota * L + (L - 1)).astype(jnp.float32)
            x_last = jnp.dot(last_sel, x, preferred_element_type=jnp.float32)
            # logits = x_last @ emb.T + bias (tied head, no materialized transpose)
            logits = jax.lax.dot_general(
                x_last, emb_ref[...],
                dimension_numbers=(((1,), (1,)), ((), ())),
                preferred_element_type=jnp.float32) + fcb_ref[...]
            mm = jnp.max(logits, axis=-1, keepdims=True)
            z = logits - mm
            lse = jnp.log(jnp.sum(jnp.exp(z), axis=-1, keepdims=True))
            o_ref[...] = (z - lse).astype(o_ref.dtype)

    return kernel


def init_params(key):
    ks = jax.random.split(key, 2 + N_LAYERS)
    scale = 0.02
    D, H, Dh = D_MODEL, N_HEADS, HEAD_DIM
    inv_sqrt_dh = 1.0 / math.sqrt(Dh)

    emb = scale * jax.random.normal(ks[0], (VOCAB_SIZE, D), jnp.float32)
    emb = emb.at[PAD_IDX].set(0.0)                     # padding_idx row zero at init
    pos = scale * jax.random.normal(ks[1], (MAX_LEN + 1, D), jnp.float32)
    fc_bias = jnp.zeros((1, VOCAB_SIZE), jnp.float32)

    wq, bq, wk, bk, wv, bv = [], [], [], [], [], []
    wo, bo, w1, b1, w2, b2 = [], [], [], [], [], []
    ln1g, ln1b, ln2g, ln2b = [], [], [], []

    for i in range(N_LAYERS):
        lk = jax.random.split(ks[2 + i], 8)
        in_proj_w = scale * jax.random.normal(lk[0], (3 * D, D), jnp.float32)
        in_proj_b = scale * jax.random.normal(lk[1], (3 * D,), jnp.float32)
        out_proj_w = scale * jax.random.normal(lk[2], (D, D), jnp.float32)
        out_proj_b = scale * jax.random.normal(lk[3], (D,), jnp.float32)
        lin1_w = scale * jax.random.normal(lk[4], (DIM_FF, D), jnp.float32)
        lin1_b = scale * jax.random.normal(lk[5], (DIM_FF,), jnp.float32)
        lin2_w = scale * jax.random.normal(lk[6], (D, DIM_FF), jnp.float32)
        lin2_b = scale * jax.random.normal(lk[7], (D,), jnp.float32)

        # split packed [q|k|v]; fold 1/sqrt(Dh) attention scale into Q
        q_w = in_proj_w[0:D] * inv_sqrt_dh
        q_b = in_proj_b[0:D] * inv_sqrt_dh
        k_w = in_proj_w[D:2 * D]
        k_b = in_proj_b[D:2 * D]
        v_w = in_proj_w[2 * D:3 * D]
        v_b = in_proj_b[2 * D:3 * D]

        def heads_w(w_full):   # (D_out, D_in) -> (H, D_in, Dh)  (pre-transposed)
            return jnp.stack([w_full[h * Dh:(h + 1) * Dh].T for h in range(H)])

        def heads_b(b_full):   # (D,) -> (H, 1, Dh)
            return jnp.stack([b_full[h * Dh:(h + 1) * Dh][None, :] for h in range(H)])

        wq.append(heads_w(q_w).astype(jnp.bfloat16))
        bq.append(heads_b(q_b))
        wk.append(heads_w(k_w).astype(jnp.bfloat16))
        bk.append(heads_b(k_b))
        wv.append(heads_w(v_w).astype(jnp.bfloat16))
        bv.append(heads_b(v_b))
        # out_proj: per-head rows of out_proj_w.T == columns of out_proj_w
        wo.append(jnp.stack([out_proj_w[:, h * Dh:(h + 1) * Dh].T
                             for h in range(H)]).astype(jnp.bfloat16))   # (H, Dh, D)
        bo.append(out_proj_b[None, :])
        w1.append(lin1_w.T.astype(jnp.bfloat16))        # (D, FF)
        b1.append(lin1_b[None, :])
        w2.append(lin2_w.T.astype(jnp.bfloat16))        # (FF, D)
        b2.append(lin2_b[None, :])
        ln1g.append(jnp.ones((1, D), jnp.float32))
        ln1b.append(jnp.zeros((1, D), jnp.float32))
        ln2g.append(jnp.ones((1, D), jnp.float32))
        ln2b.append(jnp.zeros((1, D), jnp.float32))

    stk = lambda xs: jnp.stack(xs, axis=0)
    return dict(emb=emb, pos=pos, fc_bias=fc_bias,
                wq=stk(wq), bq=stk(bq), wk=stk(wk), bk=stk(bk),
                wv=stk(wv), bv=stk(bv), wo=stk(wo), bo=stk(bo),
                ln1_g=stk(ln1g), ln1_b=stk(ln1b),
                w1=stk(w1), b1=stk(b1), w2=stk(w2), b2=stk(b2),
                ln2_g=stk(ln2g), ln2_b=stk(ln2b))


@jax.jit
def flownet_forward(prefix, params):
    B, L = prefix.shape
    BL = B * L
    D, V = D_MODEL, VOCAB_SIZE

    ids = prefix.reshape(BL, 1).astype(jnp.int32)
    # Precompute (plain XLA, outside the kernel) the per-token positional rows
    # and the block-diagonal causal additive mask; both DMA'd once per call.
    pos_b = jnp.tile(params["pos"][:L], (B, 1))                          # (BL, D)
    r = jnp.arange(BL)
    same_seq = (r[:, None] // L) == (r[None, :] // L)
    causal = r[None, :] <= r[:, None]
    addmask = jnp.where(same_seq & causal, 0.0, NEG_INF).astype(jnp.float32)

    kern = _make_kernel(B, L)

    const2 = lambda i: (0, 0)
    lyr3 = lambda i: (i, 0, 0)
    lyr4 = lambda i: (i, 0, 0, 0)

    in_specs = [
        pl.BlockSpec((BL, 1), const2),                        # ids
        pl.BlockSpec((V, D), const2),                         # emb (tied head)
        pl.BlockSpec((BL, D), const2),                        # positional rows
        pl.BlockSpec((BL, BL), const2),                       # additive mask
        pl.BlockSpec((1, V), const2),                         # fc bias
        pl.BlockSpec((1, N_HEADS, D, HEAD_DIM), lyr4),        # wq
        pl.BlockSpec((1, N_HEADS, 1, HEAD_DIM), lyr4),        # bq
        pl.BlockSpec((1, N_HEADS, D, HEAD_DIM), lyr4),        # wk
        pl.BlockSpec((1, N_HEADS, 1, HEAD_DIM), lyr4),        # bk
        pl.BlockSpec((1, N_HEADS, D, HEAD_DIM), lyr4),        # wv
        pl.BlockSpec((1, N_HEADS, 1, HEAD_DIM), lyr4),        # bv
        pl.BlockSpec((1, N_HEADS, HEAD_DIM, D), lyr4),        # wo
        pl.BlockSpec((1, 1, D), lyr3),                        # bo
        pl.BlockSpec((1, 1, D), lyr3),                        # ln1 gamma
        pl.BlockSpec((1, 1, D), lyr3),                        # ln1 beta
        pl.BlockSpec((1, D, DIM_FF), lyr3),                   # w1
        pl.BlockSpec((1, 1, DIM_FF), lyr3),                   # b1
        pl.BlockSpec((1, DIM_FF, D), lyr3),                   # w2
        pl.BlockSpec((1, 1, D), lyr3),                        # b2
        pl.BlockSpec((1, 1, D), lyr3),                        # ln2 gamma
        pl.BlockSpec((1, 1, D), lyr3),                        # ln2 beta
    ]

    grid_spec = pltpu.PrefetchScalarGridSpec(
        num_scalar_prefetch=0,
        grid=(N_LAYERS,),
        in_specs=in_specs,
        out_specs=pl.BlockSpec((B, V), const2),
        scratch_shapes=[pltpu.VMEM((BL, D), jnp.float32)],    # resident activation
    )

    return pl.pallas_call(
        kern,
        out_shape=jax.ShapeDtypeStruct((B, V), jnp.float32),
        grid_spec=grid_spec,
        compiler_params=pltpu.CompilerParams(
            dimension_semantics=("arbitrary",)),
    )(ids, params["emb"], pos_b, addmask, params["fc_bias"],
      params["wq"], params["bq"], params["wk"], params["bk"],
      params["wv"], params["bv"], params["wo"], params["bo"],
      params["ln1_g"], params["ln1_b"], params["w1"], params["b1"],
      params["w2"], params["b2"], params["ln2_g"], params["ln2_b"])


def flownet_reference(prefix, params):
    """Pure-JAX forward with the same precision choices (bf16 weights, f32 accum)."""
    B, L = prefix.shape
    BL, D, H = B * L, D_MODEL, N_HEADS
    ids = prefix.reshape(BL)
    x = params["emb"][ids] + jnp.tile(params["pos"][:L], (B, 1))
    r = jnp.arange(BL)
    ok = ((r[:, None] // L) == (r[None, :] // L)) & (r[None, :] <= r[:, None])
    addmask = jnp.where(ok, 0.0, NEG_INF).astype(jnp.float32)
    for i in range(N_LAYERS):
        xb = x.astype(jnp.bfloat16)
        attn = jnp.zeros((BL, D), jnp.float32)
        for h in range(H):
            qh = jnp.dot(xb, params["wq"][i, h],
                         preferred_element_type=jnp.float32) + params["bq"][i, h]
            kh = jnp.dot(xb, params["wk"][i, h],
                         preferred_element_type=jnp.float32) + params["bk"][i, h]
            vh = jnp.dot(xb, params["wv"][i, h],
                         preferred_element_type=jnp.float32) + params["bv"][i, h]
            s = qh @ kh.T + addmask
            p = jax.nn.softmax(s, axis=-1)
            attn = attn + jnp.dot((p @ vh).astype(jnp.bfloat16), params["wo"][i, h],
                                  preferred_element_type=jnp.float32)
        attn = attn + params["bo"][i]
        x = _layernorm(x + attn, params["ln1_g"][i], params["ln1_b"][i])
        hmid = jnp.maximum(
            jnp.dot(x.astype(jnp.bfloat16), params["w1"][i],
                    preferred_element_type=jnp.float32) + params["b1"][i], 0.0)
        ffn = jnp.dot(hmid.astype(jnp.bfloat16), params["w2"][i],
                      preferred_element_type=jnp.float32) + params["b2"][i]
        x = _layernorm(x + ffn, params["ln2_g"][i], params["ln2_b"][i])
    x_last = x.reshape(B, L, D)[:, -1, :]
    logits = x_last @ params["emb"].T + params["fc_bias"]
    return jax.nn.log_softmax(logits, axis=-1)


if __name__ == "__main__":
    key = jax.random.PRNGKey(0)
    pkey, dkey = jax.random.split(key)
    params = init_params(pkey)

    # BL = 128 rows per call: amortizes the per-call weight DMA and fills the
    # MXU M dimension (per the perf review), while staying a small example.
    B, L = 16, 8
    prefix = jax.random.randint(dkey, (B, L), 1, VOCAB_SIZE, dtype=jnp.int32)

    logp = flownet_forward(prefix, params)
    jax.block_until_ready(logp)

    assert logp.shape == (B, VOCAB_SIZE)
    assert bool(jnp.all(jnp.isfinite(logp)))
    # log_softmax rows must exponentiate to probability simplexes
    assert bool(jnp.allclose(jnp.sum(jnp.exp(logp), axis=-1), 1.0, atol=1e-4))

    # pure-JAX reference check (same bf16 weights / f32 accumulation)
    ref = flownet_reference(prefix, params)
    assert bool(jnp.allclose(logp, ref, atol=1e-2)), \
        f"max abs diff {float(jnp.max(jnp.abs(logp - ref)))}"

    print("KERNEL_OK")
</pallas_src>

<mosaic_0001>
module attributes {stable_mosaic.version = 11 : i64} {
  func.func @kernel(%arg0: i32, %arg1: memref<128x1xi32, #tpu.memory_space<vmem>>, %arg2: memref<16x64xf32, #tpu.memory_space<vmem>>, %arg3: memref<128x64xf32, #tpu.memory_space<vmem>>, %arg4: memref<128x128xf32, #tpu.memory_space<vmem>>, %arg5: memref<1x16xf32, #tpu.memory_space<vmem>>, %arg6: memref<1x2x64x32xbf16, #tpu.memory_space<vmem>>, %arg7: memref<1x2x1x32xf32, #tpu.memory_space<vmem>>, %arg8: memref<1x2x64x32xbf16, #tpu.memory_space<vmem>>, %arg9: memref<1x2x1x32xf32, #tpu.memory_space<vmem>>, %arg10: memref<1x2x64x32xbf16, #tpu.memory_space<vmem>>, %arg11: memref<1x2x1x32xf32, #tpu.memory_space<vmem>>, %arg12: memref<1x2x32x64xbf16, #tpu.memory_space<vmem>>, %arg13: memref<1x1x64xf32, #tpu.memory_space<vmem>>, %arg14: memref<1x1x64xf32, #tpu.memory_space<vmem>>, %arg15: memref<1x1x64xf32, #tpu.memory_space<vmem>>, %arg16: memref<1x64x2048xbf16, #tpu.memory_space<vmem>>, %arg17: memref<1x1x2048xf32, #tpu.memory_space<vmem>>, %arg18: memref<1x2048x64xbf16, #tpu.memory_space<vmem>>, %arg19: memref<1x1x64xf32, #tpu.memory_space<vmem>>, %arg20: memref<1x1x64xf32, #tpu.memory_space<vmem>>, %arg21: memref<1x1x64xf32, #tpu.memory_space<vmem>>, %arg22: memref<16x16xf32, #tpu.memory_space<vmem>>, %arg23: memref<128x64xf32, #tpu.memory_space<vmem>>) attributes {dimension_semantics = [#tpu.dimension_semantics<arbitrary>], iteration_bounds = array<i64: 2>, scalar_prefetch = 0 : i64, scratch_operands = 1 : i64, tpu.core_type = #tpu.core_type<tc>, window_params = [{pipeline_mode = #tpu.pipeline_mode<synchronous>, transform_indices = @transform_0, window_bounds = array<i64: 128, 1>}, {pipeline_mode = #tpu.pipeline_mode<synchronous>, transform_indices = @transform_1, window_bounds = array<i64: 16, 64>}, {pipeline_mode = #tpu.pipeline_mode<synchronous>, transform_indices = @transform_2, window_bounds = array<i64: 128, 64>}, {pipeline_mode = #tpu.pipeline_mode<synchronous>, transform_indices = @transform_3, window_bounds = array<i64: 128, 128>}, {pipeline_mode = #tpu.pipeline_mode<synchronous>, transform_indices = @transform_4, window_bounds = array<i64: 1, 16>}, {transform_indices = @transform_5, window_bounds = array<i64: 1, 2, 64, 32>}, {transform_indices = @transform_6, window_bounds = array<i64: 1, 2, 1, 32>}, {transform_indices = @transform_7, window_bounds = array<i64: 1, 2, 64, 32>}, {transform_indices = @transform_8, window_bounds = array<i64: 1, 2, 1, 32>}, {transform_indices = @transform_9, window_bounds = array<i64: 1, 2, 64, 32>}, {transform_indices = @transform_10, window_bounds = array<i64: 1, 2, 1, 32>}, {transform_indices = @transform_11, window_bounds = array<i64: 1, 2, 32, 64>}, {transform_indices = @transform_12, window_bounds = array<i64: 1, 1, 64>}, {transform_indices = @transform_13, window_bounds = array<i64: 1, 1, 64>}, {transform_indices = @transform_14, window_bounds = array<i64: 1, 1, 64>}, {transform_indices = @transform_15, window_bounds = array<i64: 1, 64, 2048>}, {transform_indices = @transform_16, window_bounds = array<i64: 1, 1, 2048>}, {transform_indices = @transform_17, window_bounds = array<i64: 1, 2048, 64>}, {transform_indices = @transform_18, window_bounds = array<i64: 1, 1, 64>}, {transform_indices = @transform_19, window_bounds = array<i64: 1, 1, 64>}, {transform_indices = @transform_20, window_bounds = array<i64: 1, 1, 64>}, {pipeline_mode = #tpu.pipeline_mode<synchronous>, transform_indices = @transform_21, window_bounds = array<i64: 16, 16>}]} {
    %c0_i32 = arith.constant 0 : i32
    %0 = arith.cmpi eq, %arg0, %c0_i32 : i32
    %1 = arith.extui %0 : i1 to i32
    %c0_i32_0 = arith.constant 0 : i32
    %2 = arith.cmpi ne, %1, %c0_i32_0 : i32
    scf.if %2 {
      %c0_118 = arith.constant 0 : index
      %c0_119 = arith.constant 0 : index
      %161 = vector.load %arg1[%c0_118, %c0_119] : memref<128x1xi32, #tpu.memory_space<vmem>>, vector<128x1xi32>
      %162 = tpu.iota {dimensions = array<i32: 1>} : vector<128x16xi32>
      %163 = vector.broadcast %161 : vector<128x1xi32> to vector<128x16xi32>
      %164 = arith.cmpi eq, %163, %162 : vector<128x16xi32>
      %165 = arith.extui %164 : vector<128x16xi1> to vector<128x16xi32>
      %166 = arith.sitofp %165 : vector<128x16xi32> to vector<128x16xf32>
      %c0_120 = arith.constant 0 : index
      %c0_121 = arith.constant 0 : index
      %167 = vector.load %arg2[%c0_120, %c0_121] : memref<16x64xf32, #tpu.memory_space<vmem>>, vector<16x64xf32>
      %cst_122 = arith.constant dense<0.000000e+00> : vector<128x64xf32>
      %168 = tpu.matmul %166, %167, %cst_122 {dimension_numbers = #tpu.dot_dimension_numbers<[1], [0], [0], [1], [0, 0, 1, 1], [], []>} : vector<128x16xf32>, vector<16x64xf32>, vector<128x64xf32> -> vector<128x64xf32>
      %c0_123 = arith.constant 0 : index
      %c0_124 = arith.constant 0 : index
      %169 = vector.load %arg3[%c0_123, %c0_124] : memref<128x64xf32, #tpu.memory_space<vmem>>, vector<128x64xf32>
      %170 = arith.addf %168, %169 : vector<128x64xf32>
      %c0_125 = arith.constant 0 : index
      %c0_126 = arith.constant 0 : index
      %171 = vector.load %arg23[%c0_125, %c0_126] : memref<128x64xf32, #tpu.memory_space<vmem>>, vector<128x64xf32>
      tpu.vector_store %arg23[%c0_125, %c0_126], %170 {strides = array<i32>} : memref<128x64xf32, #tpu.memory_space<vmem>>, vector<128x64xf32>,
    } else {
    }
    %c0 = arith.constant 0 : index
    %c0_1 = arith.constant 0 : index
    %3 = vector.load %arg23[%c0, %c0_1] : memref<128x64xf32, #tpu.memory_space<vmem>>, vector<128x64xf32>
    %4 = arith.truncf %3 : vector<128x64xf32> to vector<128x64xbf16>
    %c0_2 = arith.constant 0 : index
    %c0_3 = arith.constant 0 : index
    %5 = vector.load %arg4[%c0_2, %c0_3] : memref<128x128xf32, #tpu.memory_space<vmem>>, vector<128x128xf32>
    %cst = arith.constant 0.000000e+00 : f32
    %6 = vector.broadcast %cst : f32 to vector<128x64xf32>
    %c0_4 = arith.constant 0 : index
    %c0_5 = arith.constant 0 : index
    %c0_6 = arith.constant 0 : index
    %c0_7 = arith.constant 0 : index
    %7 = vector.load %arg6[%c0_4, %c0_5, %c0_6, %c0_7] : memref<1x2x64x32xbf16, #tpu.memory_space<vmem>>, vector<1x1x64x32xbf16>
    %8 = vector.shape_cast %7 : vector<1x1x64x32xbf16> to vector<64x32xbf16>
    %cst_8 = arith.constant dense<0.000000e+00> : vector<128x32xf32>
    %9 = tpu.matmul %4, %8, %cst_8 {dimension_numbers = #tpu.dot_dimension_numbers<[1], [0], [0], [1], [0, 0, 1, 1], [], []>} : vector<128x64xbf16>, vector<64x32xbf16>, vector<128x32xf32> -> vector<128x32xf32>
    %c0_9 = arith.constant 0 : index
    %c0_10 = arith.constant 0 : index
    %c0_11 = arith.constant 0 : index
    %c0_12 = arith.constant 0 : index
    %10 = vector.load %arg7[%c0_9, %c0_10, %c0_11, %c0_12] : memref<1x2x1x32xf32, #tpu.memory_space<vmem>>, vector<1x1x1x32xf32>
    %11 = vector.shape_cast %10 : vector<1x1x1x32xf32> to vector<1x32xf32>
    %12 = vector.broadcast %11 : vector<1x32xf32> to vector<128x32xf32>
    %13 = arith.addf %9, %12 : vector<128x32xf32>
    %c0_13 = arith.constant 0 : index
    %c0_14 = arith.constant 0 : index
    %c0_15 = arith.constant 0 : index
    %c0_16 = arith.constant 0 : index
    %14 = vector.load %arg8[%c0_13, %c0_14, %c0_15, %c0_16] : memref<1x2x64x32xbf16, #tpu.memory_space<vmem>>, vector<1x1x64x32xbf16>
    %15 = vector.shape_cast %14 : vector<1x1x64x32xbf16> to vector<64x32xbf16>
    %cst_17 = arith.constant dense<0.000000e+00> : vector<128x32xf32>
    %16 = tpu.matmul %4, %15, %cst_17 {dimension_numbers = #tpu.dot_dimension_numbers<[1], [0], [0], [1], [0, 0, 1, 1], [], []>} : vector<128x64xbf16>, vector<64x32xbf16>, vector<128x32xf32> -> vector<128x32xf32>
    %c0_18 = arith.constant 0 : index
    %c0_19 = arith.constant 0 : index
    %c0_20 = arith.constant 0 : index
    %c0_21 = arith.constant 0 : index
    %17 = vector.load %arg9[%c0_18, %c0_19, %c0_20, %c0_21] : memref<1x2x1x32xf32, #tpu.memory_space<vmem>>, vector<1x1x1x32xf32>
    %18 = vector.shape_cast %17 : vector<1x1x1x32xf32> to vector<1x32xf32>
    %19 = vector.broadcast %18 : vector<1x32xf32> to vector<128x32xf32>
    %20 = arith.addf %16, %19 : vector<128x32xf32>
    %c0_22 = arith.constant 0 : index
    %c0_23 = arith.constant 0 : index
    %c0_24 = arith.constant 0 : index
    %c0_25 = arith.constant 0 : index
    %21 = vector.load %arg10[%c0_22, %c0_23, %c0_24, %c0_25] : memref<1x2x64x32xbf16, #tpu.memory_space<vmem>>, vector<1x1x64x32xbf16>
    %22 = vector.shape_cast %21 : vector<1x1x64x32xbf16> to vector<64x32xbf16>
    %cst_26 = arith.constant dense<0.000000e+00> : vector<128x32xf32>
    %23 = tpu.matmul %4, %22, %cst_26 {dimension_numbers = #tpu.dot_dimension_numbers<[1], [0], [0], [1], [0, 0, 1, 1], [], []>} : vector<128x64xbf16>, vector<64x32xbf16>, vector<128x32xf32> -> vector<128x32xf32>
    %c0_27 = arith.constant 0 : index
    %c0_28 = arith.constant 0 : index
    %c0_29 = arith.constant 0 : index
    %c0_30 = arith.constant 0 : index
    %24 = vector.load %arg11[%c0_27, %c0_28, %c0_29, %c0_30] : memref<1x2x1x32xf32, #tpu.memory_space<vmem>>, vector<1x1x1x32xf32>
    %25 = vector.shape_cast %24 : vector<1x1x1x32xf32> to vector<1x32xf32>
    %26 = vector.broadcast %25 : vector<1x32xf32> to vector<128x32xf32>
    %27 = arith.addf %23, %26 : vector<128x32xf32>
    %cst_31 = arith.constant dense<0.000000e+00> : vector<128x128xf32>
    %28 = tpu.matmul %13, %20, %cst_31 {dimension_numbers = #tpu.dot_dimension_numbers<[1], [1], [0], [0], [0, 0, 1, 0], [], []>} : vector<128x32xf32>, vector<128x32xf32>, vector<128x128xf32> -> vector<128x128xf32>
    %29 = arith.addf %28, %5 : vector<128x128xf32>
    %cst_32 = arith.constant dense<0xFF800000> : vector<128xf32>
    %30 = vector.multi_reduction <maximumf>, %29, %cst_32 [1] : vector<128x128xf32> to vector<128xf32>
    %31 = vector.shape_cast %30 : vector<128xf32> to vector<128x1xf32>
    %32 = vector.broadcast %31 : vector<128x1xf32> to vector<128x128xf32>
    %33 = arith.subf %29, %32 : vector<128x128xf32>
    %34 = math.exp %33 : vector<128x128xf32>
    %cst_33 = arith.constant dense<0.000000e+00> : vector<128xf32>
    %35 = vector.multi_reduction <add>, %34, %cst_33 [1] : vector<128x128xf32> to vector<128xf32>
    %36 = vector.shape_cast %35 : vector<128xf32> to vector<128x1xf32>
    %37 = tpu.reciprocal %36 {approx = true} : vector<128x1xf32> -> vector<128x1xf32>
    %38 = vector.broadcast %37 : vector<128x1xf32> to vector<128x128xf32>
    %39 = arith.mulf %34, %38 : vector<128x128xf32>
    %cst_34 = arith.constant dense<0.000000e+00> : vector<128x32xf32>
    %40 = tpu.matmul %39, %27, %cst_34 {dimension_numbers = #tpu.dot_dimension_numbers<[1], [0], [0], [1], [0, 0, 1, 1], [], []>} : vector<128x128xf32>, vector<128x32xf32>, vector<128x32xf32> -> vector<128x32xf32>
    %41 = arith.truncf %40 : vector<128x32xf32> to vector<128x32xbf16>
    %c0_35 = arith.constant 0 : index
    %c0_36 = arith.constant 0 : index
    %c0_37 = arith.constant 0 : index
    %c0_38 = arith.constant 0 : index
    %42 = vector.load %arg12[%c0_35, %c0_36, %c0_37, %c0_38] : memref<1x2x32x64xbf16, #tpu.memory_space<vmem>>, vector<1x1x32x64xbf16>
    %43 = vector.shape_cast %42 : vector<1x1x32x64xbf16> to vector<32x64xbf16>
    %cst_39 = arith.constant dense<0.000000e+00> : vector<128x64xf32>
    %44 = tpu.matmul %41, %43, %cst_39 {dimension_numbers = #tpu.dot_dimension_numbers<[1], [0], [0], [1], [0, 0, 1, 1], [], []>} : vector<128x32xbf16>, vector<32x64xbf16>, vector<128x64xf32> -> vector<128x64xf32>
    %45 = arith.addf %6, %44 : vector<128x64xf32>
    %c0_40 = arith.constant 0 : index
    %c1 = arith.constant 1 : index
    %c0_41 = arith.constant 0 : index
    %c0_42 = arith.constant 0 : index
    %46 = vector.load %arg6[%c0_40, %c1, %c0_41, %c0_42] : memref<1x2x64x32xbf16, #tpu.memory_space<vmem>>, vector<1x1x64x32xbf16>
    %47 = vector.shape_cast %46 : vector<1x1x64x32xbf16> to vector<64x32xbf16>
    %cst_43 = arith.constant dense<0.000000e+00> : vector<128x32xf32>
    %48 = tpu.matmul %4, %47, %cst_43 {dimension_numbers = #tpu.dot_dimension_numbers<[1], [0], [0], [1], [0, 0, 1, 1], [], []>} : vector<128x64xbf16>, vector<64x32xbf16>, vector<128x32xf32> -> vector<128x32xf32>
    %c0_44 = arith.constant 0 : index
    %c1_45 = arith.constant 1 : index
    %c0_46 = arith.constant 0 : index
    %c0_47 = arith.constant 0 : index
    %49 = vector.load %arg7[%c0_44, %c1_45, %c0_46, %c0_47] : memref<1x2x1x32xf32, #tpu.memory_space<vmem>>, vector<1x1x1x32xf32>
    %50 = vector.shape_cast %49 : vector<1x1x1x32xf32> to vector<1x32xf32>
    %51 = vector.broadcast %50 : vector<1x32xf32> to vector<128x32xf32>
    %52 = arith.addf %48, %51 : vector<128x32xf32>
    %c0_48 = arith.constant 0 : index
    %c1_49 = arith.constant 1 : index
    %c0_50 = arith.constant 0 : index
    %c0_51 = arith.constant 0 : index
    %53 = vector.load %arg8[%c0_48, %c1_49, %c0_50, %c0_51] : memref<1x2x64x32xbf16, #tpu.memory_space<vmem>>, vector<1x1x64x32xbf16>
    %54 = vector.shape_cast %53 : vector<1x1x64x32xbf16> to vector<64x32xbf16>
    %cst_52 = arith.constant dense<0.000000e+00> : vector<128x32xf32>
    %55 = tpu.matmul %4, %54, %cst_52 {dimension_numbers = #tpu.dot_dimension_numbers<[1], [0], [0], [1], [0, 0, 1, 1], [], []>} : vector<128x64xbf16>, vector<64x32xbf16>, vector<128x32xf32> -> vector<128x32xf32>
    %c0_53 = arith.constant 0 : index
    %c1_54 = arith.constant 1 : index
    %c0_55 = arith.constant 0 : index
    %c0_56 = arith.constant 0 : index
    %56 = vector.load %arg9[%c0_53, %c1_54, %c0_55, %c0_56] : memref<1x2x1x32xf32, #tpu.memory_space<vmem>>, vector<1x1x1x32xf32>
    %57 = vector.shape_cast %56 : vector<1x1x1x32xf32> to vector<1x32xf32>
    %58 = vector.broadcast %57 : vector<1x32xf32> to vector<128x32xf32>
    %59 = arith.addf %55, %58 : vector<128x32xf32>
    %c0_57 = arith.constant 0 : index
    %c1_58 = arith.constant 1 : index
    %c0_59 = arith.constant 0 : index
    %c0_60 = arith.constant 0 : index
    %60 = vector.load %arg10[%c0_57, %c1_58, %c0_59, %c0_60] : memref<1x2x64x32xbf16, #tpu.memory_space<vmem>>, vector<1x1x64x32xbf16>
    %61 = vector.shape_cast %60 : vector<1x1x64x32xbf16> to vector<64x32xbf16>
    %cst_61 = arith.constant dense<0.000000e+00> : vector<128x32xf32>
    %62 = tpu.matmul %4, %61, %cst_61 {dimension_numbers = #tpu.dot_dimension_numbers<[1], [0], [0], [1], [0, 0, 1, 1], [], []>} : vector<128x64xbf16>, vector<64x32xbf16>, vector<128x32xf32> -> vector<128x32xf32>
    %c0_62 = arith.constant 0 : index
    %c1_63 = arith.constant 1 : index
    %c0_64 = arith.constant 0 : index
    %c0_65 = arith.constant 0 : index
    %63 = vector.load %arg11[%c0_62, %c1_63, %c0_64, %c0_65] : memref<1x2x1x32xf32, #tpu.memory_space<vmem>>, vector<1x1x1x32xf32>
    %64 = vector.shape_cast %63 : vector<1x1x1x32xf32> to vector<1x32xf32>
    %65 = vector.broadcast %64 : vector<1x32xf32> to vector<128x32xf32>
    %66 = arith.addf %62, %65 : vector<128x32xf32>
    %cst_66 = arith.constant dense<0.000000e+00> : vector<128x128xf32>
    %67 = tpu.matmul %52, %59, %cst_66 {dimension_numbers = #tpu.dot_dimension_numbers<[1], [1], [0], [0], [0, 0, 1, 0], [], []>} : vector<128x32xf32>, vector<128x32xf32>, vector<128x128xf32> -> vector<128x128xf32>
    %68 = arith.addf %67, %5 : vector<128x128xf32>
    %cst_67 = arith.constant dense<0xFF800000> : vector<128xf32>
    %69 = vector.multi_reduction <maximumf>, %68, %cst_67 [1] : vector<128x128xf32> to vector<128xf32>
    %70 = vector.shape_cast %69 : vector<128xf32> to vector<128x1xf32>
    %71 = vector.broadcast %70 : vector<128x1xf32> to vector<128x128xf32>
    %72 = arith.subf %68, %71 : vector<128x128xf32>
    %73 = math.exp %72 : vector<128x128xf32>
    %cst_68 = arith.constant dense<0.000000e+00> : vector<128xf32>
    %74 = vector.multi_reduction <add>, %73, %cst_68 [1] : vector<128x128xf32> to vector<128xf32>
    %75 = vector.shape_cast %74 : vector<128xf32> to vector<128x1xf32>
    %76 = tpu.reciprocal %75 {approx = true} : vector<128x1xf32> -> vector<128x1xf32>
    %77 = vector.broadcast %76 : vector<128x1xf32> to vector<128x128xf32>
    %78 = arith.mulf %73, %77 : vector<128x128xf32>
    %cst_69 = arith.constant dense<0.000000e+00> : vector<128x32xf32>
    %79 = tpu.matmul %78, %66, %cst_69 {dimension_numbers = #tpu.dot_dimension_numbers<[1], [0], [0], [1], [0, 0, 1, 1], [], []>} : vector<128x128xf32>, vector<128x32xf32>, vector<128x32xf32> -> vector<128x32xf32>
    %80 = arith.truncf %79 : vector<128x32xf32> to vector<128x32xbf16>
    %c0_70 = arith.constant 0 : index
    %c1_71 = arith.constant 1 : index
    %c0_72 = arith.constant 0 : index
    %c0_73 = arith.constant 0 : index
    %81 = vector.load %arg12[%c0_70, %c1_71, %c0_72, %c0_73] : memref<1x2x32x64xbf16, #tpu.memory_space<vmem>>, vector<1x1x32x64xbf16>
    %82 = vector.shape_cast %81 : vector<1x1x32x64xbf16> to vector<32x64xbf16>
    %cst_74 = arith.constant dense<0.000000e+00> : vector<128x64xf32>
    %83 = tpu.matmul %80, %82, %cst_74 {dimension_numbers = #tpu.dot_dimension_numbers<[1], [0], [0], [1], [0, 0, 1, 1], [], []>} : vector<128x32xbf16>, vector<32x64xbf16>, vector<128x64xf32> -> vector<128x64xf32>
    %84 = arith.addf %45, %83 : vector<128x64xf32>
    %c0_75 = arith.constant 0 : index
    %c0_76 = arith.constant 0 : index
    %c0_77 = arith.constant 0 : index
    %85 = vector.load %arg13[%c0_75, %c0_76, %c0_77] : memref<1x1x64xf32, #tpu.memory_space<vmem>>, vector<1x1x64xf32>
    %86 = vector.shape_cast %85 : vector<1x1x64xf32> to vector<1x64xf32>
    %87 = vector.broadcast %86 : vector<1x64xf32> to vector<128x64xf32>
    %88 = arith.addf %84, %87 : vector<128x64xf32>
    %89 = arith.addf %3, %88 : vector<128x64xf32>
    %c0_78 = arith.constant 0 : index
    %c0_79 = arith.constant 0 : index
    %c0_80 = arith.constant 0 : index
    %90 = vector.load %arg14[%c0_78, %c0_79, %c0_80] : memref<1x1x64xf32, #tpu.memory_space<vmem>>, vector<1x1x64xf32>
    %91 = vector.shape_cast %90 : vector<1x1x64xf32> to vector<1x64xf32>
    %c0_81 = arith.constant 0 : index
    %c0_82 = arith.constant 0 : index
    %c0_83 = arith.constant 0 : index
    %92 = vector.load %arg15[%c0_81, %c0_82, %c0_83] : memref<1x1x64xf32, #tpu.memory_space<vmem>>, vector<1x1x64xf32>
    %93 = vector.shape_cast %92 : vector<1x1x64xf32> to vector<1x64xf32>
    %cst_84 = arith.constant dense<0.000000e+00> : vector<128xf32>
    %94 = vector.multi_reduction <add>, %89, %cst_84 [1] : vector<128x64xf32> to vector<128xf32>
    %95 = vector.shape_cast %94 : vector<128xf32> to vector<128x1xf32>
    %cst_85 = arith.constant 6.400000e+01 : f32
    %96 = vector.broadcast %cst_85 : f32 to vector<128x1xf32>
    %97 = arith.divf %95, %96 : vector<128x1xf32>
    %98 = vector.broadcast %97 : vector<128x1xf32> to vector<128x64xf32>
    %99 = arith.subf %89, %98 : vector<128x64xf32>
    %100 = arith.mulf %99, %99 : vector<128x64xf32>
    %cst_86 = arith.constant dense<0.000000e+00> : vector<128xf32>
    %101 = vector.multi_reduction <add>, %100, %cst_86 [1] : vector<128x64xf32> to vector<128xf32>
    %102 = vector.shape_cast %101 : vector<128xf32> to vector<128x1xf32>
    %cst_87 = arith.constant 6.400000e+01 : f32
    %103 = vector.broadcast %cst_87 : f32 to vector<128x1xf32>
    %104 = arith.divf %102, %103 : vector<128x1xf32>
    %cst_88 = arith.constant 9.99999974E-6 : f32
    %105 = vector.broadcast %cst_88 : f32 to vector<128x1xf32>
    %106 = arith.addf %104, %105 : vector<128x1xf32>
    %107 = math.rsqrt %106 : vector<128x1xf32>
    %108 = vector.broadcast %107 : vector<128x1xf32> to vector<128x64xf32>
    %109 = arith.mulf %99, %108 : vector<128x64xf32>
    %110 = vector.broadcast %91 : vector<1x64xf32> to vector<128x64xf32>
    %111 = arith.mulf %109, %110 : vector<128x64xf32>
    %112 = vector.broadcast %93 : vector<1x64xf32> to vector<128x64xf32>
    %113 = arith.addf %111, %112 : vector<128x64xf32>
    %114 = arith.truncf %113 : vector<128x64xf32> to vector<128x64xbf16>
    %c0_89 = arith.constant 0 : index
    %c0_90 = arith.constant 0 : index
    %c0_91 = arith.constant 0 : index
    %115 = vector.load %arg16[%c0_89, %c0_90, %c0_91] : memref<1x64x2048xbf16, #tpu.memory_space<vmem>>, vector<1x64x2048xbf16>
    %116 = vector.shape_cast %115 : vector<1x64x2048xbf16> to vector<64x2048xbf16>
    %cst_92 = arith.constant dense<0.000000e+00> : vector<128x2048xf32>
    %117 = tpu.matmul %114, %116, %cst_92 {dimension_numbers = #tpu.dot_dimension_numbers<[1], [0], [0], [1], [0, 0, 1, 1], [], []>} : vector<128x64xbf16>, vector<64x2048xbf16>, vector<128x2048xf32> -> vector<128x2048xf32>
    %c0_93 = arith.constant 0 : index
    %c0_94 = arith.constant 0 : index
    %c0_95 = arith.constant 0 : index
    %118 = vector.load %arg17[%c0_93, %c0_94, %c0_95] : memref<1x1x2048xf32, #tpu.memory_space<vmem>>, vector<1x1x2048xf32>
    %119 = vector.shape_cast %118 : vector<1x1x2048xf32> to vector<1x2048xf32>
    %120 = vector.broadcast %119 : vector<1x2048xf32> to vector<128x2048xf32>
    %121 = arith.addf %117, %120 : vector<128x2048xf32>
    %cst_96 = arith.constant 0.000000e+00 : f32
    %122 = vector.broadcast %cst_96 : f32 to vector<128x2048xf32>
    %123 = arith.maximumf %121, %122 : vector<128x2048xf32>
    %124 = arith.truncf %123 : vector<128x2048xf32> to vector<128x2048xbf16>
    %c0_97 = arith.constant 0 : index
    %c0_98 = arith.constant 0 : index
    %c0_99 = arith.constant 0 : index
    %125 = vector.load %arg18[%c0_97, %c0_98, %c0_99] : memref<1x2048x64xbf16, #tpu.memory_space<vmem>>, vector<1x2048x64xbf16>
    %126 = vector.shape_cast %125 : vector<1x2048x64xbf16> to vector<2048x64xbf16>
    %cst_100 = arith.constant dense<0.000000e+00> : vector<128x64xf32>
    %127 = tpu.matmul %124, %126, %cst_100 {dimension_numbers = #tpu.dot_dimension_numbers<[1], [0], [0], [1], [0, 0, 1, 1], [], []>} : vector<128x2048xbf16>, vector<2048x64xbf16>, vector<128x64xf32> -> vector<128x64xf32>
    %c0_101 = arith.constant 0 : index
    %c0_102 = arith.constant 0 : index
    %c0_103 = arith.constant 0 : index
    %128 = vector.load %arg19[%c0_101, %c0_102, %c0_103] : memref<1x1x64xf32, #tpu.memory_space<vmem>>, vector<1x1x64xf32>
    %129 = vector.shape_cast %128 : vector<1x1x64xf32> to vector<1x64xf32>
    %130 = vector.broadcast %129 : vector<1x64xf32> to vector<128x64xf32>
    %131 = arith.addf %127, %130 : vector<128x64xf32>
    %132 = arith.addf %113, %131 : vector<128x64xf32>
    %c0_104 = arith.constant 0 : index
    %c0_105 = arith.constant 0 : index
    %c0_106 = arith.constant 0 : index
    %133 = vector.load %arg20[%c0_104, %c0_105, %c0_106] : memref<1x1x64xf32, #tpu.memory_space<vmem>>, vector<1x1x64xf32>
    %134 = vector.shape_cast %133 : vector<1x1x64xf32> to vector<1x64xf32>
    %c0_107 = arith.constant 0 : index
    %c0_108 = arith.constant 0 : index
    %c0_109 = arith.constant 0 : index
    %135 = vector.load %arg21[%c0_107, %c0_108, %c0_109] : memref<1x1x64xf32, #tpu.memory_space<vmem>>, vector<1x1x64xf32>
    %136 = vector.shape_cast %135 : vector<1x1x64xf32> to vector<1x64xf32>
    %cst_110 = arith.constant dense<0.000000e+00> : vector<128xf32>
    %137 = vector.multi_reduction <add>, %132, %cst_110 [1] : vector<128x64xf32> to vector<128xf32>
    %138 = vector.shape_cast %137 : vector<128xf32> to vector<128x1xf32>
    %cst_111 = arith.constant 6.400000e+01 : f32
    %139 = vector.broadcast %cst_111 : f32 to vector<128x1xf32>
    %140 = arith.divf %138, %139 : vector<128x1xf32>
    %141 = vector.broadcast %140 : vector<128x1xf32> to vector<128x64xf32>
    %142 = arith.subf %132, %141 : vector<128x64xf32>
    %143 = arith.mulf %142, %142 : vector<128x64xf32>
    %cst_112 = arith.constant dense<0.000000e+00> : vector<128xf32>
    %144 = vector.multi_reduction <add>, %143, %cst_112 [1] : vector<128x64xf32> to vector<128xf32>
    %145 = vector.shape_cast %144 : vector<128xf32> to vector<128x1xf32>
    %cst_113 = arith.constant 6.400000e+01 : f32
    %146 = vector.broadcast %cst_113 : f32 to vector<128x1xf32>
    %147 = arith.divf %145, %146 : vector<128x1xf32>
    %cst_114 = arith.constant 9.99999974E-6 : f32
    %148 = vector.broadcast %cst_114 : f32 to vector<128x1xf32>
    %149 = arith.addf %147, %148 : vector<128x1xf32>
    %150 = math.rsqrt %149 : vector<128x1xf32>
    %151 = vector.broadcast %150 : vector<128x1xf32> to vector<128x64xf32>
    %152 = arith.mulf %142, %151 : vector<128x64xf32>
    %153 = vector.broadcast %134 : vector<1x64xf32> to vector<128x64xf32>
    %154 = arith.mulf %152, %153 : vector<128x64xf32>
    %155 = vector.broadcast %136 : vector<1x64xf32> to vector<128x64xf32>
    %156 = arith.addf %154, %155 : vector<128x64xf32>
    %c0_115 = arith.constant 0 : index
    %c0_116 = arith.constant 0 : index
    %157 = vector.load %arg23[%c0_115, %c0_116] : memref<128x64xf32, #tpu.memory_space<vmem>>, vector<128x64xf32>
    tpu.vector_store %arg23[%c0_115, %c0_116], %156 {strides = array<i32>} : memref<128x64xf32, #tpu.memory_space<vmem>>, vector<128x64xf32>,
    %c1_i32 = arith.constant 1 : i32
    %158 = arith.cmpi eq, %arg0, %c1_i32 : i32
    %159 = arith.extui %158 : i1 to i32
    %c0_i32_117 = arith.constant 0 : i32
    %160 = arith.cmpi ne, %159, %c0_i32_117 : i32
    scf.if %160 {
      %161 = tpu.iota {dimensions = array<i32: 0>} : vector<16x128xi32>
      %162 = tpu.iota {dimensions = array<i32: 1>} : vector<16x128xi32>
      %c8_i32 = arith.constant 8 : i32
      %163 = vector.broadcast %c8_i32 : i32 to vector<16x128xi32>
      %164 = arith.muli %161, %163 : vector<16x128xi32>
      %c7_i32 = arith.constant 7 : i32
      %165 = vector.broadcast %c7_i32 : i32 to vector<16x128xi32>
      %166 = arith.addi %164, %165 : vector<16x128xi32>
      %167 = arith.cmpi eq, %162, %166 : vector<16x128xi32>
      %168 = arith.extui %167 : vector<16x128xi1> to vector<16x128xi32>
      %169 = arith.sitofp %168 : vector<16x128xi32> to vector<16x128xf32>
      %cst_118 = arith.constant dense<0.000000e+00> : vector<16x64xf32>
      %170 = tpu.matmul %169, %156, %cst_118 {dimension_numbers = #tpu.dot_dimension_numbers<[1], [0], [0], [1], [0, 0, 1, 1], [], []>} : vector<16x128xf32>, vector<128x64xf32>, vector<16x64xf32> -> vector<16x64xf32>
      %c0_119 = arith.constant 0 : index
      %c0_120 = arith.constant 0 : index
      %171 = vector.load %arg2[%c0_119, %c0_120] : memref<16x64xf32, #tpu.memory_space<vmem>>, vector<16x64xf32>
      %cst_121 = arith.constant dense<0.000000e+00> : vector<16x16xf32>
      %172 = tpu.matmul %170, %171, %cst_121 {dimension_numbers = #tpu.dot_dimension_numbers<[1], [1], [0], [0], [0, 0, 1, 0], [], []>} : vector<16x64xf32>, vector<16x64xf32>, vector<16x16xf32> -> vector<16x16xf32>
      %c0_122 = arith.constant 0 : index
      %c0_123 = arith.constant 0 : index
      %173 = vector.load %arg5[%c0_122, %c0_123] : memref<1x16xf32, #tpu.memory_space<vmem>>, vector<1x16xf32>
      %174 = vector.broadcast %173 : vector<1x16xf32> to vector<16x16xf32>
      %175 = arith.addf %172, %174 : vector<16x16xf32>
      %cst_124 = arith.constant dense<0xFF800000> : vector<16xf32>
      %176 = vector.multi_reduction <maximumf>, %175, %cst_124 [1] : vector<16x16xf32> to vector<16xf32>
      %177 = vector.shape_cast %176 : vector<16xf32> to vector<16x1xf32>
      %178 = vector.broadcast %177 : vector<16x1xf32> to vector<16x16xf32>
      %179 = arith.subf %175, %178 : vector<16x16xf32>
      %180 = math.exp %179 : vector<16x16xf32>
      %cst_125 = arith.constant dense<0.000000e+00> : vector<16xf32>
      %181 = vector.multi_reduction <add>, %180, %cst_125 [1] : vector<16x16xf32> to vector<16xf32>
      %182 = vector.shape_cast %181 : vector<16xf32> to vector<16x1xf32>
      %183 = math.log %182 : vector<16x1xf32>
      %184 = vector.broadcast %183 : vector<16x1xf32> to vector<16x16xf32>
      %185 = arith.subf %179, %184 : vector<16x16xf32>
      %c0_126 = arith.constant 0 : index
      %c0_127 = arith.constant 0 : index
      %186 = vector.load %arg22[%c0_126, %c0_127] : memref<16x16xf32, #tpu.memory_space<vmem>>, vector<16x16xf32>
      tpu.vector_store %arg22[%c0_126, %c0_127], %185 {strides = array<i32>} : memref<16x16xf32, #tpu.memory_space<vmem>>, vector<16x16xf32>,
    } else {
    }
    return
  }
  func.func @transform_0(%arg0: i32) -> (i32, i32) {
    %c0_i32 = arith.constant 0 : i32
    %c0_i32_0 = arith.constant 0 : i32
    %c0_i32_1 = arith.constant 0 : i32
    return %c0_i32, %c0_i32_0 : i32, i32
  }
  func.func @transform_1(%arg0: i32) -> (i32, i32) {
    %c0_i32 = arith.constant 0 : i32
    %c0_i32_0 = arith.constant 0 : i32
    %c0_i32_1 = arith.constant 0 : i32
    return %c0_i32, %c0_i32_0 : i32, i32
  }
  func.func @transform_2(%arg0: i32) -> (i32, i32) {
    %c0_i32 = arith.constant 0 : i32
    %c0_i32_0 = arith.constant 0 : i32
    %c0_i32_1 = arith.constant 0 : i32
    return %c0_i32, %c0_i32_0 : i32, i32
  }
  func.func @transform_3(%arg0: i32) -> (i32, i32) {
    %c0_i32 = arith.constant 0 : i32
    %c0_i32_0 = arith.constant 0 : i32
    %c0_i32_1 = arith.constant 0 : i32
    return %c0_i32, %c0_i32_0 : i32, i32
  }
  func.func @transform_4(%arg0: i32) -> (i32, i32) {
    %c0_i32 = arith.constant 0 : i32
    %c0_i32_0 = arith.constant 0 : i32
    %c0_i32_1 = arith.constant 0 : i32
    return %c0_i32, %c0_i32_0 : i32, i32
  }
  func.func @transform_5(%arg0: i32) -> (i32, i32, i32, i32) {
    %c0_i32 = arith.constant 0 : i32
    %c0_i32_0 = arith.constant 0 : i32
    %c0_i32_1 = arith.constant 0 : i32
    %c0_i32_2 = arith.constant 0 : i32
    return %arg0, %c0_i32, %c0_i32_0, %c0_i32_1 : i32, i32, i32, i32
  }
  func.func @transform_6(%arg0: i32) -> (i32, i32, i32, i32) {
    %c0_i32 = arith.constant 0 : i32
    %c0_i32_0 = arith.constant 0 : i32
    %c0_i32_1 = arith.constant 0 : i32
    %c0_i32_2 = arith.constant 0 : i32
    return %arg0, %c0_i32, %c0_i32_0, %c0_i32_1 : i32, i32, i32, i32
  }
  func.func @transform_7(%arg0: i32) -> (i32, i32, i32, i32) {
    %c0_i32 = arith.constant 0 : i32
    %c0_i32_0 = arith.constant 0 : i32
    %c0_i32_1 = arith.constant 0 : i32
    %c0_i32_2 = arith.constant 0 : i32
    return %arg0, %c0_i32, %c0_i32_0, %c0_i32_1 : i32, i32, i32, i32
  }
  func.func @transform_8(%arg0: i32) -> (i32, i32, i32, i32) {
    %c0_i32 = arith.constant 0 : i32
    %c0_i32_0 = arith.constant 0 : i32
    %c0_i32_1 = arith.constant 0 : i32
    %c0_i32_2 = arith.constant 0 : i32
    return %arg0, %c0_i32, %c0_i32_0, %c0_i32_1 : i32, i32, i32, i32
  }
  func.func @transform_9(%arg0: i32) -> (i32, i32, i32, i32) {
    %c0_i32 = arith.constant 0 : i32
    %c0_i32_0 = arith.constant 0 : i32
    %c0_i32_1 = arith.constant 0 : i32
    %c0_i32_2 = arith.constant 0 : i32
    return %arg0, %c0_i32, %c0_i32_0, %c0_i32_1 : i32, i32, i32, i32
  }
  func.func @transform_10(%arg0: i32) -> (i32, i32, i32, i32) {
    %c0_i32 = arith.constant 0 : i32
    %c0_i32_0 = arith.constant 0 : i32
    %c0_i32_1 = arith.constant 0 : i32
    %c0_i32_2 = arith.constant 0 : i32
    return %arg0, %c0_i32, %c0_i32_0, %c0_i32_1 : i32, i32, i32, i32
  }
  func.func @transform_11(%arg0: i32) -> (i32, i32, i32, i32) {
    %c0_i32 = arith.constant 0 : i32
    %c0_i32_0 = arith.constant 0 : i32
    %c0_i32_1 = arith.constant 0 : i32
    %c0_i32_2 = arith.constant 0 : i32
    return %arg0, %c0_i32, %c0_i32_0, %c0_i32_1 : i32, i32, i32, i32
  }
  func.func @transform_12(%arg0: i32) -> (i32, i32, i32) {
    %c0_i32 = arith.constant 0 : i32
    %c0_i32_0 = arith.constant 0 : i32
    %c0_i32_1 = arith.constant 0 : i32
    return %arg0, %c0_i32, %c0_i32_0 : i32, i32, i32
  }
  func.func @transform_13(%arg0: i32) -> (i32, i32, i32) {
    %c0_i32 = arith.constant 0 : i32
    %c0_i32_0 = arith.constant 0 : i32
    %c0_i32_1 = arith.constant 0 : i32
    return %arg0, %c0_i32, %c0_i32_0 : i32, i32, i32
  }
  func.func @transform_14(%arg0: i32) -> (i32, i32, i32) {
    %c0_i32 = arith.constant 0 : i32
    %c0_i32_0 = arith.constant 0 : i32
    %c0_i32_1 = arith.constant 0 : i32
    return %arg0, %c0_i32, %c0_i32_0 : i32, i32, i32
  }
  func.func @transform_15(%arg0: i32) -> (i32, i32, i32) {
    %c0_i32 = arith.constant 0 : i32
    %c0_i32_0 = arith.constant 0 : i32
    %c0_i32_1 = arith.constant 0 : i32
    return %arg0, %c0_i32, %c0_i32_0 : i32, i32, i32
  }
  func.func @transform_16(%arg0: i32) -> (i32, i32, i32) {
    %c0_i32 = arith.constant 0 : i32
    %c0_i32_0 = arith.constant 0 : i32
    %c0_i32_1 = arith.constant 0 : i32
    return %arg0, %c0_i32, %c0_i32_0 : i32, i32, i32
  }
  func.func @transform_17(%arg0: i32) -> (i32, i32, i32) {
    %c0_i32 = arith.constant 0 : i32
    %c0_i32_0 = arith.constant 0 : i32
    %c0_i32_1 = arith.constant 0 : i32
    return %arg0, %c0_i32, %c0_i32_0 : i32, i32, i32
  }
  func.func @transform_18(%arg0: i32) -> (i32, i32, i32) {
    %c0_i32 = arith.constant 0 : i32
    %c0_i32_0 = arith.constant 0 : i32
    %c0_i32_1 = arith.constant 0 : i32
    return %arg0, %c0_i32, %c0_i32_0 : i32, i32, i32
  }
  func.func @transform_19(%arg0: i32) -> (i32, i32, i32) {
    %c0_i32 = arith.constant 0 : i32
    %c0_i32_0 = arith.constant 0 : i32
    %c0_i32_1 = arith.constant 0 : i32
    return %arg0, %c0_i32, %c0_i32_0 : i32, i32, i32
  }
  func.func @transform_20(%arg0: i32) -> (i32, i32, i32) {
    %c0_i32 = arith.constant 0 : i32
    %c0_i32_0 = arith.constant 0 : i32
    %c0_i32_1 = arith.constant 0 : i32
    return %arg0, %c0_i32, %c0_i32_0 : i32, i32, i32
  }
  func.func @transform_21(%arg0: i32) -> (i32, i32) {
    %c0_i32 = arith.constant 0 : i32
    %c0_i32_0 = arith.constant 0 : i32
    %c0_i32_1 = arith.constant 0 : i32
    return %c0_i32, %c0_i32_0 : i32, i32
  }
}

</mosaic_0001>

<llo_original>
// kernel: flownet_forward.1
$region0: #{flownet_forward.1}
  #allocation0 [shape = 'u32[]', space=smem, size = 0x4, offset = 0x4, fixed_abs, tag = 'smem constant byte address 0x4 - core index']
  #allocation1 [shape = 'u32[144,128]{1,0:T(1,128)}', space=vmem, size = 0x12000, scoped, tag = 'internal scratch']
  #allocation2 [shape = 'f32[128,64]{1,0:T(8,128)}', space=vmem, size = 0x10000, scoped, tag = 'scratch operand']
  %s0 = inlined_call_operand.vmem [shape: s32[128,1], index: 0, kind: input, shape index: {}]
  %s1 = inlined_call_operand.vmem [shape: f32[16,64], index: 1, kind: input, shape index: {}]
  %s2 = inlined_call_operand.vmem [shape: f32[128,64], index: 2, kind: input, shape index: {}]
  %s3 = inlined_call_operand.vmem [shape: f32[128,128], index: 3, kind: input, shape index: {}]
  %s4 = inlined_call_operand.vmem [shape: f32[1,16], index: 4, kind: input, shape index: {}]
  %s5 = inlined_call_operand.vmem [shape: bf16[2,2,64,32], index: 5, kind: input, shape index: {}]
  %s6 = inlined_call_operand.vmem [shape: f32[2,2,1,32], index: 6, kind: input, shape index: {}]
  %s7 = inlined_call_operand.vmem [shape: bf16[2,2,64,32], index: 7, kind: input, shape index: {}]
  %s8 = inlined_call_operand.vmem [shape: f32[2,2,1,32], index: 8, kind: input, shape index: {}]
  %s9 = inlined_call_operand.vmem [shape: bf16[2,2,64,32], index: 9, kind: input, shape index: {}]
  %s10 = inlined_call_operand.vmem [shape: f32[2,2,1,32], index: 10, kind: input, shape index: {}]
  %s11 = inlined_call_operand.vmem [shape: bf16[2,2,32,64], index: 11, kind: input, shape index: {}]
  %s12 = inlined_call_operand.vmem [shape: f32[2,1,64], index: 12, kind: input, shape index: {}]
  %s13 = inlined_call_operand.vmem [shape: f32[2,1,64], index: 13, kind: input, shape index: {}]
  %s14 = inlined_call_operand.vmem [shape: f32[2,1,64], index: 14, kind: input, shape index: {}]
  %s15 = inlined_call_operand.vmem [shape: bf16[2,64,2048], index: 15, kind: input, shape index: {}]
  %s16 = inlined_call_operand.vmem [shape: f32[2,1,2048], index: 16, kind: input, shape index: {}]
  %s17 = inlined_call_operand.vmem [shape: bf16[2,2048,64], index: 17, kind: input, shape index: {}]
  %s18 = inlined_call_operand.vmem [shape: f32[2,1,64], index: 18, kind: input, shape index: {}]
  %s19 = inlined_call_operand.vmem [shape: f32[2,1,64], index: 19, kind: input, shape index: {}]
  %s20 = inlined_call_operand.vmem [shape: f32[2,1,64], index: 20, kind: input, shape index: {}]
  %s21 = inlined_call_operand.hbm [shape: f32[16,16], index: 21, kind: output, shape index: {}]
  %s22 = sld [smem:[#allocation0]]
  $region125: #{flownet_forward.1} parent=0
    _
  %s24 = ssub.s32 1, %s22
  %s25 = scalar_select 0, %s24, %s22
  $region1: #{flownet_forward.1} parent=0
    #allocation3 [shape = 'u8[8192]{0}', space=vmem, size = 0x2000, scoped, tag = 'output window, operand 0, single buffered']
    #allocation4 [shape = 's32[2]{0}', space=sflag, size = 0x8, scoped, tag = 'scoped memory for flownet_forward.1']
    %26 = vsyncpa [#allocation4], 0
    loop: start=0, step=1, limit=4
    $region2: #{flownet_forward.1} parent=1 // loop_pre_header
      _
    $region3: #{flownet_forward.1} parent=1 // loop_header
      %s28 = sphi 0, %s32
      %p29 = scmp.ge.s32.totalorder %s28, 4
      %s36 = sphi 0, %s36
      %s38 = sphi 0, %s36
      %s39 = sphi 0, %s38
      %s53 = sphi 0, %s39
      %s57 = sphi 0, %s57
      %s59 = sphi 0, %s57
      %s60 = sphi 0, %s59
      %s74 = sphi 0, %s60
      %s78 = sphi 0, %s78
      %s80 = sphi 0, %s78
      %s81 = sphi 0, %s80
      %s95 = sphi 0, %s81
      %s99 = sphi 0, %s99
      %s101 = sphi 0, %s99
      %s102 = sphi 0, %s101
      %s116 = sphi 0, %s102
      %s120 = sphi 0, %s120
      %s122 = sphi 0, %s120
      %s123 = sphi 0, %s122
      %s137 = sphi 0, %s123
      %s143 = sphi 0, %s145
      %s146 = sphi 0, %s143
      %s147 = sphi 0, %s146
      %s163 = sphi 0, %s147
      %s169 = sphi 0, %s171
      %s172 = sphi 0, %s169
      %s173 = sphi 0, %s172
      %s189 = sphi 0, %s173
      %s195 = sphi 0, %s197
      %s198 = sphi 0, %s195
      %s199 = sphi 0, %s198
      %s215 = sphi 0, %s199
      %s221 = sphi 0, %s223
      %s224 = sphi 0, %s221
      %s225 = sphi 0, %s224
      %s241 = sphi 0, %s225
      %s247 = sphi 0, %s249
      %s250 = sphi 0, %s247
      %s251 = sphi 0, %s250
      %s267 = sphi 0, %s251
      %s273 = sphi 0, %s275
      %s276 = sphi 0, %s273
      %s277 = sphi 0, %s276
      %s293 = sphi 0, %s277
      %s299 = sphi 0, %s301
      %s302 = sphi 0, %s299
      %s303 = sphi 0, %s302
      %s319 = sphi 0, %s303
      %s325 = sphi 0, %s327
      %s328 = sphi 0, %s325
      %s329 = sphi 0, %s328
      %s345 = sphi 0, %s329
      %s351 = sphi 0, %s353
      %s354 = sphi 0, %s351
      %s355 = sphi 0, %s354
      %s371 = sphi 0, %s355
      %s377 = sphi 0, %s379
      %s380 = sphi 0, %s377
      %s381 = sphi 0, %s380
      %s397 = sphi 0, %s381
      %s403 = sphi 0, %s405
      %s406 = sphi 0, %s403
      %s407 = sphi 0, %s406
      %s423 = sphi 0, %s407
      %s429 = sphi 0, %s431
      %s432 = sphi 0, %s429
      %s433 = sphi 0, %s432
      %s449 = sphi 0, %s433
      %s455 = sphi 0, %s457
      %s458 = sphi 0, %s455
      %s459 = sphi 0, %s458
      %s475 = sphi 0, %s459
      %s481 = sphi 0, %s483
      %s484 = sphi 0, %s481
      %s485 = sphi 0, %s484
      %s501 = sphi 0, %s485
      %s507 = sphi 0, %s509
      %s510 = sphi 0, %s507
      %s511 = sphi 0, %s510
      %s527 = sphi 0, %s511
      %s533 = sphi 0, %s535
      %s536 = sphi 0, %s533
      %s537 = sphi 0, %s536
      %s553 = sphi 0, %s537
      %s557 = sphi 0, %s557
      %s559 = sphi 0, %s557
      %s560 = sphi 0, %s559
      %s574 = sphi 0, %s560
    $region4: #{flownet_forward.1} parent=1 // loop_header_branch
      %31 = sbr.rel (%p29) target = $region8
    $region5: #{flownet_forward.1} parent=1 // loop_body
      %s33 = ssub.s32 %s28, 1
      %s34 = ssub.s32 %s28, 2
      %s35 = sadd.s32 %s28, 1
      %s37 = sadd.s32 %s36, 1
      %p40 = scmp.eq.s32.totalorder %s28, 1
      %p41 = scmp.ne.s32.totalorder %s36, %s38
      %p42 = scmp.eq.s32.totalorder %s28, 0
      %p43 = por %p41, %p42
      %p44 = scmp.ne.s32.totalorder %s36, %s38
      %p45 = scmp.eq.s32.totalorder %s33, 1
      %p46 = por %p44, %p45
      %p47 = scmp.ne.s32.totalorder %s38, %s39
      %p48 = scmp.eq.s32.totalorder %s33, 0
      %p49 = por %p47, %p48
      %p50 = scmp.ne.s32.totalorder %s38, %s39
      %p51 = scmp.eq.s32.totalorder %s34, 1
      %p52 = por %p50, %p51
      %p54 = scmp.ne.s32.totalorder %s39, %s53
      %p55 = scmp.eq.s32.totalorder %s34, 0
      %p56 = por %p54, %p55
      %s58 = sadd.s32 %s57, 1
      %p61 = scmp.eq.s32.totalorder %s28, 1
      %p62 = scmp.ne.s32.totalorder %s57, %s59
      %p63 = scmp.eq.s32.totalorder %s28, 0
      %p64 = por %p62, %p63
      %p65 = scmp.ne.s32.totalorder %s57, %s59
      %p66 = scmp.eq.s32.totalorder %s33, 1
      %p67 = por %p65, %p66
      %p68 = scmp.ne.s32.totalorder %s59, %s60
      %p69 = scmp.eq.s32.totalorder %s33, 0
      %p70 = por %p68, %p69
      %p71 = scmp.ne.s32.totalorder %s59, %s60
      %p72 = scmp.eq.s32.totalorder %s34, 1
      %p73 = por %p71, %p72
      %p75 = scmp.ne.s32.totalorder %s60, %s74
      %p76 = scmp.eq.s32.totalorder %s34, 0
      %p77 = por %p75, %p76
      %s79 = sadd.s32 %s78, 1
      %p82 = scmp.eq.s32.totalorder %s28, 1
      %p83 = scmp.ne.s32.totalorder %s78, %s80
      %p84 = scmp.eq.s32.totalorder %s28, 0
      %p85 = por %p83, %p84
      %p86 = scmp.ne.s32.totalorder %s78, %s80
      %p87 = scmp.eq.s32.totalorder %s33, 1
      %p88 = por %p86, %p87
      %p89 = scmp.ne.s32.totalorder %s80, %s81
      %p90 = scmp.eq.s32.totalorder %s33, 0
      %p91 = por %p89, %p90
      %p92 = scmp.ne.s32.totalorder %s80, %s81
      %p93 = scmp.eq.s32.totalorder %s34, 1
      %p94 = por %p92, %p93
      %p96 = scmp.ne.s32.totalorder %s81, %s95
      %p97 = scmp.eq.s32.totalorder %s34, 0
      %p98 = por %p96, %p97
      %s100 = sadd.s32 %s99, 1
      %p103 = scmp.eq.s32.totalorder %s28, 1
      %p104 = scmp.ne.s32.totalorder %s99, %s101
      %p105 = scmp.eq.s32.totalorder %s28, 0
      %p106 = por %p104, %p105
      %p107 = scmp.ne.s32.totalorder %s99, %s101
      %p108 = scmp.eq.s32.totalorder %s33, 1
      %p109 = por %p107, %p108
      %p110 = scmp.ne.s32.totalorder %s101, %s102
      %p111 = scmp.eq.s32.totalorder %s33, 0
      %p112 = por %p110, %p111
      %p113 = scmp.ne.s32.totalorder %s101, %s102
      %p114 = scmp.eq.s32.totalorder %s34, 1
      %p115 = por %p113, %p114
      %p117 = scmp.ne.s32.totalorder %s102, %s116
      %p118 = scmp.eq.s32.totalorder %s34, 0
      %p119 = por %p117, %p118
      %s121 = sadd.s32 %s120, 1
      %p124 = scmp.eq.s32.totalorder %s28, 1
      %p125 = scmp.ne.s32.totalorder %s120, %s122
      %p126 = scmp.eq.s32.totalorder %s28, 0
      %p127 = por %p125, %p126
      %p128 = scmp.ne.s32.totalorder %s120, %s122
      %p129 = scmp.eq.s32.totalorder %s33, 1
      %p130 = por %p128, %p129
      %p131 = scmp.ne.s32.totalorder %s122, %s123
      %p132 = scmp.eq.s32.totalorder %s33, 0
      %p133 = por %p131, %p132
      %p134 = scmp.ne.s32.totalorder %s122, %s123
      %p135 = scmp.eq.s32.totalorder %s34, 1
      %p136 = por %p134, %p135
      %p138 = scmp.ne.s32.totalorder %s123, %s137
      %p139 = scmp.eq.s32.totalorder %s34, 0
      %p140 = por %p138, %p139
      %s141 = ssub.s32 %s28, %s35
      %p142 = scmp.eq.s32.totalorder %s141, 0
      %s144 = sadd.s32 %s143, 1
      %s145 = scalar_select %p142, %s143, %s144
      %p148 = pneg %p142
      %p149 = scmp.eq.s32.totalorder %s28, 1
      %p150 = por %p148, %p149
      %p151 = scmp.ne.s32.totalorder %s143, %s146
      %p152 = scmp.eq.s32.totalorder %s28, 0
      %p153 = por %p151, %p152
      %p154 = scmp.ne.s32.totalorder %s143, %s146
      %p155 = scmp.eq.s32.totalorder %s33, 1
      %p156 = por %p154, %p155
      %p157 = scmp.ne.s32.totalorder %s146, %s147
      %p158 = scmp.eq.s32.totalorder %s33, 0
      %p159 = por %p157, %p158
      %p160 = scmp.ne.s32.totalorder %s146, %s147
      %p161 = scmp.eq.s32.totalorder %s34, 1
      %p162 = por %p160, %p161
      %p164 = scmp.ne.s32.totalorder %s147, %s163
      %p165 = scmp.eq.s32.totalorder %s34, 0
      %p166 = por %p164, %p165
      %s167 = ssub.s32 %s28, %s35
      %p168 = scmp.eq.s32.totalorder %s167, 0
      %s170 = sadd.s32 %s169, 1
      %s171 = scalar_select %p168, %s169, %s170
      %p174 = pneg %p168
      %p175 = scmp.eq.s32.totalorder %s28, 1
      %p176 = por %p174, %p175
      %p177 = scmp.ne.s32.totalorder %s169, %s172
      %p178 = scmp.eq.s32.totalorder %s28, 0
      %p179 = por %p177, %p178
      %p180 = scmp.ne.s32.totalorder %s169, %s172
      %p181 = scmp.eq.s32.totalorder %s33, 1
      %p182 = por %p180, %p181
      %p183 = scmp.ne.s32.totalorder %s172, %s173
      %p184 = scmp.eq.s32.totalorder %s33, 0
      %p185 = por %p183, %p184
      %p186 = scmp.ne.s32.totalorder %s172, %s173
      %p187 = scmp.eq.s32.totalorder %s34, 1
      %p188 = por %p186, %p187
      %p190 = scmp.ne.s32.totalorder %s173, %s189
      %p191 = scmp.eq.s32.totalorder %s34, 0
      %p192 = por %p190, %p191
      %s193 = ssub.s32 %s28, %s35
      %p194 = scmp.eq.s32.totalorder %s193, 0
      %s196 = sadd.s32 %s195, 1
      %s197 = scalar_select %p194, %s195, %s196
      %p200 = pneg %p194
      %p201 = scmp.eq.s32.totalorder %s28, 1
      %p202 = por %p200, %p201
      %p203 = scmp.ne.s32.totalorder %s195, %s198
      %p204 = scmp.eq.s32.totalorder %s28, 0
      %p205 = por %p203, %p204
      %p206 = scmp.ne.s32.totalorder %s195, %s198
      %p207 = scmp.eq.s32.totalorder %s33, 1
      %p208 = por %p206, %p207
      %p209 = scmp.ne.s32.totalorder %s198, %s199
      %p210 = scmp.eq.s32.totalorder %s33, 0
      %p211 = por %p209, %p210
      %p212 = scmp.ne.s32.totalorder %s198, %s199
      %p213 = scmp.eq.s32.totalorder %s34, 1
      %p214 = por %p212, %p213
      %p216 = scmp.ne.s32.totalorder %s199, %s215
      %p217 = scmp.eq.s32.totalorder %s34, 0
      %p218 = por %p216, %p217
      %s219 = ssub.s32 %s28, %s35
      %p220 = scmp.eq.s32.totalorder %s219, 0
      %s222 = sadd.s32 %s221, 1
      %s223 = scalar_select %p220, %s221, %s222
      %p226 = pneg %p220
      %p227 = scmp.eq.s32.totalorder %s28, 1
      %p228 = por %p226, %p227
      %p229 = scmp.ne.s32.totalorder %s221, %s224
      %p230 = scmp.eq.s32.totalorder %s28, 0
      %p231 = por %p229, %p230
      %p232 = scmp.ne.s32.totalorder %s221, %s224
      %p233 = scmp.eq.s32.totalorder %s33, 1
      %p234 = por %p232, %p233
      %p235 = scmp.ne.s32.totalorder %s224, %s225
      %p236 = scmp.eq.s32.totalorder %s33, 0
      %p237 = por %p235, %p236
      %p238 = scmp.ne.s32.totalorder %s224, %s225
      %p239 = scmp.eq.s32.totalorder %s34, 1
      %p240 = por %p238, %p239
      %p242 = scmp.ne.s32.totalorder %s225, %s241
      %p243 = scmp.eq.s32.totalorder %s34, 0
      %p244 = por %p242, %p243
      %s245 = ssub.s32 %s28, %s35
      %p246 = scmp.eq.s32.totalorder %s245, 0
      %s248 = sadd.s32 %s247, 1
      %s249 = scalar_select %p246, %s247, %s248
      %p252 = pneg %p246
      %p253 = scmp.eq.s32.totalorder %s28, 1
      %p254 = por %p252, %p253
      %p255 = scmp.ne.s32.totalorder %s247, %s250
      %p256 = scmp.eq.s32.totalorder %s28, 0
      %p257 = por %p255, %p256
      %p258 = scmp.ne.s32.totalorder %s247, %s250
      %p259 = scmp.eq.s32.totalorder %s33, 1
      %p260 = por %p258, %p259
      %p261 = scmp.ne.s32.totalorder %s250, %s251
      %p262 = scmp.eq.s32.totalorder %s33, 0
      %p263 = por %p261, %p262
      %p264 = scmp.ne.s32.totalorder %s250, %s251
      %p265 = scmp.eq.s32.totalorder %s34, 1
      %p266 = por %p264, %p265
      %p268 = scmp.ne.s32.totalorder %s251, %s267
      %p269 = scmp.eq.s32.totalorder %s34, 0
      %p270 = por %p268, %p269
      %s271 = ssub.s32 %s28, %s35
      %p272 = scmp.eq.s32.totalorder %s271, 0
      %s274 = sadd.s32 %s273, 1
      %s275 = scalar_select %p272, %s273, %s274
      %p278 = pneg %p272
      %p279 = scmp.eq.s32.totalorder %s28, 1
      %p280 = por %p278, %p279
      %p281 = scmp.ne.s32.totalorder %s273, %s276
      %p282 = scmp.eq.s32.totalorder %s28, 0
      %p283 = por %p281, %p282
      %p284 = scmp.ne.s32.totalorder %s273, %s276
      %p285 = scmp.eq.s32.totalorder %s33, 1
      %p286 = por %p284, %p285
      %p287 = scmp.ne.s32.totalorder %s276, %s277
      %p288 = scmp.eq.s32.totalorder %s33, 0
      %p289 = por %p287, %p288
      %p290 = scmp.ne.s32.totalorder %s276, %s277
      %p291 = scmp.eq.s32.totalorder %s34, 1
      %p292 = por %p290, %p291
      %p294 = scmp.ne.s32.totalorder %s277, %s293
      %p295 = scmp.eq.s32.totalorder %s34, 0
      %p296 = por %p294, %p295
      %s297 = ssub.s32 %s28, %s35
      %p298 = scmp.eq.s32.totalorder %s297, 0
      %s300 = sadd.s32 %s299, 1
      %s301 = scalar_select %p298, %s299, %s300
      %p304 = pneg %p298
      %p305 = scmp.eq.s32.totalorder %s28, 1
      %p306 = por %p304, %p305
      %p307 = scmp.ne.s32.totalorder %s299, %s302
      %p308 = scmp.eq.s32.totalorder %s28, 0
      %p309 = por %p307, %p308
      %p310 = scmp.ne.s32.totalorder %s299, %s302
      %p311 = scmp.eq.s32.totalorder %s33, 1
      %p312 = por %p310, %p311
      %p313 = scmp.ne.s32.totalorder %s302, %s303
      %p314 = scmp.eq.s32.totalorder %s33, 0
      %p315 = por %p313, %p314
      %p316 = scmp.ne.s32.totalorder %s302, %s303
      %p317 = scmp.eq.s32.totalorder %s34, 1
      %p318 = por %p316, %p317
      %p320 = scmp.ne.s32.totalorder %s303, %s319
      %p321 = scmp.eq.s32.totalorder %s34, 0
      %p322 = por %p320, %p321
      %s323 = ssub.s32 %s28, %s35
      %p324 = scmp.eq.s32.totalorder %s323, 0
      %s326 = sadd.s32 %s325, 1
      %s327 = scalar_select %p324, %s325, %s326
      %p330 = pneg %p324
      %p331 = scmp.eq.s32.totalorder %s28, 1
      %p332 = por %p330, %p331
      %p333 = scmp.ne.s32.totalorder %s325, %s328
      %p334 = scmp.eq.s32.totalorder %s28, 0
      %p335 = por %p333, %p334
      %p336 = scmp.ne.s32.totalorder %s325, %s328
      %p337 = scmp.eq.s32.totalorder %s33, 1
      %p338 = por %p336, %p337
      %p339 = scmp.ne.s32.totalorder %s328, %s329
      %p340 = scmp.eq.s32.totalorder %s33, 0
      %p341 = por %p339, %p340
      %p342 = scmp.ne.s32.totalorder %s328, %s329
      %p343 = scmp.eq.s32.totalorder %s34, 1
      %p344 = por %p342, %p343
      %p346 = scmp.ne.s32.totalorder %s329, %s345
      %p347 = scmp.eq.s32.totalorder %s34, 0
      %p348 = por %p346, %p347
      %s349 = ssub.s32 %s28, %s35
      %p350 = scmp.eq.s32.totalorder %s349, 0
      %s352 = sadd.s32 %s351, 1
      %s353 = scalar_select %p350, %s351, %s352
      %p356 = pneg %p350
      %p357 = scmp.eq.s32.totalorder %s28, 1
      %p358 = por %p356, %p357
      %p359 = scmp.ne.s32.totalorder %s351, %s354
      %p360 = scmp.eq.s32.totalorder %s28, 0
      %p361 = por %p359, %p360
      %p362 = scmp.ne.s32.totalorder %s351, %s354
      %p363 = scmp.eq.s32.totalorder %s33, 1
      %p364 = por %p362, %p363
      %p365 = scmp.ne.s32.totalorder %s354, %s355
      %p366 = scmp.eq.s32.totalorder %s33, 0
      %p367 = por %p365, %p366
      %p368 = scmp.ne.s32.totalorder %s354, %s355
      %p369 = scmp.eq.s32.totalorder %s34, 1
      %p370 = por %p368, %p369
      %p372 = scmp.ne.s32.totalorder %s355, %s371
      %p373 = scmp.eq.s32.totalorder %s34, 0
      %p374 = por %p372, %p373
      %s375 = ssub.s32 %s28, %s35
      %p376 = scmp.eq.s32.totalorder %s375, 0
      %s378 = sadd.s32 %s377, 1
      %s379 = scalar_select %p376, %s377, %s378
      %p382 = pneg %p376
      %p383 = scmp.eq.s32.totalorder %s28, 1
      %p384 = por %p382, %p383
      %p385 = scmp.ne.s32.totalorder %s377, %s380
      %p386 = scmp.eq.s32.totalorder %s28, 0
      %p387 = por %p385, %p386
      %p388 = scmp.ne.s32.totalorder %s377, %s380
      %p389 = scmp.eq.s32.totalorder %s33, 1
      %p390 = por %p388, %p389
      %p391 = scmp.ne.s32.totalorder %s380, %s381
      %p392 = scmp.eq.s32.totalorder %s33, 0
      %p393 = por %p391, %p392
      %p394 = scmp.ne.s32.totalorder %s380, %s381
      %p395 = scmp.eq.s32.totalorder %s34, 1
      %p396 = por %p394, %p395
      %p398 = scmp.ne.s32.totalorder %s381, %s397
      %p399 = scmp.eq.s32.totalorder %s34, 0
      %p400 = por %p398, %p399
      %s401 = ssub.s32 %s28, %s35
      %p402 = scmp.eq.s32.totalorder %s401, 0
      %s404 = sadd.s32 %s403, 1
      %s405 = scalar_select %p402, %s403, %s404
      %p408 = pneg %p402
      %p409 = scmp.eq.s32.totalorder %s28, 1
      %p410 = por %p408, %p409
      %p411 = scmp.ne.s32.totalorder %s403, %s406
      %p412 = scmp.eq.s32.totalorder %s28, 0
      %p413 = por %p411, %p412
      %p414 = scmp.ne.s32.totalorder %s403, %s406
      %p415 = scmp.eq.s32.totalorder %s33, 1
      %p416 = por %p414, %p415
      %p417 = scmp.ne.s32.totalorder %s406, %s407
      %p418 = scmp.eq.s32.totalorder %s33, 0
      %p419 = por %p417, %p418
      %p420 = scmp.ne.s32.totalorder %s406, %s407
      %p421 = scmp.eq.s32.totalorder %s34, 1
      %p422 = por %p420, %p421
      %p424 = scmp.ne.s32.totalorder %s407, %s423
      %p425 = scmp.eq.s32.totalorder %s34, 0
      %p426 = por %p424, %p425
      %s427 = ssub.s32 %s28, %s35
      %p428 = scmp.eq.s32.totalorder %s427, 0
      %s430 = sadd.s32 %s429, 1
      %s431 = scalar_select %p428, %s429, %s430
      %p434 = pneg %p428
      %p435 = scmp.eq.s32.totalorder %s28, 1
      %p436 = por %p434, %p435
      %p437 = scmp.ne.s32.totalorder %s429, %s432
      %p438 = scmp.eq.s32.totalorder %s28, 0
      %p439 = por %p437, %p438
      %p440 = scmp.ne.s32.totalorder %s429, %s432
      %p441 = scmp.eq.s32.totalorder %s33, 1
      %p442 = por %p440, %p441
      %p443 = scmp.ne.s32.totalorder %s432, %s433
      %p444 = scmp.eq.s32.totalorder %s33, 0
      %p445 = por %p443, %p444
      %p446 = scmp.ne.s32.totalorder %s432, %s433
      %p447 = scmp.eq.s32.totalorder %s34, 1
      %p448 = por %p446, %p447
      %p450 = scmp.ne.s32.totalorder %s433, %s449
      %p451 = scmp.eq.s32.totalorder %s34, 0
      %p452 = por %p450, %p451
      %s453 = ssub.s32 %s28, %s35
      %p454 = scmp.eq.s32.totalorder %s453, 0
      %s456 = sadd.s32 %s455, 1
      %s457 = scalar_select %p454, %s455, %s456
      %p460 = pneg %p454
      %p461 = scmp.eq.s32.totalorder %s28, 1
      %p462 = por %p460, %p461
      %p463 = scmp.ne.s32.totalorder %s455, %s458
      %p464 = scmp.eq.s32.totalorder %s28, 0
      %p465 = por %p463, %p464
      %p466 = scmp.ne.s32.totalorder %s455, %s458
      %p467 = scmp.eq.s32.totalorder %s33, 1
      %p468 = por %p466, %p467
      %p469 = scmp.ne.s32.totalorder %s458, %s459
      %p470 = scmp.eq.s32.totalorder %s33, 0
      %p471 = por %p469, %p470
      %p472 = scmp.ne.s32.totalorder %s458, %s459
      %p473 = scmp.eq.s32.totalorder %s34, 1
      %p474 = por %p472, %p473
      %p476 = scmp.ne.s32.totalorder %s459, %s475
      %p477 = scmp.eq.s32.totalorder %s34, 0
      %p478 = por %p476, %p477
      %s479 = ssub.s32 %s28, %s35
      %p480 = scmp.eq.s32.totalorder %s479, 0
      %s482 = sadd.s32 %s481, 1
      %s483 = scalar_select %p480, %s481, %s482
      %p486 = pneg %p480
      %p487 = scmp.eq.s32.totalorder %s28, 1
      %p488 = por %p486, %p487
      %p489 = scmp.ne.s32.totalorder %s481, %s484
      %p490 = scmp.eq.s32.totalorder %s28, 0
      %p491 = por %p489, %p490
      %p492 = scmp.ne.s32.totalorder %s481, %s484
      %p493 = scmp.eq.s32.totalorder %s33, 1
      %p494 = por %p492, %p493
      %p495 = scmp.ne.s32.totalorder %s484, %s485
      %p496 = scmp.eq.s32.totalorder %s33, 0
      %p497 = por %p495, %p496
      %p498 = scmp.ne.s32.totalorder %s484, %s485
      %p499 = scmp.eq.s32.totalorder %s34, 1
      %p500 = por %p498, %p499
      %p502 = scmp.ne.s32.totalorder %s485, %s501
      %p503 = scmp.eq.s32.totalorder %s34, 0
      %p504 = por %p502, %p503
      %s505 = ssub.s32 %s28, %s35
      %p506 = scmp.eq.s32.totalorder %s505, 0
      %s508 = sadd.s32 %s507, 1
      %s509 = scalar_select %p506, %s507, %s508
      %p512 = pneg %p506
      %p513 = scmp.eq.s32.totalorder %s28, 1
      %p514 = por %p512, %p513
      %p515 = scmp.ne.s32.totalorder %s507, %s510
      %p516 = scmp.eq.s32.totalorder %s28, 0
      %p517 = por %p515, %p516
      %p518 = scmp.ne.s32.totalorder %s507, %s510
      %p519 = scmp.eq.s32.totalorder %s33, 1
      %p520 = por %p518, %p519
      %p521 = scmp.ne.s32.totalorder %s510, %s511
      %p522 = scmp.eq.s32.totalorder %s33, 0
      %p523 = por %p521, %p522
      %p524 = scmp.ne.s32.totalorder %s510, %s511
      %p525 = scmp.eq.s32.totalorder %s34, 1
      %p526 = por %p524, %p525
      %p528 = scmp.ne.s32.totalorder %s511, %s527
      %p529 = scmp.eq.s32.totalorder %s34, 0
      %p530 = por %p528, %p529
      %s531 = ssub.s32 %s28, %s35
      %p532 = scmp.eq.s32.totalorder %s531, 0
      %s534 = sadd.s32 %s533, 1
      %s535 = scalar_select %p532, %s533, %s534
      %p538 = pneg %p532
      %p539 = scmp.eq.s32.totalorder %s28, 1
      %p540 = por %p538, %p539
      %p541 = scmp.ne.s32.totalorder %s533, %s536
      %p542 = scmp.eq.s32.totalorder %s28, 0
      %p543 = por %p541, %p542
      %p544 = scmp.ne.s32.totalorder %s533, %s536
      %p545 = scmp.eq.s32.totalorder %s33, 1
      %p546 = por %p544, %p545
      %p547 = scmp.ne.s32.totalorder %s536, %s537
      %p548 = scmp.eq.s32.totalorder %s33, 0
      %p549 = por %p547, %p548
      %p550 = scmp.ne.s32.totalorder %s536, %s537
      %p551 = scmp.eq.s32.totalorder %s34, 1
      %p552 = por %p550, %p551
      %p554 = scmp.ne.s32.totalorder %s537, %s553
      %p555 = scmp.eq.s32.totalorder %s34, 0
      %p556 = por %p554, %p555
      %s558 = sadd.s32 %s557, 1
      %p561 = scmp.eq.s32.totalorder %s28, 1
      %p562 = scmp.ne.s32.totalorder %s557, %s559
      %p563 = scmp.eq.s32.totalorder %s28, 0
      %p564 = por %p562, %p563
      %p565 = scmp.ne.s32.totalorder %s557, %s559
      %p566 = scmp.eq.s32.totalorder %s33, 1
      %p567 = por %p565, %p566
      %p568 = scmp.ne.s32.totalorder %s559, %s560
      %p569 = scmp.eq.s32.totalorder %s33, 0
      %p570 = por %p568, %p569
      %p571 = scmp.ne.s32.totalorder %s559, %s560
      %p572 = scmp.eq.s32.totalorder %s34, 1
      %p573 = por %p571, %p572
      %p575 = scmp.ne.s32.totalorder %s560, %s574
      %p576 = scmp.eq.s32.totalorder %s34, 0
      %p577 = por %p575, %p576
      %p578 = scmp.le.s32.totalorder 1, %s28
      %p579 = scmp.lt.s32.totalorder %s28, 3
      %p580 = pnand %p578, %p579
      %p581 = pneg %p580
      // Predicated region
      $region9: #{flownet_forward.1} parent=5 // pred_check
        _
      $region10: #{flownet_forward.1} parent=5 // pred_check_branch
        %583 = sbr.rel (%p580) target = $region12
      $region11: #{flownet_forward.1} parent=5 // pred_region
        %s584 = ssub.s32 %s28, 1
        // Predicated region
        $region13: #{flownet_forward.1} parent=11 // pred_check
          %p585 = pneg %p49
        $region14: #{flownet_forward.1} parent=11 // pred_check_branch
          %587 = sbr.rel (%p585) target = $region16
        $region15: #{flownet_forward.1} parent=11 // pred_region
          _
        $region16: #{flownet_forward.1} parent=11 // pred_fallthru
          _
        // Predicated region
        $region17: #{flownet_forward.1} parent=11 // pred_check
          %p588 = pneg %p70
        $region18: #{flownet_forward.1} parent=11 // pred_check_branch
          %590 = sbr.rel (%p588) target = $region20
        $region19: #{flownet_forward.1} parent=11 // pred_region
          _
        $region20: #{flownet_forward.1} parent=11 // pred_fallthru
          _
        // Predicated region
        $region21: #{flownet_forward.1} parent=11 // pred_check
          %p591 = pneg %p91
        $region22: #{flownet_forward.1} parent=11 // pred_check_branch
          %593 = sbr.rel (%p591) target = $region24
        $region23: #{flownet_forward.1} parent=11 // pred_region
          _
        $region24: #{flownet_forward.1} parent=11 // pred_fallthru
          _
        // Predicated region
        $region25: #{flownet_forward.1} parent=11 // pred_check
          %p594 = pneg %p112
        $region26: #{flownet_forward.1} parent=11 // pred_check_branch
          %596 = sbr.rel (%p594) target = $region28
        $region27: #{flownet_forward.1} parent=11 // pred_region
          _
        $region28: #{flownet_forward.1} parent=11 // pred_fallthru
          _
        // Predicated region
        $region29: #{flownet_forward.1} parent=11 // pred_check
          %p597 = pneg %p133
        $region30: #{flownet_forward.1} parent=11 // pred_check_branch
          %599 = sbr.rel (%p597) target = $region32
        $region31: #{flownet_forward.1} parent=11 // pred_region
          _
        $region32: #{flownet_forward.1} parent=11 // pred_fallthru
          _
      $region12: #{flownet_forward.1} parent=5 // pred_fallthru
        _
      %p600 = scmp.lt.s32.totalorder %s28, 2
      // Predicated region
      $region33: #{flownet_forward.1} parent=5 // pred_check
        %p601 = pneg %p600
      $region34: #{flownet_forward.1} parent=5 // pred_check_branch
        %603 = sbr.rel (%p601) target = $region36
      $region35: #{flownet_forward.1} parent=5 // pred_region
        // Predicated region
        $region37: #{flownet_forward.1} parent=35 // pred_check
          %p604 = pneg %p153
        $region38: #{flownet_forward.1} parent=35 // pred_check_branch
          %606 = sbr.rel (%p604) target = $region40
        $region39: #{flownet_forward.1} parent=35 // pred_region
          %p607 = scmp.lt.s32.totalorder %s28, 1
          %s608 = scalar_select %p607, %s28, 1
          %s609 = smul.addr %s608, 16
          %s610 = smul.addr %s609, 4
          %s611 = scalar_lea.vmem %s5, %s610
        $region40: #{flownet_forward.1} parent=35 // pred_fallthru
          _
        // Predicated region
        $region41: #{flownet_forward.1} parent=35 // pred_check
          %p612 = pneg %p179
        $region42: #{flownet_forward.1} parent=35 // pred_check_branch
          %614 = sbr.rel (%p612) target = $region44
        $region43: #{flownet_forward.1} parent=35 // pred_region
          %p615 = scmp.lt.s32.totalorder %s28, 1
          %s616 = scalar_select %p615, %s28, 1
          %s617 = smul.addr %s616, 2
          %s618 = scalar_lea.vmem %s6, %s617
        $region44: #{flownet_forward.1} parent=35 // pred_fallthru
          _
        // Predicated region
        $region45: #{flownet_forward.1} parent=35 // pred_check
          %p619 = pneg %p205
        $region46: #{flownet_forward.1} parent=35 // pred_check_branch
          %621 = sbr.rel (%p619) target = $region48
        $region47: #{flownet_forward.1} parent=35 // pred_region
          %p622 = scmp.lt.s32.totalorder %s28, 1
          %s623 = scalar_select %p622, %s28, 1
          %s624 = smul.addr %s623, 16
          %s625 = smul.addr %s624, 4
          %s626 = scalar_lea.vmem %s7, %s625
        $region48: #{flownet_forward.1} parent=35 // pred_fallthru
          _
        // Predicated region
        $region49: #{flownet_forward.1} parent=35 // pred_check
          %p627 = pneg %p231
        $region50: #{flownet_forward.1} parent=35 // pred_check_branch
          %629 = sbr.rel (%p627) target = $region52
        $region51: #{flownet_forward.1} parent=35 // pred_region
          %p630 = scmp.lt.s32.totalorder %s28, 1
          %s631 = scalar_select %p630, %s28, 1
          %s632 = smul.addr %s631, 2
          %s633 = scalar_lea.vmem %s8, %s632
        $region52: #{flownet_forward.1} parent=35 // pred_fallthru
          _
        // Predicated region
        $region53: #{flownet_forward.1} parent=35 // pred_check
          %p634 = pneg %p257
        $region54: #{flownet_forward.1} parent=35 // pred_check_branch
          %636 = sbr.rel (%p634) target = $region56
        $region55: #{flownet_forward.1} parent=35 // pred_region
          %p637 = scmp.lt.s32.totalorder %s28, 1
          %s638 = scalar_select %p637, %s28, 1
          %s639 = smul.addr %s638, 16
          %s640 = smul.addr %s639, 4
          %s641 = scalar_lea.vmem %s9, %s640
        $region56: #{flownet_forward.1} parent=35 // pred_fallthru
          _
        // Predicated region
        $region57: #{flownet_forward.1} parent=35 // pred_check
          %p642 = pneg %p283
        $region58: #{flownet_forward.1} parent=35 // pred_check_branch
          %644 = sbr.rel (%p642) target = $region60
        $region59: #{flownet_forward.1} parent=35 // pred_region
          %p645 = scmp.lt.s32.totalorder %s28, 1
          %s646 = scalar_select %p645, %s28, 1
          %s647 = smul.addr %s646, 2
          %s648 = scalar_lea.vmem %s10, %s647
        $region60: #{flownet_forward.1} parent=35 // pred_fallthru
          _
        // Predicated region
        $region61: #{flownet_forward.1} parent=35 // pred_check
          %p649 = pneg %p309
        $region62: #{flownet_forward.1} parent=35 // pred_check_branch
          %651 = sbr.rel (%p649) target = $region64
        $region63: #{flownet_forward.1} parent=35 // pred_region
          %p652 = scmp.lt.s32.totalorder %s28, 1
          %s653 = scalar_select %p652, %s28, 1
          %s654 = smul.addr %s653, 8
          %s655 = smul.addr %s654, 4
          %s656 = scalar_lea.vmem %s11, %s655
        $region64: #{flownet_forward.1} parent=35 // pred_fallthru
          _
        // Predicated region
        $region65: #{flownet_forward.1} parent=35 // pred_check
          %p657 = pneg %p335
        $region66: #{flownet_forward.1} parent=35 // pred_check_branch
          %659 = sbr.rel (%p657) target = $region68
        $region67: #{flownet_forward.1} parent=35 // pred_region
          %p660 = scmp.lt.s32.totalorder %s28, 1
          %s661 = scalar_select %p660, %s28, 1
          %s662 = scalar_lea.vmem %s12, %s661
        $region68: #{flownet_forward.1} parent=35 // pred_fallthru
          _
        // Predicated region
        $region69: #{flownet_forward.1} parent=35 // pred_check
          %p663 = pneg %p361
        $region70: #{flownet_forward.1} parent=35 // pred_check_branch
          %665 = sbr.rel (%p663) target = $region72
        $region71: #{flownet_forward.1} parent=35 // pred_region
          %p666 = scmp.lt.s32.totalorder %s28, 1
          %s667 = scalar_select %p666, %s28, 1
          %s668 = scalar_lea.vmem %s13, %s667
        $region72: #{flownet_forward.1} parent=35 // pred_fallthru
          _
        // Predicated region
        $region73: #{flownet_forward.1} parent=35 // pred_check
          %p669 = pneg %p387
        $region74: #{flownet_forward.1} parent=35 // pred_check_branch
          %671 = sbr.rel (%p669) target = $region76
        $region75: #{flownet_forward.1} parent=35 // pred_region
          %p672 = scmp.lt.s32.totalorder %s28, 1
          %s673 = scalar_select %p672, %s28, 1
          %s674 = scalar_lea.vmem %s14, %s673
        $region76: #{flownet_forward.1} parent=35 // pred_fallthru
          _
        // Predicated region
        $region77: #{flownet_forward.1} parent=35 // pred_check
          %p675 = pneg %p413
        $region78: #{flownet_forward.1} parent=35 // pred_check_branch
          %677 = sbr.rel (%p675) target = $region80
        $region79: #{flownet_forward.1} parent=35 // pred_region
          %p678 = scmp.lt.s32.totalorder %s28, 1
          %s679 = scalar_select %p678, %s28, 1
          %s680 = smul.addr %s679, 128
          %s681 = smul.addr %s680, 4
          %s682 = scalar_lea.vmem %s15, %s681
        $region80: #{flownet_forward.1} parent=35 // pred_fallthru
          _
        // Predicated region
        $region81: #{flownet_forward.1} parent=35 // pred_check
          %p683 = pneg %p439
        $region82: #{flownet_forward.1} parent=35 // pred_check_branch
          %685 = sbr.rel (%p683) target = $region84
        $region83: #{flownet_forward.1} parent=35 // pred_region
          %p686 = scmp.lt.s32.totalorder %s28, 1
          %s687 = scalar_select %p686, %s28, 1
          %s688 = smul.addr %s687, 16
          %s689 = scalar_lea.vmem %s16, %s688
        $region84: #{flownet_forward.1} parent=35 // pred_fallthru
          _
        // Predicated region
        $region85: #{flownet_forward.1} parent=35 // pred_check
          %p690 = pneg %p465
        $region86: #{flownet_forward.1} parent=35 // pred_check_branch
          %692 = sbr.rel (%p690) target = $region88
        $region87: #{flownet_forward.1} parent=35 // pred_region
          %p693 = scmp.lt.s32.totalorder %s28, 1
          %s694 = scalar_select %p693, %s28, 1
          %s695 = smul.addr %s694, 256
          %s696 = smul.addr %s695, 4
          %s697 = scalar_lea.vmem %s17, %s696
        $region88: #{flownet_forward.1} parent=35 // pred_fallthru
          _
        // Predicated region
        $region89: #{flownet_forward.1} parent=35 // pred_check
          %p698 = pneg %p491
        $region90: #{flownet_forward.1} parent=35 // pred_check_branch
          %700 = sbr.rel (%p698) target = $region92
        $region91: #{flownet_forward.1} parent=35 // pred_region
          %p701 = scmp.lt.s32.totalorder %s28, 1
          %s702 = scalar_select %p701, %s28, 1
          %s703 = scalar_lea.vmem %s18, %s702
        $region92: #{flownet_forward.1} parent=35 // pred_fallthru
          _
        // Predicated region
        $region93: #{flownet_forward.1} parent=35 // pred_check
          %p704 = pneg %p517
        $region94: #{flownet_forward.1} parent=35 // pred_check_branch
          %706 = sbr.rel (%p704) target = $region96
        $region95: #{flownet_forward.1} parent=35 // pred_region
          %p707 = scmp.lt.s32.totalorder %s28, 1
          %s708 = scalar_select %p707, %s28, 1
          %s709 = scalar_lea.vmem %s19, %s708
        $region96: #{flownet_forward.1} parent=35 // pred_fallthru
          _
        // Predicated region
        $region97: #{flownet_forward.1} parent=35 // pred_check
          %p710 = pneg %p543
        $region98: #{flownet_forward.1} parent=35 // pred_check_branch
          %712 = sbr.rel (%p710) target = $region100
        $region99: #{flownet_forward.1} parent=35 // pred_region
          %p713 = scmp.lt.s32.totalorder %s28, 1
          %s714 = scalar_select %p713, %s28, 1
          %s715 = scalar_lea.vmem %s20, %s714
        $region100: #{flownet_forward.1} parent=35 // pred_fallthru
          _
      $region36: #{flownet_forward.1} parent=5 // pred_fallthru
        _
      %p716 = scmp.le.s32.totalorder 1, %s28
      %p717 = scmp.lt.s32.totalorder %s28, 3
      %p718 = pnand %p716, %p717
      %p719 = pneg %p718
      // Predicated region
      $region101: #{flownet_forward.1} parent=5 // pred_check
        _
      $region102: #{flownet_forward.1} parent=5 // pred_check_branch
        %721 = sbr.rel (%p718) target = $region104
      $region103: #{flownet_forward.1} parent=5 // pred_region
        %s722 = ssub.s32 %s28, 1
        %p723 = pneg %p49
        %p724 = pneg %p46
        %p725 = pneg %p70
        %p726 = pneg %p67
        %p727 = pneg %p91
        %p728 = pneg %p88
        %p729 = pneg %p112
        %p730 = pneg %p109
        %p731 = pneg %p133
        %p732 = pneg %p130
        %p733 = scmp.lt.s32.totalorder %s33, 1
        %s734 = scalar_select %p733, %s33, 1
        %s735 = smul.addr %s734, 16
        %s736 = smul.addr %s735, 4
        %s737 = scalar_lea.vmem %s5, %s736
        %p738 = pneg %p159
        %p739 = pneg %p156
        %p740 = scmp.lt.s32.totalorder %s33, 1
        %s741 = scalar_select %p740, %s33, 1
        %s742 = smul.addr %s741, 2
        %s743 = scalar_lea.vmem %s6, %s742
        %p744 = pneg %p185
        %p745 = pneg %p182
        %p746 = scmp.lt.s32.totalorder %s33, 1
        %s747 = scalar_select %p746, %s33, 1
        %s748 = smul.addr %s747, 16
        %s749 = smul.addr %s748, 4
        %s750 = scalar_lea.vmem %s7, %s749
        %p751 = pneg %p211
        %p752 = pneg %p208
        %p753 = scmp.lt.s32.totalorder %s33, 1
        %s754 = scalar_select %p753, %s33, 1
        %s755 = smul.addr %s754, 2
        %s756 = scalar_lea.vmem %s8, %s755
        %p757 = pneg %p237
        %p758 = pneg %p234
        %p759 = scmp.lt.s32.totalorder %s33, 1
        %s760 = scalar_select %p759, %s33, 1
        %s761 = smul.addr %s760, 16
        %s762 = smul.addr %s761, 4
        %s763 = scalar_lea.vmem %s9, %s762
        %p764 = pneg %p263
        %p765 = pneg %p260
        %p766 = scmp.lt.s32.totalorder %s33, 1
        %s767 = scalar_select %p766, %s33, 1
        %s768 = smul.addr %s767, 2
        %s769 = scalar_lea.vmem %s10, %s768
        %p770 = pneg %p289
        %p771 = pneg %p286
        %p772 = scmp.lt.s32.totalorder %s33, 1
        %s773 = scalar_select %p772, %s33, 1
        %s774 = smul.addr %s773, 8
        %s775 = smul.addr %s774, 4
        %s776 = scalar_lea.vmem %s11, %s775
        %p777 = pneg %p315
        %p778 = pneg %p312
        %p779 = scmp.lt.s32.totalorder %s33, 1
        %s780 = scalar_select %p779, %s33, 1
        %s781 = scalar_lea.vmem %s12, %s780
        %p782 = pneg %p341
        %p783 = pneg %p338
        %p784 = scmp.lt.s32.totalorder %s33, 1
        %s785 = scalar_select %p784, %s33, 1
        %s786 = scalar_lea.vmem %s13, %s785
        %p787 = pneg %p367
        %p788 = pneg %p364
        %p789 = scmp.lt.s32.totalorder %s33, 1
        %s790 = scalar_select %p789, %s33, 1
        %s791 = scalar_lea.vmem %s14, %s790
        %p792 = pneg %p393
        %p793 = pneg %p390
        %p794 = scmp.lt.s32.totalorder %s33, 1
        %s795 = scalar_select %p794, %s33, 1
        %s796 = smul.addr %s795, 128
        %s797 = smul.addr %s796, 4
        %s798 = scalar_lea.vmem %s15, %s797
        %p799 = pneg %p419
        %p800 = pneg %p416
        %p801 = scmp.lt.s32.totalorder %s33, 1
        %s802 = scalar_select %p801, %s33, 1
        %s803 = smul.addr %s802, 16
        %s804 = scalar_lea.vmem %s16, %s803
        %p805 = pneg %p445
        %p806 = pneg %p442
        %p807 = scmp.lt.s32.totalorder %s33, 1
        %s808 = scalar_select %p807, %s33, 1
        %s809 = smul.addr %s808, 256
        %s810 = smul.addr %s809, 4
        %s811 = scalar_lea.vmem %s17, %s810
        %p812 = pneg %p471
        %p813 = pneg %p468
        %p814 = scmp.lt.s32.totalorder %s33, 1
        %s815 = scalar_select %p814, %s33, 1
        %s816 = scalar_lea.vmem %s18, %s815
        %p817 = pneg %p497
        %p818 = pneg %p494
        %p819 = scmp.lt.s32.totalorder %s33, 1
        %s820 = scalar_select %p819, %s33, 1
        %s821 = scalar_lea.vmem %s19, %s820
        %p822 = pneg %p523
        %p823 = pneg %p520
        %p824 = scmp.lt.s32.totalorder %s33, 1
        %s825 = scalar_select %p824, %s33, 1
        %s826 = scalar_lea.vmem %s20, %s825
        %p827 = pneg %p549
        %p828 = pneg %p546
        %p829 = pneg %p570
        %p830 = pneg %p567
        %p831 = scmp.lt.s32.totalorder %s33, 1
        %s832 = scalar_select %p831, %s33, 1
        %s833 = smul.addr %s832, 16
        %s834 = smul.addr %s833, 4
        %s835 = scalar_lea.vmem %s5, %s834
        %p836 = scmp.lt.s32.totalorder %s33, 1
        %s837 = scalar_select %p836, %s33, 1
        %s838 = smul.addr %s837, 2
        %s839 = scalar_lea.vmem %s6, %s838
        %p840 = scmp.lt.s32.totalorder %s33, 1
        %s841 = scalar_select %p840, %s33, 1
        %s842 = smul.addr %s841, 16
        %s843 = smul.addr %s842, 4
        %s844 = scalar_lea.vmem %s7, %s843
        %p845 = scmp.lt.s32.totalorder %s33, 1
        %s846 = scalar_select %p845, %s33, 1
        %s847 = smul.addr %s846, 2
        %s848 = scalar_lea.vmem %s8, %s847
        %p849 = scmp.lt.s32.totalorder %s33, 1
        %s850 = scalar_select %p849, %s33, 1
        %s851 = smul.addr %s850, 16
        %s852 = smul.addr %s851, 4
        %s853 = scalar_lea.vmem %s9, %s852
        %p854 = scmp.lt.s32.totalorder %s33, 1
        %s855 = scalar_select %p854, %s33, 1
        %s856 = smul.addr %s855, 2
        %s857 = scalar_lea.vmem %s10, %s856
        %p858 = scmp.lt.s32.totalorder %s33, 1
        %s859 = scalar_select %p858, %s33, 1
        %s860 = smul.addr %s859, 8
        %s861 = smul.addr %s860, 4
        %s862 = scalar_lea.vmem %s11, %s861
        %p863 = scmp.lt.s32.totalorder %s33, 1
        %s864 = scalar_select %p863, %s33, 1
        %s865 = scalar_lea.vmem %s12, %s864
        %p866 = scmp.lt.s32.totalorder %s33, 1
        %s867 = scalar_select %p866, %s33, 1
        %s868 = scalar_lea.vmem %s13, %s867
        %p869 = scmp.lt.s32.totalorder %s33, 1
        %s870 = scalar_select %p869, %s33, 1
        %s871 = scalar_lea.vmem %s14, %s870
        %p872 = scmp.lt.s32.totalorder %s33, 1
        %s873 = scalar_select %p872, %s33, 1
        %s874 = smul.addr %s873, 128
        %s875 = smul.addr %s874, 4
        %s876 = scalar_lea.vmem %s15, %s875
        %p877 = scmp.lt.s32.totalorder %s33, 1
        %s878 = scalar_select %p877, %s33, 1
        %s879 = smul.addr %s878, 16
        %s880 = scalar_lea.vmem %s16, %s879
        %p881 = scmp.lt.s32.totalorder %s33, 1
        %s882 = scalar_select %p881, %s33, 1
        %s883 = smul.addr %s882, 256
        %s884 = smul.addr %s883, 4
        %s885 = scalar_lea.vmem %s17, %s884
        %p886 = scmp.lt.s32.totalorder %s33, 1
        %s887 = scalar_select %p886, %s33, 1
        %s888 = scalar_lea.vmem %s18, %s887
        %p889 = scmp.lt.s32.totalorder %s33, 1
        %s890 = scalar_select %p889, %s33, 1
        %s891 = scalar_lea.vmem %s19, %s890
        %p892 = scmp.lt.s32.totalorder %s33, 1
        %s893 = scalar_select %p892, %s33, 1
        %s894 = scalar_lea.vmem %s20, %s893
        %p896 = scmp.eq.s32.totalorder %s33, 0
        // Predicated region
        $region105: #{flownet_forward.1} parent=103 // pred_check
          %p897 = pneg %p896
        $region106: #{flownet_forward.1} parent=103 // pred_check_branch
          %899 = sbr.rel (%p897) target = $region108
        $region107: #{flownet_forward.1} parent=103 // pred_region
          %v900 = vld [vmem:[%s0] sm:$0xff]
          %v901 = vld [vmem:[%s0 + $0x8] sm:$0xff]
          %v902 = vld [vmem:[%s0 + $0x10] sm:$0xff]
          %v903 = vld [vmem:[%s0 + $0x18] sm:$0xff]
          %v904 = vld [vmem:[%s0 + $0x20] sm:$0xff]
          %v905 = vld [vmem:[%s0 + $0x28] sm:$0xff]
          %v906 = vld [vmem:[%s0 + $0x30] sm:$0xff]
          %v907 = vld [vmem:[%s0 + $0x38] sm:$0xff]
          %v908 = vld [vmem:[%s0 + $0x40] sm:$0xff]
          %v909 = vld [vmem:[%s0 + $0x48] sm:$0xff]
          %v910 = vld [vmem:[%s0 + $0x50] sm:$0xff]
          %v911 = vld [vmem:[%s0 + $0x58] sm:$0xff]
          %v912 = vld [vmem:[%s0 + $0x60] sm:$0xff]
          %v913 = vld [vmem:[%s0 + $0x68] sm:$0xff]
          %v914 = vld [vmem:[%s0 + $0x70] sm:$0xff]
          %v915 = vld [vmem:[%s0 + $0x78] sm:$0xff]
          %v916 = vlaneseq
          %v917 = vand.u32 %v916, 127
          %918 = vset.pattern.permute.xlu0 0
          %919 = vperm.xlu0 %918, %v900
          %v920 = vpop.permute.xlu0 %919
          %921 = vset.pattern.permute.xlu0 0
          %922 = vperm.xlu0 %921, %v901
          %v923 = vpop.permute.xlu0 %922
          %924 = vset.pattern.permute.xlu0 0
          %925 = vperm.xlu0 %924, %v902
          %v926 = vpop.permute.xlu0 %925
          %927 = vset.pattern.permute.xlu0 0
          %928 = vperm.xlu0 %927, %v903
          %v929 = vpop.permute.xlu0 %928
          %930 = vset.pattern.permute.xlu0 0
          %931 = vperm.xlu0 %930, %v904
          %v932 = vpop.permute.xlu0 %931
          %933 = vset.pattern.permute.xlu0 0
          %934 = vperm.xlu0 %933, %v905
          %v935 = vpop.permute.xlu0 %934
          %936 = vset.pattern.permute.xlu0 0
          %937 = vperm.xlu0 %936, %v906
          %v938 = vpop.permute.xlu0 %937
          %939 = vset.pattern.permute.xlu0 0
          %940 = vperm.xlu0 %939, %v907
          %v941 = vpop.permute.xlu0 %940
          %942 = vset.pattern.permute.xlu0 0
          %943 = vperm.xlu0 %942, %v908
          %v944 = vpop.permute.xlu0 %943
          %945 = vset.pattern.permute.xlu0 0
          %946 = vperm.xlu0 %945, %v909
          %v947 = vpop.permute.xlu0 %946
          %948 = vset.pattern.permute.xlu0 0
          %949 = vperm.xlu0 %948, %v910
          %v950 = vpop.permute.xlu0 %949
          %951 = vset.pattern.permute.xlu0 0
          %952 = vperm.xlu0 %951, %v911
          %v953 = vpop.permute.xlu0 %952
          %954 = vset.pattern.permute.xlu0 0
          %955 = vperm.xlu0 %954, %v912
          %v956 = vpop.permute.xlu0 %955
          %957 = vset.pattern.permute.xlu0 0
          %958 = vperm.xlu0 %957, %v913
          %v959 = vpop.permute.xlu0 %958
          %960 = vset.pattern.permute.xlu0 0
          %961 = vperm.xlu0 %960, %v914
          %v962 = vpop.permute.xlu0 %961
          %963 = vset.pattern.permute.xlu0 0
          %964 = vperm.xlu0 %963, %v915
          %v965 = vpop.permute.xlu0 %964
          %vm966 = vcmp.eq.s32.totalorder %v920, %v917
          %vm967 = vcmp.eq.s32.totalorder %v923, %v917
          %vm968 = vcmp.eq.s32.totalorder %v926, %v917
          %vm969 = vcmp.eq.s32.totalorder %v929, %v917
          %vm970 = vcmp.eq.s32.totalorder %v932, %v917
          %vm971 = vcmp.eq.s32.totalorder %v935, %v917
          %vm972 = vcmp.eq.s32.totalorder %v938, %v917
          %vm973 = vcmp.eq.s32.totalorder %v941, %v917
          %vm974 = vcmp.eq.s32.totalorder %v944, %v917
          %vm975 = vcmp.eq.s32.totalorder %v947, %v917
          %vm976 = vcmp.eq.s32.totalorder %v950, %v917
          %vm977 = vcmp.eq.s32.totalorder %v953, %v917
          %vm978 = vcmp.eq.s32.totalorder %v956, %v917
          %vm979 = vcmp.eq.s32.totalorder %v959, %v917
          %vm980 = vcmp.eq.s32.totalorder %v962, %v917
          %vm981 = vcmp.eq.s32.totalorder %v965, %v917
          %v982 = vsel %vm966, 1, 0
          %v983 = vsel %vm967, 1, 0
          %v984 = vsel %vm968, 1, 0
          %v985 = vsel %vm969, 1, 0
          %v986 = vsel %vm970, 1, 0
          %v987 = vsel %vm971, 1, 0
          %v988 = vsel %vm972, 1, 0
          %v989 = vsel %vm973, 1, 0
          %v990 = vsel %vm974, 1, 0
          %v991 = vsel %vm975, 1, 0
          %v992 = vsel %vm976, 1, 0
          %v993 = vsel %vm977, 1, 0
          %v994 = vsel %vm978, 1, 0
          %v995 = vsel %vm979, 1, 0
          %v996 = vsel %vm980, 1, 0
          %v997 = vsel %vm981, 1, 0
          %v998 = vcvt.s32.f32 %v982
          %v999 = vcvt.s32.f32 %v983
          %v1000 = vcvt.s32.f32 %v984
          %v1001 = vcvt.s32.f32 %v985
          %v1002 = vcvt.s32.f32 %v986
          %v1003 = vcvt.s32.f32 %v987
          %v1004 = vcvt.s32.f32 %v988
          %v1005 = vcvt.s32.f32 %v989
          %v1006 = vcvt.s32.f32 %v990
          %v1007 = vcvt.s32.f32 %v991
          %v1008 = vcvt.s32.f32 %v992
          %v1009 = vcvt.s32.f32 %v993
          %v1010 = vcvt.s32.f32 %v994
          %v1011 = vcvt.s32.f32 %v995
          %v1012 = vcvt.s32.f32 %v996
          %v1013 = vcvt.s32.f32 %v997
          %v1014 = vld [vmem:[%s1] sm:$0xff]
          %v1015 = vld [vmem:[%s1 + $0x8] sm:$0xff]
          %v1016 = vld [vmem:[%s2] sm:$0xff]
          %v1017 = vld [vmem:[%s2 + $0x8] sm:$0xff]
          %v1018 = vld [vmem:[%s2 + $0x10] sm:$0xff]
          %v1019 = vld [vmem:[%s2 + $0x18] sm:$0xff]
          %v1020 = vld [vmem:[%s2 + $0x20] sm:$0xff]
          %v1021 = vld [vmem:[%s2 + $0x28] sm:$0xff]
          %v1022 = vld [vmem:[%s2 + $0x30] sm:$0xff]
          %v1023 = vld [vmem:[%s2 + $0x38] sm:$0xff]
          %v1024 = vld [vmem:[%s2 + $0x40] sm:$0xff]
          %v1025 = vld [vmem:[%s2 + $0x48] sm:$0xff]
          %v1026 = vld [vmem:[%s2 + $0x50] sm:$0xff]
          %v1027 = vld [vmem:[%s2 + $0x58] sm:$0xff]
          %v1028 = vld [vmem:[%s2 + $0x60] sm:$0xff]
          %v1029 = vld [vmem:[%s2 + $0x68] sm:$0xff]
          %v1030 = vld [vmem:[%s2 + $0x70] sm:$0xff]
          %v1031 = vld [vmem:[%s2 + $0x78] sm:$0xff]
          %vm1032 = vcmask 130048
          %v1034 = vsel %vm1032, %v998, 0
          %v1037 = vsel %vm1032, %v999, 0
          %v1040 = vsel %vm1032, %v1000, 0
          %v1043 = vsel %vm1032, %v1001, 0
          %v1046 = vsel %vm1032, %v1002, 0
          %v1049 = vsel %vm1032, %v1003, 0
          %v1052 = vsel %vm1032, %v1004, 0
          %v1055 = vsel %vm1032, %v1005, 0
          %v1058 = vsel %vm1032, %v1006, 0
          %v1061 = vsel %vm1032, %v1007, 0
          %v1064 = vsel %vm1032, %v1008, 0
          %v1067 = vsel %vm1032, %v1009, 0
          %v1070 = vsel %vm1032, %v1010, 0
          %v1073 = vsel %vm1032, %v1011, 0
          %v1076 = vsel %vm1032, %v1012, 0
          %v1079 = vsel %vm1032, %v1013, 0
          %1081 = vmatprep.subr.mxu0 0.0
          %1082 = vmatpush1.msra.mxu0 %v1014
          %1083 = vmatprep.subr.mxu0 0.0
          %1084 = vmatpush1.msra.mxu0 %v1015
          %1085 = vmatprep.subr.mxu0 0.0
          %1086 = vmatpush1.msra.mxu0 0.0
          %1087 = vmatprep.subr.mxu0 0.0
          %1088 = vmatpush1.msra.mxu0 0.0
          %1089 = vmatprep.subr.mxu0 0.0
          %1090 = vmatpush1.msra.mxu0 0.0
          %1091 = vmatprep.subr.mxu0 0.0
          %1092 = vmatpush1.msra.mxu0 0.0
          %1093 = vmatprep.subr.mxu0 0.0
          %1094 = vmatpush1.msra.mxu0 0.0
          %1095 = vmatprep.subr.mxu0 0.0
          %1096 = vmatpush1.msra.mxu0 0.0
          %1097 = vmatprep.subr.mxu0 0.0
          %1098 = vmatpush1.msra.mxu0 0.0
          %1099 = vmatprep.subr.mxu0 0.0
          %1100 = vmatpush1.msra.mxu0 0.0
          %1101 = vmatprep.subr.mxu0 0.0
          %1102 = vmatpush1.msra.mxu0 0.0
          %1103 = vmatprep.subr.mxu0 0.0
          %1104 = vmatpush1.msra.mxu0 0.0
          %1105 = vmatprep.subr.mxu0 0.0
          %1106 = vmatpush1.msra.mxu0 0.0
          %1107 = vmatprep.subr.mxu0 0.0
          %1108 = vmatpush1.msra.mxu0 0.0
          %1109 = vmatprep.subr.mxu0 0.0
          %1110 = vmatpush1.msra.mxu0 0.0
          %1111 = vmatprep.subr.mxu0 0.0
          %1112 = vmatpush1.msra.mxu0 0.0
          %1113 = vmatprep.subr.mxu0 0.0
          %1114 = vmatpush1.msra.mxu0 0.0
          %1115 = vmatprep.subr.mxu0 0.0
          %1116 = vmatpush1.msra.mxu0 0.0
          %1117 = vmatprep.subr.mxu0 0.0
          %1118 = vmatpush1.msra.mxu0 0.0
          %1119 = vmatprep.subr.mxu0 0.0
          %1120 = vmatpush1.msra.mxu0 0.0
          %1121 = vmatprep.subr.mxu0 0.0
          %1122 = vmatpush1.msra.mxu0 0.0
          %1123 = vmatprep.subr.mxu0 0.0
          %1124 = vmatpush1.msra.mxu0 0.0
          %1125 = vmatprep.subr.mxu0 0.0
          %1126 = vmatpush1.msra.mxu0 0.0
          %1127 = vmatprep.subr.mxu0 0.0
          %1128 = vmatpush1.msra.mxu0 0.0
          %1129 = vmatprep.subr.mxu0 0.0
          %1130 = vmatpush1.msra.mxu0 0.0
          %1131 = vmatprep.subr.mxu0 0.0
          %1132 = vmatpush1.msra.mxu0 0.0
          %1133 = vmatprep.subr.mxu0 0.0
          %1134 = vmatpush1.msra.mxu0 0.0
          %1135 = vmatprep.subr.mxu0 0.0
          %1136 = vmatpush1.msra.mxu0 0.0
          %1137 = vmatprep.subr.mxu0 0.0
          %1138 = vmatpush1.msra.mxu0 0.0
          %1139 = vmatprep.subr.mxu0 0.0
          %1140 = vmatpush1.msra.mxu0 0.0
          %1141 = vmatprep.subr.mxu0 0.0
          %1142 = vmatpush1.msra.mxu0 0.0
          %1143 = vmatprep.subr.mxu0 0.0
          %1144 = vmatpush1.msra.mxu0 0.0
          %1145 = vmatprep.mubr.f32.mxu0 0.0
          %1146 = vmatmul.mubr.f32.gmra.mrb[0].mxu0 %v1034
          %v1147 = vpop.f32.mrb[0].mxu0
          %v1148 = vadd.f32 %v1016, %v1147
          %v1149 = vpop.f32.mrb[0].mxu0
          %1150 = vmatprep.mubr.f32.mxu0 0.0
          %1151 = vmatmul.mubr.f32.gmra.mrb[0].mxu0 %v1037
          %v1152 = vpop.f32.mrb[0].mxu0
          %v1153 = vadd.f32 %v1017, %v1152
          %v1154 = vpop.f32.mrb[0].mxu0
          %1155 = vmatprep.mubr.f32.mxu0 0.0
          %1156 = vmatmul.mubr.f32.gmra.mrb[0].mxu0 %v1040
          %v1157 = vpop.f32.mrb[0].mxu0
          %v1158 = vadd.f32 %v1018, %v1157
          %v1159 = vpop.f32.mrb[0].mxu0
          %1160 = vmatprep.mubr.f32.mxu0 0.0
          %1161 = vmatmul.mubr.f32.gmra.mrb[0].mxu0 %v1043
          %v1162 = vpop.f32.mrb[0].mxu0
          %v1163 = vadd.f32 %v1019, %v1162
          %v1164 = vpop.f32.mrb[0].mxu0
          %1165 = vmatprep.mubr.f32.mxu0 0.0
          %1166 = vmatmul.mubr.f32.gmra.mrb[0].mxu0 %v1046
          %v1167 = vpop.f32.mrb[0].mxu0
          %v1168 = vadd.f32 %v1020, %v1167
          %v1169 = vpop.f32.mrb[0].mxu0
          %1170 = vmatprep.mubr.f32.mxu0 0.0
          %1171 = vmatmul.mubr.f32.gmra.mrb[0].mxu0 %v1049
          %v1172 = vpop.f32.mrb[0].mxu0
          %v1173 = vadd.f32 %v1021, %v1172
          %v1174 = vpop.f32.mrb[0].mxu0
          %1175 = vmatprep.mubr.f32.mxu0 0.0
          %1176 = vmatmul.mubr.f32.gmra.mrb[0].mxu0 %v1052
          %v1177 = vpop.f32.mrb[0].mxu0
          %v1178 = vadd.f32 %v1022, %v1177
          %v1179 = vpop.f32.mrb[0].mxu0
          %1180 = vmatprep.mubr.f32.mxu0 0.0
          %1181 = vmatmul.mubr.f32.gmra.mrb[0].mxu0 %v1055
          %v1182 = vpop.f32.mrb[0].mxu0
          %v1183 = vadd.f32 %v1023, %v1182
          %v1184 = vpop.f32.mrb[0].mxu0
          %1185 = vmatprep.mubr.f32.mxu0 0.0
          %1186 = vmatmul.mubr.f32.gmra.mrb[0].mxu0 %v1058
          %v1187 = vpop.f32.mrb[0].mxu0
          %v1188 = vadd.f32 %v1024, %v1187
          %v1189 = vpop.f32.mrb[0].mxu0
          %1190 = vmatprep.mubr.f32.mxu0 0.0
          %1191 = vmatmul.mubr.f32.gmra.mrb[0].mxu0 %v1061
          %v1192 = vpop.f32.mrb[0].mxu0
          %v1193 = vadd.f32 %v1025, %v1192
          %v1194 = vpop.f32.mrb[0].mxu0
          %1195 = vmatprep.mubr.f32.mxu0 0.0
          %1196 = vmatmul.mubr.f32.gmra.mrb[0].mxu0 %v1064
          %v1197 = vpop.f32.mrb[0].mxu0
          %v1198 = vadd.f32 %v1026, %v1197
          %v1199 = vpop.f32.mrb[0].mxu0
          %1200 = vmatprep.mubr.f32.mxu0 0.0
          %1201 = vmatmul.mubr.f32.gmra.mrb[0].mxu0 %v1067
          %v1202 = vpop.f32.mrb[0].mxu0
          %v1203 = vadd.f32 %v1027, %v1202
          %v1204 = vpop.f32.mrb[0].mxu0
          %1205 = vmatprep.mubr.f32.mxu0 0.0
          %1206 = vmatmul.mubr.f32.gmra.mrb[0].mxu0 %v1070
          %v1207 = vpop.f32.mrb[0].mxu0
          %v1208 = vadd.f32 %v1028, %v1207
          %v1209 = vpop.f32.mrb[0].mxu0
          %1210 = vmatprep.mubr.f32.mxu0 0.0
          %1211 = vmatmul.mubr.f32.gmra.mrb[0].mxu0 %v1073
          %v1212 = vpop.f32.mrb[0].mxu0
          %v1213 = vadd.f32 %v1029, %v1212
          %v1214 = vpop.f32.mrb[0].mxu0
          %1215 = vmatprep.mubr.f32.mxu0 0.0
          %1216 = vmatmul.mubr.f32.gmra.mrb[0].mxu0 %v1076
          %v1217 = vpop.f32.mrb[0].mxu0
          %v1218 = vadd.f32 %v1030, %v1217
          %v1219 = vpop.f32.mrb[0].mxu0
          %1220 = vmatprep.mubr.f32.mxu0 0.0
          %1221 = vmatmul.mubr.f32.gmra.mrb[0].mxu0 %v1079
          %v1222 = vpop.f32.mrb[0].mxu0
          %v1223 = vadd.f32 %v1031, %v1222
          %v1224 = vpop.f32.mrb[0].mxu0
          %1225 = vdwg.mxu0
          %vm1226 = vcmask 523264
          %1227 = vst.msk [vmem:[#allocation2] sm:$0xff] %vm1226, %v1148
          %1228 = vst.msk [vmem:[#allocation2 + $0x8] sm:$0xff] %vm1226, %v1153
          %1229 = vst.msk [vmem:[#allocation2 + $0x10] sm:$0xff] %vm1226, %v1158
          %1230 = vst.msk [vmem:[#allocation2 + $0x18] sm:$0xff] %vm1226, %v1163
          %1231 = vst.msk [vmem:[#allocation2 + $0x20] sm:$0xff] %vm1226, %v1168
          %1232 = vst.msk [vmem:[#allocation2 + $0x28] sm:$0xff] %vm1226, %v1173
          %1233 = vst.msk [vmem:[#allocation2 + $0x30] sm:$0xff] %vm1226, %v1178
          %1234 = vst.msk [vmem:[#allocation2 + $0x38] sm:$0xff] %vm1226, %v1183
          %1235 = vst.msk [vmem:[#allocation2 + $0x40] sm:$0xff] %vm1226, %v1188
          %1236 = vst.msk [vmem:[#allocation2 + $0x48] sm:$0xff] %vm1226, %v1193
          %1237 = vst.msk [vmem:[#allocation2 + $0x50] sm:$0xff] %vm1226, %v1198
          %1238 = vst.msk [vmem:[#allocation2 + $0x58] sm:$0xff] %vm1226, %v1203
          %1239 = vst.msk [vmem:[#allocation2 + $0x60] sm:$0xff] %vm1226, %v1208
          %1240 = vst.msk [vmem:[#allocation2 + $0x68] sm:$0xff] %vm1226, %v1213
          %1241 = vst.msk [vmem:[#allocation2 + $0x70] sm:$0xff] %vm1226, %v1218
          %1242 = vst.msk [vmem:[#allocation2 + $0x78] sm:$0xff] %vm1226, %v1223
        $region108: #{flownet_forward.1} parent=103 // pred_fallthru
          _
        %v1243 = vld [vmem:[#allocation2] sm:$0xff]
        %v1244 = vld [vmem:[#allocation2 + $0x8] sm:$0xff]
        %v1245 = vld [vmem:[#allocation2 + $0x10] sm:$0xff]
        %v1246 = vld [vmem:[#allocation2 + $0x18] sm:$0xff]
        %v1247 = vld [vmem:[#allocation2 + $0x20] sm:$0xff]
        %v1248 = vld [vmem:[#allocation2 + $0x28] sm:$0xff]
        %v1249 = vld [vmem:[#allocation2 + $0x30] sm:$0xff]
        %v1250 = vld [vmem:[#allocation2 + $0x38] sm:$0xff]
        %v1251 = vld [vmem:[#allocation2 + $0x40] sm:$0xff]
        %v1252 = vld [vmem:[#allocation2 + $0x48] sm:$0xff]
        %v1253 = vld [vmem:[#allocation2 + $0x50] sm:$0xff]
        %v1254 = vld [vmem:[#allocation2 + $0x58] sm:$0xff]
        %v1255 = vld [vmem:[#allocation2 + $0x60] sm:$0xff]
        %v1256 = vld [vmem:[#allocation2 + $0x68] sm:$0xff]
        %v1257 = vld [vmem:[#allocation2 + $0x70] sm:$0xff]
        %v1258 = vld [vmem:[#allocation2 + $0x78] sm:$0xff]
        %v1259 = vpack.c.bf16 %v1244, %v1243
        %v1260 = vpack.c.bf16 %v1246, %v1245
        %v1261 = vpack.c.bf16 %v1248, %v1247
        %v1262 = vpack.c.bf16 %v1250, %v1249
        %v1263 = vpack.c.bf16 %v1252, %v1251
        %v1264 = vpack.c.bf16 %v1254, %v1253
        %v1265 = vpack.c.bf16 %v1256, %v1255
        %v1266 = vpack.c.bf16 %v1258, %v1257
        %v1267 = vld [vmem:[%s3] sm:$0xff]
        %v1268 = vld [vmem:[%s3 + $0x8] sm:$0xff]
        %v1269 = vld [vmem:[%s3 + $0x10] sm:$0xff]
        %v1270 = vld [vmem:[%s3 + $0x18] sm:$0xff]
        %v1271 = vld [vmem:[%s3 + $0x20] sm:$0xff]
        %v1272 = vld [vmem:[%s3 + $0x28] sm:$0xff]
        %v1273 = vld [vmem:[%s3 + $0x30] sm:$0xff]
        %v1274 = vld [vmem:[%s3 + $0x38] sm:$0xff]
        %v1275 = vld [vmem:[%s3 + $0x40] sm:$0xff]
        %v1276 = vld [vmem:[%s3 + $0x48] sm:$0xff]
        %v1277 = vld [vmem:[%s3 + $0x50] sm:$0xff]
        %v1278 = vld [vmem:[%s3 + $0x58] sm:$0xff]
        %v1279 = vld [vmem:[%s3 + $0x60] sm:$0xff]
        %v1280 = vld [vmem:[%s3 + $0x68] sm:$0xff]
        %v1281 = vld [vmem:[%s3 + $0x70] sm:$0xff]
        %v1282 = vld [vmem:[%s3 + $0x78] sm:$0xff]
        %v1283 = vld [vmem:[%s835] sm:$0xf]
        %v1284 = vld [vmem:[%s835 + $0x4] sm:$0xf]
        %v1285 = vld [vmem:[%s835 + $0x8] sm:$0xf]
        %v1286 = vld [vmem:[%s835 + $0xc] sm:$0xf]
        %v1287 = vld [vmem:[%s835 + $0x10] sm:$0xf]
        %v1288 = vld [vmem:[%s835 + $0x14] sm:$0xf]
        %v1289 = vld [vmem:[%s835 + $0x18] sm:$0xf]
        %v1290 = vld [vmem:[%s835 + $0x1c] sm:$0xf]
        %v1291 = vld [vmem:[%s839] sm:$0x1]
        %v1293 = vlaneseq
        %v1294 = vshrl.u32 %v1293, 7
        %v1295 = vsub.s32 0, %v1294
        %v1296 = vrot.slane %v1291, %v1295
        %v1306 = vunpack.c.l.b16 %v1283
        %v1307 = vunpack.c.l.b16 %v1284
        %v1308 = vunpack.c.l.b16 %v1285
        %v1309 = vunpack.c.l.b16 %v1286
        %v1310 = vunpack.c.l.b16 %v1287
        %v1311 = vunpack.c.l.b16 %v1288
        %v1312 = vunpack.c.l.b16 %v1289
        %v1313 = vunpack.c.l.b16 %v1290
        %v1314 = vpack.c.b16 %v1307, %v1306
        %v1315 = vpack.c.b16 %v1309, %v1308
        %v1316 = vpack.c.b16 %v1311, %v1310
        %v1317 = vpack.c.b16 %v1313, %v1312
        %vm1322 = vcmask 523264
        %v1324 = vsel %vm1322, %v1259, 0
        %v1327 = vsel %vm1322, %v1260, 0
        %v1330 = vsel %vm1322, %v1261, 0
        %v1333 = vsel %vm1322, %v1262, 0
        %v1336 = vsel %vm1322, %v1263, 0
        %v1339 = vsel %vm1322, %v1264, 0
        %v1342 = vsel %vm1322, %v1265, 0
        %v1345 = vsel %vm1322, %v1266, 0
        %1347 = vmatprep.subr.bf16.mxu0 0
        %1348 = vmatpush1.bf16.msra.mxu0 %v1314
        %1349 = vmatprep.subr.bf16.mxu0 0
        %1350 = vmatpush1.bf16.msra.mxu0 %v1315
        %1351 = vmatprep.subr.bf16.mxu0 0
        %1352 = vmatpush1.bf16.msra.mxu0 %v1316
        %1353 = vmatprep.subr.bf16.mxu0 0
        %1354 = vmatpush1.bf16.msra.mxu0 %v1317
        %1355 = vmatprep.subr.bf16.mxu0 0
        %1356 = vmatpush1.bf16.msra.mxu0 0
        %1357 = vmatprep.subr.bf16.mxu0 0
        %1358 = vmatpush1.bf16.msra.mxu0 0
        %1359 = vmatprep.subr.bf16.mxu0 0
        %1360 = vmatpush1.bf16.msra.mxu0 0
        %1361 = vmatprep.subr.bf16.mxu0 0
        %1362 = vmatpush1.bf16.msra.mxu0 0
        %1363 = vmatprep.subr.bf16.mxu0 0
        %1364 = vmatpush1.bf16.msra.mxu0 0
        %1365 = vmatprep.subr.bf16.mxu0 0
        %1366 = vmatpush1.bf16.msra.mxu0 0
        %1367 = vmatprep.subr.bf16.mxu0 0
        %1368 = vmatpush1.bf16.msra.mxu0 0
        %1369 = vmatprep.subr.bf16.mxu0 0
        %1370 = vmatpush1.bf16.msra.mxu0 0
        %1371 = vmatprep.subr.bf16.mxu0 0
        %1372 = vmatpush1.bf16.msra.mxu0 0
        %1373 = vmatprep.subr.bf16.mxu0 0
        %1374 = vmatpush1.bf16.msra.mxu0 0
        %1375 = vmatprep.subr.bf16.mxu0 0
        %1376 = vmatpush1.bf16.msra.mxu0 0
        %1377 = vmatprep.subr.bf16.mxu0 0
        %1378 = vmatpush1.bf16.msra.mxu0 0
        %1379 = vmatprep.mubr.bf16.mxu0 0
        %1380 = vmatmul.mubr.bf16.gmra.mrb[0].mxu0 %v1324
        %v1381 = vpop.f32.mrb[0].mxu0
        %v1382 = vadd.f32 %v1296, %v1381
        %v1383 = vpop.f32.mrb[0].mxu0
        %v1384 = vpop.f32.mrb[0].mxu0
        %v1385 = vadd.f32 %v1296, %v1384
        %v1386 = vpop.f32.mrb[0].mxu0
        %1387 = vmatprep.mubr.bf16.mxu0 0
        %1388 = vmatmul.mubr.bf16.gmra.mrb[0].mxu0 %v1327
        %v1389 = vpop.f32.mrb[0].mxu0
        %v1390 = vadd.f32 %v1296, %v1389
        %v1391 = vpop.f32.mrb[0].mxu0
        %v1392 = vpop.f32.mrb[0].mxu0
        %v1393 = vadd.f32 %v1296, %v1392
        %v1394 = vpop.f32.mrb[0].mxu0
        %1395 = vmatprep.mubr.bf16.mxu0 0
        %1396 = vmatmul.mubr.bf16.gmra.mrb[0].mxu0 %v1330
        %v1397 = vpop.f32.mrb[0].mxu0
        %v1398 = vadd.f32 %v1296, %v1397
        %v1399 = vpop.f32.mrb[0].mxu0
        %v1400 = vpop.f32.mrb[0].mxu0
        %v1401 = vadd.f32 %v1296, %v1400
        %v1402 = vpop.f32.mrb[0].mxu0
        %1403 = vmatprep.mubr.bf16.mxu0 0
        %1404 = vmatmul.mubr.bf16.gmra.mrb[0].mxu0 %v1333
        %v1405 = vpop.f32.mrb[0].mxu0
        %v1406 = vadd.f32 %v1296, %v1405
        %v1407 = vpop.f32.mrb[0].mxu0
        %v1408 = vpop.f32.mrb[0].mxu0
        %v1409 = vadd.f32 %v1296, %v1408
        %v1410 = vpop.f32.mrb[0].mxu0
        %1411 = vmatprep.mubr.bf16.mxu0 0
        %1412 = vmatmul.mubr.bf16.gmra.mrb[0].mxu0 %v1336
        %v1413 = vpop.f32.mrb[0].mxu0
        %v1414 = vadd.f32 %v1296, %v1413
        %v1415 = vpop.f32.mrb[0].mxu0
        %v1416 = vpop.f32.mrb[0].mxu0
        %v1417 = vadd.f32 %v1296, %v1416
        %v1418 = vpop.f32.mrb[0].mxu0
        %1419 = vmatprep.mubr.bf16.mxu0 0
        %1420 = vmatmul.mubr.bf16.gmra.mrb[0].mxu0 %v1339
        %v1421 = vpop.f32.mrb[0].mxu0
        %v1422 = vadd.f32 %v1296, %v1421
        %v1423 = vpop.f32.mrb[0].mxu0
        %v1424 = vpop.f32.mrb[0].mxu0
        %v1425 = vadd.f32 %v1296, %v1424
        %v1426 = vpop.f32.mrb[0].mxu0
        %1427 = vmatprep.mubr.bf16.mxu0 0
        %1428 = vmatmul.mubr.bf16.gmra.mrb[0].mxu0 %v1342
        %v1429 = vpop.f32.mrb[0].mxu0
        %v1430 = vadd.f32 %v1296, %v1429
        %v1431 = vpop.f32.mrb[0].mxu0
        %v1432 = vpop.f32.mrb[0].mxu0
        %v1433 = vadd.f32 %v1296, %v1432
        %v1434 = vpop.f32.mrb[0].mxu0
        %1435 = vmatprep.mubr.bf16.mxu0 0
        %1436 = vmatmul.mubr.bf16.gmra.mrb[0].mxu0 %v1345
        %v1437 = vpop.f32.mrb[0].mxu0
        %v1438 = vadd.f32 %v1296, %v1437
        %v1439 = vpop.f32.mrb[0].mxu0
        %v1440 = vpop.f32.mrb[0].mxu0
        %v1441 = vadd.f32 %v1296, %v1440
        %v1442 = vpop.f32.mrb[0].mxu0
        %1443 = vdwg.mxu0
        %v1444 = vld [vmem:[%s844] sm:$0xf]
        %v1445 = vld [vmem:[%s844 + $0x4] sm:$0xf]
        %v1446 = vld [vmem:[%s844 + $0x8] sm:$0xf]
        %v1447 = vld [vmem:[%s844 + $0xc] sm:$0xf]
        %v1448 = vld [vmem:[%s844 + $0x10] sm:$0xf]
        %v1449 = vld [vmem:[%s844 + $0x14] sm:$0xf]
        %v1450 = vld [vmem:[%s844 + $0x18] sm:$0xf]
        %v1451 = vld [vmem:[%s844 + $0x1c] sm:$0xf]
        %v1452 = vld [vmem:[%s848] sm:$0x1]
        %v1454 = vlaneseq
        %v1455 = vshrl.u32 %v1454, 7
        %v1456 = vsub.s32 0, %v1455
        %v1457 = vrot.slane %v1452, %v1456
        %v1467 = vunpack.c.l.b16 %v1444
        %v1468 = vunpack.c.l.b16 %v1445
        %v1469 = vunpack.c.l.b16 %v1446
        %v1470 = vunpack.c.l.b16 %v1447
        %v1471 = vunpack.c.l.b16 %v1448
        %v1472 = vunpack.c.l.b16 %v1449
        %v1473 = vunpack.c.l.b16 %v1450
        %v1474 = vunpack.c.l.b16 %v1451
        %v1475 = vpack.c.b16 %v1468, %v1467
        %v1476 = vpack.c.b16 %v1470, %v1469
        %v1477 = vpack.c.b16 %v1472, %v1471
        %v1478 = vpack.c.b16 %v1474, %v1473
        %1483 = vmatprep.subr.bf16.mxu0 0
        %1484 = vmatpush1.bf16.msra.mxu0 %v1475
        %1485 = vmatprep.subr.bf16.mxu0 0
        %1486 = vmatpush1.bf16.msra.mxu0 %v1476
        %1487 = vmatprep.subr.bf16.mxu0 0
        %1488 = vmatpush1.bf16.msra.mxu0 %v1477
        %1489 = vmatprep.subr.bf16.mxu0 0
        %1490 = vmatpush1.bf16.msra.mxu0 %v1478
        %1491 = vmatprep.subr.bf16.mxu0 0
        %1492 = vmatpush1.bf16.msra.mxu0 0
        %1493 = vmatprep.subr.bf16.mxu0 0
        %1494 = vmatpush1.bf16.msra.mxu0 0
        %1495 = vmatprep.subr.bf16.mxu0 0
        %1496 = vmatpush1.bf16.msra.mxu0 0
        %1497 = vmatprep.subr.bf16.mxu0 0
        %1498 = vmatpush1.bf16.msra.mxu0 0
        %1499 = vmatprep.subr.bf16.mxu0 0
        %1500 = vmatpush1.bf16.msra.mxu0 0
        %1501 = vmatprep.subr.bf16.mxu0 0
        %1502 = vmatpush1.bf16.msra.mxu0 0
        %1503 = vmatprep.subr.bf16.mxu0 0
        %1504 = vmatpush1.bf16.msra.mxu0 0
        %1505 = vmatprep.subr.bf16.mxu0 0
        %1506 = vmatpush1.bf16.msra.mxu0 0
        %1507 = vmatprep.subr.bf16.mxu0 0
        %1508 = vmatpush1.bf16.msra.mxu0 0
        %1509 = vmatprep.subr.bf16.mxu0 0
        %1510 = vmatpush1.bf16.msra.mxu0 0
        %1511 = vmatprep.subr.bf16.mxu0 0
        %1512 = vmatpush1.bf16.msra.mxu0 0
        %1513 = vmatprep.subr.bf16.mxu0 0
        %1514 = vmatpush1.bf16.msra.mxu0 0
        %1515 = vmatprep.mubr.bf16.mxu0 0
        %1516 = vmatmul.mubr.bf16.gmra.mrb[0].mxu0 %v1324
        %v1517 = vpop.f32.mrb[0].mxu0
        %v1518 = vadd.f32 %v1457, %v1517
        %v1519 = vpop.f32.mrb[0].mxu0
        %v1520 = vpop.f32.mrb[0].mxu0
        %v1521 = vadd.f32 %v1457, %v1520
        %v1522 = vpop.f32.mrb[0].mxu0
        %1523 = vmatprep.mubr.bf16.mxu0 0
        %1524 = vmatmul.mubr.bf16.gmra.mrb[0].mxu0 %v1327
        %v1525 = vpop.f32.mrb[0].mxu0
        %v1526 = vadd.f32 %v1457, %v1525
        %v1527 = vpop.f32.mrb[0].mxu0
        %v1528 = vpop.f32.mrb[0].mxu0
        %v1529 = vadd.f32 %v1457, %v1528
        %v1530 = vpop.f32.mrb[0].mxu0
        %1531 = vmatprep.mubr.bf16.mxu0 0
        %1532 = vmatmul.mubr.bf16.gmra.mrb[0].mxu0 %v1330
        %v1533 = vpop.f32.mrb[0].mxu0
        %v1534 = vadd.f32 %v1457, %v1533
        %v1535 = vpop.f32.mrb[0].mxu0
        %v1536 = vpop.f32.mrb[0].mxu0
        %v1537 = vadd.f32 %v1457, %v1536
        %v1538 = vpop.f32.mrb[0].mxu0
        %1539 = vmatprep.mubr.bf16.mxu0 0
        %1540 = vmatmul.mubr.bf16.gmra.mrb[0].mxu0 %v1333
        %v1541 = vpop.f32.mrb[0].mxu0
        %v1542 = vadd.f32 %v1457, %v1541
        %v1543 = vpop.f32.mrb[0].mxu0
        %v1544 = vpop.f32.mrb[0].mxu0
        %v1545 = vadd.f32 %v1457, %v1544
        %v1546 = vpop.f32.mrb[0].mxu0
        %1547 = vmatprep.mubr.bf16.mxu0 0
        %1548 = vmatmul.mubr.bf16.gmra.mrb[0].mxu0 %v1336
        %v1549 = vpop.f32.mrb[0].mxu0
        %v1550 = vadd.f32 %v1457, %v1549
        %v1551 = vpop.f32.mrb[0].mxu0
        %v1552 = vpop.f32.mrb[0].mxu0
        %v1553 = vadd.f32 %v1457, %v1552
        %v1554 = vpop.f32.mrb[0].mxu0
        %1555 = vmatprep.mubr.bf16.mxu0 0
        %1556 = vmatmul.mubr.bf16.gmra.mrb[0].mxu0 %v1339
        %v1557 = vpop.f32.mrb[0].mxu0
        %v1558 = vadd.f32 %v1457, %v1557
        %v1559 = vpop.f32.mrb[0].mxu0
        %v1560 = vpop.f32.mrb[0].mxu0
        %v1561 = vadd.f32 %v1457, %v1560
        %v1562 = vpop.f32.mrb[0].mxu0
        %1563 = vmatprep.mubr.bf16.mxu0 0
        %1564 = vmatmul.mubr.bf16.gmra.mrb[0].mxu0 %v1342
        %v1565 = vpop.f32.mrb[0].mxu0
        %v1566 = vadd.f32 %v1457, %v1565
        %v1567 = vpop.f32.mrb[0].mxu0
        %v1568 = vpop.f32.mrb[0].mxu0
        %v1569 = vadd.f32 %v1457, %v1568
        %v1570 = vpop.f32.mrb[0].mxu0
        %1571 = vmatprep.mubr.bf16.mxu0 0
        %1572 = vmatmul.mubr.bf16.gmra.mrb[0].mxu0 %v1345
        %v1573 = vpop.f32.mrb[0].mxu0
        %v1574 = vadd.f32 %v1457, %v1573
        %v1575 = vpop.f32.mrb[0].mxu0
        %v1576 = vpop.f32.mrb[0].mxu0
        %v1577 = vadd.f32 %v1457, %v1576
        %v1578 = vpop.f32.mrb[0].mxu0
        %1579 = vdwg.mxu0
        %v1580 = vld [vmem:[%s853] sm:$0xf]
        %v1581 = vld [vmem:[%s853 + $0x4] sm:$0xf]
        %v1582 = vld [vmem:[%s853 + $0x8] sm:$0xf]
        %v1583 = vld [vmem:[%s853 + $0xc] sm:$0xf]
        %v1584 = vld [vmem:[%s853 + $0x10] sm:$0xf]
        %v1585 = vld [vmem:[%s853 + $0x14] sm:$0xf]
        %v1586 = vld [vmem:[%s853 + $0x18] sm:$0xf]
        %v1587 = vld [vmem:[%s853 + $0x1c] sm:$0xf]
        %v1588 = vld [vmem:[%s857] sm:$0x1]
        %v1590 = vlaneseq
        %v1591 = vshrl.u32 %v1590, 7
        %v1592 = vsub.s32 0, %v1591
        %v1593 = vrot.slane %v1588, %v1592
        %v1603 = vunpack.c.l.b16 %v1580
        %v1604 = vunpack.c.l.b16 %v1581
        %v1605 = vunpack.c.l.b16 %v1582
        %v1606 = vunpack.c.l.b16 %v1583
        %v1607 = vunpack.c.l.b16 %v1584
        %v1608 = vunpack.c.l.b16 %v1585
        %v1609 = vunpack.c.l.b16 %v1586
        %v1610 = vunpack.c.l.b16 %v1587
        %v1611 = vpack.c.b16 %v1604, %v1603
        %v1612 = vpack.c.b16 %v1606, %v1605
        %v1613 = vpack.c.b16 %v1608, %v1607
        %v1614 = vpack.c.b16 %v1610, %v1609
        %1619 = vmatprep.subr.bf16.mxu0 0
        %1620 = vmatpush1.bf16.msra.mxu0 %v1611
        %1621 = vmatprep.subr.bf16.mxu0 0
        %1622 = vmatpush1.bf16.msra.mxu0 %v1612
        %1623 = vmatprep.subr.bf16.mxu0 0
        %1624 = vmatpush1.bf16.msra.mxu0 %v1613
        %1625 = vmatprep.subr.bf16.mxu0 0
        %1626 = vmatpush1.bf16.msra.mxu0 %v1614
        %1627 = vmatprep.subr.bf16.mxu0 0
        %1628 = vmatpush1.bf16.msra.mxu0 0
        %1629 = vmatprep.subr.bf16.mxu0 0
        %1630 = vmatpush1.bf16.msra.mxu0 0
        %1631 = vmatprep.subr.bf16.mxu0 0
        %1632 = vmatpush1.bf16.msra.mxu0 0
        %1633 = vmatprep.subr.bf16.mxu0 0
        %1634 = vmatpush1.bf16.msra.mxu0 0
        %1635 = vmatprep.subr.bf16.mxu0 0
        %1636 = vmatpush1.bf16.msra.mxu0 0
        %1637 = vmatprep.subr.bf16.mxu0 0
        %1638 = vmatpush1.bf16.msra.mxu0 0
        %1639 = vmatprep.subr.bf16.mxu0 0
        %1640 = vmatpush1.bf16.msra.mxu0 0
        %1641 = vmatprep.subr.bf16.mxu0 0
        %1642 = vmatpush1.bf16.msra.mxu0 0
        %1643 = vmatprep.subr.bf16.mxu0 0
        %1644 = vmatpush1.bf16.msra.mxu0 0
        %1645 = vmatprep.subr.bf16.mxu0 0
        %1646 = vmatpush1.bf16.msra.mxu0 0
        %1647 = vmatprep.subr.bf16.mxu0 0
        %1648 = vmatpush1.bf16.msra.mxu0 0
        %1649 = vmatprep.subr.bf16.mxu0 0
        %1650 = vmatpush1.bf16.msra.mxu0 0
        %1651 = vmatprep.mubr.bf16.mxu0 0
        %1652 = vmatmul.mubr.bf16.gmra.mrb[0].mxu0 %v1324
        %v1653 = vpop.f32.mrb[0].mxu0
        %v1654 = vadd.f32 %v1593, %v1653
        %v1655 = vpop.f32.mrb[0].mxu0
        %v1656 = vpop.f32.mrb[0].mxu0
        %v1657 = vadd.f32 %v1593, %v1656
        %v1658 = vpop.f32.mrb[0].mxu0
        %1659 = vmatprep.mubr.bf16.mxu0 0
        %1660 = vmatmul.mubr.bf16.gmra.mrb[0].mxu0 %v1327
        %v1661 = vpop.f32.mrb[0].mxu0
        %v1662 = vadd.f32 %v1593, %v1661
        %v1663 = vpop.f32.mrb[0].mxu0
        %v1664 = vpop.f32.mrb[0].mxu0
        %v1665 = vadd.f32 %v1593, %v1664
        %v1666 = vpop.f32.mrb[0].mxu0
        %1667 = vmatprep.mubr.bf16.mxu0 0
        %1668 = vmatmul.mubr.bf16.gmra.mrb[0].mxu0 %v1330
        %v1669 = vpop.f32.mrb[0].mxu0
        %v1670 = vadd.f32 %v1593, %v1669
        %v1671 = vpop.f32.mrb[0].mxu0
        %v1672 = vpop.f32.mrb[0].mxu0
        %v1673 = vadd.f32 %v1593, %v1672
        %v1674 = vpop.f32.mrb[0].mxu0
        %1675 = vmatprep.mubr.bf16.mxu0 0
        %1676 = vmatmul.mubr.bf16.gmra.mrb[0].mxu0 %v1333
        %v1677 = vpop.f32.mrb[0].mxu0
        %v1678 = vadd.f32 %v1593, %v1677
        %v1679 = vpop.f32.mrb[0].mxu0
        %v1680 = vpop.f32.mrb[0].mxu0
        %v1681 = vadd.f32 %v1593, %v1680
        %v1682 = vpop.f32.mrb[0].mxu0
        %1683 = vmatprep.mubr.bf16.mxu0 0
        %1684 = vmatmul.mubr.bf16.gmra.mrb[0].mxu0 %v1336
        %v1685 = vpop.f32.mrb[0].mxu0
        %v1686 = vadd.f32 %v1593, %v1685
        %v1687 = vpop.f32.mrb[0].mxu0
        %v1688 = vpop.f32.mrb[0].mxu0
        %v1689 = vadd.f32 %v1593, %v1688
        %v1690 = vpop.f32.mrb[0].mxu0
        %1691 = vmatprep.mubr.bf16.mxu0 0
        %1692 = vmatmul.mubr.bf16.gmra.mrb[0].mxu0 %v1339
        %v1693 = vpop.f32.mrb[0].mxu0
        %v1694 = vadd.f32 %v1593, %v1693
        %v1695 = vpop.f32.mrb[0].mxu0
        %v1696 = vpop.f32.mrb[0].mxu0
        %v1697 = vadd.f32 %v1593, %v1696
        %v1698 = vpop.f32.mrb[0].mxu0
        %1699 = vmatprep.mubr.bf16.mxu0 0
        %1700 = vmatmul.mubr.bf16.gmra.mrb[0].mxu0 %v1342
        %v1701 = vpop.f32.mrb[0].mxu0
        %v1702 = vadd.f32 %v1593, %v1701
        %v1703 = vpop.f32.mrb[0].mxu0
        %v1704 = vpop.f32.mrb[0].mxu0
        %v1705 = vadd.f32 %v1593, %v1704
        %v1706 = vpop.f32.mrb[0].mxu0
        %1707 = vmatprep.mubr.bf16.mxu0 0
        %1708 = vmatmul.mubr.bf16.gmra.mrb[0].mxu0 %v1345
        %v1709 = vpop.f32.mrb[0].mxu0
        %v1710 = vadd.f32 %v1593, %v1709
        %v1711 = vpop.f32.mrb[0].mxu0
        %v1712 = vpop.f32.mrb[0].mxu0
        %v1713 = vadd.f32 %v1593, %v1712
        %v1714 = vpop.f32.mrb[0].mxu0
        %1715 = vdwg.mxu0
        %vm1716 = vcmask 261120
        %v1718 = vsel %vm1716, %v1382, 0
        %v1721 = vsel %vm1716, %v1385, 0
        %v1724 = vsel %vm1716, %v1390, 0
        %v1727 = vsel %vm1716, %v1393, 0
        %v1730 = vsel %vm1716, %v1398, 0
        %v1733 = vsel %vm1716, %v1401, 0
        %v1736 = vsel %vm1716, %v1406, 0
        %v1739 = vsel %vm1716, %v1409, 0
        %v1742 = vsel %vm1716, %v1414, 0
        %v1745 = vsel %vm1716, %v1417, 0
        %v1748 = vsel %vm1716, %v1422, 0
        %v1751 = vsel %vm1716, %v1425, 0
        %v1754 = vsel %vm1716, %v1430, 0
        %v1757 = vsel %vm1716, %v1433, 0
        %v1760 = vsel %vm1716, %v1438, 0
        %v1763 = vsel %vm1716, %v1441, 0
        %v1766 = vsel %vm1716, %v1518, 0
        %v1769 = vsel %vm1716, %v1521, 0
        %v1772 = vsel %vm1716, %v1526, 0
        %v1775 = vsel %vm1716, %v1529, 0
        %v1778 = vsel %vm1716, %v1534, 0
        %v1781 = vsel %vm1716, %v1537, 0
        %v1784 = vsel %vm1716, %v1542, 0
        %v1787 = vsel %vm1716, %v1545, 0
        %v1790 = vsel %vm1716, %v1550, 0
        %v1793 = vsel %vm1716, %v1553, 0
        %v1796 = vsel %vm1716, %v1558, 0
        %v1799 = vsel %vm1716, %v1561, 0
        %v1802 = vsel %vm1716, %v1566, 0
        %v1805 = vsel %vm1716, %v1569, 0
        %v1808 = vsel %vm1716, %v1574, 0
        %v1811 = vsel %vm1716, %v1577, 0
        %1813 = vmatprep.subr.mxu0 0.0
        %1814 = vmatpush1.xpose.msra.mxu0 %v1766
        %1815 = vmatprep.subr.mxu0 0.0
        %1816 = vmatpush1.xpose.msra.mxu0 %v1769
        %1817 = vmatprep.subr.mxu0 0.0
        %1818 = vmatpush1.xpose.msra.mxu0 %v1772
        %1819 = vmatprep.subr.mxu0 0.0
        %1820 = vmatpush1.xpose.msra.mxu0 %v1775
        %1821 = vmatprep.subr.mxu0 0.0
        %1822 = vmatpush1.xpose.msra.mxu0 %v1778
        %1823 = vmatprep.subr.mxu0 0.0
        %1824 = vmatpush1.xpose.msra.mxu0 %v1781
        %1825 = vmatprep.subr.mxu0 0.0
        %1826 = vmatpush1.xpose.msra.mxu0 %v1784
        %1827 = vmatprep.subr.mxu0 0.0
        %1828 = vmatpush1.xpose.msra.mxu0 %v1787
        %1829 = vmatprep.subr.mxu0 0.0
        %1830 = vmatpush1.xpose.msra.mxu0 %v1790
        %1831 = vmatprep.subr.mxu0 0.0
        %1832 = vmatpush1.xpose.msra.mxu0 %v1793
        %1833 = vmatprep.subr.mxu0 0.0
        %1834 = vmatpush1.xpose.msra.mxu0 %v1796
        %1835 = vmatprep.subr.mxu0 0.0
        %1836 = vmatpush1.xpose.msra.mxu0 %v1799
        %1837 = vmatprep.subr.mxu0 0.0
        %1838 = vmatpush1.xpose.msra.mxu0 %v1802
        %1839 = vmatprep.subr.mxu0 0.0
        %1840 = vmatpush1.xpose.msra.mxu0 %v1805
        %1841 = vmatprep.subr.mxu0 0.0
        %1842 = vmatpush1.xpose.msra.mxu0 %v1808
        %1843 = vmatprep.subr.mxu0 0.0
        %1844 = vmatpush1.xpose.msra.mxu0 %v1811
        %1845 = vmatprep.subr.mxu0 0.0
        %1846 = vmatpush1.xpose.msra.mxu0 0.0
        %1847 = vmatprep.subr.mxu0 0.0
        %1848 = vmatpush1.xpose.msra.mxu0 0.0
        %1849 = vmatprep.subr.mxu0 0.0
        %1850 = vmatpush1.xpose.msra.mxu0 0.0
        %1851 = vmatprep.subr.mxu0 0.0
        %1852 = vmatpush1.xpose.msra.mxu0 0.0
        %1853 = vmatprep.subr.mxu0 0.0
        %1854 = vmatpush1.xpose.msra.mxu0 0.0
        %1855 = vmatprep.subr.mxu0 0.0
        %1856 = vmatpush1.xpose.msra.mxu0 0.0
        %1857 = vmatprep.subr.mxu0 0.0
        %1858 = vmatpush1.xpose.msra.mxu0 0.0
        %1859 = vmatprep.subr.mxu0 0.0
        %1860 = vmatpush1.xpose.msra.mxu0 0.0
        %1861 = vmatprep.subr.mxu0 0.0
        %1862 = vmatpush1.xpose.msra.mxu0 0.0
        %1863 = vmatprep.subr.mxu0 0.0
        %1864 = vmatpush1.xpose.msra.mxu0 0.0
        %1865 = vmatprep.subr.mxu0 0.0
        %1866 = vmatpush1.xpose.msra.mxu0 0.0
        %1867 = vmatprep.subr.mxu0 0.0
        %1868 = vmatpush1.xpose.msra.mxu0 0.0
        %1869 = vmatprep.subr.mxu0 0.0
        %1870 = vmatpush1.xpose.msra.mxu0 0.0
        %1871 = vmatprep.subr.mxu0 0.0
        %1872 = vmatpush1.xpose.msra.mxu0 0.0
        %1873 = vmatprep.subr.mxu0 0.0
        %1874 = vmatpush1.xpose.msra.mxu0 0.0
        %1875 = vmatprep.subr.mxu0 0.0
        %1876 = vmatpush1.xpose.msra.mxu0 0.0
        %1877 = vmatprep.mubr.f32.mxu0 0.0
        %1878 = vmatmul.mubr.f32.gmra.mrb[0].mxu0 %v1718
        %v1879 = vpop.f32.mrb[0].mxu0
        %v1880 = vadd.f32 %v1267, %v1879
        %v1881 = vpop.f32.mrb[0].mxu0
        %1882 = vmatprep.mubr.f32.mxu0 0.0
        %1883 = vmatmul.mubr.f32.gmra.mrb[0].mxu0 %v1721
        %v1884 = vpop.f32.mrb[0].mxu0
        %v1885 = vadd.f32 %v1268, %v1884
        %v1886 = vpop.f32.mrb[0].mxu0
        %1887 = vmatprep.mubr.f32.mxu0 0.0
        %1888 = vmatmul.mubr.f32.gmra.mrb[0].mxu0 %v1724
        %v1889 = vpop.f32.mrb[0].mxu0
        %v1890 = vadd.f32 %v1269, %v1889
        %v1891 = vpop.f32.mrb[0].mxu0
        %1892 = vmatprep.mubr.f32.mxu0 0.0
        %1893 = vmatmul.mubr.f32.gmra.mrb[0].mxu0 %v1727
        %v1894 = vpop.f32.mrb[0].mxu0
        %v1895 = vadd.f32 %v1270, %v1894
        %v1896 = vpop.f32.mrb[0].mxu0
        %1897 = vmatprep.mubr.f32.mxu0 0.0
        %1898 = vmatmul.mubr.f32.gmra.mrb[0].mxu0 %v1730
        %v1899 = vpop.f32.mrb[0].mxu0
        %v1900 = vadd.f32 %v1271, %v1899
        %v1901 = vpop.f32.mrb[0].mxu0
        %1902 = vmatprep.mubr.f32.mxu0 0.0
        %1903 = vmatmul.mubr.f32.gmra.mrb[0].mxu0 %v1733
        %v1904 = vpop.f32.mrb[0].mxu0
        %v1905 = vadd.f32 %v1272, %v1904
        %v1906 = vpop.f32.mrb[0].mxu0
        %1907 = vmatprep.mubr.f32.mxu0 0.0
        %1908 = vmatmul.mubr.f32.gmra.mrb[0].mxu0 %v1736
        %v1909 = vpop.f32.mrb[0].mxu0
        %v1910 = vadd.f32 %v1273, %v1909
        %v1911 = vpop.f32.mrb[0].mxu0
        %1912 = vmatprep.mubr.f32.mxu0 0.0
        %1913 = vmatmul.mubr.f32.gmra.mrb[0].mxu0 %v1739
        %v1914 = vpop.f32.mrb[0].mxu0
        %v1915 = vadd.f32 %v1274, %v1914
        %v1916 = vpop.f32.mrb[0].mxu0
        %1917 = vmatprep.mubr.f32.mxu0 0.0
        %1918 = vmatmul.mubr.f32.gmra.mrb[0].mxu0 %v1742
        %v1919 = vpop.f32.mrb[0].mxu0
        %v1920 = vadd.f32 %v1275, %v1919
        %v1921 = vpop.f32.mrb[0].mxu0
        %1922 = vmatprep.mubr.f32.mxu0 0.0
        %1923 = vmatmul.mubr.f32.gmra.mrb[0].mxu0 %v1745
        %v1924 = vpop.f32.mrb[0].mxu0
        %v1925 = vadd.f32 %v1276, %v1924
        %v1926 = vpop.f32.mrb[0].mxu0
        %1927 = vmatprep.mubr.f32.mxu0 0.0
        %1928 = vmatmul.mubr.f32.gmra.mrb[0].mxu0 %v1748
        %v1929 = vpop.f32.mrb[0].mxu0
        %v1930 = vadd.f32 %v1277, %v1929
        %v1931 = vpop.f32.mrb[0].mxu0
        %1932 = vmatprep.mubr.f32.mxu0 0.0
        %1933 = vmatmul.mubr.f32.gmra.mrb[0].mxu0 %v1751
        %v1934 = vpop.f32.mrb[0].mxu0
        %v1935 = vadd.f32 %v1278, %v1934
        %v1936 = vpop.f32.mrb[0].mxu0
        %1937 = vmatprep.mubr.f32.mxu0 0.0
        %1938 = vmatmul.mubr.f32.gmra.mrb[0].mxu0 %v1754
        %v1939 = vpop.f32.mrb[0].mxu0
        %v1940 = vadd.f32 %v1279, %v1939
        %v1941 = vpop.f32.mrb[0].mxu0
        %1942 = vmatprep.mubr.f32.mxu0 0.0
        %1943 = vmatmul.mubr.f32.gmra.mrb[0].mxu0 %v1757
        %v1944 = vpop.f32.mrb[0].mxu0
        %v1945 = vadd.f32 %v1280, %v1944
        %v1946 = vpop.f32.mrb[0].mxu0
        %1947 = vmatprep.mubr.f32.mxu0 0.0
        %1948 = vmatmul.mubr.f32.gmra.mrb[0].mxu0 %v1760
        %v1949 = vpop.f32.mrb[0].mxu0
        %v1950 = vadd.f32 %v1281, %v1949
        %v1951 = vpop.f32.mrb[0].mxu0
        %1952 = vmatprep.mubr.f32.mxu0 0.0
        %1953 = vmatmul.mubr.f32.gmra.mrb[0].mxu0 %v1763
        %v1954 = vpop.f32.mrb[0].mxu0
        %v1955 = vadd.f32 %v1282, %v1954
        %v1956 = vpop.f32.mrb[0].mxu0
        %1957 = vdwg.mxu0
        %1958 = vmax.xlane.f32.xlu0 %v1880
        %v1959 = vpop.xlane.xlu0 %1958
        %1960 = vmax.xlane.f32.xlu0 %v1885
        %v1961 = vpop.xlane.xlu0 %1960
        %1962 = vmax.xlane.f32.xlu0 %v1890
        %v1963 = vpop.xlane.xlu0 %1962
        %1964 = vmax.xlane.f32.xlu0 %v1895
        %v1965 = vpop.xlane.xlu0 %1964
        %1966 = vmax.xlane.f32.xlu0 %v1900
        %v1967 = vpop.xlane.xlu0 %1966
        %1968 = vmax.xlane.f32.xlu0 %v1905
        %v1969 = vpop.xlane.xlu0 %1968
        %1970 = vmax.xlane.f32.xlu0 %v1910
        %v1971 = vpop.xlane.xlu0 %1970
        %1972 = vmax.xlane.f32.xlu0 %v1915
        %v1973 = vpop.xlane.xlu0 %1972
        %1974 = vmax.xlane.f32.xlu0 %v1920
        %v1975 = vpop.xlane.xlu0 %1974
        %1976 = vmax.xlane.f32.xlu0 %v1925
        %v1977 = vpop.xlane.xlu0 %1976
        %1978 = vmax.xlane.f32.xlu0 %v1930
        %v1979 = vpop.xlane.xlu0 %1978
        %1980 = vmax.xlane.f32.xlu0 %v1935
        %v1981 = vpop.xlane.xlu0 %1980
        %1982 = vmax.xlane.f32.xlu0 %v1940
        %v1983 = vpop.xlane.xlu0 %1982
        %1984 = vmax.xlane.f32.xlu0 %v1945
        %v1985 = vpop.xlane.xlu0 %1984
        %1986 = vmax.xlane.f32.xlu0 %v1950
        %v1987 = vpop.xlane.xlu0 %1986
        %1988 = vmax.xlane.f32.xlu0 %v1955
        %v1989 = vpop.xlane.xlu0 %1988
        %v1990 = vsub.f32 %v1880, %v1959
        %v1991 = vsub.f32 %v1885, %v1961
        %v1992 = vsub.f32 %v1890, %v1963
        %v1993 = vsub.f32 %v1895, %v1965
        %v1994 = vsub.f32 %v1900, %v1967
        %v1995 = vsub.f32 %v1905, %v1969
        %v1996 = vsub.f32 %v1910, %v1971
        %v1997 = vsub.f32 %v1915, %v1973
        %v1998 = vsub.f32 %v1920, %v1975
        %v1999 = vsub.f32 %v1925, %v1977
        %v2000 = vsub.f32 %v1930, %v1979
        %v2001 = vsub.f32 %v1935, %v1981
        %v2002 = vsub.f32 %v1940, %v1983
        %v2003 = vsub.f32 %v1945, %v1985
        %v2004 = vsub.f32 %v1950, %v1987
        %v2005 = vsub.f32 %v1955, %v1989
        %v2006 = vmul.f32 %v1990, 1.442695
        %v2007 = vpow.pop %v2006
        %v2008 = vmul.f32 %v1991, 1.442695
        %v2009 = vpow.pop %v2008
        %v2010 = vmul.f32 %v1992, 1.442695
        %v2011 = vpow.pop %v2010
        %v2012 = vmul.f32 %v1993, 1.442695
        %v2013 = vpow.pop %v2012
        %v2014 = vmul.f32 %v1994, 1.442695
        %v2015 = vpow.pop %v2014
        %v2016 = vmul.f32 %v1995, 1.442695
        %v2017 = vpow.pop %v2016
        %v2018 = vmul.f32 %v1996, 1.442695
        %v2019 = vpow.pop %v2018
        %v2020 = vmul.f32 %v1997, 1.442695
        %v2021 = vpow.pop %v2020
        %v2022 = vmul.f32 %v1998, 1.442695
        %v2023 = vpow.pop %v2022
        %v2024 = vmul.f32 %v1999, 1.442695
        %v2025 = vpow.pop %v2024
        %v2026 = vmul.f32 %v2000, 1.442695
        %v2027 = vpow.pop %v2026
        %v2028 = vmul.f32 %v2001, 1.442695
        %v2029 = vpow.pop %v2028
        %v2030 = vmul.f32 %v2002, 1.442695
        %v2031 = vpow.pop %v2030
        %v2032 = vmul.f32 %v2003, 1.442695
        %v2033 = vpow.pop %v2032
        %v2034 = vmul.f32 %v2004, 1.442695
        %v2035 = vpow.pop %v2034
        %v2036 = vmul.f32 %v2005, 1.442695
        %v2037 = vpow.pop %v2036
        %2038 = vadd.xlane.f32.xlu0 %v2007
        %v2039 = vpop.xlane.xlu0 %2038
        %2040 = vadd.xlane.f32.xlu0 %v2009
        %v2041 = vpop.xlane.xlu0 %2040
        %2042 = vadd.xlane.f32.xlu0 %v2011
        %v2043 = vpop.xlane.xlu0 %2042
        %2044 = vadd.xlane.f32.xlu0 %v2013
        %v2045 = vpop.xlane.xlu0 %2044
        %2046 = vadd.xlane.f32.xlu0 %v2015
        %v2047 = vpop.xlane.xlu0 %2046
        %2048 = vadd.xlane.f32.xlu0 %v2017
        %v2049 = vpop.xlane.xlu0 %2048
        %2050 = vadd.xlane.f32.xlu0 %v2019
        %v2051 = vpop.xlane.xlu0 %2050
        %2052 = vadd.xlane.f32.xlu0 %v2021
        %v2053 = vpop.xlane.xlu0 %2052
        %2054 = vadd.xlane.f32.xlu0 %v2023
        %v2055 = vpop.xlane.xlu0 %2054
        %2056 = vadd.xlane.f32.xlu0 %v2025
        %v2057 = vpop.xlane.xlu0 %2056
        %2058 = vadd.xlane.f32.xlu0 %v2027
        %v2059 = vpop.xlane.xlu0 %2058
        %2060 = vadd.xlane.f32.xlu0 %v2029
        %v2061 = vpop.xlane.xlu0 %2060
        %2062 = vadd.xlane.f32.xlu0 %v2031
        %v2063 = vpop.xlane.xlu0 %2062
        %2064 = vadd.xlane.f32.xlu0 %v2033
        %v2065 = vpop.xlane.xlu0 %2064
        %2066 = vadd.xlane.f32.xlu0 %v2035
        %v2067 = vpop.xlane.xlu0 %2066
        %2068 = vadd.xlane.f32.xlu0 %v2037
        %v2069 = vpop.xlane.xlu0 %2068
        %v2070 = vrcp.pop %v2039
        %v2071 = vrcp.pop %v2041
        %v2072 = vrcp.pop %v2043
        %v2073 = vrcp.pop %v2045
        %v2074 = vrcp.pop %v2047
        %v2075 = vrcp.pop %v2049
        %v2076 = vrcp.pop %v2051
        %v2077 = vrcp.pop %v2053
        %v2078 = vrcp.pop %v2055
        %v2079 = vrcp.pop %v2057
        %v2080 = vrcp.pop %v2059
        %v2081 = vrcp.pop %v2061
        %v2082 = vrcp.pop %v2063
        %v2083 = vrcp.pop %v2065
        %v2084 = vrcp.pop %v2067
        %v2085 = vrcp.pop %v2069
        %v2086 = vmul.f32 %v2007, %v2070
        %v2087 = vmul.f32 %v2009, %v2071
        %v2088 = vmul.f32 %v2011, %v2072
        %v2089 = vmul.f32 %v2013, %v2073
        %v2090 = vmul.f32 %v2015, %v2074
        %v2091 = vmul.f32 %v2017, %v2075
        %v2092 = vmul.f32 %v2019, %v2076
        %v2093 = vmul.f32 %v2021, %v2077
        %v2094 = vmul.f32 %v2023, %v2078
        %v2095 = vmul.f32 %v2025, %v2079
        %v2096 = vmul.f32 %v2027, %v2080
        %v2097 = vmul.f32 %v2029, %v2081
        %v2098 = vmul.f32 %v2031, %v2082
        %v2099 = vmul.f32 %v2033, %v2083
        %v2100 = vmul.f32 %v2035, %v2084
        %v2101 = vmul.f32 %v2037, %v2085
        %2102 = vmatprep.subr.mxu0 0.0
        %2103 = vmatpush1.msra.mxu0 %v1654
        %2104 = vmatprep.subr.mxu0 0.0
        %2105 = vmatpush1.msra.mxu0 %v1657
        %2106 = vmatprep.subr.mxu0 0.0
        %2107 = vmatpush1.msra.mxu0 %v1662
        %2108 = vmatprep.subr.mxu0 0.0
        %2109 = vmatpush1.msra.mxu0 %v1665
        %2110 = vmatprep.subr.mxu0 0.0
        %2111 = vmatpush1.msra.mxu0 %v1670
        %2112 = vmatprep.subr.mxu0 0.0
        %2113 = vmatpush1.msra.mxu0 %v1673
        %2114 = vmatprep.subr.mxu0 0.0
        %2115 = vmatpush1.msra.mxu0 %v1678
        %2116 = vmatprep.subr.mxu0 0.0
        %2117 = vmatpush1.msra.mxu0 %v1681
        %2118 = vmatprep.subr.mxu0 0.0
        %2119 = vmatpush1.msra.mxu0 %v1686
        %2120 = vmatprep.subr.mxu0 0.0
        %2121 = vmatpush1.msra.mxu0 %v1689
        %2122 = vmatprep.subr.mxu0 0.0
        %2123 = vmatpush1.msra.mxu0 %v1694
        %2124 = vmatprep.subr.mxu0 0.0
        %2125 = vmatpush1.msra.mxu0 %v1697
        %2126 = vmatprep.subr.mxu0 0.0
        %2127 = vmatpush1.msra.mxu0 %v1702
        %2128 = vmatprep.subr.mxu0 0.0
        %2129 = vmatpush1.msra.mxu0 %v1705
        %2130 = vmatprep.subr.mxu0 0.0
        %2131 = vmatpush1.msra.mxu0 %v1710
        %2132 = vmatprep.subr.mxu0 0.0
        %2133 = vmatpush1.msra.mxu0 %v1713
        %2134 = vmatprep.subr.mxu0 0.0
        %2135 = vmatpush1.msra.mxu0 0.0
        %2136 = vmatprep.subr.mxu0 0.0
        %2137 = vmatpush1.msra.mxu0 0.0
        %2138 = vmatprep.subr.mxu0 0.0
        %2139 = vmatpush1.msra.mxu0 0.0
        %2140 = vmatprep.subr.mxu0 0.0
        %2141 = vmatpush1.msra.mxu0 0.0
        %2142 = vmatprep.subr.mxu0 0.0
        %2143 = vmatpush1.msra.mxu0 0.0
        %2144 = vmatprep.subr.mxu0 0.0
        %2145 = vmatpush1.msra.mxu0 0.0
        %2146 = vmatprep.subr.mxu0 0.0
        %2147 = vmatpush1.msra.mxu0 0.0
        %2148 = vmatprep.subr.mxu0 0.0
        %2149 = vmatpush1.msra.mxu0 0.0
        %2150 = vmatprep.subr.mxu0 0.0
        %2151 = vmatpush1.msra.mxu0 0.0
        %2152 = vmatprep.subr.mxu0 0.0
        %2153 = vmatpush1.msra.mxu0 0.0
        %2154 = vmatprep.subr.mxu0 0.0
        %2155 = vmatpush1.msra.mxu0 0.0
        %2156 = vmatprep.subr.mxu0 0.0
        %2157 = vmatpush1.msra.mxu0 0.0
        %2158 = vmatprep.subr.mxu0 0.0
        %2159 = vmatpush1.msra.mxu0 0.0
        %2160 = vmatprep.subr.mxu0 0.0
        %2161 = vmatpush1.msra.mxu0 0.0
        %2162 = vmatprep.subr.mxu0 0.0
        %2163 = vmatpush1.msra.mxu0 0.0
        %2164 = vmatprep.subr.mxu0 0.0
        %2165 = vmatpush1.msra.mxu0 0.0
        %2166 = vmatprep.mubr.f32.mxu0 0.0
        %2167 = vmatmul.mubr.f32.gmra.mrb[0].mxu0 %v2086
        %v2168 = vpop.f32.mrb[0].mxu0
        %v2169 = vadd.f32 0.0, %v2168
        %v2170 = vpop.f32.mrb[0].mxu0
        %2171 = vmatprep.mubr.f32.mxu0 0.0
        %2172 = vmatmul.mubr.f32.gmra.mrb[0].mxu0 %v2087
        %v2173 = vpop.f32.mrb[0].mxu0
        %v2174 = vadd.f32 0.0, %v2173
        %v2175 = vpop.f32.mrb[0].mxu0
        %2176 = vmatprep.mubr.f32.mxu0 0.0
        %2177 = vmatmul.mubr.f32.gmra.mrb[0].mxu0 %v2088
        %v2178 = vpop.f32.mrb[0].mxu0
        %v2179 = vadd.f32 0.0, %v2178
        %v2180 = vpop.f32.mrb[0].mxu0
        %2181 = vmatprep.mubr.f32.mxu0 0.0
        %2182 = vmatmul.mubr.f32.gmra.mrb[0].mxu0 %v2089
        %v2183 = vpop.f32.mrb[0].mxu0
        %v2184 = vadd.f32 0.0, %v2183
        %v2185 = vpop.f32.mrb[0].mxu0
        %2186 = vmatprep.mubr.f32.mxu0 0.0
        %2187 = vmatmul.mubr.f32.gmra.mrb[0].mxu0 %v2090
        %v2188 = vpop.f32.mrb[0].mxu0
        %v2189 = vadd.f32 0.0, %v2188
        %v2190 = vpop.f32.mrb[0].mxu0
        %2191 = vmatprep.mubr.f32.mxu0 0.0
        %2192 = vmatmul.mubr.f32.gmra.mrb[0].mxu0 %v2091
        %v2193 = vpop.f32.mrb[0].mxu0
        %v2194 = vadd.f32 0.0, %v2193
        %v2195 = vpop.f32.mrb[0].mxu0
        %2196 = vmatprep.mubr.f32.mxu0 0.0
        %2197 = vmatmul.mubr.f32.gmra.mrb[0].mxu0 %v2092
        %v2198 = vpop.f32.mrb[0].mxu0
        %v2199 = vadd.f32 0.0, %v2198
        %v2200 = vpop.f32.mrb[0].mxu0
        %2201 = vmatprep.mubr.f32.mxu0 0.0
        %2202 = vmatmul.mubr.f32.gmra.mrb[0].mxu0 %v2093
        %v2203 = vpop.f32.mrb[0].mxu0
        %v2204 = vadd.f32 0.0, %v2203
        %v2205 = vpop.f32.mrb[0].mxu0
        %2206 = vmatprep.mubr.f32.mxu0 0.0
        %2207 = vmatmul.mubr.f32.gmra.mrb[0].mxu0 %v2094
        %v2208 = vpop.f32.mrb[0].mxu0
        %v2209 = vadd.f32 0.0, %v2208
        %v2210 = vpop.f32.mrb[0].mxu0
        %2211 = vmatprep.mubr.f32.mxu0 0.0
        %2212 = vmatmul.mubr.f32.gmra.mrb[0].mxu0 %v2095
        %v2213 = vpop.f32.mrb[0].mxu0
        %v2214 = vadd.f32 0.0, %v2213
        %v2215 = vpop.f32.mrb[0].mxu0
        %2216 = vmatprep.mubr.f32.mxu0 0.0
        %2217 = vmatmul.mubr.f32.gmra.mrb[0].mxu0 %v2096
        %v2218 = vpop.f32.mrb[0].mxu0
        %v2219 = vadd.f32 0.0, %v2218
        %v2220 = vpop.f32.mrb[0].mxu0
        %2221 = vmatprep.mubr.f32.mxu0 0.0
        %2222 = vmatmul.mubr.f32.gmra.mrb[0].mxu0 %v2097
        %v2223 = vpop.f32.mrb[0].mxu0
        %v2224 = vadd.f32 0.0, %v2223
        %v2225 = vpop.f32.mrb[0].mxu0
        %2226 = vmatprep.mubr.f32.mxu0 0.0
        %2227 = vmatmul.mubr.f32.gmra.mrb[0].mxu0 %v2098
        %v2228 = vpop.f32.mrb[0].mxu0
        %v2229 = vadd.f32 0.0, %v2228
        %v2230 = vpop.f32.mrb[0].mxu0
        %2231 = vmatprep.mubr.f32.mxu0 0.0
        %2232 = vmatmul.mubr.f32.gmra.mrb[0].mxu0 %v2099
        %v2233 = vpop.f32.mrb[0].mxu0
        %v2234 = vadd.f32 0.0, %v2233
        %v2235 = vpop.f32.mrb[0].mxu0
        %2236 = vmatprep.mubr.f32.mxu0 0.0
        %2237 = vmatmul.mubr.f32.gmra.mrb[0].mxu0 %v2100
        %v2238 = vpop.f32.mrb[0].mxu0
        %v2239 = vadd.f32 0.0, %v2238
        %v2240 = vpop.f32.mrb[0].mxu0
        %2241 = vmatprep.mubr.f32.mxu0 0.0
        %2242 = vmatmul.mubr.f32.gmra.mrb[0].mxu0 %v2101
        %v2243 = vpop.f32.mrb[0].mxu0
        %v2244 = vadd.f32 0.0, %v2243
        %v2245 = vpop.f32.mrb[0].mxu0
        %2246 = vdwg.mxu0
        %v2247 = vpack.c.bf16 %v2174, %v2169
        %v2248 = vpack.c.bf16 %v2184, %v2179
        %v2249 = vpack.c.bf16 %v2194, %v2189
        %v2250 = vpack.c.bf16 %v2204, %v2199
        %v2251 = vpack.c.bf16 %v2214, %v2209
        %v2252 = vpack.c.bf16 %v2224, %v2219
        %v2253 = vpack.c.bf16 %v2234, %v2229
        %v2254 = vpack.c.bf16 %v2244, %v2239
        %v2255 = vld [vmem:[%s862] sm:$0xf]
        %v2256 = vld [vmem:[%s862 + $0x4] sm:$0xf]
        %v2257 = vld [vmem:[%s862 + $0x8] sm:$0xf]
        %v2258 = vld [vmem:[%s862 + $0xc] sm:$0xf]
        %s2259 = scalar_lea.vmem %s835, 32
        %v2260 = vld [vmem:[%s2259] sm:$0xf]
        %v2261 = vld [vmem:[%s2259 + $0x4] sm:$0xf]
        %v2262 = vld [vmem:[%s2259 + $0x8] sm:$0xf]
        %v2263 = vld [vmem:[%s2259 + $0xc] sm:$0xf]
        %v2264 = vld [vmem:[%s2259 + $0x10] sm:$0xf]
        %v2265 = vld [vmem:[%s2259 + $0x14] sm:$0xf]
        %v2266 = vld [vmem:[%s2259 + $0x18] sm:$0xf]
        %v2267 = vld [vmem:[%s2259 + $0x1c] sm:$0xf]
        %s2268 = scalar_lea.vmem %s839, 1
        %v2269 = vld [vmem:[%s2268] sm:$0x1]
        %v2271 = vlaneseq
        %v2272 = vshrl.u32 %v2271, 7
        %v2273 = vsub.s32 0, %v2272
        %v2274 = vrot.slane %v2269, %v2273
        %v2284 = vunpack.c.l.b16 %v2260
        %v2285 = vunpack.c.l.b16 %v2261
        %v2286 = vunpack.c.l.b16 %v2262
        %v2287 = vunpack.c.l.b16 %v2263
        %v2288 = vunpack.c.l.b16 %v2264
        %v2289 = vunpack.c.l.b16 %v2265
        %v2290 = vunpack.c.l.b16 %v2266
        %v2291 = vunpack.c.l.b16 %v2267
        %v2292 = vpack.c.b16 %v2285, %v2284
        %v2293 = vpack.c.b16 %v2287, %v2286
        %v2294 = vpack.c.b16 %v2289, %v2288
        %v2295 = vpack.c.b16 %v2291, %v2290
        %2300 = vmatprep.subr.bf16.mxu0 0
        %2301 = vmatpush1.bf16.msra.mxu0 %v2292
        %2302 = vmatprep.subr.bf16.mxu0 0
        %2303 = vmatpush1.bf16.msra.mxu0 %v2293
        %2304 = vmatprep.subr.bf16.mxu0 0
        %2305 = vmatpush1.bf16.msra.mxu0 %v2294
        %2306 = vmatprep.subr.bf16.mxu0 0
        %2307 = vmatpush1.bf16.msra.mxu0 %v2295
        %2308 = vmatprep.subr.bf16.mxu0 0
        %2309 = vmatpush1.bf16.msra.mxu0 0
        %2310 = vmatprep.subr.bf16.mxu0 0
        %2311 = vmatpush1.bf16.msra.mxu0 0
        %2312 = vmatprep.subr.bf16.mxu0 0
        %2313 = vmatpush1.bf16.msra.mxu0 0
        %2314 = vmatprep.subr.bf16.mxu0 0
        %2315 = vmatpush1.bf16.msra.mxu0 0
        %2316 = vmatprep.subr.bf16.mxu0 0
        %2317 = vmatpush1.bf16.msra.mxu0 0
        %2318 = vmatprep.subr.bf16.mxu0 0
        %2319 = vmatpush1.bf16.msra.mxu0 0
        %2320 = vmatprep.subr.bf16.mxu0 0
        %2321 = vmatpush1.bf16.msra.mxu0 0
        %2322 = vmatprep.subr.bf16.mxu0 0
        %2323 = vmatpush1.bf16.msra.mxu0 0
        %2324 = vmatprep.subr.bf16.mxu0 0
        %2325 = vmatpush1.bf16.msra.mxu0 0
        %2326 = vmatprep.subr.bf16.mxu0 0
        %2327 = vmatpush1.bf16.msra.mxu0 0
        %2328 = vmatprep.subr.bf16.mxu0 0
        %2329 = vmatpush1.bf16.msra.mxu0 0
        %2330 = vmatprep.subr.bf16.mxu0 0
        %2331 = vmatpush1.bf16.msra.mxu0 0
        %2332 = vmatprep.mubr.bf16.mxu0 0
        %2333 = vmatmul.mubr.bf16.gmra.mrb[0].mxu0 %v1324
        %v2334 = vpop.f32.mrb[0].mxu0
        %v2335 = vadd.f32 %v2274, %v2334
        %v2336 = vpop.f32.mrb[0].mxu0
        %v2337 = vpop.f32.mrb[0].mxu0
        %v2338 = vadd.f32 %v2274, %v2337
        %v2339 = vpop.f32.mrb[0].mxu0
        %2340 = vmatprep.mubr.bf16.mxu0 0
        %2341 = vmatmul.mubr.bf16.gmra.mrb[0].mxu0 %v1327
        %v2342 = vpop.f32.mrb[0].mxu0
        %v2343 = vadd.f32 %v2274, %v2342
        %v2344 = vpop.f32.mrb[0].mxu0
        %v2345 = vpop.f32.mrb[0].mxu0
        %v2346 = vadd.f32 %v2274, %v2345
        %v2347 = vpop.f32.mrb[0].mxu0
        %2348 = vmatprep.mubr.bf16.mxu0 0
        %2349 = vmatmul.mubr.bf16.gmra.mrb[0].mxu0 %v1330
        %v2350 = vpop.f32.mrb[0].mxu0
        %v2351 = vadd.f32 %v2274, %v2350
        %v2352 = vpop.f32.mrb[0].mxu0
        %v2353 = vpop.f32.mrb[0].mxu0
        %v2354 = vadd.f32 %v2274, %v2353
        %v2355 = vpop.f32.mrb[0].mxu0
        %2356 = vmatprep.mubr.bf16.mxu0 0
        %2357 = vmatmul.mubr.bf16.gmra.mrb[0].mxu0 %v1333
        %v2358 = vpop.f32.mrb[0].mxu0
        %v2359 = vadd.f32 %v2274, %v2358
        %v2360 = vpop.f32.mrb[0].mxu0
        %v2361 = vpop.f32.mrb[0].mxu0
        %v2362 = vadd.f32 %v2274, %v2361
        %v2363 = vpop.f32.mrb[0].mxu0
        %2364 = vmatprep.mubr.bf16.mxu0 0
        %2365 = vmatmul.mubr.bf16.gmra.mrb[0].mxu0 %v1336
        %v2366 = vpop.f32.mrb[0].mxu0
        %v2367 = vadd.f32 %v2274, %v2366
        %v2368 = vpop.f32.mrb[0].mxu0
        %v2369 = vpop.f32.mrb[0].mxu0
        %v2370 = vadd.f32 %v2274, %v2369
        %v2371 = vpop.f32.mrb[0].mxu0
        %2372 = vmatprep.mubr.bf16.mxu0 0
        %2373 = vmatmul.mubr.bf16.gmra.mrb[0].mxu0 %v1339
        %v2374 = vpop.f32.mrb[0].mxu0
        %v2375 = vadd.f32 %v2274, %v2374
        %v2376 = vpop.f32.mrb[0].mxu0
        %v2377 = vpop.f32.mrb[0].mxu0
        %v2378 = vadd.f32 %v2274, %v2377
        %v2379 = vpop.f32.mrb[0].mxu0
        %2380 = vmatprep.mubr.bf16.mxu0 0
        %2381 = vmatmul.mubr.bf16.gmra.mrb[0].mxu0 %v1342
        %v2382 = vpop.f32.mrb[0].mxu0
        %v2383 = vadd.f32 %v2274, %v2382
        %v2384 = vpop.f32.mrb[0].mxu0
        %v2385 = vpop.f32.mrb[0].mxu0
        %v2386 = vadd.f32 %v2274, %v2385
        %v2387 = vpop.f32.mrb[0].mxu0
        %2388 = vmatprep.mubr.bf16.mxu0 0
        %2389 = vmatmul.mubr.bf16.gmra.mrb[0].mxu0 %v1345
        %v2390 = vpop.f32.mrb[0].mxu0
        %v2391 = vadd.f32 %v2274, %v2390
        %v2392 = vpop.f32.mrb[0].mxu0
        %v2393 = vpop.f32.mrb[0].mxu0
        %v2394 = vadd.f32 %v2274, %v2393
        %v2395 = vpop.f32.mrb[0].mxu0
        %2396 = vdwg.mxu0
        %s2397 = scalar_lea.vmem %s844, 32
        %v2398 = vld [vmem:[%s2397] sm:$0xf]
        %v2399 = vld [vmem:[%s2397 + $0x4] sm:$0xf]
        %v2400 = vld [vmem:[%s2397 + $0x8] sm:$0xf]
        %v2401 = vld [vmem:[%s2397 + $0xc] sm:$0xf]
        %v2402 = vld [vmem:[%s2397 + $0x10] sm:$0xf]
        %v2403 = vld [vmem:[%s2397 + $0x14] sm:$0xf]
        %v2404 = vld [vmem:[%s2397 + $0x18] sm:$0xf]
        %v2405 = vld [vmem:[%s2397 + $0x1c] sm:$0xf]
        %s2406 = scalar_lea.vmem %s848, 1
        %v2407 = vld [vmem:[%s2406] sm:$0x1]
        %v2409 = vlaneseq
        %v2410 = vshrl.u32 %v2409, 7
        %v2411 = vsub.s32 0, %v2410
        %v2412 = vrot.slane %v2407, %v2411
        %v2422 = vunpack.c.l.b16 %v2398
        %v2423 = vunpack.c.l.b16 %v2399
        %v2424 = vunpack.c.l.b16 %v2400
        %v2425 = vunpack.c.l.b16 %v2401
        %v2426 = vunpack.c.l.b16 %v2402
        %v2427 = vunpack.c.l.b16 %v2403
        %v2428 = vunpack.c.l.b16 %v2404
        %v2429 = vunpack.c.l.b16 %v2405
        %v2430 = vpack.c.b16 %v2423, %v2422
        %v2431 = vpack.c.b16 %v2425, %v2424
        %v2432 = vpack.c.b16 %v2427, %v2426
        %v2433 = vpack.c.b16 %v2429, %v2428
        %2438 = vmatprep.subr.bf16.mxu0 0
        %2439 = vmatpush1.bf16.msra.mxu0 %v2430
        %2440 = vmatprep.subr.bf16.mxu0 0
        %2441 = vmatpush1.bf16.msra.mxu0 %v2431
        %2442 = vmatprep.subr.bf16.mxu0 0
        %2443 = vmatpush1.bf16.msra.mxu0 %v2432
        %2444 = vmatprep.subr.bf16.mxu0 0
        %2445 = vmatpush1.bf16.msra.mxu0 %v2433
        %2446 = vmatprep.subr.bf16.mxu0 0
        %2447 = vmatpush1.bf16.msra.mxu0 0
        %2448 = vmatprep.subr.bf16.mxu0 0
        %2449 = vmatpush1.bf16.msra.mxu0 0
        %2450 = vmatprep.subr.bf16.mxu0 0
        %2451 = vmatpush1.bf16.msra.mxu0 0
        %2452 = vmatprep.subr.bf16.mxu0 0
        %2453 = vmatpush1.bf16.msra.mxu0 0
        %2454 = vmatprep.subr.bf16.mxu0 0
        %2455 = vmatpush1.bf16.msra.mxu0 0
        %2456 = vmatprep.subr.bf16.mxu0 0
        %2457 = vmatpush1.bf16.msra.mxu0 0
        %2458 = vmatprep.subr.bf16.mxu0 0
        %2459 = vmatpush1.bf16.msra.mxu0 0
        %2460 = vmatprep.subr.bf16.mxu0 0
        %2461 = vmatpush1.bf16.msra.mxu0 0
        %2462 = vmatprep.subr.bf16.mxu0 0
        %2463 = vmatpush1.bf16.msra.mxu0 0
        %2464 = vmatprep.subr.bf16.mxu0 0
        %2465 = vmatpush1.bf16.msra.mxu0 0
        %2466 = vmatprep.subr.bf16.mxu0 0
        %2467 = vmatpush1.bf16.msra.mxu0 0
        %2468 = vmatprep.subr.bf16.mxu0 0
        %2469 = vmatpush1.bf16.msra.mxu0 0
        %2470 = vmatprep.mubr.bf16.mxu0 0
        %2471 = vmatmul.mubr.bf16.gmra.mrb[0].mxu0 %v1324
        %v2472 = vpop.f32.mrb[0].mxu0
        %v2473 = vadd.f32 %v2412, %v2472
        %v2474 = vpop.f32.mrb[0].mxu0
        %v2475 = vpop.f32.mrb[0].mxu0
        %v2476 = vadd.f32 %v2412, %v2475
        %v2477 = vpop.f32.mrb[0].mxu0
        %2478 = vmatprep.mubr.bf16.mxu0 0
        %2479 = vmatmul.mubr.bf16.gmra.mrb[0].mxu0 %v1327
        %v2480 = vpop.f32.mrb[0].mxu0
        %v2481 = vadd.f32 %v2412, %v2480
        %v2482 = vpop.f32.mrb[0].mxu0
        %v2483 = vpop.f32.mrb[0].mxu0
        %v2484 = vadd.f32 %v2412, %v2483
        %v2485 = vpop.f32.mrb[0].mxu0
        %2486 = vmatprep.mubr.bf16.mxu0 0
        %2487 = vmatmul.mubr.bf16.gmra.mrb[0].mxu0 %v1330
        %v2488 = vpop.f32.mrb[0].mxu0
        %v2489 = vadd.f32 %v2412, %v2488
        %v2490 = vpop.f32.mrb[0].mxu0
        %v2491 = vpop.f32.mrb[0].mxu0
        %v2492 = vadd.f32 %v2412, %v2491
        %v2493 = vpop.f32.mrb[0].mxu0
        %2494 = vmatprep.mubr.bf16.mxu0 0
        %2495 = vmatmul.mubr.bf16.gmra.mrb[0].mxu0 %v1333
        %v2496 = vpop.f32.mrb[0].mxu0
        %v2497 = vadd.f32 %v2412, %v2496
        %v2498 = vpop.f32.mrb[0].mxu0
        %v2499 = vpop.f32.mrb[0].mxu0
        %v2500 = vadd.f32 %v2412, %v2499
        %v2501 = vpop.f32.mrb[0].mxu0
        %2502 = vmatprep.mubr.bf16.mxu0 0
        %2503 = vmatmul.mubr.bf16.gmra.mrb[0].mxu0 %v1336
        %v2504 = vpop.f32.mrb[0].mxu0
        %v2505 = vadd.f32 %v2412, %v2504
        %v2506 = vpop.f32.mrb[0].mxu0
        %v2507 = vpop.f32.mrb[0].mxu0
        %v2508 = vadd.f32 %v2412, %v2507
        %v2509 = vpop.f32.mrb[0].mxu0
        %2510 = vmatprep.mubr.bf16.mxu0 0
        %2511 = vmatmul.mubr.bf16.gmra.mrb[0].mxu0 %v1339
        %v2512 = vpop.f32.mrb[0].mxu0
        %v2513 = vadd.f32 %v2412, %v2512
        %v2514 = vpop.f32.mrb[0].mxu0
        %v2515 = vpop.f32.mrb[0].mxu0
        %v2516 = vadd.f32 %v2412, %v2515
        %v2517 = vpop.f32.mrb[0].mxu0
        %2518 = vmatprep.mubr.bf16.mxu0 0
        %2519 = vmatmul.mubr.bf16.gmra.mrb[0].mxu0 %v1342
        %v2520 = vpop.f32.mrb[0].mxu0
        %v2521 = vadd.f32 %v2412, %v2520
        %v2522 = vpop.f32.mrb[0].mxu0
        %v2523 = vpop.f32.mrb[0].mxu0
        %v2524 = vadd.f32 %v2412, %v2523
        %v2525 = vpop.f32.mrb[0].mxu0
        %2526 = vmatprep.mubr.bf16.mxu0 0
        %2527 = vmatmul.mubr.bf16.gmra.mrb[0].mxu0 %v1345
        %v2528 = vpop.f32.mrb[0].mxu0
        %v2529 = vadd.f32 %v2412, %v2528
        %v2530 = vpop.f32.mrb[0].mxu0
        %v2531 = vpop.f32.mrb[0].mxu0
        %v2532 = vadd.f32 %v2412, %v2531
        %v2533 = vpop.f32.mrb[0].mxu0
        %2534 = vdwg.mxu0
        %s2535 = scalar_lea.vmem %s853, 32
        %v2536 = vld [vmem:[%s2535] sm:$0xf]
        %v2537 = vld [vmem:[%s2535 + $0x4] sm:$0xf]
        %v2538 = vld [vmem:[%s2535 + $0x8] sm:$0xf]
        %v2539 = vld [vmem:[%s2535 + $0xc] sm:$0xf]
        %v2540 = vld [vmem:[%s2535 + $0x10] sm:$0xf]
        %v2541 = vld [vmem:[%s2535 + $0x14] sm:$0xf]
        %v2542 = vld [vmem:[%s2535 + $0x18] sm:$0xf]
        %v2543 = vld [vmem:[%s2535 + $0x1c] sm:$0xf]
        %s2544 = scalar_lea.vmem %s857, 1
        %v2545 = vld [vmem:[%s2544] sm:$0x1]
        %v2547 = vlaneseq
        %v2548 = vshrl.u32 %v2547, 7
        %v2549 = vsub.s32 0, %v2548
        %v2550 = vrot.slane %v2545, %v2549
        %v2560 = vunpack.c.l.b16 %v2536
        %v2561 = vunpack.c.l.b16 %v2537
        %v2562 = vunpack.c.l.b16 %v2538
        %v2563 = vunpack.c.l.b16 %v2539
        %v2564 = vunpack.c.l.b16 %v2540
        %v2565 = vunpack.c.l.b16 %v2541
        %v2566 = vunpack.c.l.b16 %v2542
        %v2567 = vunpack.c.l.b16 %v2543
        %v2568 = vpack.c.b16 %v2561, %v2560
        %v2569 = vpack.c.b16 %v2563, %v2562
        %v2570 = vpack.c.b16 %v2565, %v2564
        %v2571 = vpack.c.b16 %v2567, %v2566
        %2576 = vmatprep.subr.bf16.mxu0 0
        %2577 = vmatpush1.bf16.msra.mxu0 %v2568
        %2578 = vmatprep.subr.bf16.mxu0 0
        %2579 = vmatpush1.bf16.msra.mxu0 %v2569
        %2580 = vmatprep.subr.bf16.mxu0 0
        %2581 = vmatpush1.bf16.msra.mxu0 %v2570
        %2582 = vmatprep.subr.bf16.mxu0 0
        %2583 = vmatpush1.bf16.msra.mxu0 %v2571
        %2584 = vmatprep.subr.bf16.mxu0 0
        %2585 = vmatpush1.bf16.msra.mxu0 0
        %2586 = vmatprep.subr.bf16.mxu0 0
        %2587 = vmatpush1.bf16.msra.mxu0 0
        %2588 = vmatprep.subr.bf16.mxu0 0
        %2589 = vmatpush1.bf16.msra.mxu0 0
        %2590 = vmatprep.subr.bf16.mxu0 0
        %2591 = vmatpush1.bf16.msra.mxu0 0
        %2592 = vmatprep.subr.bf16.mxu0 0
        %2593 = vmatpush1.bf16.msra.mxu0 0
        %2594 = vmatprep.subr.bf16.mxu0 0
        %2595 = vmatpush1.bf16.msra.mxu0 0
        %2596 = vmatprep.subr.bf16.mxu0 0
        %2597 = vmatpush1.bf16.msra.mxu0 0
        %2598 = vmatprep.subr.bf16.mxu0 0
        %2599 = vmatpush1.bf16.msra.mxu0 0
        %2600 = vmatprep.subr.bf16.mxu0 0
        %2601 = vmatpush1.bf16.msra.mxu0 0
        %2602 = vmatprep.subr.bf16.mxu0 0
        %2603 = vmatpush1.bf16.msra.mxu0 0
        %2604 = vmatprep.subr.bf16.mxu0 0
        %2605 = vmatpush1.bf16.msra.mxu0 0
        %2606 = vmatprep.subr.bf16.mxu0 0
        %2607 = vmatpush1.bf16.msra.mxu0 0
        %2608 = vmatprep.mubr.bf16.mxu0 0
        %2609 = vmatmul.mubr.bf16.gmra.mrb[0].mxu0 %v1324
        %v2610 = vpop.f32.mrb[0].mxu0
        %v2611 = vadd.f32 %v2550, %v2610
        %v2612 = vpop.f32.mrb[0].mxu0
        %v2613 = vpop.f32.mrb[0].mxu0
        %v2614 = vadd.f32 %v2550, %v2613
        %v2615 = vpop.f32.mrb[0].mxu0
        %2616 = vmatprep.mubr.bf16.mxu0 0
        %2617 = vmatmul.mubr.bf16.gmra.mrb[0].mxu0 %v1327
        %v2618 = vpop.f32.mrb[0].mxu0
        %v2619 = vadd.f32 %v2550, %v2618
        %v2620 = vpop.f32.mrb[0].mxu0
        %v2621 = vpop.f32.mrb[0].mxu0
        %v2622 = vadd.f32 %v2550, %v2621
        %v2623 = vpop.f32.mrb[0].mxu0
        %2624 = vmatprep.mubr.bf16.mxu0 0
        %2625 = vmatmul.mubr.bf16.gmra.mrb[0].mxu0 %v1330
        %v2626 = vpop.f32.mrb[0].mxu0
        %v2627 = vadd.f32 %v2550, %v2626
        %v2628 = vpop.f32.mrb[0].mxu0
        %v2629 = vpop.f32.mrb[0].mxu0
        %v2630 = vadd.f32 %v2550, %v2629
        %v2631 = vpop.f32.mrb[0].mxu0
        %2632 = vmatprep.mubr.bf16.mxu0 0
        %2633 = vmatmul.mubr.bf16.gmra.mrb[0].mxu0 %v1333
        %v2634 = vpop.f32.mrb[0].mxu0
        %v2635 = vadd.f32 %v2550, %v2634
        %v2636 = vpop.f32.mrb[0].mxu0
        %v2637 = vpop.f32.mrb[0].mxu0
        %v2638 = vadd.f32 %v2550, %v2637
        %v2639 = vpop.f32.mrb[0].mxu0
        %2640 = vmatprep.mubr.bf16.mxu0 0
        %2641 = vmatmul.mubr.bf16.gmra.mrb[0].mxu0 %v1336
        %v2642 = vpop.f32.mrb[0].mxu0
        %v2643 = vadd.f32 %v2550, %v2642
        %v2644 = vpop.f32.mrb[0].mxu0
        %v2645 = vpop.f32.mrb[0].mxu0
        %v2646 = vadd.f32 %v2550, %v2645
        %v2647 = vpop.f32.mrb[0].mxu0
        %2648 = vmatprep.mubr.bf16.mxu0 0
        %2649 = vmatmul.mubr.bf16.gmra.mrb[0].mxu0 %v1339
        %v2650 = vpop.f32.mrb[0].mxu0
        %v2651 = vadd.f32 %v2550, %v2650
        %v2652 = vpop.f32.mrb[0].mxu0
        %v2653 = vpop.f32.mrb[0].mxu0
        %v2654 = vadd.f32 %v2550, %v2653
        %v2655 = vpop.f32.mrb[0].mxu0
        %2656 = vmatprep.mubr.bf16.mxu0 0
        %2657 = vmatmul.mubr.bf16.gmra.mrb[0].mxu0 %v1342
        %v2658 = vpop.f32.mrb[0].mxu0
        %v2659 = vadd.f32 %v2550, %v2658
        %v2660 = vpop.f32.mrb[0].mxu0
        %v2661 = vpop.f32.mrb[0].mxu0
        %v2662 = vadd.f32 %v2550, %v2661
        %v2663 = vpop.f32.mrb[0].mxu0
        %2664 = vmatprep.mubr.bf16.mxu0 0
        %2665 = vmatmul.mubr.bf16.gmra.mrb[0].mxu0 %v1345
        %v2666 = vpop.f32.mrb[0].mxu0
        %v2667 = vadd.f32 %v2550, %v2666
        %v2668 = vpop.f32.mrb[0].mxu0
        %v2669 = vpop.f32.mrb[0].mxu0
        %v2670 = vadd.f32 %v2550, %v2669
        %v2671 = vpop.f32.mrb[0].mxu0
        %2672 = vdwg.mxu0
        %v2674 = vsel %vm1716, %v2335, 0
        %v2677 = vsel %vm1716, %v2338, 0
        %v2680 = vsel %vm1716, %v2343, 0
        %v2683 = vsel %vm1716, %v2346, 0
        %v2686 = vsel %vm1716, %v2351, 0
        %v2689 = vsel %vm1716, %v2354, 0
        %v2692 = vsel %vm1716, %v2359, 0
        %v2695 = vsel %vm1716, %v2362, 0
        %v2698 = vsel %vm1716, %v2367, 0
        %v2701 = vsel %vm1716, %v2370, 0
        %v2704 = vsel %vm1716, %v2375, 0
        %v2707 = vsel %vm1716, %v2378, 0
        %v2710 = vsel %vm1716, %v2383, 0
        %v2713 = vsel %vm1716, %v2386, 0
        %v2716 = vsel %vm1716, %v2391, 0
        %v2719 = vsel %vm1716, %v2394, 0
        %v2722 = vsel %vm1716, %v2473, 0
        %v2725 = vsel %vm1716, %v2476, 0
        %v2728 = vsel %vm1716, %v2481, 0
        %v2731 = vsel %vm1716, %v2484, 0
        %v2734 = vsel %vm1716, %v2489, 0
        %v2737 = vsel %vm1716, %v2492, 0
        %v2740 = vsel %vm1716, %v2497, 0
        %v2743 = vsel %vm1716, %v2500, 0
        %v2746 = vsel %vm1716, %v2505, 0
        %v2749 = vsel %vm1716, %v2508, 0
        %v2752 = vsel %vm1716, %v2513, 0
        %v2755 = vsel %vm1716, %v2516, 0
        %v2758 = vsel %vm1716, %v2521, 0
        %v2761 = vsel %vm1716, %v2524, 0
        %v2764 = vsel %vm1716, %v2529, 0
        %v2767 = vsel %vm1716, %v2532, 0
        %2769 = vmatprep.subr.mxu0 0.0
        %2770 = vmatpush1.xpose.msra.mxu0 %v2722
        %2771 = vmatprep.subr.mxu0 0.0
        %2772 = vmatpush1.xpose.msra.mxu0 %v2725
        %2773 = vmatprep.subr.mxu0 0.0
        %2774 = vmatpush1.xpose.msra.mxu0 %v2728
        %2775 = vmatprep.subr.mxu0 0.0
        %2776 = vmatpush1.xpose.msra.mxu0 %v2731
        %2777 = vmatprep.subr.mxu0 0.0
        %2778 = vmatpush1.xpose.msra.mxu0 %v2734
        %2779 = vmatprep.subr.mxu0 0.0
        %2780 = vmatpush1.xpose.msra.mxu0 %v2737
        %2781 = vmatprep.subr.mxu0 0.0
        %2782 = vmatpush1.xpose.msra.mxu0 %v2740
        %2783 = vmatprep.subr.mxu0 0.0
        %2784 = vmatpush1.xpose.msra.mxu0 %v2743
        %2785 = vmatprep.subr.mxu0 0.0
        %2786 = vmatpush1.xpose.msra.mxu0 %v2746
        %2787 = vmatprep.subr.mxu0 0.0
        %2788 = vmatpush1.xpose.msra.mxu0 %v2749
        %2789 = vmatprep.subr.mxu0 0.0
        %2790 = vmatpush1.xpose.msra.mxu0 %v2752
        %2791 = vmatprep.subr.mxu0 0.0
        %2792 = vmatpush1.xpose.msra.mxu0 %v2755
        %2793 = vmatprep.subr.mxu0 0.0
        %2794 = vmatpush1.xpose.msra.mxu0 %v2758
        %2795 = vmatprep.subr.mxu0 0.0
        %2796 = vmatpush1.xpose.msra.mxu0 %v2761
        %2797 = vmatprep.subr.mxu0 0.0
        %2798 = vmatpush1.xpose.msra.mxu0 %v2764
        %2799 = vmatprep.subr.mxu0 0.0
        %2800 = vmatpush1.xpose.msra.mxu0 %v2767
        %2801 = vmatprep.subr.mxu0 0.0
        %2802 = vmatpush1.xpose.msra.mxu0 0.0
        %2803 = vmatprep.subr.mxu0 0.0
        %2804 = vmatpush1.xpose.msra.mxu0 0.0
        %2805 = vmatprep.subr.mxu0 0.0
        %2806 = vmatpush1.xpose.msra.mxu0 0.0
        %2807 = vmatprep.subr.mxu0 0.0
        %2808 = vmatpush1.xpose.msra.mxu0 0.0
        %2809 = vmatprep.subr.mxu0 0.0
        %2810 = vmatpush1.xpose.msra.mxu0 0.0
        %2811 = vmatprep.subr.mxu0 0.0
        %2812 = vmatpush1.xpose.msra.mxu0 0.0
        %2813 = vmatprep.subr.mxu0 0.0
        %2814 = vmatpush1.xpose.msra.mxu0 0.0
        %2815 = vmatprep.subr.mxu0 0.0
        %2816 = vmatpush1.xpose.msra.mxu0 0.0
        %2817 = vmatprep.subr.mxu0 0.0
        %2818 = vmatpush1.xpose.msra.mxu0 0.0
        %2819 = vmatprep.subr.mxu0 0.0
        %2820 = vmatpush1.xpose.msra.mxu0 0.0
        %2821 = vmatprep.subr.mxu0 0.0
        %2822 = vmatpush1.xpose.msra.mxu0 0.0
        %2823 = vmatprep.subr.mxu0 0.0
        %2824 = vmatpush1.xpose.msra.mxu0 0.0
        %2825 = vmatprep.subr.mxu0 0.0
        %2826 = vmatpush1.xpose.msra.mxu0 0.0
        %2827 = vmatprep.subr.mxu0 0.0
        %2828 = vmatpush1.xpose.msra.mxu0 0.0
        %2829 = vmatprep.subr.mxu0 0.0
        %2830 = vmatpush1.xpose.msra.mxu0 0.0
        %2831 = vmatprep.subr.mxu0 0.0
        %2832 = vmatpush1.xpose.msra.mxu0 0.0
        %2833 = vmatprep.mubr.f32.mxu0 0.0
        %2834 = vmatmul.mubr.f32.gmra.mrb[0].mxu0 %v2674
        %v2835 = vpop.f32.mrb[0].mxu0
        %v2836 = vadd.f32 %v1267, %v2835
        %v2837 = vpop.f32.mrb[0].mxu0
        %2838 = vmatprep.mubr.f32.mxu0 0.0
        %2839 = vmatmul.mubr.f32.gmra.mrb[0].mxu0 %v2677
        %v2840 = vpop.f32.mrb[0].mxu0
        %v2841 = vadd.f32 %v1268, %v2840
        %v2842 = vpop.f32.mrb[0].mxu0
        %2843 = vmatprep.mubr.f32.mxu0 0.0
        %2844 = vmatmul.mubr.f32.gmra.mrb[0].mxu0 %v2680
        %v2845 = vpop.f32.mrb[0].mxu0
        %v2846 = vadd.f32 %v1269, %v2845
        %v2847 = vpop.f32.mrb[0].mxu0
        %2848 = vmatprep.mubr.f32.mxu0 0.0
        %2849 = vmatmul.mubr.f32.gmra.mrb[0].mxu0 %v2683
        %v2850 = vpop.f32.mrb[0].mxu0
        %v2851 = vadd.f32 %v1270, %v2850
        %v2852 = vpop.f32.mrb[0].mxu0
        %2853 = vmatprep.mubr.f32.mxu0 0.0
        %2854 = vmatmul.mubr.f32.gmra.mrb[0].mxu0 %v2686
        %v2855 = vpop.f32.mrb[0].mxu0
        %v2856 = vadd.f32 %v1271, %v2855
        %v2857 = vpop.f32.mrb[0].mxu0
        %2858 = vmatprep.mubr.f32.mxu0 0.0
        %2859 = vmatmul.mubr.f32.gmra.mrb[0].mxu0 %v2689
        %v2860 = vpop.f32.mrb[0].mxu0
        %v2861 = vadd.f32 %v1272, %v2860
        %v2862 = vpop.f32.mrb[0].mxu0
        %2863 = vmatprep.mubr.f32.mxu0 0.0
        %2864 = vmatmul.mubr.f32.gmra.mrb[0].mxu0 %v2692
        %v2865 = vpop.f32.mrb[0].mxu0
        %v2866 = vadd.f32 %v1273, %v2865
        %v2867 = vpop.f32.mrb[0].mxu0
        %2868 = vmatprep.mubr.f32.mxu0 0.0
        %2869 = vmatmul.mubr.f32.gmra.mrb[0].mxu0 %v2695
        %v2870 = vpop.f32.mrb[0].mxu0
        %v2871 = vadd.f32 %v1274, %v2870
        %v2872 = vpop.f32.mrb[0].mxu0
        %2873 = vmatprep.mubr.f32.mxu0 0.0
        %2874 = vmatmul.mubr.f32.gmra.mrb[0].mxu0 %v2698
        %v2875 = vpop.f32.mrb[0].mxu0
        %v2876 = vadd.f32 %v1275, %v2875
        %v2877 = vpop.f32.mrb[0].mxu0
        %2878 = vmatprep.mubr.f32.mxu0 0.0
        %2879 = vmatmul.mubr.f32.gmra.mrb[0].mxu0 %v2701
        %v2880 = vpop.f32.mrb[0].mxu0
        %v2881 = vadd.f32 %v1276, %v2880
        %v2882 = vpop.f32.mrb[0].mxu0
        %2883 = vmatprep.mubr.f32.mxu0 0.0
        %2884 = vmatmul.mubr.f32.gmra.mrb[0].mxu0 %v2704
        %v2885 = vpop.f32.mrb[0].mxu0
        %v2886 = vadd.f32 %v1277, %v2885
        %v2887 = vpop.f32.mrb[0].mxu0
        %2888 = vmatprep.mubr.f32.mxu0 0.0
        %2889 = vmatmul.mubr.f32.gmra.mrb[0].mxu0 %v2707
        %v2890 = vpop.f32.mrb[0].mxu0
        %v2891 = vadd.f32 %v1278, %v2890
        %v2892 = vpop.f32.mrb[0].mxu0
        %2893 = vmatprep.mubr.f32.mxu0 0.0
        %2894 = vmatmul.mubr.f32.gmra.mrb[0].mxu0 %v2710
        %v2895 = vpop.f32.mrb[0].mxu0
        %v2896 = vadd.f32 %v1279, %v2895
        %v2897 = vpop.f32.mrb[0].mxu0
        %2898 = vmatprep.mubr.f32.mxu0 0.0
        %2899 = vmatmul.mubr.f32.gmra.mrb[0].mxu0 %v2713
        %v2900 = vpop.f32.mrb[0].mxu0
        %v2901 = vadd.f32 %v1280, %v2900
        %v2902 = vpop.f32.mrb[0].mxu0
        %2903 = vmatprep.mubr.f32.mxu0 0.0
        %2904 = vmatmul.mubr.f32.gmra.mrb[0].mxu0 %v2716
        %v2905 = vpop.f32.mrb[0].mxu0
        %v2906 = vadd.f32 %v1281, %v2905
        %v2907 = vpop.f32.mrb[0].mxu0
        %2908 = vmatprep.mubr.f32.mxu0 0.0
        %2909 = vmatmul.mubr.f32.gmra.mrb[0].mxu0 %v2719
        %v2910 = vpop.f32.mrb[0].mxu0
        %v2911 = vadd.f32 %v1282, %v2910
        %v2912 = vpop.f32.mrb[0].mxu0
        %2913 = vdwg.mxu0
        %2914 = vmax.xlane.f32.xlu0 %v2836
        %v2915 = vpop.xlane.xlu0 %2914
        %2916 = vmax.xlane.f32.xlu0 %v2841
        %v2917 = vpop.xlane.xlu0 %2916
        %2918 = vmax.xlane.f32.xlu0 %v2846
        %v2919 = vpop.xlane.xlu0 %2918
        %2920 = vmax.xlane.f32.xlu0 %v2851
        %v2921 = vpop.xlane.xlu0 %2920
        %2922 = vmax.xlane.f32.xlu0 %v2856
        %v2923 = vpop.xlane.xlu0 %2922
        %2924 = vmax.xlane.f32.xlu0 %v2861
        %v2925 = vpop.xlane.xlu0 %2924
        %2926 = vmax.xlane.f32.xlu0 %v2866
        %v2927 = vpop.xlane.xlu0 %2926
        %2928 = vmax.xlane.f32.xlu0 %v2871
        %v2929 = vpop.xlane.xlu0 %2928
        %2930 = vmax.xlane.f32.xlu0 %v2876
        %v2931 = vpop.xlane.xlu0 %2930
        %2932 = vmax.xlane.f32.xlu0 %v2881
        %v2933 = vpop.xlane.xlu0 %2932
        %2934 = vmax.xlane.f32.xlu0 %v2886
        %v2935 = vpop.xlane.xlu0 %2934
        %2936 = vmax.xlane.f32.xlu0 %v2891
        %v2937 = vpop.xlane.xlu0 %2936
        %2938 = vmax.xlane.f32.xlu0 %v2896
        %v2939 = vpop.xlane.xlu0 %2938
        %2940 = vmax.xlane.f32.xlu0 %v2901
        %v2941 = vpop.xlane.xlu0 %2940
        %2942 = vmax.xlane.f32.xlu0 %v2906
        %v2943 = vpop.xlane.xlu0 %2942
        %2944 = vmax.xlane.f32.xlu0 %v2911
        %v2945 = vpop.xlane.xlu0 %2944
        %v2946 = vsub.f32 %v2836, %v2915
        %v2947 = vsub.f32 %v2841, %v2917
        %v2948 = vsub.f32 %v2846, %v2919
        %v2949 = vsub.f32 %v2851, %v2921
        %v2950 = vsub.f32 %v2856, %v2923
        %v2951 = vsub.f32 %v2861, %v2925
        %v2952 = vsub.f32 %v2866, %v2927
        %v2953 = vsub.f32 %v2871, %v2929
        %v2954 = vsub.f32 %v2876, %v2931
        %v2955 = vsub.f32 %v2881, %v2933
        %v2956 = vsub.f32 %v2886, %v2935
        %v2957 = vsub.f32 %v2891, %v2937
        %v2958 = vsub.f32 %v2896, %v2939
        %v2959 = vsub.f32 %v2901, %v2941
        %v2960 = vsub.f32 %v2906, %v2943
        %v2961 = vsub.f32 %v2911, %v2945
        %v2962 = vmul.f32 %v2946, 1.442695
        %v2963 = vpow.pop %v2962
        %v2964 = vmul.f32 %v2947, 1.442695
        %v2965 = vpow.pop %v2964
        %v2966 = vmul.f32 %v2948, 1.442695
        %v2967 = vpow.pop %v2966
        %v2968 = vmul.f32 %v2949, 1.442695
        %v2969 = vpow.pop %v2968
        %v2970 = vmul.f32 %v2950, 1.442695
        %v2971 = vpow.pop %v2970
        %v2972 = vmul.f32 %v2951, 1.442695
        %v2973 = vpow.pop %v2972
        %v2974 = vmul.f32 %v2952, 1.442695
        %v2975 = vpow.pop %v2974
        %v2976 = vmul.f32 %v2953, 1.442695
        %v2977 = vpow.pop %v2976
        %v2978 = vmul.f32 %v2954, 1.442695
        %v2979 = vpow.pop %v2978
        %v2980 = vmul.f32 %v2955, 1.442695
        %v2981 = vpow.pop %v2980
        %v2982 = vmul.f32 %v2956, 1.442695
        %v2983 = vpow.pop %v2982
        %v2984 = vmul.f32 %v2957, 1.442695
        %v2985 = vpow.pop %v2984
        %v2986 = vmul.f32 %v2958, 1.442695
        %v2987 = vpow.pop %v2986
        %v2988 = vmul.f32 %v2959, 1.442695
        %v2989 = vpow.pop %v2988
        %v2990 = vmul.f32 %v2960, 1.442695
        %v2991 = vpow.pop %v2990
        %v2992 = vmul.f32 %v2961, 1.442695
        %v2993 = vpow.pop %v2992
        %2994 = vadd.xlane.f32.xlu0 %v2963
        %v2995 = vpop.xlane.xlu0 %2994
        %2996 = vadd.xlane.f32.xlu0 %v2965
        %v2997 = vpop.xlane.xlu0 %2996
        %2998 = vadd.xlane.f32.xlu0 %v2967
        %v2999 = vpop.xlane.xlu0 %2998
        %3000 = vadd.xlane.f32.xlu0 %v2969
        %v3001 = vpop.xlane.xlu0 %3000
        %3002 = vadd.xlane.f32.xlu0 %v2971
        %v3003 = vpop.xlane.xlu0 %3002
        %3004 = vadd.xlane.f32.xlu0 %v2973
        %v3005 = vpop.xlane.xlu0 %3004
        %3006 = vadd.xlane.f32.xlu0 %v2975
        %v3007 = vpop.xlane.xlu0 %3006
        %3008 = vadd.xlane.f32.xlu0 %v2977
        %v3009 = vpop.xlane.xlu0 %3008
        %3010 = vadd.xlane.f32.xlu0 %v2979
        %v3011 = vpop.xlane.xlu0 %3010
        %3012 = vadd.xlane.f32.xlu0 %v2981
        %v3013 = vpop.xlane.xlu0 %3012
        %3014 = vadd.xlane.f32.xlu0 %v2983
        %v3015 = vpop.xlane.xlu0 %3014
        %3016 = vadd.xlane.f32.xlu0 %v2985
        %v3017 = vpop.xlane.xlu0 %3016
        %3018 = vadd.xlane.f32.xlu0 %v2987
        %v3019 = vpop.xlane.xlu0 %3018
        %3020 = vadd.xlane.f32.xlu0 %v2989
        %v3021 = vpop.xlane.xlu0 %3020
        %3022 = vadd.xlane.f32.xlu0 %v2991
        %v3023 = vpop.xlane.xlu0 %3022
        %3024 = vadd.xlane.f32.xlu0 %v2993
        %v3025 = vpop.xlane.xlu0 %3024
        %v3026 = vrcp.pop %v2995
        %v3027 = vrcp.pop %v2997
        %v3028 = vrcp.pop %v2999
        %v3029 = vrcp.pop %v3001
        %v3030 = vrcp.pop %v3003
        %v3031 = vrcp.pop %v3005
        %v3032 = vrcp.pop %v3007
        %v3033 = vrcp.pop %v3009
        %v3034 = vrcp.pop %v3011
        %v3035 = vrcp.pop %v3013
        %v3036 = vrcp.pop %v3015
        %v3037 = vrcp.pop %v3017
        %v3038 = vrcp.pop %v3019
        %v3039 = vrcp.pop %v3021
        %v3040 = vrcp.pop %v3023
        %v3041 = vrcp.pop %v3025
        %v3042 = vmul.f32 %v2963, %v3026
        %v3043 = vmul.f32 %v2965, %v3027
        %v3044 = vmul.f32 %v2967, %v3028
        %v3045 = vmul.f32 %v2969, %v3029
        %v3046 = vmul.f32 %v2971, %v3030
        %v3047 = vmul.f32 %v2973, %v3031
        %v3048 = vmul.f32 %v2975, %v3032
        %v3049 = vmul.f32 %v2977, %v3033
        %v3050 = vmul.f32 %v2979, %v3034
        %v3051 = vmul.f32 %v2981, %v3035
        %v3052 = vmul.f32 %v2983, %v3036
        %v3053 = vmul.f32 %v2985, %v3037
        %v3054 = vmul.f32 %v2987, %v3038
        %v3055 = vmul.f32 %v2989, %v3039
        %v3056 = vmul.f32 %v2991, %v3040
        %v3057 = vmul.f32 %v2993, %v3041
        %3058 = vmatprep.subr.mxu0 0.0
        %3059 = vmatpush1.msra.mxu0 %v2611
        %3060 = vmatprep.subr.mxu0 0.0
        %3061 = vmatpush1.msra.mxu0 %v2614
        %3062 = vmatprep.subr.mxu0 0.0
        %3063 = vmatpush1.msra.mxu0 %v2619
        %3064 = vmatprep.subr.mxu0 0.0
        %3065 = vmatpush1.msra.mxu0 %v2622
        %3066 = vmatprep.subr.mxu0 0.0
        %3067 = vmatpush1.msra.mxu0 %v2627
        %3068 = vmatprep.subr.mxu0 0.0
        %3069 = vmatpush1.msra.mxu0 %v2630
        %3070 = vmatprep.subr.mxu0 0.0
        %3071 = vmatpush1.msra.mxu0 %v2635
        %3072 = vmatprep.subr.mxu0 0.0
        %3073 = vmatpush1.msra.mxu0 %v2638
        %3074 = vmatprep.subr.mxu0 0.0
        %3075 = vmatpush1.msra.mxu0 %v2643
        %3076 = vmatprep.subr.mxu0 0.0
        %3077 = vmatpush1.msra.mxu0 %v2646
        %3078 = vmatprep.subr.mxu0 0.0
        %3079 = vmatpush1.msra.mxu0 %v2651
        %3080 = vmatprep.subr.mxu0 0.0
        %3081 = vmatpush1.msra.mxu0 %v2654
        %3082 = vmatprep.subr.mxu0 0.0
        %3083 = vmatpush1.msra.mxu0 %v2659
        %3084 = vmatprep.subr.mxu0 0.0
        %3085 = vmatpush1.msra.mxu0 %v2662
        %3086 = vmatprep.subr.mxu0 0.0
        %3087 = vmatpush1.msra.mxu0 %v2667
        %3088 = vmatprep.subr.mxu0 0.0
        %3089 = vmatpush1.msra.mxu0 %v2670
        %3090 = vmatprep.subr.mxu0 0.0
        %3091 = vmatpush1.msra.mxu0 0.0
        %3092 = vmatprep.subr.mxu0 0.0
        %3093 = vmatpush1.msra.mxu0 0.0
        %3094 = vmatprep.subr.mxu0 0.0
        %3095 = vmatpush1.msra.mxu0 0.0
        %3096 = vmatprep.subr.mxu0 0.0
        %3097 = vmatpush1.msra.mxu0 0.0
        %3098 = vmatprep.subr.mxu0 0.0
        %3099 = vmatpush1.msra.mxu0 0.0
        %3100 = vmatprep.subr.mxu0 0.0
        %3101 = vmatpush1.msra.mxu0 0.0
        %3102 = vmatprep.subr.mxu0 0.0
        %3103 = vmatpush1.msra.mxu0 0.0
        %3104 = vmatprep.subr.mxu0 0.0
        %3105 = vmatpush1.msra.mxu0 0.0
        %3106 = vmatprep.subr.mxu0 0.0
        %3107 = vmatpush1.msra.mxu0 0.0
        %3108 = vmatprep.subr.mxu0 0.0
        %3109 = vmatpush1.msra.mxu0 0.0
        %3110 = vmatprep.subr.mxu0 0.0
        %3111 = vmatpush1.msra.mxu0 0.0
        %3112 = vmatprep.subr.mxu0 0.0
        %3113 = vmatpush1.msra.mxu0 0.0
        %3114 = vmatprep.subr.mxu0 0.0
        %3115 = vmatpush1.msra.mxu0 0.0
        %3116 = vmatprep.subr.mxu0 0.0
        %3117 = vmatpush1.msra.mxu0 0.0
        %3118 = vmatprep.subr.mxu0 0.0
        %3119 = vmatpush1.msra.mxu0 0.0
        %3120 = vmatprep.subr.mxu0 0.0
        %3121 = vmatpush1.msra.mxu0 0.0
        %3122 = vmatprep.mubr.f32.mxu0 0.0
        %3123 = vmatmul.mubr.f32.gmra.mrb[0].mxu0 %v3042
        %v3124 = vpop.f32.mrb[0].mxu0
        %v3125 = vadd.f32 0.0, %v3124
        %v3126 = vpop.f32.mrb[0].mxu0
        %3127 = vmatprep.mubr.f32.mxu0 0.0
        %3128 = vmatmul.mubr.f32.gmra.mrb[0].mxu0 %v3043
        %v3129 = vpop.f32.mrb[0].mxu0
        %v3130 = vadd.f32 0.0, %v3129
        %v3131 = vpop.f32.mrb[0].mxu0
        %3132 = vmatprep.mubr.f32.mxu0 0.0
        %3133 = vmatmul.mubr.f32.gmra.mrb[0].mxu0 %v3044
        %v3134 = vpop.f32.mrb[0].mxu0
        %v3135 = vadd.f32 0.0, %v3134
        %v3136 = vpop.f32.mrb[0].mxu0
        %3137 = vmatprep.mubr.f32.mxu0 0.0
        %3138 = vmatmul.mubr.f32.gmra.mrb[0].mxu0 %v3045
        %v3139 = vpop.f32.mrb[0].mxu0
        %v3140 = vadd.f32 0.0, %v3139
        %v3141 = vpop.f32.mrb[0].mxu0
        %3142 = vmatprep.mubr.f32.mxu0 0.0
        %3143 = vmatmul.mubr.f32.gmra.mrb[0].mxu0 %v3046
        %v3144 = vpop.f32.mrb[0].mxu0
        %v3145 = vadd.f32 0.0, %v3144
        %v3146 = vpop.f32.mrb[0].mxu0
        %3147 = vmatprep.mubr.f32.mxu0 0.0
        %3148 = vmatmul.mubr.f32.gmra.mrb[0].mxu0 %v3047
        %v3149 = vpop.f32.mrb[0].mxu0
        %v3150 = vadd.f32 0.0, %v3149
        %v3151 = vpop.f32.mrb[0].mxu0
        %3152 = vmatprep.mubr.f32.mxu0 0.0
        %3153 = vmatmul.mubr.f32.gmra.mrb[0].mxu0 %v3048
        %v3154 = vpop.f32.mrb[0].mxu0
        %v3155 = vadd.f32 0.0, %v3154
        %v3156 = vpop.f32.mrb[0].mxu0
        %3157 = vmatprep.mubr.f32.mxu0 0.0
        %3158 = vmatmul.mubr.f32.gmra.mrb[0].mxu0 %v3049
        %v3159 = vpop.f32.mrb[0].mxu0
        %v3160 = vadd.f32 0.0, %v3159
        %v3161 = vpop.f32.mrb[0].mxu0
        %3162 = vmatprep.mubr.f32.mxu0 0.0
        %3163 = vmatmul.mubr.f32.gmra.mrb[0].mxu0 %v3050
        %v3164 = vpop.f32.mrb[0].mxu0
        %v3165 = vadd.f32 0.0, %v3164
        %v3166 = vpop.f32.mrb[0].mxu0
        %3167 = vmatprep.mubr.f32.mxu0 0.0
        %3168 = vmatmul.mubr.f32.gmra.mrb[0].mxu0 %v3051
        %v3169 = vpop.f32.mrb[0].mxu0
        %v3170 = vadd.f32 0.0, %v3169
        %v3171 = vpop.f32.mrb[0].mxu0
        %3172 = vmatprep.mubr.f32.mxu0 0.0
        %3173 = vmatmul.mubr.f32.gmra.mrb[0].mxu0 %v3052
        %v3174 = vpop.f32.mrb[0].mxu0
        %v3175 = vadd.f32 0.0, %v3174
        %v3176 = vpop.f32.mrb[0].mxu0
        %3177 = vmatprep.mubr.f32.mxu0 0.0
        %3178 = vmatmul.mubr.f32.gmra.mrb[0].mxu0 %v3053
        %v3179 = vpop.f32.mrb[0].mxu0
        %v3180 = vadd.f32 0.0, %v3179
        %v3181 = vpop.f32.mrb[0].mxu0
        %3182 = vmatprep.mubr.f32.mxu0 0.0
        %3183 = vmatmul.mubr.f32.gmra.mrb[0].mxu0 %v3054
        %v3184 = vpop.f32.mrb[0].mxu0
        %v3185 = vadd.f32 0.0, %v3184
        %v3186 = vpop.f32.mrb[0].mxu0
        %3187 = vmatprep.mubr.f32.mxu0 0.0
        %3188 = vmatmul.mubr.f32.gmra.mrb[0].mxu0 %v3055
        %v3189 = vpop.f32.mrb[0].mxu0
        %v3190 = vadd.f32 0.0, %v3189
        %v3191 = vpop.f32.mrb[0].mxu0
        %3192 = vmatprep.mubr.f32.mxu0 0.0
        %3193 = vmatmul.mubr.f32.gmra.mrb[0].mxu0 %v3056
        %v3194 = vpop.f32.mrb[0].mxu0
        %v3195 = vadd.f32 0.0, %v3194
        %v3196 = vpop.f32.mrb[0].mxu0
        %3197 = vmatprep.mubr.f32.mxu0 0.0
        %3198 = vmatmul.mubr.f32.gmra.mrb[0].mxu0 %v3057
        %v3199 = vpop.f32.mrb[0].mxu0
        %v3200 = vadd.f32 0.0, %v3199
        %v3201 = vpop.f32.mrb[0].mxu0
        %3202 = vdwg.mxu0
        %v3203 = vpack.c.bf16 %v3130, %v3125
        %v3204 = vpack.c.bf16 %v3140, %v3135
        %v3205 = vpack.c.bf16 %v3150, %v3145
        %v3206 = vpack.c.bf16 %v3160, %v3155
        %v3207 = vpack.c.bf16 %v3170, %v3165
        %v3208 = vpack.c.bf16 %v3180, %v3175
        %v3209 = vpack.c.bf16 %v3190, %v3185
        %v3210 = vpack.c.bf16 %v3200, %v3195
        %s3211 = scalar_lea.vmem %s862, 16
        %v3212 = vld [vmem:[%s3211] sm:$0xf]
        %v3213 = vld [vmem:[%s3211 + $0x4] sm:$0xf]
        %v3214 = vld [vmem:[%s3211 + $0x8] sm:$0xf]
        %v3215 = vld [vmem:[%s3211 + $0xc] sm:$0xf]
        %v3220 = vunpack.c.l.b16 %v3212
        %v3221 = vunpack.c.l.b16 %v3213
        %v3222 = vunpack.c.l.b16 %v3214
        %v3223 = vunpack.c.l.b16 %v3215
        %v3224 = vpack.c.b16 %v3221, %v3220
        %v3225 = vpack.c.b16 %v3223, %v3222
        %v3229 = vsel %vm1716, %v3203, 0
        %v3232 = vsel %vm1716, %v3204, 0
        %v3235 = vsel %vm1716, %v3205, 0
        %v3238 = vsel %vm1716, %v3206, 0
        %v3241 = vsel %vm1716, %v3207, 0
        %v3244 = vsel %vm1716, %v3208, 0
        %v3247 = vsel %vm1716, %v3209, 0
        %v3250 = vsel %vm1716, %v3210, 0
        %3252 = vmatprep.subr.bf16.mxu0 0
        %3253 = vmatpush1.bf16.msra.mxu0 %v3224
        %3254 = vmatprep.subr.bf16.mxu0 0
        %3255 = vmatpush1.bf16.msra.mxu0 %v3225
        %3256 = vmatprep.subr.bf16.mxu0 0
        %3257 = vmatpush1.bf16.msra.mxu0 0
        %3258 = vmatprep.subr.bf16.mxu0 0
        %3259 = vmatpush1.bf16.msra.mxu0 0
        %3260 = vmatprep.subr.bf16.mxu0 0
        %3261 = vmatpush1.bf16.msra.mxu0 0
        %3262 = vmatprep.subr.bf16.mxu0 0
        %3263 = vmatpush1.bf16.msra.mxu0 0
        %3264 = vmatprep.subr.bf16.mxu0 0
        %3265 = vmatpush1.bf16.msra.mxu0 0
        %3266 = vmatprep.subr.bf16.mxu0 0
        %3267 = vmatpush1.bf16.msra.mxu0 0
        %3268 = vmatprep.subr.bf16.mxu0 0
        %3269 = vmatpush1.bf16.msra.mxu0 0
        %3270 = vmatprep.subr.bf16.mxu0 0
        %3271 = vmatpush1.bf16.msra.mxu0 0
        %3272 = vmatprep.subr.bf16.mxu0 0
        %3273 = vmatpush1.bf16.msra.mxu0 0
        %3274 = vmatprep.subr.bf16.mxu0 0
        %3275 = vmatpush1.bf16.msra.mxu0 0
        %3276 = vmatprep.subr.bf16.mxu0 0
        %3277 = vmatpush1.bf16.msra.mxu0 0
        %3278 = vmatprep.subr.bf16.mxu0 0
        %3279 = vmatpush1.bf16.msra.mxu0 0
        %3280 = vmatprep.subr.bf16.mxu0 0
        %3281 = vmatpush1.bf16.msra.mxu0 0
        %3282 = vmatprep.subr.bf16.mxu0 0
        %3283 = vmatpush1.bf16.msra.mxu0 0
        %3284 = vmatprep.mubr.bf16.mxu0 0
        %3285 = vmatmul.mubr.bf16.gmra.mrb[0].mxu0 %v3229
        %v3286 = vpop.f32.mrb[0].mxu0
        %v3287 = vadd.f32 0.0, %v3286
        %v3288 = vpop.f32.mrb[0].mxu0
        %v3289 = vpop.f32.mrb[0].mxu0
        %v3290 = vadd.f32 0.0, %v3289
        %v3291 = vpop.f32.mrb[0].mxu0
        %3292 = vmatprep.mubr.bf16.mxu0 0
        %3293 = vmatmul.mubr.bf16.gmra.mrb[0].mxu0 %v3232
        %v3294 = vpop.f32.mrb[0].mxu0
        %v3295 = vadd.f32 0.0, %v3294
        %v3296 = vpop.f32.mrb[0].mxu0
        %v3297 = vpop.f32.mrb[0].mxu0
        %v3298 = vadd.f32 0.0, %v3297
        %v3299 = vpop.f32.mrb[0].mxu0
        %3300 = vmatprep.mubr.bf16.mxu0 0
        %3301 = vmatmul.mubr.bf16.gmra.mrb[0].mxu0 %v3235
        %v3302 = vpop.f32.mrb[0].mxu0
        %v3303 = vadd.f32 0.0, %v3302
        %v3304 = vpop.f32.mrb[0].mxu0
        %v3305 = vpop.f32.mrb[0].mxu0
        %v3306 = vadd.f32 0.0, %v3305
        %v3307 = vpop.f32.mrb[0].mxu0
        %3308 = vmatprep.mubr.bf16.mxu0 0
        %3309 = vmatmul.mubr.bf16.gmra.mrb[0].mxu0 %v3238
        %v3310 = vpop.f32.mrb[0].mxu0
        %v3311 = vadd.f32 0.0, %v3310
        %v3312 = vpop.f32.mrb[0].mxu0
        %v3313 = vpop.f32.mrb[0].mxu0
        %v3314 = vadd.f32 0.0, %v3313
        %v3315 = vpop.f32.mrb[0].mxu0
        %3316 = vmatprep.mubr.bf16.mxu0 0
        %3317 = vmatmul.mubr.bf16.gmra.mrb[0].mxu0 %v3241
        %v3318 = vpop.f32.mrb[0].mxu0
        %v3319 = vadd.f32 0.0, %v3318
        %v3320 = vpop.f32.mrb[0].mxu0
        %v3321 = vpop.f32.mrb[0].mxu0
        %v3322 = vadd.f32 0.0, %v3321
        %v3323 = vpop.f32.mrb[0].mxu0
        %3324 = vmatprep.mubr.bf16.mxu0 0
        %3325 = vmatmul.mubr.bf16.gmra.mrb[0].mxu0 %v3244
        %v3326 = vpop.f32.mrb[0].mxu0
        %v3327 = vadd.f32 0.0, %v3326
        %v3328 = vpop.f32.mrb[0].mxu0
        %v3329 = vpop.f32.mrb[0].mxu0
        %v3330 = vadd.f32 0.0, %v3329
        %v3331 = vpop.f32.mrb[0].mxu0
        %3332 = vmatprep.mubr.bf16.mxu0 0
        %3333 = vmatmul.mubr.bf16.gmra.mrb[0].mxu0 %v3247
        %v3334 = vpop.f32.mrb[0].mxu0
        %v3335 = vadd.f32 0.0, %v3334
        %v3336 = vpop.f32.mrb[0].mxu0
        %v3337 = vpop.f32.mrb[0].mxu0
        %v3338 = vadd.f32 0.0, %v3337
        %v3339 = vpop.f32.mrb[0].mxu0
        %3340 = vmatprep.mubr.bf16.mxu0 0
        %3341 = vmatmul.mubr.bf16.gmra.mrb[0].mxu0 %v3250
        %v3342 = vpop.f32.mrb[0].mxu0
        %v3343 = vadd.f32 0.0, %v3342
        %v3344 = vpop.f32.mrb[0].mxu0
        %v3345 = vpop.f32.mrb[0].mxu0
        %v3346 = vadd.f32 0.0, %v3345
        %v3347 = vpop.f32.mrb[0].mxu0
        %3348 = vdwg.mxu0
        %v3353 = vunpack.c.l.b16 %v2255
        %v3354 = vunpack.c.l.b16 %v2256
        %v3355 = vunpack.c.l.b16 %v2257
        %v3356 = vunpack.c.l.b16 %v2258
        %v3357 = vpack.c.b16 %v3354, %v3353
        %v3358 = vpack.c.b16 %v3356, %v3355
        %v3362 = vsel %vm1716, %v2247, 0
        %v3365 = vsel %vm1716, %v2248, 0
        %v3368 = vsel %vm1716, %v2249, 0
        %v3371 = vsel %vm1716, %v2250, 0
        %v3374 = vsel %vm1716, %v2251, 0
        %v3377 = vsel %vm1716, %v2252, 0
        %v3380 = vsel %vm1716, %v2253, 0
        %v3383 = vsel %vm1716, %v2254, 0
        %3385 = vmatprep.subr.bf16.mxu0 0
        %3386 = vmatpush1.bf16.msra.mxu0 %v3357
        %3387 = vmatprep.subr.bf16.mxu0 0
        %3388 = vmatpush1.bf16.msra.mxu0 %v3358
        %3389 = vmatprep.subr.bf16.mxu0 0
        %3390 = vmatpush1.bf16.msra.mxu0 0
        %3391 = vmatprep.subr.bf16.mxu0 0
        %3392 = vmatpush1.bf16.msra.mxu0 0
        %3393 = vmatprep.subr.bf16.mxu0 0
        %3394 = vmatpush1.bf16.msra.mxu0 0
        %3395 = vmatprep.subr.bf16.mxu0 0
        %3396 = vmatpush1.bf16.msra.mxu0 0
        %3397 = vmatprep.subr.bf16.mxu0 0
        %3398 = vmatpush1.bf16.msra.mxu0 0
        %3399 = vmatprep.subr.bf16.mxu0 0
        %3400 = vmatpush1.bf16.msra.mxu0 0
        %3401 = vmatprep.subr.bf16.mxu0 0
        %3402 = vmatpush1.bf16.msra.mxu0 0
        %3403 = vmatprep.subr.bf16.mxu0 0
        %3404 = vmatpush1.bf16.msra.mxu0 0
        %3405 = vmatprep.subr.bf16.mxu0 0
        %3406 = vmatpush1.bf16.msra.mxu0 0
        %3407 = vmatprep.subr.bf16.mxu0 0
        %3408 = vmatpush1.bf16.msra.mxu0 0
        %3409 = vmatprep.subr.bf16.mxu0 0
        %3410 = vmatpush1.bf16.msra.mxu0 0
        %3411 = vmatprep.subr.bf16.mxu0 0
        %3412 = vmatpush1.bf16.msra.mxu0 0
        %3413 = vmatprep.subr.bf16.mxu0 0
        %3414 = vmatpush1.bf16.msra.mxu0 0
        %3415 = vmatprep.subr.bf16.mxu0 0
        %3416 = vmatpush1.bf16.msra.mxu0 0
        %3417 = vmatprep.mubr.bf16.mxu0 0
        %3418 = vmatmul.mubr.bf16.gmra.mrb[0].mxu0 %v3362
        %v3419 = vpop.f32.mrb[0].mxu0
        %v3420 = vadd.f32 %v3287, %v3419
        %v3421 = vpop.f32.mrb[0].mxu0
        %v3422 = vpop.f32.mrb[0].mxu0
        %v3423 = vadd.f32 %v3290, %v3422
        %v3424 = vpop.f32.mrb[0].mxu0
        %3425 = vmatprep.mubr.bf16.mxu0 0
        %3426 = vmatmul.mubr.bf16.gmra.mrb[0].mxu0 %v3365
        %v3427 = vpop.f32.mrb[0].mxu0
        %v3428 = vadd.f32 %v3295, %v3427
        %v3429 = vpop.f32.mrb[0].mxu0
        %v3430 = vpop.f32.mrb[0].mxu0
        %v3431 = vadd.f32 %v3298, %v3430
        %v3432 = vpop.f32.mrb[0].mxu0
        %3433 = vmatprep.mubr.bf16.mxu0 0
        %3434 = vmatmul.mubr.bf16.gmra.mrb[0].mxu0 %v3368
        %v3435 = vpop.f32.mrb[0].mxu0
        %v3436 = vadd.f32 %v3303, %v3435
        %v3437 = vpop.f32.mrb[0].mxu0
        %v3438 = vpop.f32.mrb[0].mxu0
        %v3439 = vadd.f32 %v3306, %v3438
        %v3440 = vpop.f32.mrb[0].mxu0
        %3441 = vmatprep.mubr.bf16.mxu0 0
        %3442 = vmatmul.mubr.bf16.gmra.mrb[0].mxu0 %v3371
        %v3443 = vpop.f32.mrb[0].mxu0
        %v3444 = vadd.f32 %v3311, %v3443
        %v3445 = vpop.f32.mrb[0].mxu0
        %v3446 = vpop.f32.mrb[0].mxu0
        %v3447 = vadd.f32 %v3314, %v3446
        %v3448 = vpop.f32.mrb[0].mxu0
        %3449 = vmatprep.mubr.bf16.mxu0 0
        %3450 = vmatmul.mubr.bf16.gmra.mrb[0].mxu0 %v3374
        %v3451 = vpop.f32.mrb[0].mxu0
        %v3452 = vadd.f32 %v3319, %v3451
        %v3453 = vpop.f32.mrb[0].mxu0
        %v3454 = vpop.f32.mrb[0].mxu0
        %v3455 = vadd.f32 %v3322, %v3454
        %v3456 = vpop.f32.mrb[0].mxu0
        %3457 = vmatprep.mubr.bf16.mxu0 0
        %3458 = vmatmul.mubr.bf16.gmra.mrb[0].mxu0 %v3377
        %v3459 = vpop.f32.mrb[0].mxu0
        %v3460 = vadd.f32 %v3327, %v3459
        %v3461 = vpop.f32.mrb[0].mxu0
        %v3462 = vpop.f32.mrb[0].mxu0
        %v3463 = vadd.f32 %v3330, %v3462
        %v3464 = vpop.f32.mrb[0].mxu0
        %3465 = vmatprep.mubr.bf16.mxu0 0
        %3466 = vmatmul.mubr.bf16.gmra.mrb[0].mxu0 %v3380
        %v3467 = vpop.f32.mrb[0].mxu0
        %v3468 = vadd.f32 %v3335, %v3467
        %v3469 = vpop.f32.mrb[0].mxu0
        %v3470 = vpop.f32.mrb[0].mxu0
        %v3471 = vadd.f32 %v3338, %v3470
        %v3472 = vpop.f32.mrb[0].mxu0
        %3473 = vmatprep.mubr.bf16.mxu0 0
        %3474 = vmatmul.mubr.bf16.gmra.mrb[0].mxu0 %v3383
        %v3475 = vpop.f32.mrb[0].mxu0
        %v3476 = vadd.f32 %v3343, %v3475
        %v3477 = vpop.f32.mrb[0].mxu0
        %v3478 = vpop.f32.mrb[0].mxu0
        %v3479 = vadd.f32 %v3346, %v3478
        %v3480 = vpop.f32.mrb[0].mxu0
        %3481 = vdwg.mxu0
        %v3482 = vld [vmem:[%s865] sm:$0x1]
        %v3484 = vlaneseq
        %v3485 = vshrl.u32 %v3484, 7
        %v3486 = vsub.s32 0, %v3485
        %v3487 = vrot.slane %v3482, %v3486
        %v3489 = vadd.f32 %v3420, %v3487
        %v3490 = vadd.f32 %v3423, %v3487
        %v3491 = vadd.f32 %v3428, %v3487
        %v3492 = vadd.f32 %v3431, %v3487
        %v3493 = vadd.f32 %v3436, %v3487
        %v3494 = vadd.f32 %v3439, %v3487
        %v3495 = vadd.f32 %v3444, %v3487
        %v3496 = vadd.f32 %v3447, %v3487
        %v3497 = vadd.f32 %v3452, %v3487
        %v3498 = vadd.f32 %v3455, %v3487
        %v3499 = vadd.f32 %v3460, %v3487
        %v3500 = vadd.f32 %v3463, %v3487
        %v3501 = vadd.f32 %v3468, %v3487
        %v3502 = vadd.f32 %v3471, %v3487
        %v3503 = vadd.f32 %v3476, %v3487
        %v3504 = vadd.f32 %v3479, %v3487
        %v3505 = vadd.f32 %v1243, %v3489
        %v3506 = vadd.f32 %v1244, %v3490
        %v3507 = vadd.f32 %v1245, %v3491
        %v3508 = vadd.f32 %v1246, %v3492
        %v3509 = vadd.f32 %v1247, %v3493
        %v3510 = vadd.f32 %v1248, %v3494
        %v3511 = vadd.f32 %v1249, %v3495
        %v3512 = vadd.f32 %v1250, %v3496
        %v3513 = vadd.f32 %v1251, %v3497
        %v3514 = vadd.f32 %v1252, %v3498
        %v3515 = vadd.f32 %v1253, %v3499
        %v3516 = vadd.f32 %v1254, %v3500
        %v3517 = vadd.f32 %v1255, %v3501
        %v3518 = vadd.f32 %v1256, %v3502
        %v3519 = vadd.f32 %v1257, %v3503
        %v3520 = vadd.f32 %v1258, %v3504
        %v3521 = vld [vmem:[%s868] sm:$0x1]
        %v3522 = vld [vmem:[%s871] sm:$0x1]
        %v3523 = vsel %vm1322, %v3505, 0.0
        %3524 = vadd.xlane.f32.xlu0 %v3523
        %v3525 = vpop.xlane.xlu0 %3524
        %v3526 = vsel %vm1322, %v3506, 0.0
        %3527 = vadd.xlane.f32.xlu0 %v3526
        %v3528 = vpop.xlane.xlu0 %3527
        %v3529 = vsel %vm1322, %v3507, 0.0
        %3530 = vadd.xlane.f32.xlu0 %v3529
        %v3531 = vpop.xlane.xlu0 %3530
        %v3532 = vsel %vm1322, %v3508, 0.0
        %3533 = vadd.xlane.f32.xlu0 %v3532
        %v3534 = vpop.xlane.xlu0 %3533
        %v3535 = vsel %vm1322, %v3509, 0.0
        %3536 = vadd.xlane.f32.xlu0 %v3535
        %v3537 = vpop.xlane.xlu0 %3536
        %v3538 = vsel %vm1322, %v3510, 0.0
        %3539 = vadd.xlane.f32.xlu0 %v3538
        %v3540 = vpop.xlane.xlu0 %3539
        %v3541 = vsel %vm1322, %v3511, 0.0
        %3542 = vadd.xlane.f32.xlu0 %v3541
        %v3543 = vpop.xlane.xlu0 %3542
        %v3544 = vsel %vm1322, %v3512, 0.0
        %3545 = vadd.xlane.f32.xlu0 %v3544
        %v3546 = vpop.xlane.xlu0 %3545
        %v3547 = vsel %vm1322, %v3513, 0.0
        %3548 = vadd.xlane.f32.xlu0 %v3547
        %v3549 = vpop.xlane.xlu0 %3548
        %v3550 = vsel %vm1322, %v3514, 0.0
        %3551 = vadd.xlane.f32.xlu0 %v3550
        %v3552 = vpop.xlane.xlu0 %3551
        %v3553 = vsel %vm1322, %v3515, 0.0
        %3554 = vadd.xlane.f32.xlu0 %v3553
        %v3555 = vpop.xlane.xlu0 %3554
        %v3556 = vsel %vm1322, %v3516, 0.0
        %3557 = vadd.xlane.f32.xlu0 %v3556
        %v3558 = vpop.xlane.xlu0 %3557
        %v3559 = vsel %vm1322, %v3517, 0.0
        %3560 = vadd.xlane.f32.xlu0 %v3559
        %v3561 = vpop.xlane.xlu0 %3560
        %v3562 = vsel %vm1322, %v3518, 0.0
        %3563 = vadd.xlane.f32.xlu0 %v3562
        %v3564 = vpop.xlane.xlu0 %3563
        %v3565 = vsel %vm1322, %v3519, 0.0
        %3566 = vadd.xlane.f32.xlu0 %v3565
        %v3567 = vpop.xlane.xlu0 %3566
        %v3568 = vsel %vm1322, %v3520, 0.0
        %3569 = vadd.xlane.f32.xlu0 %v3568
        %v3570 = vpop.xlane.xlu0 %3569
        %v3571 = vrcp.pop 64.0
        %v3572 = vmul.f32 %v3525, %v3571
        %v3573 = vmul.f32 %v3528, %v3571
        %v3574 = vmul.f32 %v3531, %v3571
        %v3575 = vmul.f32 %v3534, %v3571
        %v3576 = vmul.f32 %v3537, %v3571
        %v3577 = vmul.f32 %v3540, %v3571
        %v3578 = vmul.f32 %v3543, %v3571
        %v3579 = vmul.f32 %v3546, %v3571
        %v3580 = vmul.f32 %v3549, %v3571
        %v3581 = vmul.f32 %v3552, %v3571
        %v3582 = vmul.f32 %v3555, %v3571
        %v3583 = vmul.f32 %v3558, %v3571
        %v3584 = vmul.f32 %v3561, %v3571
        %v3585 = vmul.f32 %v3564, %v3571
        %v3586 = vmul.f32 %v3567, %v3571
        %v3587 = vmul.f32 %v3570, %v3571
        %v3588 = vsub.f32 %v3505, %v3572
        %v3589 = vsub.f32 %v3506, %v3573
        %v3590 = vsub.f32 %v3507, %v3574
        %v3591 = vsub.f32 %v3508, %v3575
        %v3592 = vsub.f32 %v3509, %v3576
        %v3593 = vsub.f32 %v3510, %v3577
        %v3594 = vsub.f32 %v3511, %v3578
        %v3595 = vsub.f32 %v3512, %v3579
        %v3596 = vsub.f32 %v3513, %v3580
        %v3597 = vsub.f32 %v3514, %v3581
        %v3598 = vsub.f32 %v3515, %v3582
        %v3599 = vsub.f32 %v3516, %v3583
        %v3600 = vsub.f32 %v3517, %v3584
        %v3601 = vsub.f32 %v3518, %v3585
        %v3602 = vsub.f32 %v3519, %v3586
        %v3603 = vsub.f32 %v3520, %v3587
        %v3604 = vmul.f32 %v3588, %v3588
        %v3605 = vmul.f32 %v3589, %v3589
        %v3606 = vmul.f32 %v3590, %v3590
        %v3607 = vmul.f32 %v3591, %v3591
        %v3608 = vmul.f32 %v3592, %v3592
        %v3609 = vmul.f32 %v3593, %v3593
        %v3610 = vmul.f32 %v3594, %v3594
        %v3611 = vmul.f32 %v3595, %v3595
        %v3612 = vmul.f32 %v3596, %v3596
        %v3613 = vmul.f32 %v3597, %v3597
        %v3614 = vmul.f32 %v3598, %v3598
        %v3615 = vmul.f32 %v3599, %v3599
        %v3616 = vmul.f32 %v3600, %v3600
        %v3617 = vmul.f32 %v3601, %v3601
        %v3618 = vmul.f32 %v3602, %v3602
        %v3619 = vmul.f32 %v3603, %v3603
        %v3620 = vsel %vm1322, %v3604, 0.0
        %3621 = vadd.xlane.f32.xlu0 %v3620
        %v3622 = vpop.xlane.xlu0 %3621
        %v3623 = vsel %vm1322, %v3605, 0.0
        %3624 = vadd.xlane.f32.xlu0 %v3623
        %v3625 = vpop.xlane.xlu0 %3624
        %v3626 = vsel %vm1322, %v3606, 0.0
        %3627 = vadd.xlane.f32.xlu0 %v3626
        %v3628 = vpop.xlane.xlu0 %3627
        %v3629 = vsel %vm1322, %v3607, 0.0
        %3630 = vadd.xlane.f32.xlu0 %v3629
        %v3631 = vpop.xlane.xlu0 %3630
        %v3632 = vsel %vm1322, %v3608, 0.0
        %3633 = vadd.xlane.f32.xlu0 %v3632
        %v3634 = vpop.xlane.xlu0 %3633
        %v3635 = vsel %vm1322, %v3609, 0.0
        %3636 = vadd.xlane.f32.xlu0 %v3635
        %v3637 = vpop.xlane.xlu0 %3636
        %v3638 = vsel %vm1322, %v3610, 0.0
        %3639 = vadd.xlane.f32.xlu0 %v3638
        %v3640 = vpop.xlane.xlu0 %3639
        %v3641 = vsel %vm1322, %v3611, 0.0
        %3642 = vadd.xlane.f32.xlu0 %v3641
        %v3643 = vpop.xlane.xlu0 %3642
        %v3644 = vsel %vm1322, %v3612, 0.0
        %3645 = vadd.xlane.f32.xlu0 %v3644
        %v3646 = vpop.xlane.xlu0 %3645
        %v3647 = vsel %vm1322, %v3613, 0.0
        %3648 = vadd.xlane.f32.xlu0 %v3647
        %v3649 = vpop.xlane.xlu0 %3648
        %v3650 = vsel %vm1322, %v3614, 0.0
        %3651 = vadd.xlane.f32.xlu0 %v3650
        %v3652 = vpop.xlane.xlu0 %3651
        %v3653 = vsel %vm1322, %v3615, 0.0
        %3654 = vadd.xlane.f32.xlu0 %v3653
        %v3655 = vpop.xlane.xlu0 %3654
        %v3656 = vsel %vm1322, %v3616, 0.0
        %3657 = vadd.xlane.f32.xlu0 %v3656
        %v3658 = vpop.xlane.xlu0 %3657
        %v3659 = vsel %vm1322, %v3617, 0.0
        %3660 = vadd.xlane.f32.xlu0 %v3659
        %v3661 = vpop.xlane.xlu0 %3660
        %v3662 = vsel %vm1322, %v3618, 0.0
        %3663 = vadd.xlane.f32.xlu0 %v3662
        %v3664 = vpop.xlane.xlu0 %3663
        %v3665 = vsel %vm1322, %v3619, 0.0
        %3666 = vadd.xlane.f32.xlu0 %v3665
        %v3667 = vpop.xlane.xlu0 %3666
        %v3668 = vmul.f32 %v3622, %v3571
        %v3669 = vmul.f32 %v3625, %v3571
        %v3670 = vmul.f32 %v3628, %v3571
        %v3671 = vmul.f32 %v3631, %v3571
        %v3672 = vmul.f32 %v3634, %v3571
        %v3673 = vmul.f32 %v3637, %v3571
        %v3674 = vmul.f32 %v3640, %v3571
        %v3675 = vmul.f32 %v3643, %v3571
        %v3676 = vmul.f32 %v3646, %v3571
        %v3677 = vmul.f32 %v3649, %v3571
        %v3678 = vmul.f32 %v3652, %v3571
        %v3679 = vmul.f32 %v3655, %v3571
        %v3680 = vmul.f32 %v3658, %v3571
        %v3681 = vmul.f32 %v3661, %v3571
        %v3682 = vmul.f32 %v3664, %v3571
        %v3683 = vmul.f32 %v3667, %v3571
        %v3684 = vadd.f32 %v3668, 1e-05
        %v3685 = vadd.f32 %v3669, 1e-05
        %v3686 = vadd.f32 %v3670, 1e-05
        %v3687 = vadd.f32 %v3671, 1e-05
        %v3688 = vadd.f32 %v3672, 1e-05
        %v3689 = vadd.f32 %v3673, 1e-05
        %v3690 = vadd.f32 %v3674, 1e-05
        %v3691 = vadd.f32 %v3675, 1e-05
        %v3692 = vadd.f32 %v3676, 1e-05
        %v3693 = vadd.f32 %v3677, 1e-05
        %v3694 = vadd.f32 %v3678, 1e-05
        %v3695 = vadd.f32 %v3679, 1e-05
        %v3696 = vadd.f32 %v3680, 1e-05
        %v3697 = vadd.f32 %v3681, 1e-05
        %v3698 = vadd.f32 %v3682, 1e-05
        %v3699 = vadd.f32 %v3683, 1e-05
        %v3700 = vrsqrt.pop %v3684
        %v3701 = vrsqrt.pop %v3685
        %v3702 = vrsqrt.pop %v3686
        %v3703 = vrsqrt.pop %v3687
        %v3704 = vrsqrt.pop %v3688
        %v3705 = vrsqrt.pop %v3689
        %v3706 = vrsqrt.pop %v3690
        %v3707 = vrsqrt.pop %v3691
        %v3708 = vrsqrt.pop %v3692
        %v3709 = vrsqrt.pop %v3693
        %v3710 = vrsqrt.pop %v3694
        %v3711 = vrsqrt.pop %v3695
        %v3712 = vrsqrt.pop %v3696
        %v3713 = vrsqrt.pop %v3697
        %v3714 = vrsqrt.pop %v3698
        %v3715 = vrsqrt.pop %v3699
        %v3716 = vmul.f32 %v3588, %v3700
        %v3717 = vmul.f32 %v3589, %v3701
        %v3718 = vmul.f32 %v3590, %v3702
        %v3719 = vmul.f32 %v3591, %v3703
        %v3720 = vmul.f32 %v3592, %v3704
        %v3721 = vmul.f32 %v3593, %v3705
        %v3722 = vmul.f32 %v3594, %v3706
        %v3723 = vmul.f32 %v3595, %v3707
        %v3724 = vmul.f32 %v3596, %v3708
        %v3725 = vmul.f32 %v3597, %v3709
        %v3726 = vmul.f32 %v3598, %v3710
        %v3727 = vmul.f32 %v3599, %v3711
        %v3728 = vmul.f32 %v3600, %v3712
        %v3729 = vmul.f32 %v3601, %v3713
        %v3730 = vmul.f32 %v3602, %v3714
        %v3731 = vmul.f32 %v3603, %v3715
        %v3733 = vlaneseq
        %v3734 = vshrl.u32 %v3733, 7
        %v3735 = vsub.s32 0, %v3734
        %v3736 = vrot.slane %v3521, %v3735
        %v3738 = vmul.f32 %v3716, %v3736
        %v3739 = vmul.f32 %v3717, %v3736
        %v3740 = vmul.f32 %v3718, %v3736
        %v3741 = vmul.f32 %v3719, %v3736
        %v3742 = vmul.f32 %v3720, %v3736
        %v3743 = vmul.f32 %v3721, %v3736
        %v3744 = vmul.f32 %v3722, %v3736
        %v3745 = vmul.f32 %v3723, %v3736
        %v3746 = vmul.f32 %v3724, %v3736
        %v3747 = vmul.f32 %v3725, %v3736
        %v3748 = vmul.f32 %v3726, %v3736
        %v3749 = vmul.f32 %v3727, %v3736
        %v3750 = vmul.f32 %v3728, %v3736
        %v3751 = vmul.f32 %v3729, %v3736
        %v3752 = vmul.f32 %v3730, %v3736
        %v3753 = vmul.f32 %v3731, %v3736
        %v3755 = vlaneseq
        %v3756 = vshrl.u32 %v3755, 7
        %v3757 = vsub.s32 0, %v3756
        %v3758 = vrot.slane %v3522, %v3757
        %v3760 = vadd.f32 %v3738, %v3758
        %v3761 = vadd.f32 %v3739, %v3758
        %v3762 = vadd.f32 %v3740, %v3758
        %v3763 = vadd.f32 %v3741, %v3758
        %v3764 = vadd.f32 %v3742, %v3758
        %v3765 = vadd.f32 %v3743, %v3758
        %v3766 = vadd.f32 %v3744, %v3758
        %v3767 = vadd.f32 %v3745, %v3758
        %v3768 = vadd.f32 %v3746, %v3758
        %v3769 = vadd.f32 %v3747, %v3758
        %v3770 = vadd.f32 %v3748, %v3758
        %v3771 = vadd.f32 %v3749, %v3758
        %v3772 = vadd.f32 %v3750, %v3758
        %v3773 = vadd.f32 %v3751, %v3758
        %v3774 = vadd.f32 %v3752, %v3758
        %v3775 = vadd.f32 %v3753, %v3758
        %v3776 = vpack.c.bf16 %v3761, %v3760
        %v3777 = vpack.c.bf16 %v3763, %v3762
        %v3778 = vpack.c.bf16 %v3765, %v3764
        %v3779 = vpack.c.bf16 %v3767, %v3766
        %v3780 = vpack.c.bf16 %v3769, %v3768
        %v3781 = vpack.c.bf16 %v3771, %v3770
        %v3782 = vpack.c.bf16 %v3773, %v3772
        %v3783 = vpack.c.bf16 %v3775, %v3774
        %v3784 = vld [vmem:[%s876] sm:$0xff]
        %v3785 = vld [vmem:[%s876 + $0x8] sm:$0xff]
        %v3786 = vld [vmem:[%s876 + $0x10] sm:$0xff]
        %v3787 = vld [vmem:[%s876 + $0x18] sm:$0xff]
        %v3788 = vld [vmem:[%s876 + $0x20] sm:$0xff]
        %v3789 = vld [vmem:[%s876 + $0x28] sm:$0xff]
        %v3790 = vld [vmem:[%s876 + $0x30] sm:$0xff]
        %v3791 = vld [vmem:[%s876 + $0x38] sm:$0xff]
        %v3792 = vld [vmem:[%s876 + $0x40] sm:$0xff]
        %v3793 = vld [vmem:[%s876 + $0x48] sm:$0xff]
        %v3794 = vld [vmem:[%s876 + $0x50] sm:$0xff]
        %v3795 = vld [vmem:[%s876 + $0x58] sm:$0xff]
        %v3796 = vld [vmem:[%s876 + $0x60] sm:$0xff]
        %v3797 = vld [vmem:[%s876 + $0x68] sm:$0xff]
        %v3798 = vld [vmem:[%s876 + $0x70] sm:$0xff]
        %v3799 = vld [vmem:[%s876 + $0x78] sm:$0xff]
        %v3800 = vld [vmem:[%s876 + $0x80] sm:$0xff]
        %v3801 = vld [vmem:[%s876 + $0x88] sm:$0xff]
        %v3802 = vld [vmem:[%s876 + $0x90] sm:$0xff]
        %v3803 = vld [vmem:[%s876 + $0x98] sm:$0xff]
        %v3804 = vld [vmem:[%s876 + $0xa0] sm:$0xff]
        %v3805 = vld [vmem:[%s876 + $0xa8] sm:$0xff]
        %v3806 = vld [vmem:[%s876 + $0xb0] sm:$0xff]
        %v3807 = vld [vmem:[%s876 + $0xb8] sm:$0xff]
        %v3808 = vld [vmem:[%s876 + $0xc0] sm:$0xff]
        %v3809 = vld [vmem:[%s876 + $0xc8] sm:$0xff]
        %v3810 = vld [vmem:[%s876 + $0xd0] sm:$0xff]
        %v3811 = vld [vmem:[%s876 + $0xd8] sm:$0xff]
        %v3812 = vld [vmem:[%s876 + $0xe0] sm:$0xff]
        %v3813 = vld [vmem:[%s876 + $0xe8] sm:$0xff]
        %v3814 = vld [vmem:[%s876 + $0xf0] sm:$0xff]
        %v3815 = vld [vmem:[%s876 + $0xf8] sm:$0xff]
        %v3816 = vld [vmem:[%s876 + $0x100] sm:$0xff]
        %v3817 = vld [vmem:[%s876 + $0x108] sm:$0xff]
        %v3818 = vld [vmem:[%s876 + $0x110] sm:$0xff]
        %v3819 = vld [vmem:[%s876 + $0x118] sm:$0xff]
        %v3820 = vld [vmem:[%s876 + $0x120] sm:$0xff]
        %v3821 = vld [vmem:[%s876 + $0x128] sm:$0xff]
        %v3822 = vld [vmem:[%s876 + $0x130] sm:$0xff]
        %v3823 = vld [vmem:[%s876 + $0x138] sm:$0xff]
        %v3824 = vld [vmem:[%s876 + $0x140] sm:$0xff]
        %v3825 = vld [vmem:[%s876 + $0x148] sm:$0xff]
        %v3826 = vld [vmem:[%s876 + $0x150] sm:$0xff]
        %v3827 = vld [vmem:[%s876 + $0x158] sm:$0xff]
        %v3828 = vld [vmem:[%s876 + $0x160] sm:$0xff]
        %v3829 = vld [vmem:[%s876 + $0x168] sm:$0xff]
        %v3830 = vld [vmem:[%s876 + $0x170] sm:$0xff]
        %v3831 = vld [vmem:[%s876 + $0x178] sm:$0xff]
        %v3832 = vld [vmem:[%s876 + $0x180] sm:$0xff]
        %v3833 = vld [vmem:[%s876 + $0x188] sm:$0xff]
        %v3834 = vld [vmem:[%s876 + $0x190] sm:$0xff]
        %v3835 = vld [vmem:[%s876 + $0x198] sm:$0xff]
        %v3836 = vld [vmem:[%s876 + $0x1a0] sm:$0xff]
        %v3837 = vld [vmem:[%s876 + $0x1a8] sm:$0xff]
        %v3838 = vld [vmem:[%s876 + $0x1b0] sm:$0xff]
        %v3839 = vld [vmem:[%s876 + $0x1b8] sm:$0xff]
        %v3840 = vld [vmem:[%s876 + $0x1c0] sm:$0xff]
        %v3841 = vld [vmem:[%s876 + $0x1c8] sm:$0xff]
        %v3842 = vld [vmem:[%s876 + $0x1d0] sm:$0xff]
        %v3843 = vld [vmem:[%s876 + $0x1d8] sm:$0xff]
        %v3844 = vld [vmem:[%s876 + $0x1e0] sm:$0xff]
        %v3845 = vld [vmem:[%s876 + $0x1e8] sm:$0xff]
        %v3846 = vld [vmem:[%s876 + $0x1f0] sm:$0xff]
        %v3847 = vld [vmem:[%s876 + $0x1f8] sm:$0xff]
        %v3848 = vld [vmem:[%s880] sm:$0xff]
        %v3849 = vld [vmem:[%s880 + $0x8] sm:$0xff]
        %v3852 = vlaneseq
        %v3853 = vshrl.u32 %v3852, 7
        %v3854 = vsub.s32 0, %v3853
        %v3855 = vrot.slane %v3848, %v3854
        %v3856 = vlaneseq
        %v3857 = vshrl.u32 %v3856, 7
        %v3858 = vsub.s32 1, %v3857
        %v3859 = vrot.slane %v3848, %v3858
        %v3860 = vlaneseq
        %v3861 = vshrl.u32 %v3860, 7
        %v3862 = vsub.s32 2, %v3861
        %v3863 = vrot.slane %v3848, %v3862
        %v3864 = vlaneseq
        %v3865 = vshrl.u32 %v3864, 7
        %v3866 = vsub.s32 3, %v3865
        %v3867 = vrot.slane %v3848, %v3866
        %v3868 = vlaneseq
        %v3869 = vshrl.u32 %v3868, 7
        %v3870 = vsub.s32 4, %v3869
        %v3871 = vrot.slane %v3848, %v3870
        %v3872 = vlaneseq
        %v3873 = vshrl.u32 %v3872, 7
        %v3874 = vsub.s32 5, %v3873
        %v3875 = vrot.slane %v3848, %v3874
        %v3876 = vlaneseq
        %v3877 = vshrl.u32 %v3876, 7
        %v3878 = vsub.s32 6, %v3877
        %v3879 = vrot.slane %v3848, %v3878
        %v3880 = vlaneseq
        %v3881 = vshrl.u32 %v3880, 7
        %v3882 = vsub.s32 7, %v3881
        %v3883 = vrot.slane %v3848, %v3882
        %v3884 = vlaneseq
        %v3885 = vshrl.u32 %v3884, 7
        %v3886 = vsub.s32 0, %v3885
        %v3887 = vrot.slane %v3849, %v3886
        %v3888 = vlaneseq
        %v3889 = vshrl.u32 %v3888, 7
        %v3890 = vsub.s32 1, %v3889
        %v3891 = vrot.slane %v3849, %v3890
        %v3892 = vlaneseq
        %v3893 = vshrl.u32 %v3892, 7
        %v3894 = vsub.s32 2, %v3893
        %v3895 = vrot.slane %v3849, %v3894
        %v3896 = vlaneseq
        %v3897 = vshrl.u32 %v3896, 7
        %v3898 = vsub.s32 3, %v3897
        %v3899 = vrot.slane %v3849, %v3898
        %v3900 = vlaneseq
        %v3901 = vshrl.u32 %v3900, 7
        %v3902 = vsub.s32 4, %v3901
        %v3903 = vrot.slane %v3849, %v3902
        %v3904 = vlaneseq
        %v3905 = vshrl.u32 %v3904, 7
        %v3906 = vsub.s32 5, %v3905
        %v3907 = vrot.slane %v3849, %v3906
        %v3908 = vlaneseq
        %v3909 = vshrl.u32 %v3908, 7
        %v3910 = vsub.s32 6, %v3909
        %v3911 = vrot.slane %v3849, %v3910
        %v3912 = vlaneseq
        %v3913 = vshrl.u32 %v3912, 7
        %v3914 = vsub.s32 7, %v3913
        %v3915 = vrot.slane %v3849, %v3914
        %v3996 = vunpack.c.l.b16 %v3784
        %v3997 = vunpack.c.h.b16 %v3784
        %v3998 = vunpack.c.l.b16 %v3785
        %v3999 = vunpack.c.h.b16 %v3785
        %v4000 = vunpack.c.l.b16 %v3786
        %v4001 = vunpack.c.h.b16 %v3786
        %v4002 = vunpack.c.l.b16 %v3787
        %v4003 = vunpack.c.h.b16 %v3787
        %v4004 = vunpack.c.l.b16 %v3788
        %v4005 = vunpack.c.h.b16 %v3788
        %v4006 = vunpack.c.l.b16 %v3789
        %v4007 = vunpack.c.h.b16 %v3789
        %v4008 = vunpack.c.l.b16 %v3790
        %v4009 = vunpack.c.h.b16 %v3790
        %v4010 = vunpack.c.l.b16 %v3791
        %v4011 = vunpack.c.h.b16 %v3791
        %v4012 = vunpack.c.l.b16 %v3792
        %v4013 = vunpack.c.h.b16 %v3792
        %v4014 = vunpack.c.l.b16 %v3793
        %v4015 = vunpack.c.h.b16 %v3793
        %v4016 = vunpack.c.l.b16 %v3794
        %v4017 = vunpack.c.h.b16 %v3794
        %v4018 = vunpack.c.l.b16 %v3795
        %v4019 = vunpack.c.h.b16 %v3795
        %v4020 = vunpack.c.l.b16 %v3796
        %v4021 = vunpack.c.h.b16 %v3796
        %v4022 = vunpack.c.l.b16 %v3797
        %v4023 = vunpack.c.h.b16 %v3797
        %v4024 = vunpack.c.l.b16 %v3798
        %v4025 = vunpack.c.h.b16 %v3798
        %v4026 = vunpack.c.l.b16 %v3799
        %v4027 = vunpack.c.h.b16 %v3799
        %v4028 = vunpack.c.l.b16 %v3800
        %v4029 = vunpack.c.h.b16 %v3800
        %v4030 = vunpack.c.l.b16 %v3801
        %v4031 = vunpack.c.h.b16 %v3801
        %v4032 = vunpack.c.l.b16 %v3802
        %v4033 = vunpack.c.h.b16 %v3802
        %v4034 = vunpack.c.l.b16 %v3803
        %v4035 = vunpack.c.h.b16 %v3803
        %v4036 = vunpack.c.l.b16 %v3804
        %v4037 = vunpack.c.h.b16 %v3804
        %v4038 = vunpack.c.l.b16 %v3805
        %v4039 = vunpack.c.h.b16 %v3805
        %v4040 = vunpack.c.l.b16 %v3806
        %v4041 = vunpack.c.h.b16 %v3806
        %v4042 = vunpack.c.l.b16 %v3807
        %v4043 = vunpack.c.h.b16 %v3807
        %v4044 = vunpack.c.l.b16 %v3808
        %v4045 = vunpack.c.h.b16 %v3808
        %v4046 = vunpack.c.l.b16 %v3809
        %v4047 = vunpack.c.h.b16 %v3809
        %v4048 = vunpack.c.l.b16 %v3810
        %v4049 = vunpack.c.h.b16 %v3810
        %v4050 = vunpack.c.l.b16 %v3811
        %v4051 = vunpack.c.h.b16 %v3811
        %v4052 = vunpack.c.l.b16 %v3812
        %v4053 = vunpack.c.h.b16 %v3812
        %v4054 = vunpack.c.l.b16 %v3813
        %v4055 = vunpack.c.h.b16 %v3813
        %v4056 = vunpack.c.l.b16 %v3814
        %v4057 = vunpack.c.h.b16 %v3814
        %v4058 = vunpack.c.l.b16 %v3815
        %v4059 = vunpack.c.h.b16 %v3815
        %v4060 = vunpack.c.l.b16 %v3816
        %v4061 = vunpack.c.h.b16 %v3816
        %v4062 = vunpack.c.l.b16 %v3817
        %v4063 = vunpack.c.h.b16 %v3817
        %v4064 = vunpack.c.l.b16 %v3818
        %v4065 = vunpack.c.h.b16 %v3818
        %v4066 = vunpack.c.l.b16 %v3819
        %v4067 = vunpack.c.h.b16 %v3819
        %v4068 = vunpack.c.l.b16 %v3820
        %v4069 = vunpack.c.h.b16 %v3820
        %v4070 = vunpack.c.l.b16 %v3821
        %v4071 = vunpack.c.h.b16 %v3821
        %v4072 = vunpack.c.l.b16 %v3822
        %v4073 = vunpack.c.h.b16 %v3822
        %v4074 = vunpack.c.l.b16 %v3823
        %v4075 = vunpack.c.h.b16 %v3823
        %v4076 = vunpack.c.l.b16 %v3824
        %v4077 = vunpack.c.h.b16 %v3824
        %v4078 = vunpack.c.l.b16 %v3825
        %v4079 = vunpack.c.h.b16 %v3825
        %v4080 = vunpack.c.l.b16 %v3826
        %v4081 = vunpack.c.h.b16 %v3826
        %v4082 = vunpack.c.l.b16 %v3827
        %v4083 = vunpack.c.h.b16 %v3827
        %v4084 = vunpack.c.l.b16 %v3828
        %v4085 = vunpack.c.h.b16 %v3828
        %v4086 = vunpack.c.l.b16 %v3829
        %v4087 = vunpack.c.h.b16 %v3829
        %v4088 = vunpack.c.l.b16 %v3830
        %v4089 = vunpack.c.h.b16 %v3830
        %v4090 = vunpack.c.l.b16 %v3831
        %v4091 = vunpack.c.h.b16 %v3831
        %v4092 = vunpack.c.l.b16 %v3832
        %v4093 = vunpack.c.h.b16 %v3832
        %v4094 = vunpack.c.l.b16 %v3833
        %v4095 = vunpack.c.h.b16 %v3833
        %v4096 = vunpack.c.l.b16 %v3834
        %v4097 = vunpack.c.h.b16 %v3834
        %v4098 = vunpack.c.l.b16 %v3835
        %v4099 = vunpack.c.h.b16 %v3835
        %v4100 = vunpack.c.l.b16 %v3836
        %v4101 = vunpack.c.h.b16 %v3836
        %v4102 = vunpack.c.l.b16 %v3837
        %v4103 = vunpack.c.h.b16 %v3837
        %v4104 = vunpack.c.l.b16 %v3838
        %v4105 = vunpack.c.h.b16 %v3838
        %v4106 = vunpack.c.l.b16 %v3839
        %v4107 = vunpack.c.h.b16 %v3839
        %v4108 = vunpack.c.l.b16 %v3840
        %v4109 = vunpack.c.h.b16 %v3840
        %v4110 = vunpack.c.l.b16 %v3841
        %v4111 = vunpack.c.h.b16 %v3841
        %v4112 = vunpack.c.l.b16 %v3842
        %v4113 = vunpack.c.h.b16 %v3842
        %v4114 = vunpack.c.l.b16 %v3843
        %v4115 = vunpack.c.h.b16 %v3843
        %v4116 = vunpack.c.l.b16 %v3844
        %v4117 = vunpack.c.h.b16 %v3844
        %v4118 = vunpack.c.l.b16 %v3845
        %v4119 = vunpack.c.h.b16 %v3845
        %v4120 = vunpack.c.l.b16 %v3846
        %v4121 = vunpack.c.h.b16 %v3846
        %v4122 = vunpack.c.l.b16 %v3847
        %v4123 = vunpack.c.h.b16 %v3847
        %v4124 = vpack.c.b16 %v4012, %v3996
        %v4125 = vpack.c.b16 %v4013, %v3997
        %v4126 = vpack.c.b16 %v4014, %v3998
        %v4127 = vpack.c.b16 %v4015, %v3999
        %v4128 = vpack.c.b16 %v4016, %v4000
        %v4129 = vpack.c.b16 %v4017, %v4001
        %v4130 = vpack.c.b16 %v4018, %v4002
        %v4131 = vpack.c.b16 %v4019, %v4003
        %v4132 = vpack.c.b16 %v4020, %v4004
        %v4133 = vpack.c.b16 %v4021, %v4005
        %v4134 = vpack.c.b16 %v4022, %v4006
        %v4135 = vpack.c.b16 %v4023, %v4007
        %v4136 = vpack.c.b16 %v4024, %v4008
        %v4137 = vpack.c.b16 %v4025, %v4009
        %v4138 = vpack.c.b16 %v4026, %v4010
        %v4139 = vpack.c.b16 %v4027, %v4011
        %v4140 = vpack.c.b16 %v4044, %v4028
        %v4141 = vpack.c.b16 %v4045, %v4029
        %v4142 = vpack.c.b16 %v4046, %v4030
        %v4143 = vpack.c.b16 %v4047, %v4031
        %v4144 = vpack.c.b16 %v4048, %v4032
        %v4145 = vpack.c.b16 %v4049, %v4033
        %v4146 = vpack.c.b16 %v4050, %v4034
        %v4147 = vpack.c.b16 %v4051, %v4035
        %v4148 = vpack.c.b16 %v4052, %v4036
        %v4149 = vpack.c.b16 %v4053, %v4037
        %v4150 = vpack.c.b16 %v4054, %v4038
        %v4151 = vpack.c.b16 %v4055, %v4039
        %v4152 = vpack.c.b16 %v4056, %v4040
        %v4153 = vpack.c.b16 %v4057, %v4041
        %v4154 = vpack.c.b16 %v4058, %v4042
        %v4155 = vpack.c.b16 %v4059, %v4043
        %v4156 = vpack.c.b16 %v4076, %v4060
        %v4157 = vpack.c.b16 %v4077, %v4061
        %v4158 = vpack.c.b16 %v4078, %v4062
        %v4159 = vpack.c.b16 %v4079, %v4063
        %v4160 = vpack.c.b16 %v4080, %v4064
        %v4161 = vpack.c.b16 %v4081, %v4065
        %v4162 = vpack.c.b16 %v4082, %v4066
        %v4163 = vpack.c.b16 %v4083, %v4067
        %v4164 = vpack.c.b16 %v4084, %v4068
        %v4165 = vpack.c.b16 %v4085, %v4069
        %v4166 = vpack.c.b16 %v4086, %v4070
        %v4167 = vpack.c.b16 %v4087, %v4071
        %v4168 = vpack.c.b16 %v4088, %v4072
        %v4169 = vpack.c.b16 %v4089, %v4073
        %v4170 = vpack.c.b16 %v4090, %v4074
        %v4171 = vpack.c.b16 %v4091, %v4075
        %v4172 = vpack.c.b16 %v4108, %v4092
        %v4173 = vpack.c.b16 %v4109, %v4093
        %v4174 = vpack.c.b16 %v4110, %v4094
        %v4175 = vpack.c.b16 %v4111, %v4095
        %v4176 = vpack.c.b16 %v4112, %v4096
        %v4177 = vpack.c.b16 %v4113, %v4097
        %v4178 = vpack.c.b16 %v4114, %v4098
        %v4179 = vpack.c.b16 %v4115, %v4099
        %v4180 = vpack.c.b16 %v4116, %v4100
        %v4181 = vpack.c.b16 %v4117, %v4101
        %v4182 = vpack.c.b16 %v4118, %v4102
        %v4183 = vpack.c.b16 %v4119, %v4103
        %v4184 = vpack.c.b16 %v4120, %v4104
        %v4185 = vpack.c.b16 %v4121, %v4105
        %v4186 = vpack.c.b16 %v4122, %v4106
        %v4187 = vpack.c.b16 %v4123, %v4107
        %v4253 = vsel %vm1322, %v3776, 0
        %v4256 = vsel %vm1322, %v3777, 0
        %v4259 = vsel %vm1322, %v3778, 0
        %v4262 = vsel %vm1322, %v3779, 0
        %v4265 = vsel %vm1322, %v3780, 0
        %v4268 = vsel %vm1322, %v3781, 0
        %v4271 = vsel %vm1322, %v3782, 0
        %v4274 = vsel %vm1322, %v3783, 0
        %4276 = vmatprep.subr.bf16.mxu0 %v4125
        %4277 = vmatpush1.bf16.msra.mxu0 %v4124
        %4278 = vmatprep.subr.bf16.mxu0 %v4141
        %4279 = vmatpush1.bf16.msra.mxu0 %v4140
        %4280 = vmatprep.subr.bf16.mxu0 %v4157
        %4281 = vmatpush1.bf16.msra.mxu0 %v4156
        %4282 = vmatprep.subr.bf16.mxu0 %v4173
        %4283 = vmatpush1.bf16.msra.mxu0 %v4172
        %4284 = vmatprep.subr.bf16.mxu0 0
        %4285 = vmatpush1.bf16.msra.mxu0 0
        %4286 = vmatprep.subr.bf16.mxu0 0
        %4287 = vmatpush1.bf16.msra.mxu0 0
        %4288 = vmatprep.subr.bf16.mxu0 0
        %4289 = vmatpush1.bf16.msra.mxu0 0
        %4290 = vmatprep.subr.bf16.mxu0 0
        %4291 = vmatpush1.bf16.msra.mxu0 0
        %4292 = vmatprep.subr.bf16.mxu0 0
        %4293 = vmatpush1.bf16.msra.mxu0 0
        %4294 = vmatprep.subr.bf16.mxu0 0
        %4295 = vmatpush1.bf16.msra.mxu0 0
        %4296 = vmatprep.subr.bf16.mxu0 0
        %4297 = vmatpush1.bf16.msra.mxu0 0
        %4298 = vmatprep.subr.bf16.mxu0 0
        %4299 = vmatpush1.bf16.msra.mxu0 0
        %4300 = vmatprep.subr.bf16.mxu0 0
        %4301 = vmatpush1.bf16.msra.mxu0 0
        %4302 = vmatprep.subr.bf16.mxu0 0
        %4303 = vmatpush1.bf16.msra.mxu0 0
        %4304 = vmatprep.subr.bf16.mxu0 0
        %4305 = vmatpush1.bf16.msra.mxu0 0
        %4306 = vmatprep.subr.bf16.mxu0 0
        %4307 = vmatpush1.bf16.msra.mxu0 0
        %4308 = vmatprep.mubr.bf16.mxu0 0
        %4309 = vmatmul.mubr.bf16.gmra.mrb[0].mxu0 %v4253
        %v4310 = vpop.f32.mrb[0].mxu0
        %v4311 = vadd.f32 %v3855, %v4310
        %v4312 = vpop.f32.mrb[0].mxu0
        %v4313 = vadd.f32 %v3859, %v4312
        %v4314 = vpop.f32.mrb[0].mxu0
        %v4315 = vadd.f32 %v3855, %v4314
        %v4316 = vpop.f32.mrb[0].mxu0
        %v4317 = vadd.f32 %v3859, %v4316
        %4318 = vmatprep.mubr.bf16.mxu0 0
        %4319 = vmatmul.mubr.bf16.gmra.mrb[0].mxu0 %v4256
        %v4320 = vpop.f32.mrb[0].mxu0
        %v4321 = vadd.f32 %v3855, %v4320
        %v4322 = vpop.f32.mrb[0].mxu0
        %v4323 = vadd.f32 %v3859, %v4322
        %v4324 = vpop.f32.mrb[0].mxu0
        %v4325 = vadd.f32 %v3855, %v4324
        %v4326 = vpop.f32.mrb[0].mxu0
        %v4327 = vadd.f32 %v3859, %v4326
        %4328 = vmatprep.mubr.bf16.mxu0 0
        %4329 = vmatmul.mubr.bf16.gmra.mrb[0].mxu0 %v4259
        %v4330 = vpop.f32.mrb[0].mxu0
        %v4331 = vadd.f32 %v3855, %v4330
        %v4332 = vpop.f32.mrb[0].mxu0
        %v4333 = vadd.f32 %v3859, %v4332
        %v4334 = vpop.f32.mrb[0].mxu0
        %v4335 = vadd.f32 %v3855, %v4334
        %v4336 = vpop.f32.mrb[0].mxu0
        %v4337 = vadd.f32 %v3859, %v4336
        %4338 = vmatprep.mubr.bf16.mxu0 0
        %4339 = vmatmul.mubr.bf16.gmra.mrb[0].mxu0 %v4262
        %v4340 = vpop.f32.mrb[0].mxu0
        %v4341 = vadd.f32 %v3855, %v4340
        %v4342 = vpop.f32.mrb[0].mxu0
        %v4343 = vadd.f32 %v3859, %v4342
        %v4344 = vpop.f32.mrb[0].mxu0
        %v4345 = vadd.f32 %v3855, %v4344
        %v4346 = vpop.f32.mrb[0].mxu0
        %v4347 = vadd.f32 %v3859, %v4346
        %4348 = vmatprep.mubr.bf16.mxu0 0
        %4349 = vmatmul.mubr.bf16.gmra.mrb[0].mxu0 %v4265
        %v4350 = vpop.f32.mrb[0].mxu0
        %v4351 = vadd.f32 %v3855, %v4350
        %v4352 = vpop.f32.mrb[0].mxu0
        %v4353 = vadd.f32 %v3859, %v4352
        %v4354 = vpop.f32.mrb[0].mxu0
        %v4355 = vadd.f32 %v3855, %v4354
        %v4356 = vpop.f32.mrb[0].mxu0
        %v4357 = vadd.f32 %v3859, %v4356
        %4358 = vmatprep.mubr.bf16.mxu0 0
        %4359 = vmatmul.mubr.bf16.gmra.mrb[0].mxu0 %v4268
        %v4360 = vpop.f32.mrb[0].mxu0
        %v4361 = vadd.f32 %v3855, %v4360
        %v4362 = vpop.f32.mrb[0].mxu0
        %v4363 = vadd.f32 %v3859, %v4362
        %v4364 = vpop.f32.mrb[0].mxu0
        %v4365 = vadd.f32 %v3855, %v4364
        %v4366 = vpop.f32.mrb[0].mxu0
        %v4367 = vadd.f32 %v3859, %v4366
        %4368 = vmatprep.mubr.bf16.mxu0 0
        %4369 = vmatmul.mubr.bf16.gmra.mrb[0].mxu0 %v4271
        %v4370 = vpop.f32.mrb[0].mxu0
        %v4371 = vadd.f32 %v3855, %v4370
        %v4372 = vpop.f32.mrb[0].mxu0
        %v4373 = vadd.f32 %v3859, %v4372
        %v4374 = vpop.f32.mrb[0].mxu0
        %v4375 = vadd.f32 %v3855, %v4374
        %v4376 = vpop.f32.mrb[0].mxu0
        %v4377 = vadd.f32 %v3859, %v4376
        %4378 = vmatprep.mubr.bf16.mxu0 0
        %4379 = vmatmul.mubr.bf16.gmra.mrb[0].mxu0 %v4274
        %v4380 = vpop.f32.mrb[0].mxu0
        %v4381 = vadd.f32 %v3855, %v4380
        %v4382 = vpop.f32.mrb[0].mxu0
        %v4383 = vadd.f32 %v3859, %v4382
        %v4384 = vpop.f32.mrb[0].mxu0
        %v4385 = vadd.f32 %v3855, %v4384
        %v4386 = vpop.f32.mrb[0].mxu0
        %v4387 = vadd.f32 %v3859, %v4386
        %4388 = vdwg.mxu0
        %4389 = vmatprep.subr.bf16.mxu0 %v4127
        %4390 = vmatpush1.bf16.msra.mxu0 %v4126
        %4391 = vmatprep.subr.bf16.mxu0 %v4143
        %4392 = vmatpush1.bf16.msra.mxu0 %v4142
        %4393 = vmatprep.subr.bf16.mxu0 %v4159
        %4394 = vmatpush1.bf16.msra.mxu0 %v4158
        %4395 = vmatprep.subr.bf16.mxu0 %v4175
        %4396 = vmatpush1.bf16.msra.mxu0 %v4174
        %4397 = vmatprep.subr.bf16.mxu0 0
        %4398 = vmatpush1.bf16.msra.mxu0 0
        %4399 = vmatprep.subr.bf16.mxu0 0
        %4400 = vmatpush1.bf16.msra.mxu0 0
        %4401 = vmatprep.subr.bf16.mxu0 0
        %4402 = vmatpush1.bf16.msra.mxu0 0
        %4403 = vmatprep.subr.bf16.mxu0 0
        %4404 = vmatpush1.bf16.msra.mxu0 0
        %4405 = vmatprep.subr.bf16.mxu0 0
        %4406 = vmatpush1.bf16.msra.mxu0 0
        %4407 = vmatprep.subr.bf16.mxu0 0
        %4408 = vmatpush1.bf16.msra.mxu0 0
        %4409 = vmatprep.subr.bf16.mxu0 0
        %4410 = vmatpush1.bf16.msra.mxu0 0
        %4411 = vmatprep.subr.bf16.mxu0 0
        %4412 = vmatpush1.bf16.msra.mxu0 0
        %4413 = vmatprep.subr.bf16.mxu0 0
        %4414 = vmatpush1.bf16.msra.mxu0 0
        %4415 = vmatprep.subr.bf16.mxu0 0
        %4416 = vmatpush1.bf16.msra.mxu0 0
        %4417 = vmatprep.subr.bf16.mxu0 0
        %4418 = vmatpush1.bf16.msra.mxu0 0
        %4419 = vmatprep.subr.bf16.mxu0 0
        %4420 = vmatpush1.bf16.msra.mxu0 0
        %4421 = vmatprep.mubr.bf16.mxu0 0
        %4422 = vmatmul.mubr.bf16.gmra.mrb[0].mxu0 %v4253
        %v4423 = vpop.f32.mrb[0].mxu0
        %v4424 = vadd.f32 %v3863, %v4423
        %v4425 = vpop.f32.mrb[0].mxu0
        %v4426 = vadd.f32 %v3867, %v4425
        %v4427 = vpop.f32.mrb[0].mxu0
        %v4428 = vadd.f32 %v3863, %v4427
        %v4429 = vpop.f32.mrb[0].mxu0
        %v4430 = vadd.f32 %v3867, %v4429
        %4431 = vmatprep.mubr.bf16.mxu0 0
        %4432 = vmatmul.mubr.bf16.gmra.mrb[0].mxu0 %v4256
        %v4433 = vpop.f32.mrb[0].mxu0
        %v4434 = vadd.f32 %v3863, %v4433
        %v4435 = vpop.f32.mrb[0].mxu0
        %v4436 = vadd.f32 %v3867, %v4435
        %v4437 = vpop.f32.mrb[0].mxu0
        %v4438 = vadd.f32 %v3863, %v4437
        %v4439 = vpop.f32.mrb[0].mxu0
        %v4440 = vadd.f32 %v3867, %v4439
        %4441 = vmatprep.mubr.bf16.mxu0 0
        %4442 = vmatmul.mubr.bf16.gmra.mrb[0].mxu0 %v4259
        %v4443 = vpop.f32.mrb[0].mxu0
        %v4444 = vadd.f32 %v3863, %v4443
        %v4445 = vpop.f32.mrb[0].mxu0
        %v4446 = vadd.f32 %v3867, %v4445
        %v4447 = vpop.f32.mrb[0].mxu0
        %v4448 = vadd.f32 %v3863, %v4447
        %v4449 = vpop.f32.mrb[0].mxu0
        %v4450 = vadd.f32 %v3867, %v4449
        %4451 = vmatprep.mubr.bf16.mxu0 0
        %4452 = vmatmul.mubr.bf16.gmra.mrb[0].mxu0 %v4262
        %v4453 = vpop.f32.mrb[0].mxu0
        %v4454 = vadd.f32 %v3863, %v4453
        %v4455 = vpop.f32.mrb[0].mxu0
        %v4456 = vadd.f32 %v3867, %v4455
        %v4457 = vpop.f32.mrb[0].mxu0
        %v4458 = vadd.f32 %v3863, %v4457
        %v4459 = vpop.f32.mrb[0].mxu0
        %v4460 = vadd.f32 %v3867, %v4459
        %4461 = vmatprep.mubr.bf16.mxu0 0
        %4462 = vmatmul.mubr.bf16.gmra.mrb[0].mxu0 %v4265
        %v4463 = vpop.f32.mrb[0].mxu0
        %v4464 = vadd.f32 %v3863, %v4463
        %v4465 = vpop.f32.mrb[0].mxu0
        %v4466 = vadd.f32 %v3867, %v4465
        %v4467 = vpop.f32.mrb[0].mxu0
        %v4468 = vadd.f32 %v3863, %v4467
        %v4469 = vpop.f32.mrb[0].mxu0
        %v4470 = vadd.f32 %v3867, %v4469
        %4471 = vmatprep.mubr.bf16.mxu0 0
        %4472 = vmatmul.mubr.bf16.gmra.mrb[0].mxu0 %v4268
        %v4473 = vpop.f32.mrb[0].mxu0
        %v4474 = vadd.f32 %v3863, %v4473
        %v4475 = vpop.f32.mrb[0].mxu0
        %v4476 = vadd.f32 %v3867, %v4475
        %v4477 = vpop.f32.mrb[0].mxu0
        %v4478 = vadd.f32 %v3863, %v4477
        %v4479 = vpop.f32.mrb[0].mxu0
        %v4480 = vadd.f32 %v3867, %v4479
        %4481 = vmatprep.mubr.bf16.mxu0 0
        %4482 = vmatmul.mubr.bf16.gmra.mrb[0].mxu0 %v4271
        %v4483 = vpop.f32.mrb[0].mxu0
        %v4484 = vadd.f32 %v3863, %v4483
        %v4485 = vpop.f32.mrb[0].mxu0
        %v4486 = vadd.f32 %v3867, %v4485
        %v4487 = vpop.f32.mrb[0].mxu0
        %v4488 = vadd.f32 %v3863, %v4487
        %v4489 = vpop.f32.mrb[0].mxu0
        %v4490 = vadd.f32 %v3867, %v4489
        %4491 = vmatprep.mubr.bf16.mxu0 0
        %4492 = vmatmul.mubr.bf16.gmra.mrb[0].mxu0 %v4274
        %v4493 = vpop.f32.mrb[0].mxu0
        %v4494 = vadd.f32 %v3863, %v4493
        %v4495 = vpop.f32.mrb[0].mxu0
        %v4496 = vadd.f32 %v3867, %v4495
        %v4497 = vpop.f32.mrb[0].mxu0
        %v4498 = vadd.f32 %v3863, %v4497
        %v4499 = vpop.f32.mrb[0].mxu0
        %v4500 = vadd.f32 %v3867, %v4499
        %4501 = vdwg.mxu0
        %4502 = vmatprep.subr.bf16.mxu0 %v4129
        %4503 = vmatpush1.bf16.msra.mxu0 %v4128
        %4504 = vmatprep.subr.bf16.mxu0 %v4145
        %4505 = vmatpush1.bf16.msra.mxu0 %v4144
        %4506 = vmatprep.subr.bf16.mxu0 %v4161
        %4507 = vmatpush1.bf16.msra.mxu0 %v4160
        %4508 = vmatprep.subr.bf16.mxu0 %v4177
        %4509 = vmatpush1.bf16.msra.mxu0 %v4176
        %4510 = vmatprep.subr.bf16.mxu0 0
        %4511 = vmatpush1.bf16.msra.mxu0 0
        %4512 = vmatprep.subr.bf16.mxu0 0
        %4513 = vmatpush1.bf16.msra.mxu0 0
        %4514 = vmatprep.subr.bf16.mxu0 0
        %4515 = vmatpush1.bf16.msra.mxu0 0
        %4516 = vmatprep.subr.bf16.mxu0 0
        %4517 = vmatpush1.bf16.msra.mxu0 0
        %4518 = vmatprep.subr.bf16.mxu0 0
        %4519 = vmatpush1.bf16.msra.mxu0 0
        %4520 = vmatprep.subr.bf16.mxu0 0
        %4521 = vmatpush1.bf16.msra.mxu0 0
        %4522 = vmatprep.subr.bf16.mxu0 0
        %4523 = vmatpush1.bf16.msra.mxu0 0
        %4524 = vmatprep.subr.bf16.mxu0 0
        %4525 = vmatpush1.bf16.msra.mxu0 0
        %4526 = vmatprep.subr.bf16.mxu0 0
        %4527 = vmatpush1.bf16.msra.mxu0 0
        %4528 = vmatprep.subr.bf16.mxu0 0
        %4529 = vmatpush1.bf16.msra.mxu0 0
        %4530 = vmatprep.subr.bf16.mxu0 0
        %4531 = vmatpush1.bf16.msra.mxu0 0
        %4532 = vmatprep.subr.bf16.mxu0 0
        %4533 = vmatpush1.bf16.msra.mxu0 0
        %4534 = vmatprep.mubr.bf16.mxu0 0
        %4535 = vmatmul.mubr.bf16.gmra.mrb[0].mxu0 %v4253
        %v4536 = vpop.f32.mrb[0].mxu0
        %v4537 = vadd.f32 %v3871, %v4536
        %v4538 = vpop.f32.mrb[0].mxu0
        %v4539 = vadd.f32 %v3875, %v4538
        %v4540 = vpop.f32.mrb[0].mxu0
        %v4541 = vadd.f32 %v3871, %v4540
        %v4542 = vpop.f32.mrb[0].mxu0
        %v4543 = vadd.f32 %v3875, %v4542
        %4544 = vmatprep.mubr.bf16.mxu0 0
        %4545 = vmatmul.mubr.bf16.gmra.mrb[0].mxu0 %v4256
        %v4546 = vpop.f32.mrb[0].mxu0
        %v4547 = vadd.f32 %v3871, %v4546
        %v4548 = vpop.f32.mrb[0].mxu0
        %v4549 = vadd.f32 %v3875, %v4548
        %v4550 = vpop.f32.mrb[0].mxu0
        %v4551 = vadd.f32 %v3871, %v4550
        %v4552 = vpop.f32.mrb[0].mxu0
        %v4553 = vadd.f32 %v3875, %v4552
        %4554 = vmatprep.mubr.bf16.mxu0 0
        %4555 = vmatmul.mubr.bf16.gmra.mrb[0].mxu0 %v4259
        %v4556 = vpop.f32.mrb[0].mxu0
        %v4557 = vadd.f32 %v3871, %v4556
        %v4558 = vpop.f32.mrb[0].mxu0
        %v4559 = vadd.f32 %v3875, %v4558
        %v4560 = vpop.f32.mrb[0].mxu0
        %v4561 = vadd.f32 %v3871, %v4560
        %v4562 = vpop.f32.mrb[0].mxu0
        %v4563 = vadd.f32 %v3875, %v4562
        %4564 = vmatprep.mubr.bf16.mxu0 0
        %4565 = vmatmul.mubr.bf16.gmra.mrb[0].mxu0 %v4262
        %v4566 = vpop.f32.mrb[0].mxu0
        %v4567 = vadd.f32 %v3871, %v4566
        %v4568 = vpop.f32.mrb[0].mxu0
        %v4569 = vadd.f32 %v3875, %v4568
        %v4570 = vpop.f32.mrb[0].mxu0
        %v4571 = vadd.f32 %v3871, %v4570
        %v4572 = vpop.f32.mrb[0].mxu0
        %v4573 = vadd.f32 %v3875, %v4572
        %4574 = vmatprep.mubr.bf16.mxu0 0
        %4575 = vmatmul.mubr.bf16.gmra.mrb[0].mxu0 %v4265
        %v4576 = vpop.f32.mrb[0].mxu0
        %v4577 = vadd.f32 %v3871, %v4576
        %v4578 = vpop.f32.mrb[0].mxu0
        %v4579 = vadd.f32 %v3875, %v4578
        %v4580 = vpop.f32.mrb[0].mxu0
        %v4581 = vadd.f32 %v3871, %v4580
        %v4582 = vpop.f32.mrb[0].mxu0
        %v4583 = vadd.f32 %v3875, %v4582
        %4584 = vmatprep.mubr.bf16.mxu0 0
        %4585 = vmatmul.mubr.bf16.gmra.mrb[0].mxu0 %v4268
        %v4586 = vpop.f32.mrb[0].mxu0
        %v4587 = vadd.f32 %v3871, %v4586
        %v4588 = vpop.f32.mrb[0].mxu0
        %v4589 = vadd.f32 %v3875, %v4588
        %v4590 = vpop.f32.mrb[0].mxu0
        %v4591 = vadd.f32 %v3871, %v4590
        %v4592 = vpop.f32.mrb[0].mxu0
        %v4593 = vadd.f32 %v3875, %v4592
        %4594 = vmatprep.mubr.bf16.mxu0 0
        %4595 = vmatmul.mubr.bf16.gmra.mrb[0].mxu0 %v4271
        %v4596 = vpop.f32.mrb[0].mxu0
        %v4597 = vadd.f32 %v3871, %v4596
        %v4598 = vpop.f32.mrb[0].mxu0
        %v4599 = vadd.f32 %v3875, %v4598
        %v4600 = vpop.f32.mrb[0].mxu0
        %v4601 = vadd.f32 %v3871, %v4600
        %v4602 = vpop.f32.mrb[0].mxu0
        %v4603 = vadd.f32 %v3875, %v4602
        %4604 = vmatprep.mubr.bf16.mxu0 0
        %4605 = vmatmul.mubr.bf16.gmra.mrb[0].mxu0 %v4274
        %v4606 = vpop.f32.mrb[0].mxu0
        %v4607 = vadd.f32 %v3871, %v4606
        %v4608 = vpop.f32.mrb[0].mxu0
        %v4609 = vadd.f32 %v3875, %v4608
        %v4610 = vpop.f32.mrb[0].mxu0
        %v4611 = vadd.f32 %v3871, %v4610
        %v4612 = vpop.f32.mrb[0].mxu0
        %v4613 = vadd.f32 %v3875, %v4612
        %4614 = vdwg.mxu0
        %4615 = vmatprep.subr.bf16.mxu0 %v4131
        %4616 = vmatpush1.bf16.msra.mxu0 %v4130
        %4617 = vmatprep.subr.bf16.mxu0 %v4147
        %4618 = vmatpush1.bf16.msra.mxu0 %v4146
        %4619 = vmatprep.subr.bf16.mxu0 %v4163
        %4620 = vmatpush1.bf16.msra.mxu0 %v4162
        %4621 = vmatprep.subr.bf16.mxu0 %v4179
        %4622 = vmatpush1.bf16.msra.mxu0 %v4178
        %4623 = vmatprep.subr.bf16.mxu0 0
        %4624 = vmatpush1.bf16.msra.mxu0 0
        %4625 = vmatprep.subr.bf16.mxu0 0
        %4626 = vmatpush1.bf16.msra.mxu0 0
        %4627 = vmatprep.subr.bf16.mxu0 0
        %4628 = vmatpush1.bf16.msra.mxu0 0
        %4629 = vmatprep.subr.bf16.mxu0 0
        %4630 = vmatpush1.bf16.msra.mxu0 0
        %4631 = vmatprep.subr.bf16.mxu0 0
        %4632 = vmatpush1.bf16.msra.mxu0 0
        %4633 = vmatprep.subr.bf16.mxu0 0
        %4634 = vmatpush1.bf16.msra.mxu0 0
        %4635 = vmatprep.subr.bf16.mxu0 0
        %4636 = vmatpush1.bf16.msra.mxu0 0
        %4637 = vmatprep.subr.bf16.mxu0 0
        %4638 = vmatpush1.bf16.msra.mxu0 0
        %4639 = vmatprep.subr.bf16.mxu0 0
        %4640 = vmatpush1.bf16.msra.mxu0 0
        %4641 = vmatprep.subr.bf16.mxu0 0
        %4642 = vmatpush1.bf16.msra.mxu0 0
        %4643 = vmatprep.subr.bf16.mxu0 0
        %4644 = vmatpush1.bf16.msra.mxu0 0
        %4645 = vmatprep.subr.bf16.mxu0 0
        %4646 = vmatpush1.bf16.msra.mxu0 0
        %4647 = vmatprep.mubr.bf16.mxu0 0
        %4648 = vmatmul.mubr.bf16.gmra.mrb[0].mxu0 %v4253
        %v4649 = vpop.f32.mrb[0].mxu0
        %v4650 = vadd.f32 %v3879, %v4649
        %v4651 = vpop.f32.mrb[0].mxu0
        %v4652 = vadd.f32 %v3883, %v4651
        %v4653 = vpop.f32.mrb[0].mxu0
        %v4654 = vadd.f32 %v3879, %v4653
        %v4655 = vpop.f32.mrb[0].mxu0
        %v4656 = vadd.f32 %v3883, %v4655
        %4657 = vmatprep.mubr.bf16.mxu0 0
        %4658 = vmatmul.mubr.bf16.gmra.mrb[0].mxu0 %v4256
        %v4659 = vpop.f32.mrb[0].mxu0
        %v4660 = vadd.f32 %v3879, %v4659
        %v4661 = vpop.f32.mrb[0].mxu0
        %v4662 = vadd.f32 %v3883, %v4661
        %v4663 = vpop.f32.mrb[0].mxu0
        %v4664 = vadd.f32 %v3879, %v4663
        %v4665 = vpop.f32.mrb[0].mxu0
        %v4666 = vadd.f32 %v3883, %v4665
        %4667 = vmatprep.mubr.bf16.mxu0 0
        %4668 = vmatmul.mubr.bf16.gmra.mrb[0].mxu0 %v4259
        %v4669 = vpop.f32.mrb[0].mxu0
        %v4670 = vadd.f32 %v3879, %v4669
        %v4671 = vpop.f32.mrb[0].mxu0
        %v4672 = vadd.f32 %v3883, %v4671
        %v4673 = vpop.f32.mrb[0].mxu0
        %v4674 = vadd.f32 %v3879, %v4673
        %v4675 = vpop.f32.mrb[0].mxu0
        %v4676 = vadd.f32 %v3883, %v4675
        %4677 = vmatprep.mubr.bf16.mxu0 0
        %4678 = vmatmul.mubr.bf16.gmra.mrb[0].mxu0 %v4262
        %v4679 = vpop.f32.mrb[0].mxu0
        %v4680 = vadd.f32 %v3879, %v4679
        %v4681 = vpop.f32.mrb[0].mxu0
        %v4682 = vadd.f32 %v3883, %v4681
        %v4683 = vpop.f32.mrb[0].mxu0
        %v4684 = vadd.f32 %v3879, %v4683
        %v4685 = vpop.f32.mrb[0].mxu0
        %v4686 = vadd.f32 %v3883, %v4685
        %4687 = vmatprep.mubr.bf16.mxu0 0
        %4688 = vmatmul.mubr.bf16.gmra.mrb[0].mxu0 %v4265
        %v4689 = vpop.f32.mrb[0].mxu0
        %v4690 = vadd.f32 %v3879, %v4689
        %v4691 = vpop.f32.mrb[0].mxu0
        %v4692 = vadd.f32 %v3883, %v4691
        %v4693 = vpop.f32.mrb[0].mxu0
        %v4694 = vadd.f32 %v3879, %v4693
        %v4695 = vpop.f32.mrb[0].mxu0
        %v4696 = vadd.f32 %v3883, %v4695
        %4697 = vmatprep.mubr.bf16.mxu0 0
        %4698 = vmatmul.mubr.bf16.gmra.mrb[0].mxu0 %v4268
        %v4699 = vpop.f32.mrb[0].mxu0
        %v4700 = vadd.f32 %v3879, %v4699
        %v4701 = vpop.f32.mrb[0].mxu0
        %v4702 = vadd.f32 %v3883, %v4701
        %v4703 = vpop.f32.mrb[0].mxu0
        %v4704 = vadd.f32 %v3879, %v4703
        %v4705 = vpop.f32.mrb[0].mxu0
        %v4706 = vadd.f32 %v3883, %v4705
        %4707 = vmatprep.mubr.bf16.mxu0 0
        %4708 = vmatmul.mubr.bf16.gmra.mrb[0].mxu0 %v4271
        %v4709 = vpop.f32.mrb[0].mxu0
        %v4710 = vadd.f32 %v3879, %v4709
        %v4711 = vpop.f32.mrb[0].mxu0
        %v4712 = vadd.f32 %v3883, %v4711
        %v4713 = vpop.f32.mrb[0].mxu0
        %v4714 = vadd.f32 %v3879, %v4713
        %v4715 = vpop.f32.mrb[0].mxu0
        %v4716 = vadd.f32 %v3883, %v4715
        %4717 = vmatprep.mubr.bf16.mxu0 0
        %4718 = vmatmul.mubr.bf16.gmra.mrb[0].mxu0 %v4274
        %v4719 = vpop.f32.mrb[0].mxu0
        %v4720 = vadd.f32 %v3879, %v4719
        %v4721 = vpop.f32.mrb[0].mxu0
        %v4722 = vadd.f32 %v3883, %v4721
        %v4723 = vpop.f32.mrb[0].mxu0
        %v4724 = vadd.f32 %v3879, %v4723
        %v4725 = vpop.f32.mrb[0].mxu0
        %v4726 = vadd.f32 %v3883, %v4725
        %4727 = vdwg.mxu0
        %4728 = vmatprep.subr.bf16.mxu0 %v4133
        %4729 = vmatpush1.bf16.msra.mxu0 %v4132
        %4730 = vmatprep.subr.bf16.mxu0 %v4149
        %4731 = vmatpush1.bf16.msra.mxu0 %v4148
        %4732 = vmatprep.subr.bf16.mxu0 %v4165
        %4733 = vmatpush1.bf16.msra.mxu0 %v4164
        %4734 = vmatprep.subr.bf16.mxu0 %v4181
        %4735 = vmatpush1.bf16.msra.mxu0 %v4180
        %4736 = vmatprep.subr.bf16.mxu0 0
        %4737 = vmatpush1.bf16.msra.mxu0 0
        %4738 = vmatprep.subr.bf16.mxu0 0
        %4739 = vmatpush1.bf16.msra.mxu0 0
        %4740 = vmatprep.subr.bf16.mxu0 0
        %4741 = vmatpush1.bf16.msra.mxu0 0
        %4742 = vmatprep.subr.bf16.mxu0 0
        %4743 = vmatpush1.bf16.msra.mxu0 0
        %4744 = vmatprep.subr.bf16.mxu0 0
        %4745 = vmatpush1.bf16.msra.mxu0 0
        %4746 = vmatprep.subr.bf16.mxu0 0
        %4747 = vmatpush1.bf16.msra.mxu0 0
        %4748 = vmatprep.subr.bf16.mxu0 0
        %4749 = vmatpush1.bf16.msra.mxu0 0
        %4750 = vmatprep.subr.bf16.mxu0 0
        %4751 = vmatpush1.bf16.msra.mxu0 0
        %4752 = vmatprep.subr.bf16.mxu0 0
        %4753 = vmatpush1.bf16.msra.mxu0 0
        %4754 = vmatprep.subr.bf16.mxu0 0
        %4755 = vmatpush1.bf16.msra.mxu0 0
        %4756 = vmatprep.subr.bf16.mxu0 0
        %4757 = vmatpush1.bf16.msra.mxu0 0
        %4758 = vmatprep.subr.bf16.mxu0 0
        %4759 = vmatpush1.bf16.msra.mxu0 0
        %4760 = vmatprep.mubr.bf16.mxu0 0
        %4761 = vmatmul.mubr.bf16.gmra.mrb[0].mxu0 %v4253
        %v4762 = vpop.f32.mrb[0].mxu0
        %v4763 = vadd.f32 %v3887, %v4762
        %v4764 = vpop.f32.mrb[0].mxu0
        %v4765 = vadd.f32 %v3891, %v4764
        %v4766 = vpop.f32.mrb[0].mxu0
        %v4767 = vadd.f32 %v3887, %v4766
        %v4768 = vpop.f32.mrb[0].mxu0
        %v4769 = vadd.f32 %v3891, %v4768
        %4770 = vmatprep.mubr.bf16.mxu0 0
        %4771 = vmatmul.mubr.bf16.gmra.mrb[0].mxu0 %v4256
        %v4772 = vpop.f32.mrb[0].mxu0
        %v4773 = vadd.f32 %v3887, %v4772
        %v4774 = vpop.f32.mrb[0].mxu0
        %v4775 = vadd.f32 %v3891, %v4774
        %v4776 = vpop.f32.mrb[0].mxu0
        %v4777 = vadd.f32 %v3887, %v4776
        %v4778 = vpop.f32.mrb[0].mxu0
        %v4779 = vadd.f32 %v3891, %v4778
        %4780 = vmatprep.mubr.bf16.mxu0 0
        %4781 = vmatmul.mubr.bf16.gmra.mrb[0].mxu0 %v4259
        %v4782 = vpop.f32.mrb[0].mxu0
        %v4783 = vadd.f32 %v3887, %v4782
        %v4784 = vpop.f32.mrb[0].mxu0
        %v4785 = vadd.f32 %v3891, %v4784
        %v4786 = vpop.f32.mrb[0].mxu0
        %v4787 = vadd.f32 %v3887, %v4786
        %v4788 = vpop.f32.mrb[0].mxu0
        %v4789 = vadd.f32 %v3891, %v4788
        %4790 = vmatprep.mubr.bf16.mxu0 0
        %4791 = vmatmul.mubr.bf16.gmra.mrb[0].mxu0 %v4262
        %v4792 = vpop.f32.mrb[0].mxu0
        %v4793 = vadd.f32 %v3887, %v4792
        %v4794 = vpop.f32.mrb[0].mxu0
        %v4795 = vadd.f32 %v3891, %v4794
        %v4796 = vpop.f32.mrb[0].mxu0
        %v4797 = vadd.f32 %v3887, %v4796
        %v4798 = vpop.f32.mrb[0].mxu0
        %v4799 = vadd.f32 %v3891, %v4798
        %4800 = vmatprep.mubr.bf16.mxu0 0
        %4801 = vmatmul.mubr.bf16.gmra.mrb[0].mxu0 %v4265
        %v4802 = vpop.f32.mrb[0].mxu0
        %v4803 = vadd.f32 %v3887, %v4802
        %v4804 = vpop.f32.mrb[0].mxu0
        %v4805 = vadd.f32 %v3891, %v4804
        %v4806 = vpop.f32.mrb[0].mxu0
        %v4807 = vadd.f32 %v3887, %v4806
        %v4808 = vpop.f32.mrb[0].mxu0
        %v4809 = vadd.f32 %v3891, %v4808
        %4810 = vmatprep.mubr.bf16.mxu0 0
        %4811 = vmatmul.mubr.bf16.gmra.mrb[0].mxu0 %v4268
        %v4812 = vpop.f32.mrb[0].mxu0
        %v4813 = vadd.f32 %v3887, %v4812
        %v4814 = vpop.f32.mrb[0].mxu0
        %v4815 = vadd.f32 %v3891, %v4814
        %v4816 = vpop.f32.mrb[0].mxu0
        %v4817 = vadd.f32 %v3887, %v4816
        %v4818 = vpop.f32.mrb[0].mxu0
        %v4819 = vadd.f32 %v3891, %v4818
        %4820 = vmatprep.mubr.bf16.mxu0 0
        %4821 = vmatmul.mubr.bf16.gmra.mrb[0].mxu0 %v4271
        %v4822 = vpop.f32.mrb[0].mxu0
        %v4823 = vadd.f32 %v3887, %v4822
        %v4824 = vpop.f32.mrb[0].mxu0
        %v4825 = vadd.f32 %v3891, %v4824
        %v4826 = vpop.f32.mrb[0].mxu0
        %v4827 = vadd.f32 %v3887, %v4826
        %v4828 = vpop.f32.mrb[0].mxu0
        %v4829 = vadd.f32 %v3891, %v4828
        %4830 = vmatprep.mubr.bf16.mxu0 0
        %4831 = vmatmul.mubr.bf16.gmra.mrb[0].mxu0 %v4274
        %v4832 = vpop.f32.mrb[0].mxu0
        %v4833 = vadd.f32 %v3887, %v4832
        %v4834 = vpop.f32.mrb[0].mxu0
        %v4835 = vadd.f32 %v3891, %v4834
        %v4836 = vpop.f32.mrb[0].mxu0
        %v4837 = vadd.f32 %v3887, %v4836
        %v4838 = vpop.f32.mrb[0].mxu0
        %v4839 = vadd.f32 %v3891, %v4838
        %4840 = vdwg.mxu0
        %4841 = vmatprep.subr.bf16.mxu0 %v4135
        %4842 = vmatpush1.bf16.msra.mxu0 %v4134
        %4843 = vmatprep.subr.bf16.mxu0 %v4151
        %4844 = vmatpush1.bf16.msra.mxu0 %v4150
        %4845 = vmatprep.subr.bf16.mxu0 %v4167
        %4846 = vmatpush1.bf16.msra.mxu0 %v4166
        %4847 = vmatprep.subr.bf16.mxu0 %v4183
        %4848 = vmatpush1.bf16.msra.mxu0 %v4182
        %4849 = vmatprep.subr.bf16.mxu0 0
        %4850 = vmatpush1.bf16.msra.mxu0 0
        %4851 = vmatprep.subr.bf16.mxu0 0
        %4852 = vmatpush1.bf16.msra.mxu0 0
        %4853 = vmatprep.subr.bf16.mxu0 0
        %4854 = vmatpush1.bf16.msra.mxu0 0
        %4855 = vmatprep.subr.bf16.mxu0 0
        %4856 = vmatpush1.bf16.msra.mxu0 0
        %4857 = vmatprep.subr.bf16.mxu0 0
        %4858 = vmatpush1.bf16.msra.mxu0 0
        %4859 = vmatprep.subr.bf16.mxu0 0
        %4860 = vmatpush1.bf16.msra.mxu0 0
        %4861 = vmatprep.subr.bf16.mxu0 0
        %4862 = vmatpush1.bf16.msra.mxu0 0
        %4863 = vmatprep.subr.bf16.mxu0 0
        %4864 = vmatpush1.bf16.msra.mxu0 0
        %4865 = vmatprep.subr.bf16.mxu0 0
        %4866 = vmatpush1.bf16.msra.mxu0 0
        %4867 = vmatprep.subr.bf16.mxu0 0
        %4868 = vmatpush1.bf16.msra.mxu0 0
        %4869 = vmatprep.subr.bf16.mxu0 0
        %4870 = vmatpush1.bf16.msra.mxu0 0
        %4871 = vmatprep.subr.bf16.mxu0 0
        %4872 = vmatpush1.bf16.msra.mxu0 0
        %4873 = vmatprep.mubr.bf16.mxu0 0
        %4874 = vmatmul.mubr.bf16.gmra.mrb[0].mxu0 %v4253
        %v4875 = vpop.f32.mrb[0].mxu0
        %v4876 = vadd.f32 %v3895, %v4875
        %v4877 = vpop.f32.mrb[0].mxu0
        %v4878 = vadd.f32 %v3899, %v4877
        %v4879 = vpop.f32.mrb[0].mxu0
        %v4880 = vadd.f32 %v3895, %v4879
        %v4881 = vpop.f32.mrb[0].mxu0
        %v4882 = vadd.f32 %v3899, %v4881
        %4883 = vmatprep.mubr.bf16.mxu0 0
        %4884 = vmatmul.mubr.bf16.gmra.mrb[0].mxu0 %v4256
        %v4885 = vpop.f32.mrb[0].mxu0
        %v4886 = vadd.f32 %v3895, %v4885
        %v4887 = vpop.f32.mrb[0].mxu0
        %v4888 = vadd.f32 %v3899, %v4887
        %v4889 = vpop.f32.mrb[0].mxu0
        %v4890 = vadd.f32 %v3895, %v4889
        %v4891 = vpop.f32.mrb[0].mxu0
        %v4892 = vadd.f32 %v3899, %v4891
        %4893 = vmatprep.mubr.bf16.mxu0 0
        %4894 = vmatmul.mubr.bf16.gmra.mrb[0].mxu0 %v4259
        %v4895 = vpop.f32.mrb[0].mxu0
        %v4896 = vadd.f32 %v3895, %v4895
        %v4897 = vpop.f32.mrb[0].mxu0
        %v4898 = vadd.f32 %v3899, %v4897
        %v4899 = vpop.f32.mrb[0].mxu0
        %v4900 = vadd.f32 %v3895, %v4899
        %v4901 = vpop.f32.mrb[0].mxu0
        %v4902 = vadd.f32 %v3899, %v4901
        %4903 = vmatprep.mubr.bf16.mxu0 0
        %4904 = vmatmul.mubr.bf16.gmra.mrb[0].mxu0 %v4262
        %v4905 = vpop.f32.mrb[0].mxu0
        %v4906 = vadd.f32 %v3895, %v4905
        %v4907 = vpop.f32.mrb[0].mxu0
        %v4908 = vadd.f32 %v3899, %v4907
        %v4909 = vpop.f32.mrb[0].mxu0
        %v4910 = vadd.f32 %v3895, %v4909
        %v4911 = vpop.f32.mrb[0].mxu0
        %v4912 = vadd.f32 %v3899, %v4911
        %4913 = vmatprep.mubr.bf16.mxu0 0
        %4914 = vmatmul.mubr.bf16.gmra.mrb[0].mxu0 %v4265
        %v4915 = vpop.f32.mrb[0].mxu0
        %v4916 = vadd.f32 %v3895, %v4915
        %v4917 = vpop.f32.mrb[0].mxu0
        %v4918 = vadd.f32 %v3899, %v4917
        %v4919 = vpop.f32.mrb[0].mxu0
        %v4920 = vadd.f32 %v3895, %v4919
        %v4921 = vpop.f32.mrb[0].mxu0
        %v4922 = vadd.f32 %v3899, %v4921
        %4923 = vmatprep.mubr.bf16.mxu0 0
        %4924 = vmatmul.mubr.bf16.gmra.mrb[0].mxu0 %v4268
        %v4925 = vpop.f32.mrb[0].mxu0
        %v4926 = vadd.f32 %v3895, %v4925
        %v4927 = vpop.f32.mrb[0].mxu0
        %v4928 = vadd.f32 %v3899, %v4927
        %v4929 = vpop.f32.mrb[0].mxu0
        %v4930 = vadd.f32 %v3895, %v4929
        %v4931 = vpop.f32.mrb[0].mxu0
        %v4932 = vadd.f32 %v3899, %v4931
        %4933 = vmatprep.mubr.bf16.mxu0 0
        %4934 = vmatmul.mubr.bf16.gmra.mrb[0].mxu0 %v4271
        %v4935 = vpop.f32.mrb[0].mxu0
        %v4936 = vadd.f32 %v3895, %v4935
        %v4937 = vpop.f32.mrb[0].mxu0
        %v4938 = vadd.f32 %v3899, %v4937
        %v4939 = vpop.f32.mrb[0].mxu0
        %v4940 = vadd.f32 %v3895, %v4939
        %v4941 = vpop.f32.mrb[0].mxu0
        %v4942 = vadd.f32 %v3899, %v4941
        %4943 = vmatprep.mubr.bf16.mxu0 0
        %4944 = vmatmul.mubr.bf16.gmra.mrb[0].mxu0 %v4274
        %v4945 = vpop.f32.mrb[0].mxu0
        %v4946 = vadd.f32 %v3895, %v4945
        %v4947 = vpop.f32.mrb[0].mxu0
        %v4948 = vadd.f32 %v3899, %v4947
        %v4949 = vpop.f32.mrb[0].mxu0
        %v4950 = vadd.f32 %v3895, %v4949
        %v4951 = vpop.f32.mrb[0].mxu0
        %v4952 = vadd.f32 %v3899, %v4951
        %4953 = vdwg.mxu0
        %4954 = vmatprep.subr.bf16.mxu0 %v4137
        %4955 = vmatpush1.bf16.msra.mxu0 %v4136
        %4956 = vmatprep.subr.bf16.mxu0 %v4153
        %4957 = vmatpush1.bf16.msra.mxu0 %v4152
        %4958 = vmatprep.subr.bf16.mxu0 %v4169
        %4959 = vmatpush1.bf16.msra.mxu0 %v4168
        %4960 = vmatprep.subr.bf16.mxu0 %v4185
        %4961 = vmatpush1.bf16.msra.mxu0 %v4184
        %4962 = vmatprep.subr.bf16.mxu0 0
        %4963 = vmatpush1.bf16.msra.mxu0 0
        %4964 = vmatprep.subr.bf16.mxu0 0
        %4965 = vmatpush1.bf16.msra.mxu0 0
        %4966 = vmatprep.subr.bf16.mxu0 0
        %4967 = vmatpush1.bf16.msra.mxu0 0
        %4968 = vmatprep.subr.bf16.mxu0 0
        %4969 = vmatpush1.bf16.msra.mxu0 0
        %4970 = vmatprep.subr.bf16.mxu0 0
        %4971 = vmatpush1.bf16.msra.mxu0 0
        %4972 = vmatprep.subr.bf16.mxu0 0
        %4973 = vmatpush1.bf16.msra.mxu0 0
        %4974 = vmatprep.subr.bf16.mxu0 0
        %4975 = vmatpush1.bf16.msra.mxu0 0
        %4976 = vmatprep.subr.bf16.mxu0 0
        %4977 = vmatpush1.bf16.msra.mxu0 0
        %4978 = vmatprep.subr.bf16.mxu0 0
        %4979 = vmatpush1.bf16.msra.mxu0 0
        %4980 = vmatprep.subr.bf16.mxu0 0
        %4981 = vmatpush1.bf16.msra.mxu0 0
        %4982 = vmatprep.subr.bf16.mxu0 0
        %4983 = vmatpush1.bf16.msra.mxu0 0
        %4984 = vmatprep.subr.bf16.mxu0 0
        %4985 = vmatpush1.bf16.msra.mxu0 0
        %4986 = vmatprep.mubr.bf16.mxu0 0
        %4987 = vmatmul.mubr.bf16.gmra.mrb[0].mxu0 %v4253
        %v4988 = vpop.f32.mrb[0].mxu0
        %v4989 = vadd.f32 %v3903, %v4988
        %v4990 = vpop.f32.mrb[0].mxu0
        %v4991 = vadd.f32 %v3907, %v4990
        %v4992 = vpop.f32.mrb[0].mxu0
        %v4993 = vadd.f32 %v3903, %v4992
        %v4994 = vpop.f32.mrb[0].mxu0
        %v4995 = vadd.f32 %v3907, %v4994
        %4996 = vmatprep.mubr.bf16.mxu0 0
        %4997 = vmatmul.mubr.bf16.gmra.mrb[0].mxu0 %v4256
        %v4998 = vpop.f32.mrb[0].mxu0
        %v4999 = vadd.f32 %v3903, %v4998
        %v5000 = vpop.f32.mrb[0].mxu0
        %v5001 = vadd.f32 %v3907, %v5000
        %v5002 = vpop.f32.mrb[0].mxu0
        %v5003 = vadd.f32 %v3903, %v5002
        %v5004 = vpop.f32.mrb[0].mxu0
        %v5005 = vadd.f32 %v3907, %v5004
        %5006 = vmatprep.mubr.bf16.mxu0 0
        %5007 = vmatmul.mubr.bf16.gmra.mrb[0].mxu0 %v4259
        %v5008 = vpop.f32.mrb[0].mxu0
        %v5009 = vadd.f32 %v3903, %v5008
        %v5010 = vpop.f32.mrb[0].mxu0
        %v5011 = vadd.f32 %v3907, %v5010
        %v5012 = vpop.f32.mrb[0].mxu0
        %v5013 = vadd.f32 %v3903, %v5012
        %v5014 = vpop.f32.mrb[0].mxu0
        %v5015 = vadd.f32 %v3907, %v5014
        %5016 = vmatprep.mubr.bf16.mxu0 0
        %5017 = vmatmul.mubr.bf16.gmra.mrb[0].mxu0 %v4262
        %v5018 = vpop.f32.mrb[0].mxu0
        %v5019 = vadd.f32 %v3903, %v5018
        %v5020 = vpop.f32.mrb[0].mxu0
        %v5021 = vadd.f32 %v3907, %v5020
        %v5022 = vpop.f32.mrb[0].mxu0
        %v5023 = vadd.f32 %v3903, %v5022
        %v5024 = vpop.f32.mrb[0].mxu0
        %v5025 = vadd.f32 %v3907, %v5024
        %5026 = vmatprep.mubr.bf16.mxu0 0
        %5027 = vmatmul.mubr.bf16.gmra.mrb[0].mxu0 %v4265
        %v5028 = vpop.f32.mrb[0].mxu0
        %v5029 = vadd.f32 %v3903, %v5028
        %v5030 = vpop.f32.mrb[0].mxu0
        %v5031 = vadd.f32 %v3907, %v5030
        %v5032 = vpop.f32.mrb[0].mxu0
        %v5033 = vadd.f32 %v3903, %v5032
        %v5034 = vpop.f32.mrb[0].mxu0
        %v5035 = vadd.f32 %v3907, %v5034
        %5036 = vmatprep.mubr.bf16.mxu0 0
        %5037 = vmatmul.mubr.bf16.gmra.mrb[0].mxu0 %v4268
        %v5038 = vpop.f32.mrb[0].mxu0
        %v5039 = vadd.f32 %v3903, %v5038
        %v5040 = vpop.f32.mrb[0].mxu0
        %v5041 = vadd.f32 %v3907, %v5040
        %v5042 = vpop.f32.mrb[0].mxu0
        %v5043 = vadd.f32 %v3903, %v5042
        %v5044 = vpop.f32.mrb[0].mxu0
        %v5045 = vadd.f32 %v3907, %v5044
        %5046 = vmatprep.mubr.bf16.mxu0 0
        %5047 = vmatmul.mubr.bf16.gmra.mrb[0].mxu0 %v4271
        %v5048 = vpop.f32.mrb[0].mxu0
        %v5049 = vadd.f32 %v3903, %v5048
        %v5050 = vpop.f32.mrb[0].mxu0
        %v5051 = vadd.f32 %v3907, %v5050
        %v5052 = vpop.f32.mrb[0].mxu0
        %v5053 = vadd.f32 %v3903, %v5052
        %v5054 = vpop.f32.mrb[0].mxu0
        %v5055 = vadd.f32 %v3907, %v5054
        %5056 = vmatprep.mubr.bf16.mxu0 0
        %5057 = vmatmul.mubr.bf16.gmra.mrb[0].mxu0 %v4274
        %v5058 = vpop.f32.mrb[0].mxu0
        %v5059 = vadd.f32 %v3903, %v5058
        %v5060 = vpop.f32.mrb[0].mxu0
        %v5061 = vadd.f32 %v3907, %v5060
        %v5062 = vpop.f32.mrb[0].mxu0
        %v5063 = vadd.f32 %v3903, %v5062
        %v5064 = vpop.f32.mrb[0].mxu0
        %v5065 = vadd.f32 %v3907, %v5064
        %5066 = vdwg.mxu0
        %5067 = vmatprep.subr.bf16.mxu0 %v4139
        %5068 = vmatpush1.bf16.msra.mxu0 %v4138
        %5069 = vmatprep.subr.bf16.mxu0 %v4155
        %5070 = vmatpush1.bf16.msra.mxu0 %v4154
        %5071 = vmatprep.subr.bf16.mxu0 %v4171
        %5072 = vmatpush1.bf16.msra.mxu0 %v4170
        %5073 = vmatprep.subr.bf16.mxu0 %v4187
        %5074 = vmatpush1.bf16.msra.mxu0 %v4186
        %5075 = vmatprep.subr.bf16.mxu0 0
        %5076 = vmatpush1.bf16.msra.mxu0 0
        %5077 = vmatprep.subr.bf16.mxu0 0
        %5078 = vmatpush1.bf16.msra.mxu0 0
        %5079 = vmatprep.subr.bf16.mxu0 0
        %5080 = vmatpush1.bf16.msra.mxu0 0
        %5081 = vmatprep.subr.bf16.mxu0 0
        %5082 = vmatpush1.bf16.msra.mxu0 0
        %5083 = vmatprep.subr.bf16.mxu0 0
        %5084 = vmatpush1.bf16.msra.mxu0 0
        %5085 = vmatprep.subr.bf16.mxu0 0
        %5086 = vmatpush1.bf16.msra.mxu0 0
        %5087 = vmatprep.subr.bf16.mxu0 0
        %5088 = vmatpush1.bf16.msra.mxu0 0
        %5089 = vmatprep.subr.bf16.mxu0 0
        %5090 = vmatpush1.bf16.msra.mxu0 0
        %5091 = vmatprep.subr.bf16.mxu0 0
        %5092 = vmatpush1.bf16.msra.mxu0 0
        %5093 = vmatprep.subr.bf16.mxu0 0
        %5094 = vmatpush1.bf16.msra.mxu0 0
        %5095 = vmatprep.subr.bf16.mxu0 0
        %5096 = vmatpush1.bf16.msra.mxu0 0
        %5097 = vmatprep.subr.bf16.mxu0 0
        %5098 = vmatpush1.bf16.msra.mxu0 0
        %5099 = vmatprep.mubr.bf16.mxu0 0
        %5100 = vmatmul.mubr.bf16.gmra.mrb[0].mxu0 %v4253
        %v5101 = vpop.f32.mrb[0].mxu0
        %v5102 = vadd.f32 %v3911, %v5101
        %v5103 = vpop.f32.mrb[0].mxu0
        %v5104 = vadd.f32 %v3915, %v5103
        %v5105 = vpop.f32.mrb[0].mxu0
        %v5106 = vadd.f32 %v3911, %v5105
        %v5107 = vpop.f32.mrb[0].mxu0
        %v5108 = vadd.f32 %v3915, %v5107
        %5109 = vmatprep.mubr.bf16.mxu0 0
        %5110 = vmatmul.mubr.bf16.gmra.mrb[0].mxu0 %v4256
        %v5111 = vpop.f32.mrb[0].mxu0
        %v5112 = vadd.f32 %v3911, %v5111
        %v5113 = vpop.f32.mrb[0].mxu0
        %v5114 = vadd.f32 %v3915, %v5113
        %v5115 = vpop.f32.mrb[0].mxu0
        %v5116 = vadd.f32 %v3911, %v5115
        %v5117 = vpop.f32.mrb[0].mxu0
        %v5118 = vadd.f32 %v3915, %v5117
        %5119 = vmatprep.mubr.bf16.mxu0 0
        %5120 = vmatmul.mubr.bf16.gmra.mrb[0].mxu0 %v4259
        %v5121 = vpop.f32.mrb[0].mxu0
        %v5122 = vadd.f32 %v3911, %v5121
        %v5123 = vpop.f32.mrb[0].mxu0
        %v5124 = vadd.f32 %v3915, %v5123
        %v5125 = vpop.f32.mrb[0].mxu0
        %v5126 = vadd.f32 %v3911, %v5125
        %v5127 = vpop.f32.mrb[0].mxu0
        %v5128 = vadd.f32 %v3915, %v5127
        %5129 = vmatprep.mubr.bf16.mxu0 0
        %5130 = vmatmul.mubr.bf16.gmra.mrb[0].mxu0 %v4262
        %v5131 = vpop.f32.mrb[0].mxu0
        %v5132 = vadd.f32 %v3911, %v5131
        %v5133 = vpop.f32.mrb[0].mxu0
        %v5134 = vadd.f32 %v3915, %v5133
        %v5135 = vpop.f32.mrb[0].mxu0
        %v5136 = vadd.f32 %v3911, %v5135
        %v5137 = vpop.f32.mrb[0].mxu0
        %v5138 = vadd.f32 %v3915, %v5137
        %5139 = vmatprep.mubr.bf16.mxu0 0
        %5140 = vmatmul.mubr.bf16.gmra.mrb[0].mxu0 %v4265
        %v5141 = vpop.f32.mrb[0].mxu0
        %v5142 = vadd.f32 %v3911, %v5141
        %v5143 = vpop.f32.mrb[0].mxu0
        %v5144 = vadd.f32 %v3915, %v5143
        %v5145 = vpop.f32.mrb[0].mxu0
        %v5146 = vadd.f32 %v3911, %v5145
        %v5147 = vpop.f32.mrb[0].mxu0
        %v5148 = vadd.f32 %v3915, %v5147
        %5149 = vmatprep.mubr.bf16.mxu0 0
        %5150 = vmatmul.mubr.bf16.gmra.mrb[0].mxu0 %v4268
        %v5151 = vpop.f32.mrb[0].mxu0
        %v5152 = vadd.f32 %v3911, %v5151
        %v5153 = vpop.f32.mrb[0].mxu0
        %v5154 = vadd.f32 %v3915, %v5153
        %v5155 = vpop.f32.mrb[0].mxu0
        %v5156 = vadd.f32 %v3911, %v5155
        %v5157 = vpop.f32.mrb[0].mxu0
        %v5158 = vadd.f32 %v3915, %v5157
        %5159 = vmatprep.mubr.bf16.mxu0 0
        %5160 = vmatmul.mubr.bf16.gmra.mrb[0].mxu0 %v4271
        %v5161 = vpop.f32.mrb[0].mxu0
        %v5162 = vadd.f32 %v3911, %v5161
        %v5163 = vpop.f32.mrb[0].mxu0
        %v5164 = vadd.f32 %v3915, %v5163
        %v5165 = vpop.f32.mrb[0].mxu0
        %v5166 = vadd.f32 %v3911, %v5165
        %v5167 = vpop.f32.mrb[0].mxu0
        %v5168 = vadd.f32 %v3915, %v5167
        %5169 = vmatprep.mubr.bf16.mxu0 0
        %5170 = vmatmul.mubr.bf16.gmra.mrb[0].mxu0 %v4274
        %v5171 = vpop.f32.mrb[0].mxu0
        %v5172 = vadd.f32 %v3911, %v5171
        %v5173 = vpop.f32.mrb[0].mxu0
        %v5174 = vadd.f32 %v3915, %v5173
        %v5175 = vpop.f32.mrb[0].mxu0
        %v5176 = vadd.f32 %v3911, %v5175
        %v5177 = vpop.f32.mrb[0].mxu0
        %v5178 = vadd.f32 %v3915, %v5177
        %5179 = vdwg.mxu0
        %v5180 = vmax.f32 %v4311, 0.0
        %v5181 = vmax.f32 %v4313, 0.0
        %v5182 = vmax.f32 %v4424, 0.0
        %v5183 = vmax.f32 %v4426, 0.0
        %v5184 = vmax.f32 %v4537, 0.0
        %v5185 = vmax.f32 %v4539, 0.0
        %v5186 = vmax.f32 %v4650, 0.0
        %v5187 = vmax.f32 %v4652, 0.0
        %v5188 = vmax.f32 %v4763, 0.0
        %v5189 = vmax.f32 %v4765, 0.0
        %v5190 = vmax.f32 %v4876, 0.0
        %v5191 = vmax.f32 %v4878, 0.0
        %v5192 = vmax.f32 %v4989, 0.0
        %v5193 = vmax.f32 %v4991, 0.0
        %v5194 = vmax.f32 %v5102, 0.0
        %v5195 = vmax.f32 %v5104, 0.0
        %v5196 = vmax.f32 %v4315, 0.0
        %v5197 = vmax.f32 %v4317, 0.0
        %v5198 = vmax.f32 %v4428, 0.0
        %v5199 = vmax.f32 %v4430, 0.0
        %v5200 = vmax.f32 %v4541, 0.0
        %v5201 = vmax.f32 %v4543, 0.0
        %v5202 = vmax.f32 %v4654, 0.0
        %v5203 = vmax.f32 %v4656, 0.0
        %v5204 = vmax.f32 %v4767, 0.0
        %v5205 = vmax.f32 %v4769, 0.0
        %v5206 = vmax.f32 %v4880, 0.0
        %v5207 = vmax.f32 %v4882, 0.0
        %v5208 = vmax.f32 %v4993, 0.0
        %v5209 = vmax.f32 %v4995, 0.0
        %v5210 = vmax.f32 %v5106, 0.0
        %v5211 = vmax.f32 %v5108, 0.0
        %v5212 = vmax.f32 %v4321, 0.0
        %v5213 = vmax.f32 %v4323, 0.0
        %v5214 = vmax.f32 %v4434, 0.0
        %v5215 = vmax.f32 %v4436, 0.0
        %v5216 = vmax.f32 %v4547, 0.0
        %v5217 = vmax.f32 %v4549, 0.0
        %v5218 = vmax.f32 %v4660, 0.0
        %v5219 = vmax.f32 %v4662, 0.0
        %v5220 = vmax.f32 %v4773, 0.0
        %v5221 = vmax.f32 %v4775, 0.0
        %v5222 = vmax.f32 %v4886, 0.0
        %v5223 = vmax.f32 %v4888, 0.0
        %v5224 = vmax.f32 %v4999, 0.0
        %v5225 = vmax.f32 %v5001, 0.0
        %v5226 = vmax.f32 %v5112, 0.0
        %v5227 = vmax.f32 %v5114, 0.0
        %v5228 = vmax.f32 %v4325, 0.0
        %v5229 = vmax.f32 %v4327, 0.0
        %v5230 = vmax.f32 %v4438, 0.0
        %v5231 = vmax.f32 %v4440, 0.0
        %v5232 = vmax.f32 %v4551, 0.0
        %v5233 = vmax.f32 %v4553, 0.0
        %v5234 = vmax.f32 %v4664, 0.0
        %v5235 = vmax.f32 %v4666, 0.0
        %v5236 = vmax.f32 %v4777, 0.0
        %v5237 = vmax.f32 %v4779, 0.0
        %v5238 = vmax.f32 %v4890, 0.0
        %v5239 = vmax.f32 %v4892, 0.0
        %v5240 = vmax.f32 %v5003, 0.0
        %v5241 = vmax.f32 %v5005, 0.0
        %v5242 = vmax.f32 %v5116, 0.0
        %v5243 = vmax.f32 %v5118, 0.0
        %v5244 = vmax.f32 %v4331, 0.0
        %v5245 = vmax.f32 %v4333, 0.0
        %v5246 = vmax.f32 %v4444, 0.0
        %v5247 = vmax.f32 %v4446, 0.0
        %v5248 = vmax.f32 %v4557, 0.0
        %v5249 = vmax.f32 %v4559, 0.0
        %v5250 = vmax.f32 %v4670, 0.0
        %v5251 = vmax.f32 %v4672, 0.0
        %v5252 = vmax.f32 %v4783, 0.0
        %v5253 = vmax.f32 %v4785, 0.0
        %v5254 = vmax.f32 %v4896, 0.0
        %v5255 = vmax.f32 %v4898, 0.0
        %v5256 = vmax.f32 %v5009, 0.0
        %v5257 = vmax.f32 %v5011, 0.0
        %v5258 = vmax.f32 %v5122, 0.0
        %v5259 = vmax.f32 %v5124, 0.0
        %v5260 = vmax.f32 %v4335, 0.0
        %v5261 = vmax.f32 %v4337, 0.0
        %v5262 = vmax.f32 %v4448, 0.0
        %v5263 = vmax.f32 %v4450, 0.0
        %v5264 = vmax.f32 %v4561, 0.0
        %v5265 = vmax.f32 %v4563, 0.0
        %v5266 = vmax.f32 %v4674, 0.0
        %v5267 = vmax.f32 %v4676, 0.0
        %v5268 = vmax.f32 %v4787, 0.0
        %v5269 = vmax.f32 %v4789, 0.0
        %v5270 = vmax.f32 %v4900, 0.0
        %v5271 = vmax.f32 %v4902, 0.0
        %v5272 = vmax.f32 %v5013, 0.0
        %v5273 = vmax.f32 %v5015, 0.0
        %v5274 = vmax.f32 %v5126, 0.0
        %v5275 = vmax.f32 %v5128, 0.0
        %v5276 = vmax.f32 %v4341, 0.0
        %v5277 = vmax.f32 %v4343, 0.0
        %v5278 = vmax.f32 %v4454, 0.0
        %v5279 = vmax.f32 %v4456, 0.0
        %v5280 = vmax.f32 %v4567, 0.0
        %v5281 = vmax.f32 %v4569, 0.0
        %v5282 = vmax.f32 %v4680, 0.0
        %v5283 = vmax.f32 %v4682, 0.0
        %v5284 = vmax.f32 %v4793, 0.0
        %v5285 = vmax.f32 %v4795, 0.0
        %v5286 = vmax.f32 %v4906, 0.0
        %v5287 = vmax.f32 %v4908, 0.0
        %v5288 = vmax.f32 %v5019, 0.0
        %v5289 = vmax.f32 %v5021, 0.0
        %v5290 = vmax.f32 %v5132, 0.0
        %v5291 = vmax.f32 %v5134, 0.0
        %v5292 = vmax.f32 %v4345, 0.0
        %v5293 = vmax.f32 %v4347, 0.0
        %v5294 = vmax.f32 %v4458, 0.0
        %v5295 = vmax.f32 %v4460, 0.0
        %v5296 = vmax.f32 %v4571, 0.0
        %v5297 = vmax.f32 %v4573, 0.0
        %v5298 = vmax.f32 %v4684, 0.0
        %v5299 = vmax.f32 %v4686, 0.0
        %v5300 = vmax.f32 %v4797, 0.0
        %v5301 = vmax.f32 %v4799, 0.0
        %v5302 = vmax.f32 %v4910, 0.0
        %v5303 = vmax.f32 %v4912, 0.0
        %v5304 = vmax.f32 %v5023, 0.0
        %v5305 = vmax.f32 %v5025, 0.0
        %v5306 = vmax.f32 %v5136, 0.0
        %v5307 = vmax.f32 %v5138, 0.0
        %v5308 = vmax.f32 %v4351, 0.0
        %v5309 = vmax.f32 %v4353, 0.0
        %v5310 = vmax.f32 %v4464, 0.0
        %v5311 = vmax.f32 %v4466, 0.0
        %v5312 = vmax.f32 %v4577, 0.0
        %v5313 = vmax.f32 %v4579, 0.0
        %v5314 = vmax.f32 %v4690, 0.0
        %v5315 = vmax.f32 %v4692, 0.0
        %v5316 = vmax.f32 %v4803, 0.0
        %v5317 = vmax.f32 %v4805, 0.0
        %v5318 = vmax.f32 %v4916, 0.0
        %v5319 = vmax.f32 %v4918, 0.0
        %v5320 = vmax.f32 %v5029, 0.0
        %v5321 = vmax.f32 %v5031, 0.0
        %v5322 = vmax.f32 %v5142, 0.0
        %v5323 = vmax.f32 %v5144, 0.0
        %v5324 = vmax.f32 %v4355, 0.0
        %v5325 = vmax.f32 %v4357, 0.0
        %v5326 = vmax.f32 %v4468, 0.0
        %v5327 = vmax.f32 %v4470, 0.0
        %v5328 = vmax.f32 %v4581, 0.0
        %v5329 = vmax.f32 %v4583, 0.0
        %v5330 = vmax.f32 %v4694, 0.0
        %v5331 = vmax.f32 %v4696, 0.0
        %v5332 = vmax.f32 %v4807, 0.0
        %v5333 = vmax.f32 %v4809, 0.0
        %v5334 = vmax.f32 %v4920, 0.0
        %v5335 = vmax.f32 %v4922, 0.0
        %v5336 = vmax.f32 %v5033, 0.0
        %v5337 = vmax.f32 %v5035, 0.0
        %v5338 = vmax.f32 %v5146, 0.0
        %v5339 = vmax.f32 %v5148, 0.0
        %v5340 = vmax.f32 %v4361, 0.0
        %v5341 = vmax.f32 %v4363, 0.0
        %v5342 = vmax.f32 %v4474, 0.0
        %v5343 = vmax.f32 %v4476, 0.0
        %v5344 = vmax.f32 %v4587, 0.0
        %v5345 = vmax.f32 %v4589, 0.0
        %v5346 = vmax.f32 %v4700, 0.0
        %v5347 = vmax.f32 %v4702, 0.0
        %v5348 = vmax.f32 %v4813, 0.0
        %v5349 = vmax.f32 %v4815, 0.0
        %v5350 = vmax.f32 %v4926, 0.0
        %v5351 = vmax.f32 %v4928, 0.0
        %v5352 = vmax.f32 %v5039, 0.0
        %v5353 = vmax.f32 %v5041, 0.0
        %v5354 = vmax.f32 %v5152, 0.0
        %v5355 = vmax.f32 %v5154, 0.0
        %v5356 = vmax.f32 %v4365, 0.0
        %v5357 = vmax.f32 %v4367, 0.0
        %v5358 = vmax.f32 %v4478, 0.0
        %v5359 = vmax.f32 %v4480, 0.0
        %v5360 = vmax.f32 %v4591, 0.0
        %v5361 = vmax.f32 %v4593, 0.0
        %v5362 = vmax.f32 %v4704, 0.0
        %v5363 = vmax.f32 %v4706, 0.0
        %v5364 = vmax.f32 %v4817, 0.0
        %v5365 = vmax.f32 %v4819, 0.0
        %v5366 = vmax.f32 %v4930, 0.0
        %v5367 = vmax.f32 %v4932, 0.0
        %v5368 = vmax.f32 %v5043, 0.0
        %v5369 = vmax.f32 %v5045, 0.0
        %v5370 = vmax.f32 %v5156, 0.0
        %v5371 = vmax.f32 %v5158, 0.0
        %v5372 = vmax.f32 %v4371, 0.0
        %v5373 = vmax.f32 %v4373, 0.0
        %v5374 = vmax.f32 %v4484, 0.0
        %v5375 = vmax.f32 %v4486, 0.0
        %v5376 = vmax.f32 %v4597, 0.0
        %v5377 = vmax.f32 %v4599, 0.0
        %v5378 = vmax.f32 %v4710, 0.0
        %v5379 = vmax.f32 %v4712, 0.0
        %v5380 = vmax.f32 %v4823, 0.0
        %v5381 = vmax.f32 %v4825, 0.0
        %v5382 = vmax.f32 %v4936, 0.0
        %v5383 = vmax.f32 %v4938, 0.0
        %v5384 = vmax.f32 %v5049, 0.0
        %v5385 = vmax.f32 %v5051, 0.0
        %v5386 = vmax.f32 %v5162, 0.0
        %v5387 = vmax.f32 %v5164, 0.0
        %v5388 = vmax.f32 %v4375, 0.0
        %v5389 = vmax.f32 %v4377, 0.0
        %v5390 = vmax.f32 %v4488, 0.0
        %v5391 = vmax.f32 %v4490, 0.0
        %v5392 = vmax.f32 %v4601, 0.0
        %v5393 = vmax.f32 %v4603, 0.0
        %v5394 = vmax.f32 %v4714, 0.0
        %v5395 = vmax.f32 %v4716, 0.0
        %v5396 = vmax.f32 %v4827, 0.0
        %v5397 = vmax.f32 %v4829, 0.0
        %v5398 = vmax.f32 %v4940, 0.0
        %v5399 = vmax.f32 %v4942, 0.0
        %v5400 = vmax.f32 %v5053, 0.0
        %v5401 = vmax.f32 %v5055, 0.0
        %v5402 = vmax.f32 %v5166, 0.0
        %v5403 = vmax.f32 %v5168, 0.0
        %v5404 = vmax.f32 %v4381, 0.0
        %v5405 = vmax.f32 %v4383, 0.0
        %v5406 = vmax.f32 %v4494, 0.0
        %v5407 = vmax.f32 %v4496, 0.0
        %v5408 = vmax.f32 %v4607, 0.0
        %v5409 = vmax.f32 %v4609, 0.0
        %v5410 = vmax.f32 %v4720, 0.0
        %v5411 = vmax.f32 %v4722, 0.0
        %v5412 = vmax.f32 %v4833, 0.0
        %v5413 = vmax.f32 %v4835, 0.0
        %v5414 = vmax.f32 %v4946, 0.0
        %v5415 = vmax.f32 %v4948, 0.0
        %v5416 = vmax.f32 %v5059, 0.0
        %v5417 = vmax.f32 %v5061, 0.0
        %v5418 = vmax.f32 %v5172, 0.0
        %v5419 = vmax.f32 %v5174, 0.0
        %v5420 = vmax.f32 %v4385, 0.0
        %v5421 = vmax.f32 %v4387, 0.0
        %v5422 = vmax.f32 %v4498, 0.0
        %v5423 = vmax.f32 %v4500, 0.0
        %v5424 = vmax.f32 %v4611, 0.0
        %v5425 = vmax.f32 %v4613, 0.0
        %v5426 = vmax.f32 %v4724, 0.0
        %v5427 = vmax.f32 %v4726, 0.0
        %v5428 = vmax.f32 %v4837, 0.0
        %v5429 = vmax.f32 %v4839, 0.0
        %v5430 = vmax.f32 %v4950, 0.0
        %v5431 = vmax.f32 %v4952, 0.0
        %v5432 = vmax.f32 %v5063, 0.0
        %v5433 = vmax.f32 %v5065, 0.0
        %v5434 = vmax.f32 %v5176, 0.0
        %v5435 = vmax.f32 %v5178, 0.0
        %v5436 = vpack.c.bf16 %v5196, %v5180
        %v5437 = vpack.c.bf16 %v5197, %v5181
        %v5438 = vpack.c.bf16 %v5198, %v5182
        %v5439 = vpack.c.bf16 %v5199, %v5183
        %v5440 = vpack.c.bf16 %v5200, %v5184
        %v5441 = vpack.c.bf16 %v5201, %v5185
        %v5442 = vpack.c.bf16 %v5202, %v5186
        %v5443 = vpack.c.bf16 %v5203, %v5187
        %v5444 = vpack.c.bf16 %v5204, %v5188
        %v5445 = vpack.c.bf16 %v5205, %v5189
        %v5446 = vpack.c.bf16 %v5206, %v5190
        %v5447 = vpack.c.bf16 %v5207, %v5191
        %v5448 = vpack.c.bf16 %v5208, %v5192
        %v5449 = vpack.c.bf16 %v5209, %v5193
        %v5450 = vpack.c.bf16 %v5210, %v5194
        %v5451 = vpack.c.bf16 %v5211, %v5195
        %v5452 = vpack.c.bf16 %v5228, %v5212
        %v5453 = vpack.c.bf16 %v5229, %v5213
        %v5454 = vpack.c.bf16 %v5230, %v5214
        %v5455 = vpack.c.bf16 %v5231, %v5215
        %v5456 = vpack.c.bf16 %v5232, %v5216
        %v5457 = vpack.c.bf16 %v5233, %v5217
        %v5458 = vpack.c.bf16 %v5234, %v5218
        %v5459 = vpack.c.bf16 %v5235, %v5219
        %v5460 = vpack.c.bf16 %v5236, %v5220
        %v5461 = vpack.c.bf16 %v5237, %v5221
        %v5462 = vpack.c.bf16 %v5238, %v5222
        %v5463 = vpack.c.bf16 %v5239, %v5223
        %v5464 = vpack.c.bf16 %v5240, %v5224
        %v5465 = vpack.c.bf16 %v5241, %v5225
        %v5466 = vpack.c.bf16 %v5242, %v5226
        %v5467 = vpack.c.bf16 %v5243, %v5227
        %v5468 = vpack.c.bf16 %v5260, %v5244
        %v5469 = vpack.c.bf16 %v5261, %v5245
        %v5470 = vpack.c.bf16 %v5262, %v5246
        %v5471 = vpack.c.bf16 %v5263, %v5247
        %v5472 = vpack.c.bf16 %v5264, %v5248
        %v5473 = vpack.c.bf16 %v5265, %v5249
        %v5474 = vpack.c.bf16 %v5266, %v5250
        %v5475 = vpack.c.bf16 %v5267, %v5251
        %v5476 = vpack.c.bf16 %v5268, %v5252
        %v5477 = vpack.c.bf16 %v5269, %v5253
        %v5478 = vpack.c.bf16 %v5270, %v5254
        %v5479 = vpack.c.bf16 %v5271, %v5255
        %v5480 = vpack.c.bf16 %v5272, %v5256
        %v5481 = vpack.c.bf16 %v5273, %v5257
        %v5482 = vpack.c.bf16 %v5274, %v5258
        %v5483 = vpack.c.bf16 %v5275, %v5259
        %v5484 = vpack.c.bf16 %v5292, %v5276
        %v5485 = vpack.c.bf16 %v5293, %v5277
        %v5486 = vpack.c.bf16 %v5294, %v5278
        %v5487 = vpack.c.bf16 %v5295, %v5279
        %v5488 = vpack.c.bf16 %v5296, %v5280
        %v5489 = vpack.c.bf16 %v5297, %v5281
        %v5490 = vpack.c.bf16 %v5298, %v5282
        %v5491 = vpack.c.bf16 %v5299, %v5283
        %v5492 = vpack.c.bf16 %v5300, %v5284
        %v5493 = vpack.c.bf16 %v5301, %v5285
        %v5494 = vpack.c.bf16 %v5302, %v5286
        %v5495 = vpack.c.bf16 %v5303, %v5287
        %v5496 = vpack.c.bf16 %v5304, %v5288
        %v5497 = vpack.c.bf16 %v5305, %v5289
        %v5498 = vpack.c.bf16 %v5306, %v5290
        %v5499 = vpack.c.bf16 %v5307, %v5291
        %v5500 = vpack.c.bf16 %v5324, %v5308
        %v5501 = vpack.c.bf16 %v5325, %v5309
        %v5502 = vpack.c.bf16 %v5326, %v5310
        %v5503 = vpack.c.bf16 %v5327, %v5311
        %v5504 = vpack.c.bf16 %v5328, %v5312
        %v5505 = vpack.c.bf16 %v5329, %v5313
        %v5506 = vpack.c.bf16 %v5330, %v5314
        %v5507 = vpack.c.bf16 %v5331, %v5315
        %v5508 = vpack.c.bf16 %v5332, %v5316
        %v5509 = vpack.c.bf16 %v5333, %v5317
        %v5510 = vpack.c.bf16 %v5334, %v5318
        %v5511 = vpack.c.bf16 %v5335, %v5319
        %v5512 = vpack.c.bf16 %v5336, %v5320
        %v5513 = vpack.c.bf16 %v5337, %v5321
        %v5514 = vpack.c.bf16 %v5338, %v5322
        %v5515 = vpack.c.bf16 %v5339, %v5323
        %v5516 = vpack.c.bf16 %v5356, %v5340
        %v5517 = vpack.c.bf16 %v5357, %v5341
        %v5518 = vpack.c.bf16 %v5358, %v5342
        %v5519 = vpack.c.bf16 %v5359, %v5343
        %v5520 = vpack.c.bf16 %v5360, %v5344
        %v5521 = vpack.c.bf16 %v5361, %v5345
        %v5522 = vpack.c.bf16 %v5362, %v5346
        %v5523 = vpack.c.bf16 %v5363, %v5347
        %v5524 = vpack.c.bf16 %v5364, %v5348
        %v5525 = vpack.c.bf16 %v5365, %v5349
        %v5526 = vpack.c.bf16 %v5366, %v5350
        %v5527 = vpack.c.bf16 %v5367, %v5351
        %v5528 = vpack.c.bf16 %v5368, %v5352
        %v5529 = vpack.c.bf16 %v5369, %v5353
        %v5530 = vpack.c.bf16 %v5370, %v5354
        %v5531 = vpack.c.bf16 %v5371, %v5355
        %v5532 = vpack.c.bf16 %v5388, %v5372
        %v5533 = vpack.c.bf16 %v5389, %v5373
        %v5534 = vpack.c.bf16 %v5390, %v5374
        %v5535 = vpack.c.bf16 %v5391, %v5375
        %v5536 = vpack.c.bf16 %v5392, %v5376
        %v5537 = vpack.c.bf16 %v5393, %v5377
        %v5538 = vpack.c.bf16 %v5394, %v5378
        %v5539 = vpack.c.bf16 %v5395, %v5379
        %v5540 = vpack.c.bf16 %v5396, %v5380
        %v5541 = vpack.c.bf16 %v5397, %v5381
        %v5542 = vpack.c.bf16 %v5398, %v5382
        %v5543 = vpack.c.bf16 %v5399, %v5383
        %v5544 = vpack.c.bf16 %v5400, %v5384
        %v5545 = vpack.c.bf16 %v5401, %v5385
        %v5546 = vpack.c.bf16 %v5402, %v5386
        %v5547 = vpack.c.bf16 %v5403, %v5387
        %v5548 = vpack.c.bf16 %v5420, %v5404
        %v5549 = vpack.c.bf16 %v5421, %v5405
        %v5550 = vpack.c.bf16 %v5422, %v5406
        %v5551 = vpack.c.bf16 %v5423, %v5407
        %v5552 = vpack.c.bf16 %v5424, %v5408
        %v5553 = vpack.c.bf16 %v5425, %v5409
        %v5554 = vpack.c.bf16 %v5426, %v5410
        %v5555 = vpack.c.bf16 %v5427, %v5411
        %v5556 = vpack.c.bf16 %v5428, %v5412
        %v5557 = vpack.c.bf16 %v5429, %v5413
        %v5558 = vpack.c.bf16 %v5430, %v5414
        %v5559 = vpack.c.bf16 %v5431, %v5415
        %v5560 = vpack.c.bf16 %v5432, %v5416
        %v5561 = vpack.c.bf16 %v5433, %v5417
        %v5562 = vpack.c.bf16 %v5434, %v5418
        %v5563 = vpack.c.bf16 %v5435, %v5419
        %v5564 = vld [vmem:[%s885] sm:$0xf]
        %v5565 = vld [vmem:[%s885 + $0x4] sm:$0xf]
        %v5566 = vld [vmem:[%s885 + $0x8] sm:$0xf]
        %v5567 = vld [vmem:[%s885 + $0xc] sm:$0xf]
        %v5568 = vld [vmem:[%s885 + $0x10] sm:$0xf]
        %v5569 = vld [vmem:[%s885 + $0x14] sm:$0xf]
        %v5570 = vld [vmem:[%s885 + $0x18] sm:$0xf]
        %v5571 = vld [vmem:[%s885 + $0x1c] sm:$0xf]
        %v5572 = vld [vmem:[%s885 + $0x20] sm:$0xf]
        %v5573 = vld [vmem:[%s885 + $0x24] sm:$0xf]
        %v5574 = vld [vmem:[%s885 + $0x28] sm:$0xf]
        %v5575 = vld [vmem:[%s885 + $0x2c] sm:$0xf]
        %v5576 = vld [vmem:[%s885 + $0x30] sm:$0xf]
        %v5577 = vld [vmem:[%s885 + $0x34] sm:$0xf]
        %v5578 = vld [vmem:[%s885 + $0x38] sm:$0xf]
        %v5579 = vld [vmem:[%s885 + $0x3c] sm:$0xf]
        %v5580 = vld [vmem:[%s885 + $0x40] sm:$0xf]
        %v5581 = vld [vmem:[%s885 + $0x44] sm:$0xf]
        %v5582 = vld [vmem:[%s885 + $0x48] sm:$0xf]
        %v5583 = vld [vmem:[%s885 + $0x4c] sm:$0xf]
        %v5584 = vld [vmem:[%s885 + $0x50] sm:$0xf]
        %v5585 = vld [vmem:[%s885 + $0x54] sm:$0xf]
        %v5586 = vld [vmem:[%s885 + $0x58] sm:$0xf]
        %v5587 = vld [vmem:[%s885 + $0x5c] sm:$0xf]
        %v5588 = vld [vmem:[%s885 + $0x60] sm:$0xf]
        %v5589 = vld [vmem:[%s885 + $0x64] sm:$0xf]
        %v5590 = vld [vmem:[%s885 + $0x68] sm:$0xf]
        %v5591 = vld [vmem:[%s885 + $0x6c] sm:$0xf]
        %v5592 = vld [vmem:[%s885 + $0x70] sm:$0xf]
        %v5593 = vld [vmem:[%s885 + $0x74] sm:$0xf]
        %v5594 = vld [vmem:[%s885 + $0x78] sm:$0xf]
        %v5595 = vld [vmem:[%s885 + $0x7c] sm:$0xf]
        %v5596 = vld [vmem:[%s885 + $0x80] sm:$0xf]
        %v5597 = vld [vmem:[%s885 + $0x84] sm:$0xf]
        %v5598 = vld [vmem:[%s885 + $0x88] sm:$0xf]
        %v5599 = vld [vmem:[%s885 + $0x8c] sm:$0xf]
        %v5600 = vld [vmem:[%s885 + $0x90] sm:$0xf]
        %v5601 = vld [vmem:[%s885 + $0x94] sm:$0xf]
        %v5602 = vld [vmem:[%s885 + $0x98] sm:$0xf]
        %v5603 = vld [vmem:[%s885 + $0x9c] sm:$0xf]
        %v5604 = vld [vmem:[%s885 + $0xa0] sm:$0xf]
        %v5605 = vld [vmem:[%s885 + $0xa4] sm:$0xf]
        %v5606 = vld [vmem:[%s885 + $0xa8] sm:$0xf]
        %v5607 = vld [vmem:[%s885 + $0xac] sm:$0xf]
        %v5608 = vld [vmem:[%s885 + $0xb0] sm:$0xf]
        %v5609 = vld [vmem:[%s885 + $0xb4] sm:$0xf]
        %v5610 = vld [vmem:[%s885 + $0xb8] sm:$0xf]
        %v5611 = vld [vmem:[%s885 + $0xbc] sm:$0xf]
        %v5612 = vld [vmem:[%s885 + $0xc0] sm:$0xf]
        %v5613 = vld [vmem:[%s885 + $0xc4] sm:$0xf]
        %v5614 = vld [vmem:[%s885 + $0xc8] sm:$0xf]
        %v5615 = vld [vmem:[%s885 + $0xcc] sm:$0xf]
        %v5616 = vld [vmem:[%s885 + $0xd0] sm:$0xf]
        %v5617 = vld [vmem:[%s885 + $0xd4] sm:$0xf]
        %v5618 = vld [vmem:[%s885 + $0xd8] sm:$0xf]
        %v5619 = vld [vmem:[%s885 + $0xdc] sm:$0xf]
        %v5620 = vld [vmem:[%s885 + $0xe0] sm:$0xf]
        %v5621 = vld [vmem:[%s885 + $0xe4] sm:$0xf]
        %v5622 = vld [vmem:[%s885 + $0xe8] sm:$0xf]
        %v5623 = vld [vmem:[%s885 + $0xec] sm:$0xf]
        %v5624 = vld [vmem:[%s885 + $0xf0] sm:$0xf]
        %v5625 = vld [vmem:[%s885 + $0xf4] sm:$0xf]
        %v5626 = vld [vmem:[%s885 + $0xf8] sm:$0xf]
        %v5627 = vld [vmem:[%s885 + $0xfc] sm:$0xf]
        %v5628 = vld [vmem:[%s885 + $0x100] sm:$0xf]
        %v5629 = vld [vmem:[%s885 + $0x104] sm:$0xf]
        %v5630 = vld [vmem:[%s885 + $0x108] sm:$0xf]
        %v5631 = vld [vmem:[%s885 + $0x10c] sm:$0xf]
        %v5632 = vld [vmem:[%s885 + $0x110] sm:$0xf]
        %v5633 = vld [vmem:[%s885 + $0x114] sm:$0xf]
        %v5634 = vld [vmem:[%s885 + $0x118] sm:$0xf]
        %v5635 = vld [vmem:[%s885 + $0x11c] sm:$0xf]
        %v5636 = vld [vmem:[%s885 + $0x120] sm:$0xf]
        %v5637 = vld [vmem:[%s885 + $0x124] sm:$0xf]
        %v5638 = vld [vmem:[%s885 + $0x128] sm:$0xf]
        %v5639 = vld [vmem:[%s885 + $0x12c] sm:$0xf]
        %v5640 = vld [vmem:[%s885 + $0x130] sm:$0xf]
        %v5641 = vld [vmem:[%s885 + $0x134] sm:$0xf]
        %v5642 = vld [vmem:[%s885 + $0x138] sm:$0xf]
        %v5643 = vld [vmem:[%s885 + $0x13c] sm:$0xf]
        %v5644 = vld [vmem:[%s885 + $0x140] sm:$0xf]
        %v5645 = vld [vmem:[%s885 + $0x144] sm:$0xf]
        %v5646 = vld [vmem:[%s885 + $0x148] sm:$0xf]
        %v5647 = vld [vmem:[%s885 + $0x14c] sm:$0xf]
        %v5648 = vld [vmem:[%s885 + $0x150] sm:$0xf]
        %v5649 = vld [vmem:[%s885 + $0x154] sm:$0xf]
        %v5650 = vld [vmem:[%s885 + $0x158] sm:$0xf]
        %v5651 = vld [vmem:[%s885 + $0x15c] sm:$0xf]
        %v5652 = vld [vmem:[%s885 + $0x160] sm:$0xf]
        %v5653 = vld [vmem:[%s885 + $0x164] sm:$0xf]
        %v5654 = vld [vmem:[%s885 + $0x168] sm:$0xf]
        %v5655 = vld [vmem:[%s885 + $0x16c] sm:$0xf]
        %v5656 = vld [vmem:[%s885 + $0x170] sm:$0xf]
        %v5657 = vld [vmem:[%s885 + $0x174] sm:$0xf]
        %v5658 = vld [vmem:[%s885 + $0x178] sm:$0xf]
        %v5659 = vld [vmem:[%s885 + $0x17c] sm:$0xf]
        %v5660 = vld [vmem:[%s885 + $0x180] sm:$0xf]
        %v5661 = vld [vmem:[%s885 + $0x184] sm:$0xf]
        %v5662 = vld [vmem:[%s885 + $0x188] sm:$0xf]
        %v5663 = vld [vmem:[%s885 + $0x18c] sm:$0xf]
        %v5664 = vld [vmem:[%s885 + $0x190] sm:$0xf]
        %v5665 = vld [vmem:[%s885 + $0x194] sm:$0xf]
        %v5666 = vld [vmem:[%s885 + $0x198] sm:$0xf]
        %v5667 = vld [vmem:[%s885 + $0x19c] sm:$0xf]
        %v5668 = vld [vmem:[%s885 + $0x1a0] sm:$0xf]
        %v5669 = vld [vmem:[%s885 + $0x1a4] sm:$0xf]
        %v5670 = vld [vmem:[%s885 + $0x1a8] sm:$0xf]
        %v5671 = vld [vmem:[%s885 + $0x1ac] sm:$0xf]
        %v5672 = vld [vmem:[%s885 + $0x1b0] sm:$0xf]
        %v5673 = vld [vmem:[%s885 + $0x1b4] sm:$0xf]
        %v5674 = vld [vmem:[%s885 + $0x1b8] sm:$0xf]
        %v5675 = vld [vmem:[%s885 + $0x1bc] sm:$0xf]
        %v5676 = vld [vmem:[%s885 + $0x1c0] sm:$0xf]
        %v5677 = vld [vmem:[%s885 + $0x1c4] sm:$0xf]
        %v5678 = vld [vmem:[%s885 + $0x1c8] sm:$0xf]
        %v5679 = vld [vmem:[%s885 + $0x1cc] sm:$0xf]
        %v5680 = vld [vmem:[%s885 + $0x1d0] sm:$0xf]
        %v5681 = vld [vmem:[%s885 + $0x1d4] sm:$0xf]
        %v5682 = vld [vmem:[%s885 + $0x1d8] sm:$0xf]
        %v5683 = vld [vmem:[%s885 + $0x1dc] sm:$0xf]
        %v5684 = vld [vmem:[%s885 + $0x1e0] sm:$0xf]
        %v5685 = vld [vmem:[%s885 + $0x1e4] sm:$0xf]
        %v5686 = vld [vmem:[%s885 + $0x1e8] sm:$0xf]
        %v5687 = vld [vmem:[%s885 + $0x1ec] sm:$0xf]
        %v5688 = vld [vmem:[%s885 + $0x1f0] sm:$0xf]
        %v5689 = vld [vmem:[%s885 + $0x1f4] sm:$0xf]
        %v5690 = vld [vmem:[%s885 + $0x1f8] sm:$0xf]
        %v5691 = vld [vmem:[%s885 + $0x1fc] sm:$0xf]
        %v5692 = vld [vmem:[%s885 + $0x200] sm:$0xf]
        %v5693 = vld [vmem:[%s885 + $0x204] sm:$0xf]
        %v5694 = vld [vmem:[%s885 + $0x208] sm:$0xf]
        %v5695 = vld [vmem:[%s885 + $0x20c] sm:$0xf]
        %v5696 = vld [vmem:[%s885 + $0x210] sm:$0xf]
        %v5697 = vld [vmem:[%s885 + $0x214] sm:$0xf]
        %v5698 = vld [vmem:[%s885 + $0x218] sm:$0xf]
        %v5699 = vld [vmem:[%s885 + $0x21c] sm:$0xf]
        %v5700 = vld [vmem:[%s885 + $0x220] sm:$0xf]
        %v5701 = vld [vmem:[%s885 + $0x224] sm:$0xf]
        %v5702 = vld [vmem:[%s885 + $0x228] sm:$0xf]
        %v5703 = vld [vmem:[%s885 + $0x22c] sm:$0xf]
        %v5704 = vld [vmem:[%s885 + $0x230] sm:$0xf]
        %v5705 = vld [vmem:[%s885 + $0x234] sm:$0xf]
        %v5706 = vld [vmem:[%s885 + $0x238] sm:$0xf]
        %v5707 = vld [vmem:[%s885 + $0x23c] sm:$0xf]
        %v5708 = vld [vmem:[%s885 + $0x240] sm:$0xf]
        %v5709 = vld [vmem:[%s885 + $0x244] sm:$0xf]
        %v5710 = vld [vmem:[%s885 + $0x248] sm:$0xf]
        %v5711 = vld [vmem:[%s885 + $0x24c] sm:$0xf]
        %v5712 = vld [vmem:[%s885 + $0x250] sm:$0xf]
        %v5713 = vld [vmem:[%s885 + $0x254] sm:$0xf]
        %v5714 = vld [vmem:[%s885 + $0x258] sm:$0xf]
        %v5715 = vld [vmem:[%s885 + $0x25c] sm:$0xf]
        %v5716 = vld [vmem:[%s885 + $0x260] sm:$0xf]
        %v5717 = vld [vmem:[%s885 + $0x264] sm:$0xf]
        %v5718 = vld [vmem:[%s885 + $0x268] sm:$0xf]
        %v5719 = vld [vmem:[%s885 + $0x26c] sm:$0xf]
        %v5720 = vld [vmem:[%s885 + $0x270] sm:$0xf]
        %v5721 = vld [vmem:[%s885 + $0x274] sm:$0xf]
        %v5722 = vld [vmem:[%s885 + $0x278] sm:$0xf]
        %v5723 = vld [vmem:[%s885 + $0x27c] sm:$0xf]
        %v5724 = vld [vmem:[%s885 + $0x280] sm:$0xf]
        %v5725 = vld [vmem:[%s885 + $0x284] sm:$0xf]
        %v5726 = vld [vmem:[%s885 + $0x288] sm:$0xf]
        %v5727 = vld [vmem:[%s885 + $0x28c] sm:$0xf]
        %v5728 = vld [vmem:[%s885 + $0x290] sm:$0xf]
        %v5729 = vld [vmem:[%s885 + $0x294] sm:$0xf]
        %v5730 = vld [vmem:[%s885 + $0x298] sm:$0xf]
        %v5731 = vld [vmem:[%s885 + $0x29c] sm:$0xf]
        %v5732 = vld [vmem:[%s885 + $0x2a0] sm:$0xf]
        %v5733 = vld [vmem:[%s885 + $0x2a4] sm:$0xf]
        %v5734 = vld [vmem:[%s885 + $0x2a8] sm:$0xf]
        %v5735 = vld [vmem:[%s885 + $0x2ac] sm:$0xf]
        %v5736 = vld [vmem:[%s885 + $0x2b0] sm:$0xf]
        %v5737 = vld [vmem:[%s885 + $0x2b4] sm:$0xf]
        %v5738 = vld [vmem:[%s885 + $0x2b8] sm:$0xf]
        %v5739 = vld [vmem:[%s885 + $0x2bc] sm:$0xf]
        %v5740 = vld [vmem:[%s885 + $0x2c0] sm:$0xf]
        %v5741 = vld [vmem:[%s885 + $0x2c4] sm:$0xf]
        %v5742 = vld [vmem:[%s885 + $0x2c8] sm:$0xf]
        %v5743 = vld [vmem:[%s885 + $0x2cc] sm:$0xf]
        %v5744 = vld [vmem:[%s885 + $0x2d0] sm:$0xf]
        %v5745 = vld [vmem:[%s885 + $0x2d4] sm:$0xf]
        %v5746 = vld [vmem:[%s885 + $0x2d8] sm:$0xf]
        %v5747 = vld [vmem:[%s885 + $0x2dc] sm:$0xf]
        %v5748 = vld [vmem:[%s885 + $0x2e0] sm:$0xf]
        %v5749 = vld [vmem:[%s885 + $0x2e4] sm:$0xf]
        %v5750 = vld [vmem:[%s885 + $0x2e8] sm:$0xf]
        %v5751 = vld [vmem:[%s885 + $0x2ec] sm:$0xf]
        %v5752 = vld [vmem:[%s885 + $0x2f0] sm:$0xf]
        %v5753 = vld [vmem:[%s885 + $0x2f4] sm:$0xf]
        %v5754 = vld [vmem:[%s885 + $0x2f8] sm:$0xf]
        %v5755 = vld [vmem:[%s885 + $0x2fc] sm:$0xf]
        %v5756 = vld [vmem:[%s885 + $0x300] sm:$0xf]
        %v5757 = vld [vmem:[%s885 + $0x304] sm:$0xf]
        %v5758 = vld [vmem:[%s885 + $0x308] sm:$0xf]
        %v5759 = vld [vmem:[%s885 + $0x30c] sm:$0xf]
        %v5760 = vld [vmem:[%s885 + $0x310] sm:$0xf]
        %v5761 = vld [vmem:[%s885 + $0x314] sm:$0xf]
        %v5762 = vld [vmem:[%s885 + $0x318] sm:$0xf]
        %v5763 = vld [vmem:[%s885 + $0x31c] sm:$0xf]
        %v5764 = vld [vmem:[%s885 + $0x320] sm:$0xf]
        %v5765 = vld [vmem:[%s885 + $0x324] sm:$0xf]
        %v5766 = vld [vmem:[%s885 + $0x328] sm:$0xf]
        %v5767 = vld [vmem:[%s885 + $0x32c] sm:$0xf]
        %v5768 = vld [vmem:[%s885 + $0x330] sm:$0xf]
        %v5769 = vld [vmem:[%s885 + $0x334] sm:$0xf]
        %v5770 = vld [vmem:[%s885 + $0x338] sm:$0xf]
        %v5771 = vld [vmem:[%s885 + $0x33c] sm:$0xf]
        %v5772 = vld [vmem:[%s885 + $0x340] sm:$0xf]
        %v5773 = vld [vmem:[%s885 + $0x344] sm:$0xf]
        %v5774 = vld [vmem:[%s885 + $0x348] sm:$0xf]
        %v5775 = vld [vmem:[%s885 + $0x34c] sm:$0xf]
        %v5776 = vld [vmem:[%s885 + $0x350] sm:$0xf]
        %v5777 = vld [vmem:[%s885 + $0x354] sm:$0xf]
        %v5778 = vld [vmem:[%s885 + $0x358] sm:$0xf]
        %v5779 = vld [vmem:[%s885 + $0x35c] sm:$0xf]
        %v5780 = vld [vmem:[%s885 + $0x360] sm:$0xf]
        %v5781 = vld [vmem:[%s885 + $0x364] sm:$0xf]
        %v5782 = vld [vmem:[%s885 + $0x368] sm:$0xf]
        %v5783 = vld [vmem:[%s885 + $0x36c] sm:$0xf]
        %v5784 = vld [vmem:[%s885 + $0x370] sm:$0xf]
        %v5785 = vld [vmem:[%s885 + $0x374] sm:$0xf]
        %v5786 = vld [vmem:[%s885 + $0x378] sm:$0xf]
        %v5787 = vld [vmem:[%s885 + $0x37c] sm:$0xf]
        %v5788 = vld [vmem:[%s885 + $0x380] sm:$0xf]
        %v5789 = vld [vmem:[%s885 + $0x384] sm:$0xf]
        %v5790 = vld [vmem:[%s885 + $0x388] sm:$0xf]
        %v5791 = vld [vmem:[%s885 + $0x38c] sm:$0xf]
        %v5792 = vld [vmem:[%s885 + $0x390] sm:$0xf]
        %v5793 = vld [vmem:[%s885 + $0x394] sm:$0xf]
        %v5794 = vld [vmem:[%s885 + $0x398] sm:$0xf]
        %v5795 = vld [vmem:[%s885 + $0x39c] sm:$0xf]
        %v5796 = vld [vmem:[%s885 + $0x3a0] sm:$0xf]
        %v5797 = vld [vmem:[%s885 + $0x3a4] sm:$0xf]
        %v5798 = vld [vmem:[%s885 + $0x3a8] sm:$0xf]
        %v5799 = vld [vmem:[%s885 + $0x3ac] sm:$0xf]
        %v5800 = vld [vmem:[%s885 + $0x3b0] sm:$0xf]
        %v5801 = vld [vmem:[%s885 + $0x3b4] sm:$0xf]
        %v5802 = vld [vmem:[%s885 + $0x3b8] sm:$0xf]
        %v5803 = vld [vmem:[%s885 + $0x3bc] sm:$0xf]
        %v5804 = vld [vmem:[%s885 + $0x3c0] sm:$0xf]
        %v5805 = vld [vmem:[%s885 + $0x3c4] sm:$0xf]
        %v5806 = vld [vmem:[%s885 + $0x3c8] sm:$0xf]
        %v5807 = vld [vmem:[%s885 + $0x3cc] sm:$0xf]
        %v5808 = vld [vmem:[%s885 + $0x3d0] sm:$0xf]
        %v5809 = vld [vmem:[%s885 + $0x3d4] sm:$0xf]
        %v5810 = vld [vmem:[%s885 + $0x3d8] sm:$0xf]
        %v5811 = vld [vmem:[%s885 + $0x3dc] sm:$0xf]
        %v5812 = vld [vmem:[%s885 + $0x3e0] sm:$0xf]
        %v5813 = vld [vmem:[%s885 + $0x3e4] sm:$0xf]
        %v5814 = vld [vmem:[%s885 + $0x3e8] sm:$0xf]
        %v5815 = vld [vmem:[%s885 + $0x3ec] sm:$0xf]
        %v5816 = vld [vmem:[%s885 + $0x3f0] sm:$0xf]
        %v5817 = vld [vmem:[%s885 + $0x3f4] sm:$0xf]
        %v5818 = vld [vmem:[%s885 + $0x3f8] sm:$0xf]
        %v5819 = vld [vmem:[%s885 + $0x3fc] sm:$0xf]
        %v5820 = vld [vmem:[%s888] sm:$0x1]
        %v5822 = vlaneseq
        %v5823 = vshrl.u32 %v5822, 7
        %v5824 = vsub.s32 0, %v5823
        %v5825 = vrot.slane %v5820, %v5824
        %v6083 = vunpack.c.l.b16 %v5564
        %v6084 = vunpack.c.l.b16 %v5565
        %v6085 = vunpack.c.l.b16 %v5566
        %v6086 = vunpack.c.l.b16 %v5567
        %v6087 = vunpack.c.l.b16 %v5568
        %v6088 = vunpack.c.l.b16 %v5569
        %v6089 = vunpack.c.l.b16 %v5570
        %v6090 = vunpack.c.l.b16 %v5571
        %v6091 = vunpack.c.l.b16 %v5572
        %v6092 = vunpack.c.l.b16 %v5573
        %v6093 = vunpack.c.l.b16 %v5574
        %v6094 = vunpack.c.l.b16 %v5575
        %v6095 = vunpack.c.l.b16 %v5576
        %v6096 = vunpack.c.l.b16 %v5577
        %v6097 = vunpack.c.l.b16 %v5578
        %v6098 = vunpack.c.l.b16 %v5579
        %v6099 = vunpack.c.l.b16 %v5580
        %v6100 = vunpack.c.l.b16 %v5581
        %v6101 = vunpack.c.l.b16 %v5582
        %v6102 = vunpack.c.l.b16 %v5583
        %v6103 = vunpack.c.l.b16 %v5584
        %v6104 = vunpack.c.l.b16 %v5585
        %v6105 = vunpack.c.l.b16 %v5586
        %v6106 = vunpack.c.l.b16 %v5587
        %v6107 = vunpack.c.l.b16 %v5588
        %v6108 = vunpack.c.l.b16 %v5589
        %v6109 = vunpack.c.l.b16 %v5590
        %v6110 = vunpack.c.l.b16 %v5591
        %v6111 = vunpack.c.l.b16 %v5592
        %v6112 = vunpack.c.l.b16 %v5593
        %v6113 = vunpack.c.l.b16 %v5594
        %v6114 = vunpack.c.l.b16 %v5595
        %v6115 = vunpack.c.l.b16 %v5596
        %v6116 = vunpack.c.l.b16 %v5597
        %v6117 = vunpack.c.l.b16 %v5598
        %v6118 = vunpack.c.l.b16 %v5599
        %v6119 = vunpack.c.l.b16 %v5600
        %v6120 = vunpack.c.l.b16 %v5601
        %v6121 = vunpack.c.l.b16 %v5602
        %v6122 = vunpack.c.l.b16 %v5603
        %v6123 = vunpack.c.l.b16 %v5604
        %v6124 = vunpack.c.l.b16 %v5605
        %v6125 = vunpack.c.l.b16 %v5606
        %v6126 = vunpack.c.l.b16 %v5607
        %v6127 = vunpack.c.l.b16 %v5608
        %v6128 = vunpack.c.l.b16 %v5609
        %v6129 = vunpack.c.l.b16 %v5610
        %v6130 = vunpack.c.l.b16 %v5611
        %v6131 = vunpack.c.l.b16 %v5612
        %v6132 = vunpack.c.l.b16 %v5613
        %v6133 = vunpack.c.l.b16 %v5614
        %v6134 = vunpack.c.l.b16 %v5615
        %v6135 = vunpack.c.l.b16 %v5616
        %v6136 = vunpack.c.l.b16 %v5617
        %v6137 = vunpack.c.l.b16 %v5618
        %v6138 = vunpack.c.l.b16 %v5619
        %v6139 = vunpack.c.l.b16 %v5620
        %v6140 = vunpack.c.l.b16 %v5621
        %v6141 = vunpack.c.l.b16 %v5622
        %v6142 = vunpack.c.l.b16 %v5623
        %v6143 = vunpack.c.l.b16 %v5624
        %v6144 = vunpack.c.l.b16 %v5625
        %v6145 = vunpack.c.l.b16 %v5626
        %v6146 = vunpack.c.l.b16 %v5627
        %v6147 = vunpack.c.l.b16 %v5628
        %v6148 = vunpack.c.l.b16 %v5629
        %v6149 = vunpack.c.l.b16 %v5630
        %v6150 = vunpack.c.l.b16 %v5631
        %v6151 = vunpack.c.l.b16 %v5632
        %v6152 = vunpack.c.l.b16 %v5633
        %v6153 = vunpack.c.l.b16 %v5634
        %v6154 = vunpack.c.l.b16 %v5635
        %v6155 = vunpack.c.l.b16 %v5636
        %v6156 = vunpack.c.l.b16 %v5637
        %v6157 = vunpack.c.l.b16 %v5638
        %v6158 = vunpack.c.l.b16 %v5639
        %v6159 = vunpack.c.l.b16 %v5640
        %v6160 = vunpack.c.l.b16 %v5641
        %v6161 = vunpack.c.l.b16 %v5642
        %v6162 = vunpack.c.l.b16 %v5643
        %v6163 = vunpack.c.l.b16 %v5644
        %v6164 = vunpack.c.l.b16 %v5645
        %v6165 = vunpack.c.l.b16 %v5646
        %v6166 = vunpack.c.l.b16 %v5647
        %v6167 = vunpack.c.l.b16 %v5648
        %v6168 = vunpack.c.l.b16 %v5649
        %v6169 = vunpack.c.l.b16 %v5650
        %v6170 = vunpack.c.l.b16 %v5651
        %v6171 = vunpack.c.l.b16 %v5652
        %v6172 = vunpack.c.l.b16 %v5653
        %v6173 = vunpack.c.l.b16 %v5654
        %v6174 = vunpack.c.l.b16 %v5655
        %v6175 = vunpack.c.l.b16 %v5656
        %v6176 = vunpack.c.l.b16 %v5657
        %v6177 = vunpack.c.l.b16 %v5658
        %v6178 = vunpack.c.l.b16 %v5659
        %v6179 = vunpack.c.l.b16 %v5660
        %v6180 = vunpack.c.l.b16 %v5661
        %v6181 = vunpack.c.l.b16 %v5662
        %v6182 = vunpack.c.l.b16 %v5663
        %v6183 = vunpack.c.l.b16 %v5664
        %v6184 = vunpack.c.l.b16 %v5665
        %v6185 = vunpack.c.l.b16 %v5666
        %v6186 = vunpack.c.l.b16 %v5667
        %v6187 = vunpack.c.l.b16 %v5668
        %v6188 = vunpack.c.l.b16 %v5669
        %v6189 = vunpack.c.l.b16 %v5670
        %v6190 = vunpack.c.l.b16 %v5671
        %v6191 = vunpack.c.l.b16 %v5672
        %v6192 = vunpack.c.l.b16 %v5673
        %v6193 = vunpack.c.l.b16 %v5674
        %v6194 = vunpack.c.l.b16 %v5675
        %v6195 = vunpack.c.l.b16 %v5676
        %v6196 = vunpack.c.l.b16 %v5677
        %v6197 = vunpack.c.l.b16 %v5678
        %v6198 = vunpack.c.l.b16 %v5679
        %v6199 = vunpack.c.l.b16 %v5680
        %v6200 = vunpack.c.l.b16 %v5681
        %v6201 = vunpack.c.l.b16 %v5682
        %v6202 = vunpack.c.l.b16 %v5683
        %v6203 = vunpack.c.l.b16 %v5684
        %v6204 = vunpack.c.l.b16 %v5685
        %v6205 = vunpack.c.l.b16 %v5686
        %v6206 = vunpack.c.l.b16 %v5687
        %v6207 = vunpack.c.l.b16 %v5688
        %v6208 = vunpack.c.l.b16 %v5689
        %v6209 = vunpack.c.l.b16 %v5690
        %v6210 = vunpack.c.l.b16 %v5691
        %v6211 = vunpack.c.l.b16 %v5692
        %v6212 = vunpack.c.l.b16 %v5693
        %v6213 = vunpack.c.l.b16 %v5694
        %v6214 = vunpack.c.l.b16 %v5695
        %v6215 = vunpack.c.l.b16 %v5696
        %v6216 = vunpack.c.l.b16 %v5697
        %v6217 = vunpack.c.l.b16 %v5698
        %v6218 = vunpack.c.l.b16 %v5699
        %v6219 = vunpack.c.l.b16 %v5700
        %v6220 = vunpack.c.l.b16 %v5701
        %v6221 = vunpack.c.l.b16 %v5702
        %v6222 = vunpack.c.l.b16 %v5703
        %v6223 = vunpack.c.l.b16 %v5704
        %v6224 = vunpack.c.l.b16 %v5705
        %v6225 = vunpack.c.l.b16 %v5706
        %v6226 = vunpack.c.l.b16 %v5707
        %v6227 = vunpack.c.l.b16 %v5708
        %v6228 = vunpack.c.l.b16 %v5709
        %v6229 = vunpack.c.l.b16 %v5710
        %v6230 = vunpack.c.l.b16 %v5711
        %v6231 = vunpack.c.l.b16 %v5712
        %v6232 = vunpack.c.l.b16 %v5713
        %v6233 = vunpack.c.l.b16 %v5714
        %v6234 = vunpack.c.l.b16 %v5715
        %v6235 = vunpack.c.l.b16 %v5716
        %v6236 = vunpack.c.l.b16 %v5717
        %v6237 = vunpack.c.l.b16 %v5718
        %v6238 = vunpack.c.l.b16 %v5719
        %v6239 = vunpack.c.l.b16 %v5720
        %v6240 = vunpack.c.l.b16 %v5721
        %v6241 = vunpack.c.l.b16 %v5722
        %v6242 = vunpack.c.l.b16 %v5723
        %v6243 = vunpack.c.l.b16 %v5724
        %v6244 = vunpack.c.l.b16 %v5725
        %v6245 = vunpack.c.l.b16 %v5726
        %v6246 = vunpack.c.l.b16 %v5727
        %v6247 = vunpack.c.l.b16 %v5728
        %v6248 = vunpack.c.l.b16 %v5729
        %v6249 = vunpack.c.l.b16 %v5730
        %v6250 = vunpack.c.l.b16 %v5731
        %v6251 = vunpack.c.l.b16 %v5732
        %v6252 = vunpack.c.l.b16 %v5733
        %v6253 = vunpack.c.l.b16 %v5734
        %v6254 = vunpack.c.l.b16 %v5735
        %v6255 = vunpack.c.l.b16 %v5736
        %v6256 = vunpack.c.l.b16 %v5737
        %v6257 = vunpack.c.l.b16 %v5738
        %v6258 = vunpack.c.l.b16 %v5739
        %v6259 = vunpack.c.l.b16 %v5740
        %v6260 = vunpack.c.l.b16 %v5741
        %v6261 = vunpack.c.l.b16 %v5742
        %v6262 = vunpack.c.l.b16 %v5743
        %v6263 = vunpack.c.l.b16 %v5744
        %v6264 = vunpack.c.l.b16 %v5745
        %v6265 = vunpack.c.l.b16 %v5746
        %v6266 = vunpack.c.l.b16 %v5747
        %v6267 = vunpack.c.l.b16 %v5748
        %v6268 = vunpack.c.l.b16 %v5749
        %v6269 = vunpack.c.l.b16 %v5750
        %v6270 = vunpack.c.l.b16 %v5751
        %v6271 = vunpack.c.l.b16 %v5752
        %v6272 = vunpack.c.l.b16 %v5753
        %v6273 = vunpack.c.l.b16 %v5754
        %v6274 = vunpack.c.l.b16 %v5755
        %v6275 = vunpack.c.l.b16 %v5756
        %v6276 = vunpack.c.l.b16 %v5757
        %v6277 = vunpack.c.l.b16 %v5758
        %v6278 = vunpack.c.l.b16 %v5759
        %v6279 = vunpack.c.l.b16 %v5760
        %v6280 = vunpack.c.l.b16 %v5761
        %v6281 = vunpack.c.l.b16 %v5762
        %v6282 = vunpack.c.l.b16 %v5763
        %v6283 = vunpack.c.l.b16 %v5764
        %v6284 = vunpack.c.l.b16 %v5765
        %v6285 = vunpack.c.l.b16 %v5766
        %v6286 = vunpack.c.l.b16 %v5767
        %v6287 = vunpack.c.l.b16 %v5768
        %v6288 = vunpack.c.l.b16 %v5769
        %v6289 = vunpack.c.l.b16 %v5770
        %v6290 = vunpack.c.l.b16 %v5771
        %v6291 = vunpack.c.l.b16 %v5772
        %v6292 = vunpack.c.l.b16 %v5773
        %v6293 = vunpack.c.l.b16 %v5774
        %v6294 = vunpack.c.l.b16 %v5775
        %v6295 = vunpack.c.l.b16 %v5776
        %v6296 = vunpack.c.l.b16 %v5777
        %v6297 = vunpack.c.l.b16 %v5778
        %v6298 = vunpack.c.l.b16 %v5779
        %v6299 = vunpack.c.l.b16 %v5780
        %v6300 = vunpack.c.l.b16 %v5781
        %v6301 = vunpack.c.l.b16 %v5782
        %v6302 = vunpack.c.l.b16 %v5783
        %v6303 = vunpack.c.l.b16 %v5784
        %v6304 = vunpack.c.l.b16 %v5785
        %v6305 = vunpack.c.l.b16 %v5786
        %v6306 = vunpack.c.l.b16 %v5787
        %v6307 = vunpack.c.l.b16 %v5788
        %v6308 = vunpack.c.l.b16 %v5789
        %v6309 = vunpack.c.l.b16 %v5790
        %v6310 = vunpack.c.l.b16 %v5791
        %v6311 = vunpack.c.l.b16 %v5792
        %v6312 = vunpack.c.l.b16 %v5793
        %v6313 = vunpack.c.l.b16 %v5794
        %v6314 = vunpack.c.l.b16 %v5795
        %v6315 = vunpack.c.l.b16 %v5796
        %v6316 = vunpack.c.l.b16 %v5797
        %v6317 = vunpack.c.l.b16 %v5798
        %v6318 = vunpack.c.l.b16 %v5799
        %v6319 = vunpack.c.l.b16 %v5800
        %v6320 = vunpack.c.l.b16 %v5801
        %v6321 = vunpack.c.l.b16 %v5802
        %v6322 = vunpack.c.l.b16 %v5803
        %v6323 = vunpack.c.l.b16 %v5804
        %v6324 = vunpack.c.l.b16 %v5805
        %v6325 = vunpack.c.l.b16 %v5806
        %v6326 = vunpack.c.l.b16 %v5807
        %v6327 = vunpack.c.l.b16 %v5808
        %v6328 = vunpack.c.l.b16 %v5809
        %v6329 = vunpack.c.l.b16 %v5810
        %v6330 = vunpack.c.l.b16 %v5811
        %v6331 = vunpack.c.l.b16 %v5812
        %v6332 = vunpack.c.l.b16 %v5813
        %v6333 = vunpack.c.l.b16 %v5814
        %v6334 = vunpack.c.l.b16 %v5815
        %v6335 = vunpack.c.l.b16 %v5816
        %v6336 = vunpack.c.l.b16 %v5817
        %v6337 = vunpack.c.l.b16 %v5818
        %v6338 = vunpack.c.l.b16 %v5819
        %v6339 = vpack.c.b16 %v6084, %v6083
        %v6340 = vpack.c.b16 %v6086, %v6085
        %v6341 = vpack.c.b16 %v6088, %v6087
        %v6342 = vpack.c.b16 %v6090, %v6089
        %v6343 = vpack.c.b16 %v6092, %v6091
        %v6344 = vpack.c.b16 %v6094, %v6093
        %v6345 = vpack.c.b16 %v6096, %v6095
        %v6346 = vpack.c.b16 %v6098, %v6097
        %v6347 = vpack.c.b16 %v6100, %v6099
        %v6348 = vpack.c.b16 %v6102, %v6101
        %v6349 = vpack.c.b16 %v6104, %v6103
        %v6350 = vpack.c.b16 %v6106, %v6105
        %v6351 = vpack.c.b16 %v6108, %v6107
        %v6352 = vpack.c.b16 %v6110, %v6109
        %v6353 = vpack.c.b16 %v6112, %v6111
        %v6354 = vpack.c.b16 %v6114, %v6113
        %v6355 = vpack.c.b16 %v6116, %v6115
        %v6356 = vpack.c.b16 %v6118, %v6117
        %v6357 = vpack.c.b16 %v6120, %v6119
        %v6358 = vpack.c.b16 %v6122, %v6121
        %v6359 = vpack.c.b16 %v6124, %v6123
        %v6360 = vpack.c.b16 %v6126, %v6125
        %v6361 = vpack.c.b16 %v6128, %v6127
        %v6362 = vpack.c.b16 %v6130, %v6129
        %v6363 = vpack.c.b16 %v6132, %v6131
        %v6364 = vpack.c.b16 %v6134, %v6133
        %v6365 = vpack.c.b16 %v6136, %v6135
        %v6366 = vpack.c.b16 %v6138, %v6137
        %v6367 = vpack.c.b16 %v6140, %v6139
        %v6368 = vpack.c.b16 %v6142, %v6141
        %v6369 = vpack.c.b16 %v6144, %v6143
        %v6370 = vpack.c.b16 %v6146, %v6145
        %v6371 = vpack.c.b16 %v6148, %v6147
        %v6372 = vpack.c.b16 %v6150, %v6149
        %v6373 = vpack.c.b16 %v6152, %v6151
        %v6374 = vpack.c.b16 %v6154, %v6153
        %v6375 = vpack.c.b16 %v6156, %v6155
        %v6376 = vpack.c.b16 %v6158, %v6157
        %v6377 = vpack.c.b16 %v6160, %v6159
        %v6378 = vpack.c.b16 %v6162, %v6161
        %v6379 = vpack.c.b16 %v6164, %v6163
        %v6380 = vpack.c.b16 %v6166, %v6165
        %v6381 = vpack.c.b16 %v6168, %v6167
        %v6382 = vpack.c.b16 %v6170, %v6169
        %v6383 = vpack.c.b16 %v6172, %v6171
        %v6384 = vpack.c.b16 %v6174, %v6173
        %v6385 = vpack.c.b16 %v6176, %v6175
        %v6386 = vpack.c.b16 %v6178, %v6177
        %v6387 = vpack.c.b16 %v6180, %v6179
        %v6388 = vpack.c.b16 %v6182, %v6181
        %v6389 = vpack.c.b16 %v6184, %v6183
        %v6390 = vpack.c.b16 %v6186, %v6185
        %v6391 = vpack.c.b16 %v6188, %v6187
        %v6392 = vpack.c.b16 %v6190, %v6189
        %v6393 = vpack.c.b16 %v6192, %v6191
        %v6394 = vpack.c.b16 %v6194, %v6193
        %v6395 = vpack.c.b16 %v6196, %v6195
        %v6396 = vpack.c.b16 %v6198, %v6197
        %v6397 = vpack.c.b16 %v6200, %v6199
        %v6398 = vpack.c.b16 %v6202, %v6201
        %v6399 = vpack.c.b16 %v6204, %v6203
        %v6400 = vpack.c.b16 %v6206, %v6205
        %v6401 = vpack.c.b16 %v6208, %v6207
        %v6402 = vpack.c.b16 %v6210, %v6209
        %v6403 = vpack.c.b16 %v6212, %v6211
        %v6404 = vpack.c.b16 %v6214, %v6213
        %v6405 = vpack.c.b16 %v6216, %v6215
        %v6406 = vpack.c.b16 %v6218, %v6217
        %v6407 = vpack.c.b16 %v6220, %v6219
        %v6408 = vpack.c.b16 %v6222, %v6221
        %v6409 = vpack.c.b16 %v6224, %v6223
        %v6410 = vpack.c.b16 %v6226, %v6225
        %v6411 = vpack.c.b16 %v6228, %v6227
        %v6412 = vpack.c.b16 %v6230, %v6229
        %v6413 = vpack.c.b16 %v6232, %v6231
        %v6414 = vpack.c.b16 %v6234, %v6233
        %v6415 = vpack.c.b16 %v6236, %v6235
        %v6416 = vpack.c.b16 %v6238, %v6237
        %v6417 = vpack.c.b16 %v6240, %v6239
        %v6418 = vpack.c.b16 %v6242, %v6241
        %v6419 = vpack.c.b16 %v6244, %v6243
        %v6420 = vpack.c.b16 %v6246, %v6245
        %v6421 = vpack.c.b16 %v6248, %v6247
        %v6422 = vpack.c.b16 %v6250, %v6249
        %v6423 = vpack.c.b16 %v6252, %v6251
        %v6424 = vpack.c.b16 %v6254, %v6253
        %v6425 = vpack.c.b16 %v6256, %v6255
        %v6426 = vpack.c.b16 %v6258, %v6257
        %v6427 = vpack.c.b16 %v6260, %v6259
        %v6428 = vpack.c.b16 %v6262, %v6261
        %v6429 = vpack.c.b16 %v6264, %v6263
        %v6430 = vpack.c.b16 %v6266, %v6265
        %v6431 = vpack.c.b16 %v6268, %v6267
        %v6432 = vpack.c.b16 %v6270, %v6269
        %v6433 = vpack.c.b16 %v6272, %v6271
        %v6434 = vpack.c.b16 %v6274, %v6273
        %v6435 = vpack.c.b16 %v6276, %v6275
        %v6436 = vpack.c.b16 %v6278, %v6277
        %v6437 = vpack.c.b16 %v6280, %v6279
        %v6438 = vpack.c.b16 %v6282, %v6281
        %v6439 = vpack.c.b16 %v6284, %v6283
        %v6440 = vpack.c.b16 %v6286, %v6285
        %v6441 = vpack.c.b16 %v6288, %v6287
        %v6442 = vpack.c.b16 %v6290, %v6289
        %v6443 = vpack.c.b16 %v6292, %v6291
        %v6444 = vpack.c.b16 %v6294, %v6293
        %v6445 = vpack.c.b16 %v6296, %v6295
        %v6446 = vpack.c.b16 %v6298, %v6297
        %v6447 = vpack.c.b16 %v6300, %v6299
        %v6448 = vpack.c.b16 %v6302, %v6301
        %v6449 = vpack.c.b16 %v6304, %v6303
        %v6450 = vpack.c.b16 %v6306, %v6305
        %v6451 = vpack.c.b16 %v6308, %v6307
        %v6452 = vpack.c.b16 %v6310, %v6309
        %v6453 = vpack.c.b16 %v6312, %v6311
        %v6454 = vpack.c.b16 %v6314, %v6313
        %v6455 = vpack.c.b16 %v6316, %v6315
        %v6456 = vpack.c.b16 %v6318, %v6317
        %v6457 = vpack.c.b16 %v6320, %v6319
        %v6458 = vpack.c.b16 %v6322, %v6321
        %v6459 = vpack.c.b16 %v6324, %v6323
        %v6460 = vpack.c.b16 %v6326, %v6325
        %v6461 = vpack.c.b16 %v6328, %v6327
        %v6462 = vpack.c.b16 %v6330, %v6329
        %v6463 = vpack.c.b16 %v6332, %v6331
        %v6464 = vpack.c.b16 %v6334, %v6333
        %v6465 = vpack.c.b16 %v6336, %v6335
        %v6466 = vpack.c.b16 %v6338, %v6337
        %6595 = vmatprep.subr.bf16.mxu0 0
        %6596 = vmatpush1.bf16.msra.mxu0 %v6339
        %6597 = vmatprep.subr.bf16.mxu0 0
        %6598 = vmatpush1.bf16.msra.mxu0 %v6340
        %6599 = vmatprep.subr.bf16.mxu0 0
        %6600 = vmatpush1.bf16.msra.mxu0 %v6341
        %6601 = vmatprep.subr.bf16.mxu0 0
        %6602 = vmatpush1.bf16.msra.mxu0 %v6342
        %6603 = vmatprep.subr.bf16.mxu0 0
        %6604 = vmatpush1.bf16.msra.mxu0 %v6343
        %6605 = vmatprep.subr.bf16.mxu0 0
        %6606 = vmatpush1.bf16.msra.mxu0 %v6344
        %6607 = vmatprep.subr.bf16.mxu0 0
        %6608 = vmatpush1.bf16.msra.mxu0 %v6345
        %6609 = vmatprep.subr.bf16.mxu0 0
        %6610 = vmatpush1.bf16.msra.mxu0 %v6346
        %6611 = vmatprep.subr.bf16.mxu0 0
        %6612 = vmatpush1.bf16.msra.mxu0 %v6347
        %6613 = vmatprep.subr.bf16.mxu0 0
        %6614 = vmatpush1.bf16.msra.mxu0 %v6348
        %6615 = vmatprep.subr.bf16.mxu0 0
        %6616 = vmatpush1.bf16.msra.mxu0 %v6349
        %6617 = vmatprep.subr.bf16.mxu0 0
        %6618 = vmatpush1.bf16.msra.mxu0 %v6350
        %6619 = vmatprep.subr.bf16.mxu0 0
        %6620 = vmatpush1.bf16.msra.mxu0 %v6351
        %6621 = vmatprep.subr.bf16.mxu0 0
        %6622 = vmatpush1.bf16.msra.mxu0 %v6352
        %6623 = vmatprep.subr.bf16.mxu0 0
        %6624 = vmatpush1.bf16.msra.mxu0 %v6353
        %6625 = vmatprep.subr.bf16.mxu0 0
        %6626 = vmatpush1.bf16.msra.mxu0 %v6354
        %6627 = vmatprep.mubr.bf16.mxu0 %v5437
        %6628 = vmatmul.mubr.bf16.gmra.mrb[0].mxu0 %v5436
        %v6629 = vpop.f32.mrb[0].mxu0
        %v6630 = vadd.f32 %v5825, %v6629
        %v6631 = vpop.f32.mrb[0].mxu0
        %v6632 = vpop.f32.mrb[0].mxu0
        %v6633 = vadd.f32 %v5825, %v6632
        %v6634 = vpop.f32.mrb[0].mxu0
        %6635 = vmatprep.mubr.bf16.mxu0 %v5453
        %6636 = vmatmul.mubr.bf16.gmra.mrb[0].mxu0 %v5452
        %v6637 = vpop.f32.mrb[0].mxu0
        %v6638 = vadd.f32 %v5825, %v6637
        %v6639 = vpop.f32.mrb[0].mxu0
        %v6640 = vpop.f32.mrb[0].mxu0
        %v6641 = vadd.f32 %v5825, %v6640
        %v6642 = vpop.f32.mrb[0].mxu0
        %6643 = vmatprep.mubr.bf16.mxu0 %v5469
        %6644 = vmatmul.mubr.bf16.gmra.mrb[0].mxu0 %v5468
        %v6645 = vpop.f32.mrb[0].mxu0
        %v6646 = vadd.f32 %v5825, %v6645
        %v6647 = vpop.f32.mrb[0].mxu0
        %v6648 = vpop.f32.mrb[0].mxu0
        %v6649 = vadd.f32 %v5825, %v6648
        %v6650 = vpop.f32.mrb[0].mxu0
        %6651 = vmatprep.mubr.bf16.mxu0 %v5485
        %6652 = vmatmul.mubr.bf16.gmra.mrb[0].mxu0 %v5484
        %v6653 = vpop.f32.mrb[0].mxu0
        %v6654 = vadd.f32 %v5825, %v6653
        %v6655 = vpop.f32.mrb[0].mxu0
        %v6656 = vpop.f32.mrb[0].mxu0
        %v6657 = vadd.f32 %v5825, %v6656
        %v6658 = vpop.f32.mrb[0].mxu0
        %6659 = vmatprep.mubr.bf16.mxu0 %v5501
        %6660 = vmatmul.mubr.bf16.gmra.mrb[0].mxu0 %v5500
        %v6661 = vpop.f32.mrb[0].mxu0
        %v6662 = vadd.f32 %v5825, %v6661
        %v6663 = vpop.f32.mrb[0].mxu0
        %v6664 = vpop.f32.mrb[0].mxu0
        %v6665 = vadd.f32 %v5825, %v6664
        %v6666 = vpop.f32.mrb[0].mxu0
        %6667 = vmatprep.mubr.bf16.mxu0 %v5517
        %6668 = vmatmul.mubr.bf16.gmra.mrb[0].mxu0 %v5516
        %v6669 = vpop.f32.mrb[0].mxu0
        %v6670 = vadd.f32 %v5825, %v6669
        %v6671 = vpop.f32.mrb[0].mxu0
        %v6672 = vpop.f32.mrb[0].mxu0
        %v6673 = vadd.f32 %v5825, %v6672
        %v6674 = vpop.f32.mrb[0].mxu0
        %6675 = vmatprep.mubr.bf16.mxu0 %v5533
        %6676 = vmatmul.mubr.bf16.gmra.mrb[0].mxu0 %v5532
        %v6677 = vpop.f32.mrb[0].mxu0
        %v6678 = vadd.f32 %v5825, %v6677
        %v6679 = vpop.f32.mrb[0].mxu0
        %v6680 = vpop.f32.mrb[0].mxu0
        %v6681 = vadd.f32 %v5825, %v6680
        %v6682 = vpop.f32.mrb[0].mxu0
        %6683 = vmatprep.mubr.bf16.mxu0 %v5549
        %6684 = vmatmul.mubr.bf16.gmra.mrb[0].mxu0 %v5548
        %v6685 = vpop.f32.mrb[0].mxu0
        %v6686 = vadd.f32 %v5825, %v6685
        %v6687 = vpop.f32.mrb[0].mxu0
        %v6688 = vpop.f32.mrb[0].mxu0
        %v6689 = vadd.f32 %v5825, %v6688
        %v6690 = vpop.f32.mrb[0].mxu0
        %6691 = vdwg.mxu0
        %6692 = vmatprep.subr.bf16.mxu0 0
        %6693 = vmatpush1.bf16.msra.mxu0 %v6355
        %6694 = vmatprep.subr.bf16.mxu0 0
        %6695 = vmatpush1.bf16.msra.mxu0 %v6356
        %6696 = vmatprep.subr.bf16.mxu0 0
        %6697 = vmatpush1.bf16.msra.mxu0 %v6357
        %6698 = vmatprep.subr.bf16.mxu0 0
        %6699 = vmatpush1.bf16.msra.mxu0 %v6358
        %6700 = vmatprep.subr.bf16.mxu0 0
        %6701 = vmatpush1.bf16.msra.mxu0 %v6359
        %6702 = vmatprep.subr.bf16.mxu0 0
        %6703 = vmatpush1.bf16.msra.mxu0 %v6360
        %6704 = vmatprep.subr.bf16.mxu0 0
        %6705 = vmatpush1.bf16.msra.mxu0 %v6361
        %6706 = vmatprep.subr.bf16.mxu0 0
        %6707 = vmatpush1.bf16.msra.mxu0 %v6362
        %6708 = vmatprep.subr.bf16.mxu0 0
        %6709 = vmatpush1.bf16.msra.mxu0 %v6363
        %6710 = vmatprep.subr.bf16.mxu0 0
        %6711 = vmatpush1.bf16.msra.mxu0 %v6364
        %6712 = vmatprep.subr.bf16.mxu0 0
        %6713 = vmatpush1.bf16.msra.mxu0 %v6365
        %6714 = vmatprep.subr.bf16.mxu0 0
        %6715 = vmatpush1.bf16.msra.mxu0 %v6366
        %6716 = vmatprep.subr.bf16.mxu0 0
        %6717 = vmatpush1.bf16.msra.mxu0 %v6367
        %6718 = vmatprep.subr.bf16.mxu0 0
        %6719 = vmatpush1.bf16.msra.mxu0 %v6368
        %6720 = vmatprep.subr.bf16.mxu0 0
        %6721 = vmatpush1.bf16.msra.mxu0 %v6369
        %6722 = vmatprep.subr.bf16.mxu0 0
        %6723 = vmatpush1.bf16.msra.mxu0 %v6370
        %6724 = vmatprep.mubr.bf16.mxu0 %v5439
        %6725 = vmatmul.mubr.bf16.gmra.mrb[0].mxu0 %v5438
        %v6726 = vpop.f32.mrb[0].mxu0
        %v6727 = vadd.f32 %v6630, %v6726
        %v6728 = vpop.f32.mrb[0].mxu0
        %v6729 = vpop.f32.mrb[0].mxu0
        %v6730 = vadd.f32 %v6633, %v6729
        %v6731 = vpop.f32.mrb[0].mxu0
        %6732 = vmatprep.mubr.bf16.mxu0 %v5455
        %6733 = vmatmul.mubr.bf16.gmra.mrb[0].mxu0 %v5454
        %v6734 = vpop.f32.mrb[0].mxu0
        %v6735 = vadd.f32 %v6638, %v6734
        %v6736 = vpop.f32.mrb[0].mxu0
        %v6737 = vpop.f32.mrb[0].mxu0
        %v6738 = vadd.f32 %v6641, %v6737
        %v6739 = vpop.f32.mrb[0].mxu0
        %6740 = vmatprep.mubr.bf16.mxu0 %v5471
        %6741 = vmatmul.mubr.bf16.gmra.mrb[0].mxu0 %v5470
        %v6742 = vpop.f32.mrb[0].mxu0
        %v6743 = vadd.f32 %v6646, %v6742
        %v6744 = vpop.f32.mrb[0].mxu0
        %v6745 = vpop.f32.mrb[0].mxu0
        %v6746 = vadd.f32 %v6649, %v6745
        %v6747 = vpop.f32.mrb[0].mxu0
        %6748 = vmatprep.mubr.bf16.mxu0 %v5487
        %6749 = vmatmul.mubr.bf16.gmra.mrb[0].mxu0 %v5486
        %v6750 = vpop.f32.mrb[0].mxu0
        %v6751 = vadd.f32 %v6654, %v6750
        %v6752 = vpop.f32.mrb[0].mxu0
        %v6753 = vpop.f32.mrb[0].mxu0
        %v6754 = vadd.f32 %v6657, %v6753
        %v6755 = vpop.f32.mrb[0].mxu0
        %6756 = vmatprep.mubr.bf16.mxu0 %v5503
        %6757 = vmatmul.mubr.bf16.gmra.mrb[0].mxu0 %v5502
        %v6758 = vpop.f32.mrb[0].mxu0
        %v6759 = vadd.f32 %v6662, %v6758
        %v6760 = vpop.f32.mrb[0].mxu0
        %v6761 = vpop.f32.mrb[0].mxu0
        %v6762 = vadd.f32 %v6665, %v6761
        %v6763 = vpop.f32.mrb[0].mxu0
        %6764 = vmatprep.mubr.bf16.mxu0 %v5519
        %6765 = vmatmul.mubr.bf16.gmra.mrb[0].mxu0 %v5518
        %v6766 = vpop.f32.mrb[0].mxu0
        %v6767 = vadd.f32 %v6670, %v6766
        %v6768 = vpop.f32.mrb[0].mxu0
        %v6769 = vpop.f32.mrb[0].mxu0
        %v6770 = vadd.f32 %v6673, %v6769
        %v6771 = vpop.f32.mrb[0].mxu0
        %6772 = vmatprep.mubr.bf16.mxu0 %v5535
        %6773 = vmatmul.mubr.bf16.gmra.mrb[0].mxu0 %v5534
        %v6774 = vpop.f32.mrb[0].mxu0
        %v6775 = vadd.f32 %v6678, %v6774
        %v6776 = vpop.f32.mrb[0].mxu0
        %v6777 = vpop.f32.mrb[0].mxu0
        %v6778 = vadd.f32 %v6681, %v6777
        %v6779 = vpop.f32.mrb[0].mxu0
        %6780 = vmatprep.mubr.bf16.mxu0 %v5551
        %6781 = vmatmul.mubr.bf16.gmra.mrb[0].mxu0 %v5550
        %v6782 = vpop.f32.mrb[0].mxu0
        %v6783 = vadd.f32 %v6686, %v6782
        %v6784 = vpop.f32.mrb[0].mxu0
        %v6785 = vpop.f32.mrb[0].mxu0
        %v6786 = vadd.f32 %v6689, %v6785
        %v6787 = vpop.f32.mrb[0].mxu0
        %6788 = vdwg.mxu0
        %6789 = vmatprep.subr.bf16.mxu0 0
        %6790 = vmatpush1.bf16.msra.mxu0 %v6371
        %6791 = vmatprep.subr.bf16.mxu0 0
        %6792 = vmatpush1.bf16.msra.mxu0 %v6372
        %6793 = vmatprep.subr.bf16.mxu0 0
        %6794 = vmatpush1.bf16.msra.mxu0 %v6373
        %6795 = vmatprep.subr.bf16.mxu0 0
        %6796 = vmatpush1.bf16.msra.mxu0 %v6374
        %6797 = vmatprep.subr.bf16.mxu0 0
        %6798 = vmatpush1.bf16.msra.mxu0 %v6375
        %6799 = vmatprep.subr.bf16.mxu0 0
        %6800 = vmatpush1.bf16.msra.mxu0 %v6376
        %6801 = vmatprep.subr.bf16.mxu0 0
        %6802 = vmatpush1.bf16.msra.mxu0 %v6377
        %6803 = vmatprep.subr.bf16.mxu0 0
        %6804 = vmatpush1.bf16.msra.mxu0 %v6378
        %6805 = vmatprep.subr.bf16.mxu0 0
        %6806 = vmatpush1.bf16.msra.mxu0 %v6379
        %6807 = vmatprep.subr.bf16.mxu0 0
        %6808 = vmatpush1.bf16.msra.mxu0 %v6380
        %6809 = vmatprep.subr.bf16.mxu0 0
        %6810 = vmatpush1.bf16.msra.mxu0 %v6381
        %6811 = vmatprep.subr.bf16.mxu0 0
        %6812 = vmatpush1.bf16.msra.mxu0 %v6382
        %6813 = vmatprep.subr.bf16.mxu0 0
        %6814 = vmatpush1.bf16.msra.mxu0 %v6383
        %6815 = vmatprep.subr.bf16.mxu0 0
        %6816 = vmatpush1.bf16.msra.mxu0 %v6384
        %6817 = vmatprep.subr.bf16.mxu0 0
        %6818 = vmatpush1.bf16.msra.mxu0 %v6385
        %6819 = vmatprep.subr.bf16.mxu0 0
        %6820 = vmatpush1.bf16.msra.mxu0 %v6386
        %6821 = vmatprep.mubr.bf16.mxu0 %v5441
        %6822 = vmatmul.mubr.bf16.gmra.mrb[0].mxu0 %v5440
        %v6823 = vpop.f32.mrb[0].mxu0
        %v6824 = vadd.f32 %v6727, %v6823
        %v6825 = vpop.f32.mrb[0].mxu0
        %v6826 = vpop.f32.mrb[0].mxu0
        %v6827 = vadd.f32 %v6730, %v6826
        %v6828 = vpop.f32.mrb[0].mxu0
        %6829 = vmatprep.mubr.bf16.mxu0 %v5457
        %6830 = vmatmul.mubr.bf16.gmra.mrb[0].mxu0 %v5456
        %v6831 = vpop.f32.mrb[0].mxu0
        %v6832 = vadd.f32 %v6735, %v6831
        %v6833 = vpop.f32.mrb[0].mxu0
        %v6834 = vpop.f32.mrb[0].mxu0
        %v6835 = vadd.f32 %v6738, %v6834
        %v6836 = vpop.f32.mrb[0].mxu0
        %6837 = vmatprep.mubr.bf16.mxu0 %v5473
        %6838 = vmatmul.mubr.bf16.gmra.mrb[0].mxu0 %v5472
        %v6839 = vpop.f32.mrb[0].mxu0
        %v6840 = vadd.f32 %v6743, %v6839
        %v6841 = vpop.f32.mrb[0].mxu0
        %v6842 = vpop.f32.mrb[0].mxu0
        %v6843 = vadd.f32 %v6746, %v6842
        %v6844 = vpop.f32.mrb[0].mxu0
        %6845 = vmatprep.mubr.bf16.mxu0 %v5489
        %6846 = vmatmul.mubr.bf16.gmra.mrb[0].mxu0 %v5488
        %v6847 = vpop.f32.mrb[0].mxu0
        %v6848 = vadd.f32 %v6751, %v6847
        %v6849 = vpop.f32.mrb[0].mxu0
        %v6850 = vpop.f32.mrb[0].mxu0
        %v6851 = vadd.f32 %v6754, %v6850
        %v6852 = vpop.f32.mrb[0].mxu0
        %6853 = vmatprep.mubr.bf16.mxu0 %v5505
        %6854 = vmatmul.mubr.bf16.gmra.mrb[0].mxu0 %v5504
        %v6855 = vpop.f32.mrb[0].mxu0
        %v6856 = vadd.f32 %v6759, %v6855
        %v6857 = vpop.f32.mrb[0].mxu0
        %v6858 = vpop.f32.mrb[0].mxu0
        %v6859 = vadd.f32 %v6762, %v6858
        %v6860 = vpop.f32.mrb[0].mxu0
        %6861 = vmatprep.mubr.bf16.mxu0 %v5521
        %6862 = vmatmul.mubr.bf16.gmra.mrb[0].mxu0 %v5520
        %v6863 = vpop.f32.mrb[0].mxu0
        %v6864 = vadd.f32 %v6767, %v6863
        %v6865 = vpop.f32.mrb[0].mxu0
        %v6866 = vpop.f32.mrb[0].mxu0
        %v6867 = vadd.f32 %v6770, %v6866
        %v6868 = vpop.f32.mrb[0].mxu0
        %6869 = vmatprep.mubr.bf16.mxu0 %v5537
        %6870 = vmatmul.mubr.bf16.gmra.mrb[0].mxu0 %v5536
        %v6871 = vpop.f32.mrb[0].mxu0
        %v6872 = vadd.f32 %v6775, %v6871
        %v6873 = vpop.f32.mrb[0].mxu0
        %v6874 = vpop.f32.mrb[0].mxu0
        %v6875 = vadd.f32 %v6778, %v6874
        %v6876 = vpop.f32.mrb[0].mxu0
        %6877 = vmatprep.mubr.bf16.mxu0 %v5553
        %6878 = vmatmul.mubr.bf16.gmra.mrb[0].mxu0 %v5552
        %v6879 = vpop.f32.mrb[0].mxu0
        %v6880 = vadd.f32 %v6783, %v6879
        %v6881 = vpop.f32.mrb[0].mxu0
        %v6882 = vpop.f32.mrb[0].mxu0
        %v6883 = vadd.f32 %v6786, %v6882
        %v6884 = vpop.f32.mrb[0].mxu0
        %6885 = vdwg.mxu0
        %6886 = vmatprep.subr.bf16.mxu0 0
        %6887 = vmatpush1.bf16.msra.mxu0 %v6387
        %6888 = vmatprep.subr.bf16.mxu0 0
        %6889 = vmatpush1.bf16.msra.mxu0 %v6388
        %6890 = vmatprep.subr.bf16.mxu0 0
        %6891 = vmatpush1.bf16.msra.mxu0 %v6389
        %6892 = vmatprep.subr.bf16.mxu0 0
        %6893 = vmatpush1.bf16.msra.mxu0 %v6390
        %6894 = vmatprep.subr.bf16.mxu0 0
        %6895 = vmatpush1.bf16.msra.mxu0 %v6391
        %6896 = vmatprep.subr.bf16.mxu0 0
        %6897 = vmatpush1.bf16.msra.mxu0 %v6392
        %6898 = vmatprep.subr.bf16.mxu0 0
        %6899 = vmatpush1.bf16.msra.mxu0 %v6393
        %6900 = vmatprep.subr.bf16.mxu0 0
        %6901 = vmatpush1.bf16.msra.mxu0 %v6394
        %6902 = vmatprep.subr.bf16.mxu0 0
        %6903 = vmatpush1.bf16.msra.mxu0 %v6395
        %6904 = vmatprep.subr.bf16.mxu0 0
        %6905 = vmatpush1.bf16.msra.mxu0 %v6396
        %6906 = vmatprep.subr.bf16.mxu0 0
        %6907 = vmatpush1.bf16.msra.mxu0 %v6397
        %6908 = vmatprep.subr.bf16.mxu0 0
        %6909 = vmatpush1.bf16.msra.mxu0 %v6398
        %6910 = vmatprep.subr.bf16.mxu0 0
        %6911 = vmatpush1.bf16.msra.mxu0 %v6399
        %6912 = vmatprep.subr.bf16.mxu0 0
        %6913 = vmatpush1.bf16.msra.mxu0 %v6400
        %6914 = vmatprep.subr.bf16.mxu0 0
        %6915 = vmatpush1.bf16.msra.mxu0 %v6401
        %6916 = vmatprep.subr.bf16.mxu0 0
        %6917 = vmatpush1.bf16.msra.mxu0 %v6402
        %6918 = vmatprep.mubr.bf16.mxu0 %v5443
        %6919 = vmatmul.mubr.bf16.gmra.mrb[0].mxu0 %v5442
        %v6920 = vpop.f32.mrb[0].mxu0
        %v6921 = vadd.f32 %v6824, %v6920
        %v6922 = vpop.f32.mrb[0].mxu0
        %v6923 = vpop.f32.mrb[0].mxu0
        %v6924 = vadd.f32 %v6827, %v6923
        %v6925 = vpop.f32.mrb[0].mxu0
        %6926 = vmatprep.mubr.bf16.mxu0 %v5459
        %6927 = vmatmul.mubr.bf16.gmra.mrb[0].mxu0 %v5458
        %v6928 = vpop.f32.mrb[0].mxu0
        %v6929 = vadd.f32 %v6832, %v6928
        %v6930 = vpop.f32.mrb[0].mxu0
        %v6931 = vpop.f32.mrb[0].mxu0
        %v6932 = vadd.f32 %v6835, %v6931
        %v6933 = vpop.f32.mrb[0].mxu0
        %6934 = vmatprep.mubr.bf16.mxu0 %v5475
        %6935 = vmatmul.mubr.bf16.gmra.mrb[0].mxu0 %v5474
        %v6936 = vpop.f32.mrb[0].mxu0
        %v6937 = vadd.f32 %v6840, %v6936
        %v6938 = vpop.f32.mrb[0].mxu0
        %v6939 = vpop.f32.mrb[0].mxu0
        %v6940 = vadd.f32 %v6843, %v6939
        %v6941 = vpop.f32.mrb[0].mxu0
        %6942 = vmatprep.mubr.bf16.mxu0 %v5491
        %6943 = vmatmul.mubr.bf16.gmra.mrb[0].mxu0 %v5490
        %v6944 = vpop.f32.mrb[0].mxu0
        %v6945 = vadd.f32 %v6848, %v6944
        %v6946 = vpop.f32.mrb[0].mxu0
        %v6947 = vpop.f32.mrb[0].mxu0
        %v6948 = vadd.f32 %v6851, %v6947
        %v6949 = vpop.f32.mrb[0].mxu0
        %6950 = vmatprep.mubr.bf16.mxu0 %v5507
        %6951 = vmatmul.mubr.bf16.gmra.mrb[0].mxu0 %v5506
        %v6952 = vpop.f32.mrb[0].mxu0
        %v6953 = vadd.f32 %v6856, %v6952
        %v6954 = vpop.f32.mrb[0].mxu0
        %v6955 = vpop.f32.mrb[0].mxu0
        %v6956 = vadd.f32 %v6859, %v6955
        %v6957 = vpop.f32.mrb[0].mxu0
        %6958 = vmatprep.mubr.bf16.mxu0 %v5523
        %6959 = vmatmul.mubr.bf16.gmra.mrb[0].mxu0 %v5522
        %v6960 = vpop.f32.mrb[0].mxu0
        %v6961 = vadd.f32 %v6864, %v6960
        %v6962 = vpop.f32.mrb[0].mxu0
        %v6963 = vpop.f32.mrb[0].mxu0
        %v6964 = vadd.f32 %v6867, %v6963
        %v6965 = vpop.f32.mrb[0].mxu0
        %6966 = vmatprep.mubr.bf16.mxu0 %v5539
        %6967 = vmatmul.mubr.bf16.gmra.mrb[0].mxu0 %v5538
        %v6968 = vpop.f32.mrb[0].mxu0
        %v6969 = vadd.f32 %v6872, %v6968
        %v6970 = vpop.f32.mrb[0].mxu0
        %v6971 = vpop.f32.mrb[0].mxu0
        %v6972 = vadd.f32 %v6875, %v6971
        %v6973 = vpop.f32.mrb[0].mxu0
        %6974 = vmatprep.mubr.bf16.mxu0 %v5555
        %6975 = vmatmul.mubr.bf16.gmra.mrb[0].mxu0 %v5554
        %v6976 = vpop.f32.mrb[0].mxu0
        %v6977 = vadd.f32 %v6880, %v6976
        %v6978 = vpop.f32.mrb[0].mxu0
        %v6979 = vpop.f32.mrb[0].mxu0
        %v6980 = vadd.f32 %v6883, %v6979
        %v6981 = vpop.f32.mrb[0].mxu0
        %6982 = vdwg.mxu0
        %6983 = vmatprep.subr.bf16.mxu0 0
        %6984 = vmatpush1.bf16.msra.mxu0 %v6403
        %6985 = vmatprep.subr.bf16.mxu0 0
        %6986 = vmatpush1.bf16.msra.mxu0 %v6404
        %6987 = vmatprep.subr.bf16.mxu0 0
        %6988 = vmatpush1.bf16.msra.mxu0 %v6405
        %6989 = vmatprep.subr.bf16.mxu0 0
        %6990 = vmatpush1.bf16.msra.mxu0 %v6406
        %6991 = vmatprep.subr.bf16.mxu0 0
        %6992 = vmatpush1.bf16.msra.mxu0 %v6407
        %6993 = vmatprep.subr.bf16.mxu0 0
        %6994 = vmatpush1.bf16.msra.mxu0 %v6408
        %6995 = vmatprep.subr.bf16.mxu0 0
        %6996 = vmatpush1.bf16.msra.mxu0 %v6409
        %6997 = vmatprep.subr.bf16.mxu0 0
        %6998 = vmatpush1.bf16.msra.mxu0 %v6410
        %6999 = vmatprep.subr.bf16.mxu0 0
        %7000 = vmatpush1.bf16.msra.mxu0 %v6411
        %7001 = vmatprep.subr.bf16.mxu0 0
        %7002 = vmatpush1.bf16.msra.mxu0 %v6412
        %7003 = vmatprep.subr.bf16.mxu0 0
        %7004 = vmatpush1.bf16.msra.mxu0 %v6413
        %7005 = vmatprep.subr.bf16.mxu0 0
        %7006 = vmatpush1.bf16.msra.mxu0 %v6414
        %7007 = vmatprep.subr.bf16.mxu0 0
        %7008 = vmatpush1.bf16.msra.mxu0 %v6415
        %7009 = vmatprep.subr.bf16.mxu0 0
        %7010 = vmatpush1.bf16.msra.mxu0 %v6416
        %7011 = vmatprep.subr.bf16.mxu0 0
        %7012 = vmatpush1.bf16.msra.mxu0 %v6417
        %7013 = vmatprep.subr.bf16.mxu0 0
        %7014 = vmatpush1.bf16.msra.mxu0 %v6418
        %7015 = vmatprep.mubr.bf16.mxu0 %v5445
        %7016 = vmatmul.mubr.bf16.gmra.mrb[0].mxu0 %v5444
        %v7017 = vpop.f32.mrb[0].mxu0
        %v7018 = vadd.f32 %v6921, %v7017
        %v7019 = vpop.f32.mrb[0].mxu0
        %v7020 = vpop.f32.mrb[0].mxu0
        %v7021 = vadd.f32 %v6924, %v7020
        %v7022 = vpop.f32.mrb[0].mxu0
        %7023 = vmatprep.mubr.bf16.mxu0 %v5461
        %7024 = vmatmul.mubr.bf16.gmra.mrb[0].mxu0 %v5460
        %v7025 = vpop.f32.mrb[0].mxu0
        %v7026 = vadd.f32 %v6929, %v7025
        %v7027 = vpop.f32.mrb[0].mxu0
        %v7028 = vpop.f32.mrb[0].mxu0
        %v7029 = vadd.f32 %v6932, %v7028
        %v7030 = vpop.f32.mrb[0].mxu0
        %7031 = vmatprep.mubr.bf16.mxu0 %v5477
        %7032 = vmatmul.mubr.bf16.gmra.mrb[0].mxu0 %v5476
        %v7033 = vpop.f32.mrb[0].mxu0
        %v7034 = vadd.f32 %v6937, %v7033
        %v7035 = vpop.f32.mrb[0].mxu0
        %v7036 = vpop.f32.mrb[0].mxu0
        %v7037 = vadd.f32 %v6940, %v7036
        %v7038 = vpop.f32.mrb[0].mxu0
        %7039 = vmatprep.mubr.bf16.mxu0 %v5493
        %7040 = vmatmul.mubr.bf16.gmra.mrb[0].mxu0 %v5492
        %v7041 = vpop.f32.mrb[0].mxu0
        %v7042 = vadd.f32 %v6945, %v7041
        %v7043 = vpop.f32.mrb[0].mxu0
        %v7044 = vpop.f32.mrb[0].mxu0
        %v7045 = vadd.f32 %v6948, %v7044
        %v7046 = vpop.f32.mrb[0].mxu0
        %7047 = vmatprep.mubr.bf16.mxu0 %v5509
        %7048 = vmatmul.mubr.bf16.gmra.mrb[0].mxu0 %v5508
        %v7049 = vpop.f32.mrb[0].mxu0
        %v7050 = vadd.f32 %v6953, %v7049
        %v7051 = vpop.f32.mrb[0].mxu0
        %v7052 = vpop.f32.mrb[0].mxu0
        %v7053 = vadd.f32 %v6956, %v7052
        %v7054 = vpop.f32.mrb[0].mxu0
        %7055 = vmatprep.mubr.bf16.mxu0 %v5525
        %7056 = vmatmul.mubr.bf16.gmra.mrb[0].mxu0 %v5524
        %v7057 = vpop.f32.mrb[0].mxu0
        %v7058 = vadd.f32 %v6961, %v7057
        %v7059 = vpop.f32.mrb[0].mxu0
        %v7060 = vpop.f32.mrb[0].mxu0
        %v7061 = vadd.f32 %v6964, %v7060
        %v7062 = vpop.f32.mrb[0].mxu0
        %7063 = vmatprep.mubr.bf16.mxu0 %v5541
        %7064 = vmatmul.mubr.bf16.gmra.mrb[0].mxu0 %v5540
        %v7065 = vpop.f32.mrb[0].mxu0
        %v7066 = vadd.f32 %v6969, %v7065
        %v7067 = vpop.f32.mrb[0].mxu0
        %v7068 = vpop.f32.mrb[0].mxu0
        %v7069 = vadd.f32 %v6972, %v7068
        %v7070 = vpop.f32.mrb[0].mxu0
        %7071 = vmatprep.mubr.bf16.mxu0 %v5557
        %7072 = vmatmul.mubr.bf16.gmra.mrb[0].mxu0 %v5556
        %v7073 = vpop.f32.mrb[0].mxu0
        %v7074 = vadd.f32 %v6977, %v7073
        %v7075 = vpop.f32.mrb[0].mxu0
        %v7076 = vpop.f32.mrb[0].mxu0
        %v7077 = vadd.f32 %v6980, %v7076
        %v7078 = vpop.f32.mrb[0].mxu0
        %7079 = vdwg.mxu0
        %7080 = vmatprep.subr.bf16.mxu0 0
        %7081 = vmatpush1.bf16.msra.mxu0 %v6419
        %7082 = vmatprep.subr.bf16.mxu0 0
        %7083 = vmatpush1.bf16.msra.mxu0 %v6420
        %7084 = vmatprep.subr.bf16.mxu0 0
        %7085 = vmatpush1.bf16.msra.mxu0 %v6421
        %7086 = vmatprep.subr.bf16.mxu0 0
        %7087 = vmatpush1.bf16.msra.mxu0 %v6422
        %7088 = vmatprep.subr.bf16.mxu0 0
        %7089 = vmatpush1.bf16.msra.mxu0 %v6423
        %7090 = vmatprep.subr.bf16.mxu0 0
        %7091 = vmatpush1.bf16.msra.mxu0 %v6424
        %7092 = vmatprep.subr.bf16.mxu0 0
        %7093 = vmatpush1.bf16.msra.mxu0 %v6425
        %7094 = vmatprep.subr.bf16.mxu0 0
        %7095 = vmatpush1.bf16.msra.mxu0 %v6426
        %7096 = vmatprep.subr.bf16.mxu0 0
        %7097 = vmatpush1.bf16.msra.mxu0 %v6427
        %7098 = vmatprep.subr.bf16.mxu0 0
        %7099 = vmatpush1.bf16.msra.mxu0 %v6428
        %7100 = vmatprep.subr.bf16.mxu0 0
        %7101 = vmatpush1.bf16.msra.mxu0 %v6429
        %7102 = vmatprep.subr.bf16.mxu0 0
        %7103 = vmatpush1.bf16.msra.mxu0 %v6430
        %7104 = vmatprep.subr.bf16.mxu0 0
        %7105 = vmatpush1.bf16.msra.mxu0 %v6431
        %7106 = vmatprep.subr.bf16.mxu0 0
        %7107 = vmatpush1.bf16.msra.mxu0 %v6432
        %7108 = vmatprep.subr.bf16.mxu0 0
        %7109 = vmatpush1.bf16.msra.mxu0 %v6433
        %7110 = vmatprep.subr.bf16.mxu0 0
        %7111 = vmatpush1.bf16.msra.mxu0 %v6434
        %7112 = vmatprep.mubr.bf16.mxu0 %v5447
        %7113 = vmatmul.mubr.bf16.gmra.mrb[0].mxu0 %v5446
        %v7114 = vpop.f32.mrb[0].mxu0
        %v7115 = vadd.f32 %v7018, %v7114
        %v7116 = vpop.f32.mrb[0].mxu0
        %v7117 = vpop.f32.mrb[0].mxu0
        %v7118 = vadd.f32 %v7021, %v7117
        %v7119 = vpop.f32.mrb[0].mxu0
        %7120 = vmatprep.mubr.bf16.mxu0 %v5463
        %7121 = vmatmul.mubr.bf16.gmra.mrb[0].mxu0 %v5462
        %v7122 = vpop.f32.mrb[0].mxu0
        %v7123 = vadd.f32 %v7026, %v7122
        %v7124 = vpop.f32.mrb[0].mxu0
        %v7125 = vpop.f32.mrb[0].mxu0
        %v7126 = vadd.f32 %v7029, %v7125
        %v7127 = vpop.f32.mrb[0].mxu0
        %7128 = vmatprep.mubr.bf16.mxu0 %v5479
        %7129 = vmatmul.mubr.bf16.gmra.mrb[0].mxu0 %v5478
        %v7130 = vpop.f32.mrb[0].mxu0
        %v7131 = vadd.f32 %v7034, %v7130
        %v7132 = vpop.f32.mrb[0].mxu0
        %v7133 = vpop.f32.mrb[0].mxu0
        %v7134 = vadd.f32 %v7037, %v7133
        %v7135 = vpop.f32.mrb[0].mxu0
        %7136 = vmatprep.mubr.bf16.mxu0 %v5495
        %7137 = vmatmul.mubr.bf16.gmra.mrb[0].mxu0 %v5494
        %v7138 = vpop.f32.mrb[0].mxu0
        %v7139 = vadd.f32 %v7042, %v7138
        %v7140 = vpop.f32.mrb[0].mxu0
        %v7141 = vpop.f32.mrb[0].mxu0
        %v7142 = vadd.f32 %v7045, %v7141
        %v7143 = vpop.f32.mrb[0].mxu0
        %7144 = vmatprep.mubr.bf16.mxu0 %v5511
        %7145 = vmatmul.mubr.bf16.gmra.mrb[0].mxu0 %v5510
        %v7146 = vpop.f32.mrb[0].mxu0
        %v7147 = vadd.f32 %v7050, %v7146
        %v7148 = vpop.f32.mrb[0].mxu0
        %v7149 = vpop.f32.mrb[0].mxu0
        %v7150 = vadd.f32 %v7053, %v7149
        %v7151 = vpop.f32.mrb[0].mxu0
        %7152 = vmatprep.mubr.bf16.mxu0 %v5527
        %7153 = vmatmul.mubr.bf16.gmra.mrb[0].mxu0 %v5526
        %v7154 = vpop.f32.mrb[0].mxu0
        %v7155 = vadd.f32 %v7058, %v7154
        %v7156 = vpop.f32.mrb[0].mxu0
        %v7157 = vpop.f32.mrb[0].mxu0
        %v7158 = vadd.f32 %v7061, %v7157
        %v7159 = vpop.f32.mrb[0].mxu0
        %7160 = vmatprep.mubr.bf16.mxu0 %v5543
        %7161 = vmatmul.mubr.bf16.gmra.mrb[0].mxu0 %v5542
        %v7162 = vpop.f32.mrb[0].mxu0
        %v7163 = vadd.f32 %v7066, %v7162
        %v7164 = vpop.f32.mrb[0].mxu0
        %v7165 = vpop.f32.mrb[0].mxu0
        %v7166 = vadd.f32 %v7069, %v7165
        %v7167 = vpop.f32.mrb[0].mxu0
        %7168 = vmatprep.mubr.bf16.mxu0 %v5559
        %7169 = vmatmul.mubr.bf16.gmra.mrb[0].mxu0 %v5558
        %v7170 = vpop.f32.mrb[0].mxu0
        %v7171 = vadd.f32 %v7074, %v7170
        %v7172 = vpop.f32.mrb[0].mxu0
        %v7173 = vpop.f32.mrb[0].mxu0
        %v7174 = vadd.f32 %v7077, %v7173
        %v7175 = vpop.f32.mrb[0].mxu0
        %7176 = vdwg.mxu0
        %7177 = vmatprep.subr.bf16.mxu0 0
        %7178 = vmatpush1.bf16.msra.mxu0 %v6435
        %7179 = vmatprep.subr.bf16.mxu0 0
        %7180 = vmatpush1.bf16.msra.mxu0 %v6436
        %7181 = vmatprep.subr.bf16.mxu0 0
        %7182 = vmatpush1.bf16.msra.mxu0 %v6437
        %7183 = vmatprep.subr.bf16.mxu0 0
        %7184 = vmatpush1.bf16.msra.mxu0 %v6438
        %7185 = vmatprep.subr.bf16.mxu0 0
        %7186 = vmatpush1.bf16.msra.mxu0 %v6439
        %7187 = vmatprep.subr.bf16.mxu0 0
        %7188 = vmatpush1.bf16.msra.mxu0 %v6440
        %7189 = vmatprep.subr.bf16.mxu0 0
        %7190 = vmatpush1.bf16.msra.mxu0 %v6441
        %7191 = vmatprep.subr.bf16.mxu0 0
        %7192 = vmatpush1.bf16.msra.mxu0 %v6442
        %7193 = vmatprep.subr.bf16.mxu0 0
        %7194 = vmatpush1.bf16.msra.mxu0 %v6443
        %7195 = vmatprep.subr.bf16.mxu0 0
        %7196 = vmatpush1.bf16.msra.mxu0 %v6444
        %7197 = vmatprep.subr.bf16.mxu0 0
        %7198 = vmatpush1.bf16.msra.mxu0 %v6445
        %7199 = vmatprep.subr.bf16.mxu0 0
        %7200 = vmatpush1.bf16.msra.mxu0 %v6446
        %7201 = vmatprep.subr.bf16.mxu0 0
        %7202 = vmatpush1.bf16.msra.mxu0 %v6447
        %7203 = vmatprep.subr.bf16.mxu0 0
        %7204 = vmatpush1.bf16.msra.mxu0 %v6448
        %7205 = vmatprep.subr.bf16.mxu0 0
        %7206 = vmatpush1.bf16.msra.mxu0 %v6449
        %7207 = vmatprep.subr.bf16.mxu0 0
        %7208 = vmatpush1.bf16.msra.mxu0 %v6450
        %7209 = vmatprep.mubr.bf16.mxu0 %v5449
        %7210 = vmatmul.mubr.bf16.gmra.mrb[0].mxu0 %v5448
        %v7211 = vpop.f32.mrb[0].mxu0
        %v7212 = vadd.f32 %v7115, %v7211
        %v7213 = vpop.f32.mrb[0].mxu0
        %v7214 = vpop.f32.mrb[0].mxu0
        %v7215 = vadd.f32 %v7118, %v7214
        %v7216 = vpop.f32.mrb[0].mxu0
        %7217 = vmatprep.mubr.bf16.mxu0 %v5465
        %7218 = vmatmul.mubr.bf16.gmra.mrb[0].mxu0 %v5464
        %v7219 = vpop.f32.mrb[0].mxu0
        %v7220 = vadd.f32 %v7123, %v7219
        %v7221 = vpop.f32.mrb[0].mxu0
        %v7222 = vpop.f32.mrb[0].mxu0
        %v7223 = vadd.f32 %v7126, %v7222
        %v7224 = vpop.f32.mrb[0].mxu0
        %7225 = vmatprep.mubr.bf16.mxu0 %v5481
        %7226 = vmatmul.mubr.bf16.gmra.mrb[0].mxu0 %v5480
        %v7227 = vpop.f32.mrb[0].mxu0
        %v7228 = vadd.f32 %v7131, %v7227
        %v7229 = vpop.f32.mrb[0].mxu0
        %v7230 = vpop.f32.mrb[0].mxu0
        %v7231 = vadd.f32 %v7134, %v7230
        %v7232 = vpop.f32.mrb[0].mxu0
        %7233 = vmatprep.mubr.bf16.mxu0 %v5497
        %7234 = vmatmul.mubr.bf16.gmra.mrb[0].mxu0 %v5496
        %v7235 = vpop.f32.mrb[0].mxu0
        %v7236 = vadd.f32 %v7139, %v7235
        %v7237 = vpop.f32.mrb[0].mxu0
        %v7238 = vpop.f32.mrb[0].mxu0
        %v7239 = vadd.f32 %v7142, %v7238
        %v7240 = vpop.f32.mrb[0].mxu0
        %7241 = vmatprep.mubr.bf16.mxu0 %v5513
        %7242 = vmatmul.mubr.bf16.gmra.mrb[0].mxu0 %v5512
        %v7243 = vpop.f32.mrb[0].mxu0
        %v7244 = vadd.f32 %v7147, %v7243
        %v7245 = vpop.f32.mrb[0].mxu0
        %v7246 = vpop.f32.mrb[0].mxu0
        %v7247 = vadd.f32 %v7150, %v7246
        %v7248 = vpop.f32.mrb[0].mxu0
        %7249 = vmatprep.mubr.bf16.mxu0 %v5529
        %7250 = vmatmul.mubr.bf16.gmra.mrb[0].mxu0 %v5528
        %v7251 = vpop.f32.mrb[0].mxu0
        %v7252 = vadd.f32 %v7155, %v7251
        %v7253 = vpop.f32.mrb[0].mxu0
        %v7254 = vpop.f32.mrb[0].mxu0
        %v7255 = vadd.f32 %v7158, %v7254
        %v7256 = vpop.f32.mrb[0].mxu0
        %7257 = vmatprep.mubr.bf16.mxu0 %v5545
        %7258 = vmatmul.mubr.bf16.gmra.mrb[0].mxu0 %v5544
        %v7259 = vpop.f32.mrb[0].mxu0
        %v7260 = vadd.f32 %v7163, %v7259
        %v7261 = vpop.f32.mrb[0].mxu0
        %v7262 = vpop.f32.mrb[0].mxu0
        %v7263 = vadd.f32 %v7166, %v7262
        %v7264 = vpop.f32.mrb[0].mxu0
        %7265 = vmatprep.mubr.bf16.mxu0 %v5561
        %7266 = vmatmul.mubr.bf16.gmra.mrb[0].mxu0 %v5560
        %v7267 = vpop.f32.mrb[0].mxu0
        %v7268 = vadd.f32 %v7171, %v7267
        %v7269 = vpop.f32.mrb[0].mxu0
        %v7270 = vpop.f32.mrb[0].mxu0
        %v7271 = vadd.f32 %v7174, %v7270
        %v7272 = vpop.f32.mrb[0].mxu0
        %7273 = vdwg.mxu0
        %7274 = vmatprep.subr.bf16.mxu0 0
        %7275 = vmatpush1.bf16.msra.mxu0 %v6451
        %7276 = vmatprep.subr.bf16.mxu0 0
        %7277 = vmatpush1.bf16.msra.mxu0 %v6452
        %7278 = vmatprep.subr.bf16.mxu0 0
        %7279 = vmatpush1.bf16.msra.mxu0 %v6453
        %7280 = vmatprep.subr.bf16.mxu0 0
        %7281 = vmatpush1.bf16.msra.mxu0 %v6454
        %7282 = vmatprep.subr.bf16.mxu0 0
        %7283 = vmatpush1.bf16.msra.mxu0 %v6455
        %7284 = vmatprep.subr.bf16.mxu0 0
        %7285 = vmatpush1.bf16.msra.mxu0 %v6456
        %7286 = vmatprep.subr.bf16.mxu0 0
        %7287 = vmatpush1.bf16.msra.mxu0 %v6457
        %7288 = vmatprep.subr.bf16.mxu0 0
        %7289 = vmatpush1.bf16.msra.mxu0 %v6458
        %7290 = vmatprep.subr.bf16.mxu0 0
        %7291 = vmatpush1.bf16.msra.mxu0 %v6459
        %7292 = vmatprep.subr.bf16.mxu0 0
        %7293 = vmatpush1.bf16.msra.mxu0 %v6460
        %7294 = vmatprep.subr.bf16.mxu0 0
        %7295 = vmatpush1.bf16.msra.mxu0 %v6461
        %7296 = vmatprep.subr.bf16.mxu0 0
        %7297 = vmatpush1.bf16.msra.mxu0 %v6462
        %7298 = vmatprep.subr.bf16.mxu0 0
        %7299 = vmatpush1.bf16.msra.mxu0 %v6463
        %7300 = vmatprep.subr.bf16.mxu0 0
        %7301 = vmatpush1.bf16.msra.mxu0 %v6464
        %7302 = vmatprep.subr.bf16.mxu0 0
        %7303 = vmatpush1.bf16.msra.mxu0 %v6465
        %7304 = vmatprep.subr.bf16.mxu0 0
        %7305 = vmatpush1.bf16.msra.mxu0 %v6466
        %7306 = vmatprep.mubr.bf16.mxu0 %v5451
        %7307 = vmatmul.mubr.bf16.gmra.mrb[0].mxu0 %v5450
        %v7308 = vpop.f32.mrb[0].mxu0
        %v7309 = vadd.f32 %v7212, %v7308
        %v7310 = vpop.f32.mrb[0].mxu0
        %v7311 = vpop.f32.mrb[0].mxu0
        %v7312 = vadd.f32 %v7215, %v7311
        %v7313 = vpop.f32.mrb[0].mxu0
        %7314 = vmatprep.mubr.bf16.mxu0 %v5467
        %7315 = vmatmul.mubr.bf16.gmra.mrb[0].mxu0 %v5466
        %v7316 = vpop.f32.mrb[0].mxu0
        %v7317 = vadd.f32 %v7220, %v7316
        %v7318 = vpop.f32.mrb[0].mxu0
        %v7319 = vpop.f32.mrb[0].mxu0
        %v7320 = vadd.f32 %v7223, %v7319
        %v7321 = vpop.f32.mrb[0].mxu0
        %7322 = vmatprep.mubr.bf16.mxu0 %v5483
        %7323 = vmatmul.mubr.bf16.gmra.mrb[0].mxu0 %v5482
        %v7324 = vpop.f32.mrb[0].mxu0
        %v7325 = vadd.f32 %v7228, %v7324
        %v7326 = vpop.f32.mrb[0].mxu0
        %v7327 = vpop.f32.mrb[0].mxu0
        %v7328 = vadd.f32 %v7231, %v7327
        %v7329 = vpop.f32.mrb[0].mxu0
        %7330 = vmatprep.mubr.bf16.mxu0 %v5499
        %7331 = vmatmul.mubr.bf16.gmra.mrb[0].mxu0 %v5498
        %v7332 = vpop.f32.mrb[0].mxu0
        %v7333 = vadd.f32 %v7236, %v7332
        %v7334 = vpop.f32.mrb[0].mxu0
        %v7335 = vpop.f32.mrb[0].mxu0
        %v7336 = vadd.f32 %v7239, %v7335
        %v7337 = vpop.f32.mrb[0].mxu0
        %7338 = vmatprep.mubr.bf16.mxu0 %v5515
        %7339 = vmatmul.mubr.bf16.gmra.mrb[0].mxu0 %v5514
        %v7340 = vpop.f32.mrb[0].mxu0
        %v7341 = vadd.f32 %v7244, %v7340
        %v7342 = vpop.f32.mrb[0].mxu0
        %v7343 = vpop.f32.mrb[0].mxu0
        %v7344 = vadd.f32 %v7247, %v7343
        %v7345 = vpop.f32.mrb[0].mxu0
        %7346 = vmatprep.mubr.bf16.mxu0 %v5531
        %7347 = vmatmul.mubr.bf16.gmra.mrb[0].mxu0 %v5530
        %v7348 = vpop.f32.mrb[0].mxu0
        %v7349 = vadd.f32 %v7252, %v7348
        %v7350 = vpop.f32.mrb[0].mxu0
        %v7351 = vpop.f32.mrb[0].mxu0
        %v7352 = vadd.f32 %v7255, %v7351
        %v7353 = vpop.f32.mrb[0].mxu0
        %7354 = vmatprep.mubr.bf16.mxu0 %v5547
        %7355 = vmatmul.mubr.bf16.gmra.mrb[0].mxu0 %v5546
        %v7356 = vpop.f32.mrb[0].mxu0
        %v7357 = vadd.f32 %v7260, %v7356
        %v7358 = vpop.f32.mrb[0].mxu0
        %v7359 = vpop.f32.mrb[0].mxu0
        %v7360 = vadd.f32 %v7263, %v7359
        %v7361 = vpop.f32.mrb[0].mxu0
        %7362 = vmatprep.mubr.bf16.mxu0 %v5563
        %7363 = vmatmul.mubr.bf16.gmra.mrb[0].mxu0 %v5562
        %v7364 = vpop.f32.mrb[0].mxu0
        %v7365 = vadd.f32 %v7268, %v7364
        %v7366 = vpop.f32.mrb[0].mxu0
        %v7367 = vpop.f32.mrb[0].mxu0
        %v7368 = vadd.f32 %v7271, %v7367
        %v7369 = vpop.f32.mrb[0].mxu0
        %7370 = vdwg.mxu0
        %v7371 = vadd.f32 %v3760, %v7309
        %v7372 = vadd.f32 %v3761, %v7312
        %v7373 = vadd.f32 %v3762, %v7317
        %v7374 = vadd.f32 %v3763, %v7320
        %v7375 = vadd.f32 %v3764, %v7325
        %v7376 = vadd.f32 %v3765, %v7328
        %v7377 = vadd.f32 %v3766, %v7333
        %v7378 = vadd.f32 %v3767, %v7336
        %v7379 = vadd.f32 %v3768, %v7341
        %v7380 = vadd.f32 %v3769, %v7344
        %v7381 = vadd.f32 %v3770, %v7349
        %v7382 = vadd.f32 %v3771, %v7352
        %v7383 = vadd.f32 %v3772, %v7357
        %v7384 = vadd.f32 %v3773, %v7360
        %v7385 = vadd.f32 %v3774, %v7365
        %v7386 = vadd.f32 %v3775, %v7368
        %v7387 = vld [vmem:[%s891] sm:$0x1]
        %v7388 = vld [vmem:[%s894] sm:$0x1]
        %v7389 = vsel %vm1322, %v7371, 0.0
        %7390 = vadd.xlane.f32.xlu0 %v7389
        %v7391 = vpop.xlane.xlu0 %7390
        %v7392 = vsel %vm1322, %v7372, 0.0
        %7393 = vadd.xlane.f32.xlu0 %v7392
        %v7394 = vpop.xlane.xlu0 %7393
        %v7395 = vsel %vm1322, %v7373, 0.0
        %7396 = vadd.xlane.f32.xlu0 %v7395
        %v7397 = vpop.xlane.xlu0 %7396
        %v7398 = vsel %vm1322, %v7374, 0.0
        %7399 = vadd.xlane.f32.xlu0 %v7398
        %v7400 = vpop.xlane.xlu0 %7399
        %v7401 = vsel %vm1322, %v7375, 0.0
        %7402 = vadd.xlane.f32.xlu0 %v7401
        %v7403 = vpop.xlane.xlu0 %7402
        %v7404 = vsel %vm1322, %v7376, 0.0
        %7405 = vadd.xlane.f32.xlu0 %v7404
        %v7406 = vpop.xlane.xlu0 %7405
        %v7407 = vsel %vm1322, %v7377, 0.0
        %7408 = vadd.xlane.f32.xlu0 %v7407
        %v7409 = vpop.xlane.xlu0 %7408
        %v7410 = vsel %vm1322, %v7378, 0.0
        %7411 = vadd.xlane.f32.xlu0 %v7410
        %v7412 = vpop.xlane.xlu0 %7411
        %v7413 = vsel %vm1322, %v7379, 0.0
        %7414 = vadd.xlane.f32.xlu0 %v7413
        %v7415 = vpop.xlane.xlu0 %7414
        %v7416 = vsel %vm1322, %v7380, 0.0
        %7417 = vadd.xlane.f32.xlu0 %v7416
        %v7418 = vpop.xlane.xlu0 %7417
        %v7419 = vsel %vm1322, %v7381, 0.0
        %7420 = vadd.xlane.f32.xlu0 %v7419
        %v7421 = vpop.xlane.xlu0 %7420
        %v7422 = vsel %vm1322, %v7382, 0.0
        %7423 = vadd.xlane.f32.xlu0 %v7422
        %v7424 = vpop.xlane.xlu0 %7423
        %v7425 = vsel %vm1322, %v7383, 0.0
        %7426 = vadd.xlane.f32.xlu0 %v7425
        %v7427 = vpop.xlane.xlu0 %7426
        %v7428 = vsel %vm1322, %v7384, 0.0
        %7429 = vadd.xlane.f32.xlu0 %v7428
        %v7430 = vpop.xlane.xlu0 %7429
        %v7431 = vsel %vm1322, %v7385, 0.0
        %7432 = vadd.xlane.f32.xlu0 %v7431
        %v7433 = vpop.xlane.xlu0 %7432
        %v7434 = vsel %vm1322, %v7386, 0.0
        %7435 = vadd.xlane.f32.xlu0 %v7434
        %v7436 = vpop.xlane.xlu0 %7435
        %v7437 = vmul.f32 %v7391, %v3571
        %v7438 = vmul.f32 %v7394, %v3571
        %v7439 = vmul.f32 %v7397, %v3571
        %v7440 = vmul.f32 %v7400, %v3571
        %v7441 = vmul.f32 %v7403, %v3571
        %v7442 = vmul.f32 %v7406, %v3571
        %v7443 = vmul.f32 %v7409, %v3571
        %v7444 = vmul.f32 %v7412, %v3571
        %v7445 = vmul.f32 %v7415, %v3571
        %v7446 = vmul.f32 %v7418, %v3571
        %v7447 = vmul.f32 %v7421, %v3571
        %v7448 = vmul.f32 %v7424, %v3571
        %v7449 = vmul.f32 %v7427, %v3571
        %v7450 = vmul.f32 %v7430, %v3571
        %v7451 = vmul.f32 %v7433, %v3571
        %v7452 = vmul.f32 %v7436, %v3571
        %v7453 = vsub.f32 %v7371, %v7437
        %v7454 = vsub.f32 %v7372, %v7438
        %v7455 = vsub.f32 %v7373, %v7439
        %v7456 = vsub.f32 %v7374, %v7440
        %v7457 = vsub.f32 %v7375, %v7441
        %v7458 = vsub.f32 %v7376, %v7442
        %v7459 = vsub.f32 %v7377, %v7443
        %v7460 = vsub.f32 %v7378, %v7444
        %v7461 = vsub.f32 %v7379, %v7445
        %v7462 = vsub.f32 %v7380, %v7446
        %v7463 = vsub.f32 %v7381, %v7447
        %v7464 = vsub.f32 %v7382, %v7448
        %v7465 = vsub.f32 %v7383, %v7449
        %v7466 = vsub.f32 %v7384, %v7450
        %v7467 = vsub.f32 %v7385, %v7451
        %v7468 = vsub.f32 %v7386, %v7452
        %v7469 = vmul.f32 %v7453, %v7453
        %v7470 = vmul.f32 %v7454, %v7454
        %v7471 = vmul.f32 %v7455, %v7455
        %v7472 = vmul.f32 %v7456, %v7456
        %v7473 = vmul.f32 %v7457, %v7457
        %v7474 = vmul.f32 %v7458, %v7458
        %v7475 = vmul.f32 %v7459, %v7459
        %v7476 = vmul.f32 %v7460, %v7460
        %v7477 = vmul.f32 %v7461, %v7461
        %v7478 = vmul.f32 %v7462, %v7462
        %v7479 = vmul.f32 %v7463, %v7463
        %v7480 = vmul.f32 %v7464, %v7464
        %v7481 = vmul.f32 %v7465, %v7465
        %v7482 = vmul.f32 %v7466, %v7466
        %v7483 = vmul.f32 %v7467, %v7467
        %v7484 = vmul.f32 %v7468, %v7468
        %v7485 = vsel %vm1322, %v7469, 0.0
        %7486 = vadd.xlane.f32.xlu0 %v7485
        %v7487 = vpop.xlane.xlu0 %7486
        %v7488 = vsel %vm1322, %v7470, 0.0
        %7489 = vadd.xlane.f32.xlu0 %v7488
        %v7490 = vpop.xlane.xlu0 %7489
        %v7491 = vsel %vm1322, %v7471, 0.0
        %7492 = vadd.xlane.f32.xlu0 %v7491
        %v7493 = vpop.xlane.xlu0 %7492
        %v7494 = vsel %vm1322, %v7472, 0.0
        %7495 = vadd.xlane.f32.xlu0 %v7494
        %v7496 = vpop.xlane.xlu0 %7495
        %v7497 = vsel %vm1322, %v7473, 0.0
        %7498 = vadd.xlane.f32.xlu0 %v7497
        %v7499 = vpop.xlane.xlu0 %7498
        %v7500 = vsel %vm1322, %v7474, 0.0
        %7501 = vadd.xlane.f32.xlu0 %v7500
        %v7502 = vpop.xlane.xlu0 %7501
        %v7503 = vsel %vm1322, %v7475, 0.0
        %7504 = vadd.xlane.f32.xlu0 %v7503
        %v7505 = vpop.xlane.xlu0 %7504
        %v7506 = vsel %vm1322, %v7476, 0.0
        %7507 = vadd.xlane.f32.xlu0 %v7506
        %v7508 = vpop.xlane.xlu0 %7507
        %v7509 = vsel %vm1322, %v7477, 0.0
        %7510 = vadd.xlane.f32.xlu0 %v7509
        %v7511 = vpop.xlane.xlu0 %7510
        %v7512 = vsel %vm1322, %v7478, 0.0
        %7513 = vadd.xlane.f32.xlu0 %v7512
        %v7514 = vpop.xlane.xlu0 %7513
        %v7515 = vsel %vm1322, %v7479, 0.0
        %7516 = vadd.xlane.f32.xlu0 %v7515
        %v7517 = vpop.xlane.xlu0 %7516
        %v7518 = vsel %vm1322, %v7480, 0.0
        %7519 = vadd.xlane.f32.xlu0 %v7518
        %v7520 = vpop.xlane.xlu0 %7519
        %v7521 = vsel %vm1322, %v7481, 0.0
        %7522 = vadd.xlane.f32.xlu0 %v7521
        %v7523 = vpop.xlane.xlu0 %7522
        %v7524 = vsel %vm1322, %v7482, 0.0
        %7525 = vadd.xlane.f32.xlu0 %v7524
        %v7526 = vpop.xlane.xlu0 %7525
        %v7527 = vsel %vm1322, %v7483, 0.0
        %7528 = vadd.xlane.f32.xlu0 %v7527
        %v7529 = vpop.xlane.xlu0 %7528
        %v7530 = vsel %vm1322, %v7484, 0.0
        %7531 = vadd.xlane.f32.xlu0 %v7530
        %v7532 = vpop.xlane.xlu0 %7531
        %v7533 = vmul.f32 %v7487, %v3571
        %v7534 = vmul.f32 %v7490, %v3571
        %v7535 = vmul.f32 %v7493, %v3571
        %v7536 = vmul.f32 %v7496, %v3571
        %v7537 = vmul.f32 %v7499, %v3571
        %v7538 = vmul.f32 %v7502, %v3571
        %v7539 = vmul.f32 %v7505, %v3571
        %v7540 = vmul.f32 %v7508, %v3571
        %v7541 = vmul.f32 %v7511, %v3571
        %v7542 = vmul.f32 %v7514, %v3571
        %v7543 = vmul.f32 %v7517, %v3571
        %v7544 = vmul.f32 %v7520, %v3571
        %v7545 = vmul.f32 %v7523, %v3571
        %v7546 = vmul.f32 %v7526, %v3571
        %v7547 = vmul.f32 %v7529, %v3571
        %v7548 = vmul.f32 %v7532, %v3571
        %v7549 = vadd.f32 %v7533, 1e-05
        %v7550 = vadd.f32 %v7534, 1e-05
        %v7551 = vadd.f32 %v7535, 1e-05
        %v7552 = vadd.f32 %v7536, 1e-05
        %v7553 = vadd.f32 %v7537, 1e-05
        %v7554 = vadd.f32 %v7538, 1e-05
        %v7555 = vadd.f32 %v7539, 1e-05
        %v7556 = vadd.f32 %v7540, 1e-05
        %v7557 = vadd.f32 %v7541, 1e-05
        %v7558 = vadd.f32 %v7542, 1e-05
        %v7559 = vadd.f32 %v7543, 1e-05
        %v7560 = vadd.f32 %v7544, 1e-05
        %v7561 = vadd.f32 %v7545, 1e-05
        %v7562 = vadd.f32 %v7546, 1e-05
        %v7563 = vadd.f32 %v7547, 1e-05
        %v7564 = vadd.f32 %v7548, 1e-05
        %v7565 = vrsqrt.pop %v7549
        %v7566 = vrsqrt.pop %v7550
        %v7567 = vrsqrt.pop %v7551
        %v7568 = vrsqrt.pop %v7552
        %v7569 = vrsqrt.pop %v7553
        %v7570 = vrsqrt.pop %v7554
        %v7571 = vrsqrt.pop %v7555
        %v7572 = vrsqrt.pop %v7556
        %v7573 = vrsqrt.pop %v7557
        %v7574 = vrsqrt.pop %v7558
        %v7575 = vrsqrt.pop %v7559
        %v7576 = vrsqrt.pop %v7560
        %v7577 = vrsqrt.pop %v7561
        %v7578 = vrsqrt.pop %v7562
        %v7579 = vrsqrt.pop %v7563
        %v7580 = vrsqrt.pop %v7564
        %v7581 = vmul.f32 %v7453, %v7565
        %v7582 = vmul.f32 %v7454, %v7566
        %v7583 = vmul.f32 %v7455, %v7567
        %v7584 = vmul.f32 %v7456, %v7568
        %v7585 = vmul.f32 %v7457, %v7569
        %v7586 = vmul.f32 %v7458, %v7570
        %v7587 = vmul.f32 %v7459, %v7571
        %v7588 = vmul.f32 %v7460, %v7572
        %v7589 = vmul.f32 %v7461, %v7573
        %v7590 = vmul.f32 %v7462, %v7574
        %v7591 = vmul.f32 %v7463, %v7575
        %v7592 = vmul.f32 %v7464, %v7576
        %v7593 = vmul.f32 %v7465, %v7577
        %v7594 = vmul.f32 %v7466, %v7578
        %v7595 = vmul.f32 %v7467, %v7579
        %v7596 = vmul.f32 %v7468, %v7580
        %v7598 = vlaneseq
        %v7599 = vshrl.u32 %v7598, 7
        %v7600 = vsub.s32 0, %v7599
        %v7601 = vrot.slane %v7387, %v7600
        %v7603 = vmul.f32 %v7581, %v7601
        %v7604 = vmul.f32 %v7582, %v7601
        %v7605 = vmul.f32 %v7583, %v7601
        %v7606 = vmul.f32 %v7584, %v7601
        %v7607 = vmul.f32 %v7585, %v7601
        %v7608 = vmul.f32 %v7586, %v7601
        %v7609 = vmul.f32 %v7587, %v7601
        %v7610 = vmul.f32 %v7588, %v7601
        %v7611 = vmul.f32 %v7589, %v7601
        %v7612 = vmul.f32 %v7590, %v7601
        %v7613 = vmul.f32 %v7591, %v7601
        %v7614 = vmul.f32 %v7592, %v7601
        %v7615 = vmul.f32 %v7593, %v7601
        %v7616 = vmul.f32 %v7594, %v7601
        %v7617 = vmul.f32 %v7595, %v7601
        %v7618 = vmul.f32 %v7596, %v7601
        %v7620 = vlaneseq
        %v7621 = vshrl.u32 %v7620, 7
        %v7622 = vsub.s32 0, %v7621
        %v7623 = vrot.slane %v7388, %v7622
        %v7625 = vadd.f32 %v7603, %v7623
        %v7626 = vadd.f32 %v7604, %v7623
        %v7627 = vadd.f32 %v7605, %v7623
        %v7628 = vadd.f32 %v7606, %v7623
        %v7629 = vadd.f32 %v7607, %v7623
        %v7630 = vadd.f32 %v7608, %v7623
        %v7631 = vadd.f32 %v7609, %v7623
        %v7632 = vadd.f32 %v7610, %v7623
        %v7633 = vadd.f32 %v7611, %v7623
        %v7634 = vadd.f32 %v7612, %v7623
        %v7635 = vadd.f32 %v7613, %v7623
        %v7636 = vadd.f32 %v7614, %v7623
        %v7637 = vadd.f32 %v7615, %v7623
        %v7638 = vadd.f32 %v7616, %v7623
        %v7639 = vadd.f32 %v7617, %v7623
        %v7640 = vadd.f32 %v7618, %v7623
        %7641 = vst.msk [vmem:[#allocation2] sm:$0xff] %vm1322, %v7625
        %7642 = vst.msk [vmem:[#allocation2 + $0x8] sm:$0xff] %vm1322, %v7626
        %7643 = vst.msk [vmem:[#allocation2 + $0x10] sm:$0xff] %vm1322, %v7627
        %7644 = vst.msk [vmem:[#allocation2 + $0x18] sm:$0xff] %vm1322, %v7628
        %7645 = vst.msk [vmem:[#allocation2 + $0x20] sm:$0xff] %vm1322, %v7629
        %7646 = vst.msk [vmem:[#allocation2 + $0x28] sm:$0xff] %vm1322, %v7630
        %7647 = vst.msk [vmem:[#allocation2 + $0x30] sm:$0xff] %vm1322, %v7631
        %7648 = vst.msk [vmem:[#allocation2 + $0x38] sm:$0xff] %vm1322, %v7632
        %7649 = vst.msk [vmem:[#allocation2 + $0x40] sm:$0xff] %vm1322, %v7633
        %7650 = vst.msk [vmem:[#allocation2 + $0x48] sm:$0xff] %vm1322, %v7634
        %7651 = vst.msk [vmem:[#allocation2 + $0x50] sm:$0xff] %vm1322, %v7635
        %7652 = vst.msk [vmem:[#allocation2 + $0x58] sm:$0xff] %vm1322, %v7636
        %7653 = vst.msk [vmem:[#allocation2 + $0x60] sm:$0xff] %vm1322, %v7637
        %7654 = vst.msk [vmem:[#allocation2 + $0x68] sm:$0xff] %vm1322, %v7638
        %7655 = vst.msk [vmem:[#allocation2 + $0x70] sm:$0xff] %vm1322, %v7639
        %7656 = vst.msk [vmem:[#allocation2 + $0x78] sm:$0xff] %vm1322, %v7640
        %p7657 = scmp.eq.s32.totalorder %s33, 1
        // Predicated region
        $region109: #{flownet_forward.1} parent=103 // pred_check
          %p7658 = pneg %p7657
        $region110: #{flownet_forward.1} parent=103 // pred_check_branch
          %7660 = sbr.rel (%p7658) target = $region112
        $region111: #{flownet_forward.1} parent=103 // pred_region
          %v7661 = vlaneseq
          %v7662 = vshrl.u32 %v7661, 7
          %v7663 = vadd.s32 %v7662, 8
          %v7664 = vlaneseq
          %v7665 = vand.u32 %v7664, 127
          %v7666 = vmul.u32 %v7662, 8
          %v7667 = vmul.u32 %v7663, 8
          %v7668 = vadd.s32 %v7666, 7
          %v7669 = vadd.s32 %v7667, 7
          %vm7670 = vcmp.eq.s32.totalorder %v7665, %v7668
          %vm7671 = vcmp.eq.s32.totalorder %v7665, %v7669
          %v7672 = vsel %vm7670, 1, 0
          %v7673 = vsel %vm7671, 1, 0
          %v7674 = vcvt.s32.f32 %v7672
          %v7675 = vcvt.s32.f32 %v7673
          %7676 = vmatprep.subr.mxu0 0.0
          %7677 = vmatpush1.msra.mxu0 %v7625
          %7678 = vmatprep.subr.mxu0 0.0
          %7679 = vmatpush1.msra.mxu0 %v7626
          %7680 = vmatprep.subr.mxu0 0.0
          %7681 = vmatpush1.msra.mxu0 %v7627
          %7682 = vmatprep.subr.mxu0 0.0
          %7683 = vmatpush1.msra.mxu0 %v7628
          %7684 = vmatprep.subr.mxu0 0.0
          %7685 = vmatpush1.msra.mxu0 %v7629
          %7686 = vmatprep.subr.mxu0 0.0
          %7687 = vmatpush1.msra.mxu0 %v7630
          %7688 = vmatprep.subr.mxu0 0.0
          %7689 = vmatpush1.msra.mxu0 %v7631
          %7690 = vmatprep.subr.mxu0 0.0
          %7691 = vmatpush1.msra.mxu0 %v7632
          %7692 = vmatprep.subr.mxu0 0.0
          %7693 = vmatpush1.msra.mxu0 %v7633
          %7694 = vmatprep.subr.mxu0 0.0
          %7695 = vmatpush1.msra.mxu0 %v7634
          %7696 = vmatprep.subr.mxu0 0.0
          %7697 = vmatpush1.msra.mxu0 %v7635
          %7698 = vmatprep.subr.mxu0 0.0
          %7699 = vmatpush1.msra.mxu0 %v7636
          %7700 = vmatprep.subr.mxu0 0.0
          %7701 = vmatpush1.msra.mxu0 %v7637
          %7702 = vmatprep.subr.mxu0 0.0
          %7703 = vmatpush1.msra.mxu0 %v7638
          %7704 = vmatprep.subr.mxu0 0.0
          %7705 = vmatpush1.msra.mxu0 %v7639
          %7706 = vmatprep.subr.mxu0 0.0
          %7707 = vmatpush1.msra.mxu0 %v7640
          %7708 = vmatprep.subr.mxu0 0.0
          %7709 = vmatpush1.msra.mxu0 0.0
          %7710 = vmatprep.subr.mxu0 0.0
          %7711 = vmatpush1.msra.mxu0 0.0
          %7712 = vmatprep.subr.mxu0 0.0
          %7713 = vmatpush1.msra.mxu0 0.0
          %7714 = vmatprep.subr.mxu0 0.0
          %7715 = vmatpush1.msra.mxu0 0.0
          %7716 = vmatprep.subr.mxu0 0.0
          %7717 = vmatpush1.msra.mxu0 0.0
          %7718 = vmatprep.subr.mxu0 0.0
          %7719 = vmatpush1.msra.mxu0 0.0
          %7720 = vmatprep.subr.mxu0 0.0
          %7721 = vmatpush1.msra.mxu0 0.0
          %7722 = vmatprep.subr.mxu0 0.0
          %7723 = vmatpush1.msra.mxu0 0.0
          %7724 = vmatprep.subr.mxu0 0.0
          %7725 = vmatpush1.msra.mxu0 0.0
          %7726 = vmatprep.subr.mxu0 0.0
          %7727 = vmatpush1.msra.mxu0 0.0
          %7728 = vmatprep.subr.mxu0 0.0
          %7729 = vmatpush1.msra.mxu0 0.0
          %7730 = vmatprep.subr.mxu0 0.0
          %7731 = vmatpush1.msra.mxu0 0.0
          %7732 = vmatprep.subr.mxu0 0.0
          %7733 = vmatpush1.msra.mxu0 0.0
          %7734 = vmatprep.subr.mxu0 0.0
          %7735 = vmatpush1.msra.mxu0 0.0
          %7736 = vmatprep.subr.mxu0 0.0
          %7737 = vmatpush1.msra.mxu0 0.0
          %7738 = vmatprep.subr.mxu0 0.0
          %7739 = vmatpush1.msra.mxu0 0.0
          %7740 = vmatprep.mubr.f32.mxu0 0.0
          %7741 = vmatmul.mubr.f32.gmra.mrb[0].mxu0 %v7674
          %v7742 = vpop.f32.mrb[0].mxu0
          %v7743 = vadd.f32 0.0, %v7742
          %v7744 = vpop.f32.mrb[0].mxu0
          %7745 = vmatprep.mubr.f32.mxu0 0.0
          %7746 = vmatmul.mubr.f32.gmra.mrb[0].mxu0 %v7675
          %v7747 = vpop.f32.mrb[0].mxu0
          %v7748 = vadd.f32 0.0, %v7747
          %v7749 = vpop.f32.mrb[0].mxu0
          %7750 = vdwg.mxu0
          %v7751 = vld [vmem:[%s1] sm:$0xff]
          %v7752 = vld [vmem:[%s1 + $0x8] sm:$0xff]
          %v7753 = vld [vmem:[%s4] sm:$0x1]
          %v7755 = vlaneseq
          %v7756 = vshrl.u32 %v7755, 7
          %v7757 = vsub.s32 0, %v7756
          %v7758 = vrot.slane %v7753, %v7757
          %v7761 = vsel %vm1322, %v7743, 0
          %v7764 = vsel %vm1322, %v7748, 0
          %v7767 = vsel %vm1322, %v7751, 0
          %v7770 = vsel %vm1322, %v7752, 0
          %7772 = vmatprep.subr.mxu0 0.0
          %7773 = vmatpush1.xpose.msra.mxu0 %v7767
          %7774 = vmatprep.subr.mxu0 0.0
          %7775 = vmatpush1.xpose.msra.mxu0 %v7770
          %7776 = vmatprep.subr.mxu0 0.0
          %7777 = vmatpush1.xpose.msra.mxu0 0.0
          %7778 = vmatprep.subr.mxu0 0.0
          %7779 = vmatpush1.xpose.msra.mxu0 0.0
          %7780 = vmatprep.subr.mxu0 0.0
          %7781 = vmatpush1.xpose.msra.mxu0 0.0
          %7782 = vmatprep.subr.mxu0 0.0
          %7783 = vmatpush1.xpose.msra.mxu0 0.0
          %7784 = vmatprep.subr.mxu0 0.0
          %7785 = vmatpush1.xpose.msra.mxu0 0.0
          %7786 = vmatprep.subr.mxu0 0.0
          %7787 = vmatpush1.xpose.msra.mxu0 0.0
          %7788 = vmatprep.subr.mxu0 0.0
          %7789 = vmatpush1.xpose.msra.mxu0 0.0
          %7790 = vmatprep.subr.mxu0 0.0
          %7791 = vmatpush1.xpose.msra.mxu0 0.0
          %7792 = vmatprep.subr.mxu0 0.0
          %7793 = vmatpush1.xpose.msra.mxu0 0.0
          %7794 = vmatprep.subr.mxu0 0.0
          %7795 = vmatpush1.xpose.msra.mxu0 0.0
          %7796 = vmatprep.subr.mxu0 0.0
          %7797 = vmatpush1.xpose.msra.mxu0 0.0
          %7798 = vmatprep.subr.mxu0 0.0
          %7799 = vmatpush1.xpose.msra.mxu0 0.0
          %7800 = vmatprep.subr.mxu0 0.0
          %7801 = vmatpush1.xpose.msra.mxu0 0.0
          %7802 = vmatprep.subr.mxu0 0.0
          %7803 = vmatpush1.xpose.msra.mxu0 0.0
          %7804 = vmatprep.subr.mxu0 0.0
          %7805 = vmatpush1.xpose.msra.mxu0 0.0
          %7806 = vmatprep.subr.mxu0 0.0
          %7807 = vmatpush1.xpose.msra.mxu0 0.0
          %7808 = vmatprep.subr.mxu0 0.0
          %7809 = vmatpush1.xpose.msra.mxu0 0.0
          %7810 = vmatprep.subr.mxu0 0.0
          %7811 = vmatpush1.xpose.msra.mxu0 0.0
          %7812 = vmatprep.subr.mxu0 0.0
          %7813 = vmatpush1.xpose.msra.mxu0 0.0
          %7814 = vmatprep.subr.mxu0 0.0
          %7815 = vmatpush1.xpose.msra.mxu0 0.0
          %7816 = vmatprep.subr.mxu0 0.0
          %7817 = vmatpush1.xpose.msra.mxu0 0.0
          %7818 = vmatprep.subr.mxu0 0.0
          %7819 = vmatpush1.xpose.msra.mxu0 0.0
          %7820 = vmatprep.subr.mxu0 0.0
          %7821 = vmatpush1.xpose.msra.mxu0 0.0
          %7822 = vmatprep.subr.mxu0 0.0
          %7823 = vmatpush1.xpose.msra.mxu0 0.0
          %7824 = vmatprep.subr.mxu0 0.0
          %7825 = vmatpush1.xpose.msra.mxu0 0.0
          %7826 = vmatprep.subr.mxu0 0.0
          %7827 = vmatpush1.xpose.msra.mxu0 0.0
          %7828 = vmatprep.subr.mxu0 0.0
          %7829 = vmatpush1.xpose.msra.mxu0 0.0
          %7830 = vmatprep.subr.mxu0 0.0
          %7831 = vmatpush1.xpose.msra.mxu0 0.0
          %7832 = vmatprep.subr.mxu0 0.0
          %7833 = vmatpush1.xpose.msra.mxu0 0.0
          %7834 = vmatprep.subr.mxu0 0.0
          %7835 = vmatpush1.xpose.msra.mxu0 0.0
          %7836 = vmatprep.mubr.f32.mxu0 0.0
          %7837 = vmatmul.mubr.f32.gmra.mrb[0].mxu0 %v7761
          %v7838 = vpop.f32.mrb[0].mxu0
          %v7839 = vadd.f32 %v7758, %v7838
          %v7840 = vpop.f32.mrb[0].mxu0
          %7841 = vmatprep.mubr.f32.mxu0 0.0
          %7842 = vmatmul.mubr.f32.gmra.mrb[0].mxu0 %v7764
          %v7843 = vpop.f32.mrb[0].mxu0
          %v7844 = vadd.f32 %v7758, %v7843
          %v7845 = vpop.f32.mrb[0].mxu0
          %7846 = vdwg.mxu0
          %vm7847 = vcmask 130048
          %v7848 = vsel %vm7847, %v7839, -inf
          %7849 = vmax.xlane.f32.xlu0 %v7848
          %v7850 = vpop.xlane.xlu0 %7849
          %v7851 = vsel %vm7847, %v7844, -inf
          %7852 = vmax.xlane.f32.xlu0 %v7851
          %v7853 = vpop.xlane.xlu0 %7852
          %v7854 = vsub.f32 %v7839, %v7850
          %v7855 = vsub.f32 %v7844, %v7853
          %v7856 = vmul.f32 %v7854, 1.442695
          %v7857 = vpow.pop %v7856
          %v7858 = vmul.f32 %v7855, 1.442695
          %v7859 = vpow.pop %v7858
          %v7860 = vsel %vm7847, %v7857, 0.0
          %7861 = vadd.xlane.f32.xlu0 %v7860
          %v7862 = vpop.xlane.xlu0 %7861
          %v7863 = vsel %vm7847, %v7859, 0.0
          %7864 = vadd.xlane.f32.xlu0 %v7863
          %v7865 = vpop.xlane.xlu0 %7864
          %v7866 = vlog2.pop %v7862
          %v7867 = vmul.f32 %v7866, 0.6931472
          %v7868 = vlog2.pop %v7865
          %v7869 = vmul.f32 %v7868, 0.6931472
          %v7870 = vsub.f32 %v7854, %v7867
          %v7871 = vsub.f32 %v7855, %v7869
          %7872 = vst.msk [vmem:[#allocation3] sm:$0xff] %vm7847, %v7870
          %7873 = vst.msk [vmem:[#allocation3 + $0x8] sm:$0xff] %vm7847, %v7871
        $region112: #{flownet_forward.1} parent=103 // pred_fallthru
          _
        // Predicated region
        $region113: #{flownet_forward.1} parent=103 // pred_check
          %p7874 = pneg %p567
        $region114: #{flownet_forward.1} parent=103 // pred_check_branch
          %7876 = sbr.rel (%p7874) target = $region116
        $region115: #{flownet_forward.1} parent=103 // pred_region
          %s7878 = ssub.s32 256, 256
          %7879 = vsyncadd [#allocation4], %s7878
          %s7880 = sshll.u32 [#allocation3], 4
          %s7881 = int_to_ptr.vmem [resolvable:$true] %s7880
          %7886 = dma.vmem_to_hbm [thread:$0]  %s7881, 256, %s21, [#allocation4], 128, 128, 8
        $region116: #{flownet_forward.1} parent=103 // pred_fallthru
          _
        // Predicated region
        $region117: #{flownet_forward.1} parent=103 // pred_check
          %p7887 = pneg %p567
        $region118: #{flownet_forward.1} parent=103 // pred_check_branch
          %7889 = sbr.rel (%p7887) target = $region120
        $region119: #{flownet_forward.1} parent=103 // pred_region
          %7890 = dma.done [#allocation4], 256
        $region120: #{flownet_forward.1} parent=103 // pred_fallthru
          _
      $region104: #{flownet_forward.1} parent=5 // pred_fallthru
        _
      %p7891 = scmp.le.s32.totalorder 2, %s28
      // Predicated region
      $region121: #{flownet_forward.1} parent=5 // pred_check
        %p7892 = pneg %p7891
      $region122: #{flownet_forward.1} parent=5 // pred_check_branch
        %7894 = sbr.rel (%p7892) target = $region124
      $region123: #{flownet_forward.1} parent=5 // pred_region
        %s7895 = ssub.s32 %s28, 2
      $region124: #{flownet_forward.1} parent=5 // pred_fallthru
        _
    $region6: #{flownet_forward.1} parent=1 // loop_footer
      %s32 = sadd.s32 1, %s28
    $region7: #{flownet_forward.1} parent=1 // loop_footer_branch
      %27 = sbr.rel target = $region3
    $region8: #{flownet_forward.1} parent=1 // loop_exit
      _
    %7896 = vsyncpa [#allocation4], 1
    %s7897 = scalar_lea.sflag [#allocation4], 1
    %7898 = vsyncpa %s7897, 1

</llo_original>
